<compile_context>
chip_gen: v6e
topology: v6e:2x2x1
jax: 0.10.0
libtpu: 0.0.40
codegen_flags: <defaults>
</compile_context>

<pallas_src>
import numpy as np

import jax
import jax.numpy as jnp
from jax.experimental import pallas as pl
from jax.experimental.pallas import tpu as pltpu


# ----------------------------------------------------------------------------
# Fused LeNet5 kernel: one grid step == one batch tile of Bt images.
# ----------------------------------------------------------------------------

def _lenet5_kernel(x_ref, w1_ref, b1_ref, p1_ref, w2_ref, b2_ref, p2_ref,
                   w3_ref, b3_ref, fw1_ref, fb1_ref, fw2_ref, fb2_ref,
                   logits_ref, a1_ref, a2_ref):
    f32 = jnp.float32

    # ---- conv1 (1->6, k5, 32x32 -> 28x28, tanh) + 2x2 avg-pool -> 14x14 -----
    w1 = w1_ref[...]          # (160, 168)  width-Toeplitz conv1 weights
    b1 = b1_ref[...]          # (1, 168)    bias tiled over the 28 output cols
    p1 = p1_ref[...]          # (168, 128)  0.25-weighted W-pool (cols>=84 zero)

    def conv1_row(oh):
        # The 5 input rows feeding conv output row `oh`, concatenated on lanes.
        v = jnp.concatenate([x_ref[:, oh + ki, :] for ki in range(5)], axis=-1)
        return jnp.tanh(jnp.dot(v, w1, preferred_element_type=f32) + b1)  # (Bt,168)

    for p in range(14):                               # fully unrolled
        r = conv1_row(2 * p) + conv1_row(2 * p + 1)   # H-pool: add adjacent rows
        a1_ref[p] = jnp.dot(r, p1, preferred_element_type=f32)   # (Bt,128)

    # ---- conv2 (6->16, k5, 14x14 -> 10x10, tanh) + 2x2 avg-pool -> 5x5 ------
    w2 = w2_ref[...]          # (640, 160)
    b2 = b2_ref[...]          # (1, 160)
    p2 = p2_ref[...]          # (160, 128)

    def conv2_row(oh):
        rows = jnp.concatenate([a1_ref[oh + ki] for ki in range(5)], axis=-1)  # (Bt,640)
        return jnp.tanh(jnp.dot(rows, w2, preferred_element_type=f32) + b2)    # (Bt,160)

    for p in range(5):                                # fully unrolled
        r = conv2_row(2 * p) + conv2_row(2 * p + 1)
        a2_ref[p] = jnp.dot(r, p2, preferred_element_type=f32)   # (Bt,128)

    # ---- conv3 (16->120, k5, 5x5 -> 1x1, tanh): single matmul over 400 taps -
    feat_in = jnp.concatenate([a2_ref[h] for h in range(5)], axis=-1)          # (Bt,640)
    feat = jnp.tanh(jnp.dot(feat_in, w3_ref[...], preferred_element_type=f32)
                    + b3_ref[...])                                             # (Bt,128)

    # ---- classifier: fc1 + tanh + fc2 (128-lane padded); softmax in wrapper -
    h = jnp.tanh(jnp.dot(feat, fw1_ref[...], preferred_element_type=f32)
                 + fb1_ref[...])                                               # (Bt,128)
    logits_ref[...] = (jnp.dot(h, fw2_ref[...], preferred_element_type=f32)
                       + fb2_ref[...])                                         # (Bt,128)


# ----------------------------------------------------------------------------
# Wrapper-side weight relayout (Toeplitz conv matrices, pooling matrices, pads)
# ----------------------------------------------------------------------------

def _band_index(in_len, out_len, k):
    """Clipped (in - out) diagonal index and validity mask (numpy constants)."""
    d = np.arange(in_len)[:, None] - np.arange(out_len)[None, :]
    mask = ((d >= 0) & (d < k)).astype(np.float32)
    return np.clip(d, 0, k - 1), mask


def _conv1_toeplitz(w1):
    """(6,1,5,5) -> (160,168): rows = (ki, u<32), cols = (ow<28, c<6)."""
    w1t = jnp.transpose(w1, (2, 3, 1, 0)).reshape(5, 5, 6)        # (ki, kj, c)
    d, m = _band_index(32, 28, 5)
    blocks = [(w1t[ki][d] * m[..., None]).reshape(32, 28 * 6) for ki in range(5)]
    return jnp.concatenate(blocks, axis=0).astype(jnp.float32)


def _conv2_toeplitz(w2):
    """(16,6,5,5) -> (640,160): rows=(ki, w<14, ic<6 | pad 128), cols=(ow<10, oc<16)."""
    w2t = jnp.transpose(w2, (2, 3, 1, 0))                         # (ki, kj, ic, oc)
    d, m = _band_index(14, 10, 5)
    out = jnp.zeros((640, 160), jnp.float32)
    for ki in range(5):
        t = w2t[ki][d] * m[..., None, None]                       # (w, ow, ic, oc)
        t = jnp.transpose(t, (0, 2, 1, 3)).reshape(14 * 6, 10 * 16)
        out = out.at[ki * 128:ki * 128 + 84, :].set(t)
    return out


def _conv3_matrix(w3):
    """(120,16,5,5) -> (640,128): rows=(h, w<5, ic<16 | pad 128), cols=(oc<120 | pad)."""
    w3t = jnp.transpose(w3, (2, 3, 1, 0))                         # (h, w, ic, oc)
    out = jnp.zeros((640, 128), jnp.float32)
    for h in range(5):
        out = out.at[h * 128:h * 128 + 80, :120].set(w3t[h].reshape(80, 120))
    return out


def _pool_matrix(n_out, c, width):
    """Constant (2*n_out*c, width) matrix: 0.25*(x[2i]+x[2i+1]) per channel."""
    m = np.zeros((2 * n_out * c, width), np.float32)
    for o in range(n_out):
        for ch in range(c):
            m[(2 * o) * c + ch, o * c + ch] = 0.25
            m[(2 * o + 1) * c + ch, o * c + ch] = 0.25
    return jnp.asarray(m)


def _pad2(a, shape):
    out = jnp.zeros(shape, jnp.float32)
    return out.at[:a.shape[0], :a.shape[1]].set(a.astype(jnp.float32))


# ----------------------------------------------------------------------------
# Wrapper: single pallas_call, gridded over batch tiles
# ----------------------------------------------------------------------------

def lenet5_forward(params, x, *, block_b=8):
    """x: (B, 1, 32, 32) NCHW float32. Returns (logits, probs), each (B, NC)."""
    b = x.shape[0]
    n_classes = params["fw2"].shape[1]

    # Drop the C=1 channel dim so W=32 maps to lanes.
    x = x.astype(jnp.float32).reshape(b, 32, 32)
    bp = ((b + block_b - 1) // block_b) * block_b
    if bp != b:
        x = jnp.pad(x, ((0, bp - b), (0, 0), (0, 0)))
    n_tiles = bp // block_b

    # Precomputed, VMEM-resident weight / pooling matrices.
    w1 = _conv1_toeplitz(params["w1"])                                    # (160,168)
    b1b = jnp.tile(params["b1"].astype(jnp.float32).reshape(1, 1, 6),
                   (1, 28, 1)).reshape(1, 168)
    p1 = _pool_matrix(14, 6, 128)                                         # (168,128)

    w2 = _conv2_toeplitz(params["w2"])                                    # (640,160)
    b2b = jnp.tile(params["b2"].astype(jnp.float32).reshape(1, 1, 16),
                   (1, 10, 1)).reshape(1, 160)
    p2 = _pool_matrix(5, 16, 128)                                         # (160,128)

    w3 = _conv3_matrix(params["w3"])                                      # (640,128)
    b3p = jnp.zeros((1, 128), jnp.float32).at[0, :120].set(params["b3"])

    fw1 = _pad2(params["fw1"], (128, 128))
    fb1p = jnp.zeros((1, 128), jnp.float32).at[0, :84].set(params["fb1"])
    fw2 = _pad2(params["fw2"], (128, 128))
    fb2p = jnp.zeros((1, 128), jnp.float32).at[0, :n_classes].set(params["fb2"])

    def wspec(shape):
        # Full-array block, same block index every grid step -> loaded to VMEM
        # once and resident across the batch grid.
        return pl.BlockSpec(shape, lambda i: (0,) * len(shape))

    logits_pad = pl.pallas_call(
        _lenet5_kernel,
        out_shape=jax.ShapeDtypeStruct((bp, 128), jnp.float32),
        grid_spec=pltpu.PrefetchScalarGridSpec(
            num_scalar_prefetch=0,
            grid=(n_tiles,),
            in_specs=[
                pl.BlockSpec((block_b, 32, 32), lambda i: (i, 0, 0)),     # images
                wspec((160, 168)), wspec((1, 168)), wspec((168, 128)),    # conv1+pool1
                wspec((640, 160)), wspec((1, 160)), wspec((160, 128)),    # conv2+pool2
                wspec((640, 128)), wspec((1, 128)),                       # conv3
                wspec((128, 128)), wspec((1, 128)),                       # fc1
                wspec((128, 128)), wspec((1, 128)),                       # fc2
            ],
            out_specs=pl.BlockSpec((block_b, 128), lambda i: (i, 0)),
            scratch_shapes=[
                pltpu.VMEM((14, block_b, 128), jnp.float32),   # pooled conv1 rows
                pltpu.VMEM((5, block_b, 128), jnp.float32),    # pooled conv2 rows
            ],
        ),
        compiler_params=pltpu.CompilerParams(
            dimension_semantics=("parallel",),        # batch tiles across TCs (v7x)
            vmem_limit_bytes=32 * 1024 * 1024,
        ),
    )(x, w1, b1b, p1, w2, b2b, p2, w3, b3p, fw1, fb1p, fw2, fb2p)

    logits = logits_pad[:b, :n_classes]
    probs = jax.nn.softmax(logits, axis=-1)           # exact softmax in the wrapper
    return logits, probs


# ----------------------------------------------------------------------------
# Pure-JAX reference (for correctness checking only)
# ----------------------------------------------------------------------------

def lenet5_reference(params, x):
    hp = jax.lax.Precision.HIGHEST

    def conv(y, w, bias):
        out = jax.lax.conv_general_dilated(
            y, w, window_strides=(1, 1), padding="VALID",
            dimension_numbers=("NCHW", "OIHW", "NCHW"), precision=hp)
        return jnp.tanh(out + bias.reshape(1, -1, 1, 1))

    def avgpool(y):
        return 0.25 * (y[:, :, 0::2, 0::2] + y[:, :, 0::2, 1::2]
                       + y[:, :, 1::2, 0::2] + y[:, :, 1::2, 1::2])

    y = avgpool(conv(x, params["w1"], params["b1"]))
    y = avgpool(conv(y, params["w2"], params["b2"]))
    y = conv(y, params["w3"], params["b3"])
    feat = y.reshape(y.shape[0], -1)                               # (B, 120)
    h = jnp.tanh(jnp.dot(feat, params["fw1"], precision=hp) + params["fb1"])
    logits = jnp.dot(h, params["fw2"], precision=hp) + params["fb2"]
    probs = jax.nn.softmax(logits, axis=-1)
    return logits, probs


# ----------------------------------------------------------------------------
# Params
# ----------------------------------------------------------------------------

def init_params(key, n_classes):
    """Deterministic init, PyTorch-style uniform(+-1/sqrt(fan_in))."""
    def uinit(key, shape, fan_in):
        bound = 1.0 / jnp.sqrt(fan_in)
        return jax.random.uniform(key, shape, jnp.float32, -bound, bound)

    keys = jax.random.split(key, 10)
    p = {}
    p["w1"] = uinit(keys[0], (6, 1, 5, 5), 1 * 5 * 5)
    p["b1"] = uinit(keys[1], (6,), 1 * 5 * 5)
    p["w2"] = uinit(keys[2], (16, 6, 5, 5), 6 * 5 * 5)
    p["b2"] = uinit(keys[3], (16,), 6 * 5 * 5)
    p["w3"] = uinit(keys[4], (120, 16, 5, 5), 16 * 5 * 5)
    p["b3"] = uinit(keys[5], (120,), 16 * 5 * 5)
    p["fw1"] = uinit(keys[6], (120, 84), 120)
    p["fb1"] = uinit(keys[7], (84,), 120)
    p["fw2"] = uinit(keys[8], (84, n_classes), 84)
    p["fb2"] = uinit(keys[9], (n_classes,), 84)
    return p


if __name__ == "__main__":
    n_classes = 10
    batch = 16          # two grid steps of 8 images (even grid length for v7x)

    key = jax.random.PRNGKey(0)
    k_params, k_x = jax.random.split(key)
    params = init_params(k_params, n_classes)

    # LeNet5 requires 32x32 single-channel input (so conv3 yields 1x1x120).
    x = jax.random.normal(k_x, (batch, 1, 32, 32), dtype=jnp.float32)

    logits, probs = jax.jit(lenet5_forward)(params, x)
    jax.block_until_ready((logits, probs))

    ref_logits, ref_probs = jax.jit(lenet5_reference)(params, x)
    jax.block_until_ready((ref_logits, ref_probs))

    assert logits.shape == (batch, n_classes)
    assert probs.shape == (batch, n_classes)
    assert jnp.allclose(jnp.sum(probs, axis=1), 1.0, atol=1e-3)
    assert jnp.allclose(logits, ref_logits, atol=2e-2, rtol=2e-2)
    assert jnp.allclose(probs, ref_probs, atol=2e-2, rtol=2e-2)
    print("KERNEL_OK")
</pallas_src>

<mosaic_0001>
module attributes {stable_mosaic.version = 11 : i64} {
  func.func @_lenet5_kernel(%arg0: i32, %arg1: memref<8x32x32xf32, #tpu.memory_space<vmem>>, %arg2: memref<160x168xf32, #tpu.memory_space<vmem>>, %arg3: memref<1x168xf32, #tpu.memory_space<vmem>>, %arg4: memref<168x128xf32, #tpu.memory_space<vmem>>, %arg5: memref<640x160xf32, #tpu.memory_space<vmem>>, %arg6: memref<1x160xf32, #tpu.memory_space<vmem>>, %arg7: memref<160x128xf32, #tpu.memory_space<vmem>>, %arg8: memref<640x128xf32, #tpu.memory_space<vmem>>, %arg9: memref<1x128xf32, #tpu.memory_space<vmem>>, %arg10: memref<128x128xf32, #tpu.memory_space<vmem>>, %arg11: memref<1x128xf32, #tpu.memory_space<vmem>>, %arg12: memref<128x128xf32, #tpu.memory_space<vmem>>, %arg13: memref<1x128xf32, #tpu.memory_space<vmem>>, %arg14: memref<8x128xf32, #tpu.memory_space<vmem>>, %arg15: memref<14x8x128xf32, #tpu.memory_space<vmem>>, %arg16: memref<5x8x128xf32, #tpu.memory_space<vmem>>) attributes {dimension_semantics = [#tpu.dimension_semantics<parallel>], iteration_bounds = array<i64: 2>, scalar_prefetch = 0 : i64, scratch_operands = 2 : i64, tpu.core_type = #tpu.core_type<tc>, window_params = [{transform_indices = @transform_0, window_bounds = array<i64: 8, 32, 32>}, {pipeline_mode = #tpu.pipeline_mode<synchronous>, transform_indices = @transform_1, window_bounds = array<i64: 160, 168>}, {pipeline_mode = #tpu.pipeline_mode<synchronous>, transform_indices = @transform_2, window_bounds = array<i64: 1, 168>}, {pipeline_mode = #tpu.pipeline_mode<synchronous>, transform_indices = @transform_3, window_bounds = array<i64: 168, 128>}, {pipeline_mode = #tpu.pipeline_mode<synchronous>, transform_indices = @transform_4, window_bounds = array<i64: 640, 160>}, {pipeline_mode = #tpu.pipeline_mode<synchronous>, transform_indices = @transform_5, window_bounds = array<i64: 1, 160>}, {pipeline_mode = #tpu.pipeline_mode<synchronous>, transform_indices = @transform_6, window_bounds = array<i64: 160, 128>}, {pipeline_mode = #tpu.pipeline_mode<synchronous>, transform_indices = @transform_7, window_bounds = array<i64: 640, 128>}, {pipeline_mode = #tpu.pipeline_mode<synchronous>, transform_indices = @transform_8, window_bounds = array<i64: 1, 128>}, {pipeline_mode = #tpu.pipeline_mode<synchronous>, transform_indices = @transform_9, window_bounds = array<i64: 128, 128>}, {pipeline_mode = #tpu.pipeline_mode<synchronous>, transform_indices = @transform_10, window_bounds = array<i64: 1, 128>}, {pipeline_mode = #tpu.pipeline_mode<synchronous>, transform_indices = @transform_11, window_bounds = array<i64: 128, 128>}, {pipeline_mode = #tpu.pipeline_mode<synchronous>, transform_indices = @transform_12, window_bounds = array<i64: 1, 128>}, {transform_indices = @transform_13, window_bounds = array<i64: 8, 128>}]} {
    %c0 = arith.constant 0 : index
    %c0_0 = arith.constant 0 : index
    %0 = vector.load %arg2[%c0, %c0_0] : memref<160x168xf32, #tpu.memory_space<vmem>>, vector<160x168xf32>
    %c0_1 = arith.constant 0 : index
    %c0_2 = arith.constant 0 : index
    %1 = vector.load %arg3[%c0_1, %c0_2] : memref<1x168xf32, #tpu.memory_space<vmem>>, vector<1x168xf32>
    %c0_3 = arith.constant 0 : index
    %c0_4 = arith.constant 0 : index
    %2 = vector.load %arg4[%c0_3, %c0_4] : memref<168x128xf32, #tpu.memory_space<vmem>>, vector<168x128xf32>
    %c0_5 = arith.constant 0 : index
    %c0_6 = arith.constant 0 : index
    %c0_7 = arith.constant 0 : index
    %3 = vector.load %arg1[%c0_5, %c0_6, %c0_7] : memref<8x32x32xf32, #tpu.memory_space<vmem>>, vector<8x1x32xf32>
    %4 = vector.shape_cast %3 : vector<8x1x32xf32> to vector<8x32xf32>
    %c0_8 = arith.constant 0 : index
    %c1 = arith.constant 1 : index
    %c0_9 = arith.constant 0 : index
    %5 = vector.load %arg1[%c0_8, %c1, %c0_9] : memref<8x32x32xf32, #tpu.memory_space<vmem>>, vector<8x1x32xf32>
    %6 = vector.shape_cast %5 : vector<8x1x32xf32> to vector<8x32xf32>
    %c0_10 = arith.constant 0 : index
    %c2 = arith.constant 2 : index
    %c0_11 = arith.constant 0 : index
    %7 = vector.load %arg1[%c0_10, %c2, %c0_11] : memref<8x32x32xf32, #tpu.memory_space<vmem>>, vector<8x1x32xf32>
    %8 = vector.shape_cast %7 : vector<8x1x32xf32> to vector<8x32xf32>
    %c0_12 = arith.constant 0 : index
    %c3 = arith.constant 3 : index
    %c0_13 = arith.constant 0 : index
    %9 = vector.load %arg1[%c0_12, %c3, %c0_13] : memref<8x32x32xf32, #tpu.memory_space<vmem>>, vector<8x1x32xf32>
    %10 = vector.shape_cast %9 : vector<8x1x32xf32> to vector<8x32xf32>
    %c0_14 = arith.constant 0 : index
    %c4 = arith.constant 4 : index
    %c0_15 = arith.constant 0 : index
    %11 = vector.load %arg1[%c0_14, %c4, %c0_15] : memref<8x32x32xf32, #tpu.memory_space<vmem>>, vector<8x1x32xf32>
    %12 = vector.shape_cast %11 : vector<8x1x32xf32> to vector<8x32xf32>
    %13 = tpu.concatenate %4, %6, %8, %10, %12 in 1 : vector<8x32xf32>, vector<8x32xf32>, vector<8x32xf32>, vector<8x32xf32>, vector<8x32xf32> -> vector<8x160xf32>
    %cst = arith.constant dense<0.000000e+00> : vector<8x168xf32>
    %14 = tpu.matmul %13, %0, %cst {dimension_numbers = #tpu.dot_dimension_numbers<[1], [0], [0], [1], [0, 0, 1, 1], [], []>} : vector<8x160xf32>, vector<160x168xf32>, vector<8x168xf32> -> vector<8x168xf32>
    %15 = vector.broadcast %1 : vector<1x168xf32> to vector<8x168xf32>
    %16 = arith.addf %14, %15 : vector<8x168xf32>
    %17 = math.tanh %16 : vector<8x168xf32>
    %c0_16 = arith.constant 0 : index
    %c1_17 = arith.constant 1 : index
    %c0_18 = arith.constant 0 : index
    %18 = vector.load %arg1[%c0_16, %c1_17, %c0_18] : memref<8x32x32xf32, #tpu.memory_space<vmem>>, vector<8x1x32xf32>
    %19 = vector.shape_cast %18 : vector<8x1x32xf32> to vector<8x32xf32>
    %c0_19 = arith.constant 0 : index
    %c2_20 = arith.constant 2 : index
    %c0_21 = arith.constant 0 : index
    %20 = vector.load %arg1[%c0_19, %c2_20, %c0_21] : memref<8x32x32xf32, #tpu.memory_space<vmem>>, vector<8x1x32xf32>
    %21 = vector.shape_cast %20 : vector<8x1x32xf32> to vector<8x32xf32>
    %c0_22 = arith.constant 0 : index
    %c3_23 = arith.constant 3 : index
    %c0_24 = arith.constant 0 : index
    %22 = vector.load %arg1[%c0_22, %c3_23, %c0_24] : memref<8x32x32xf32, #tpu.memory_space<vmem>>, vector<8x1x32xf32>
    %23 = vector.shape_cast %22 : vector<8x1x32xf32> to vector<8x32xf32>
    %c0_25 = arith.constant 0 : index
    %c4_26 = arith.constant 4 : index
    %c0_27 = arith.constant 0 : index
    %24 = vector.load %arg1[%c0_25, %c4_26, %c0_27] : memref<8x32x32xf32, #tpu.memory_space<vmem>>, vector<8x1x32xf32>
    %25 = vector.shape_cast %24 : vector<8x1x32xf32> to vector<8x32xf32>
    %c0_28 = arith.constant 0 : index
    %c5 = arith.constant 5 : index
    %c0_29 = arith.constant 0 : index
    %26 = vector.load %arg1[%c0_28, %c5, %c0_29] : memref<8x32x32xf32, #tpu.memory_space<vmem>>, vector<8x1x32xf32>
    %27 = vector.shape_cast %26 : vector<8x1x32xf32> to vector<8x32xf32>
    %28 = tpu.concatenate %19, %21, %23, %25, %27 in 1 : vector<8x32xf32>, vector<8x32xf32>, vector<8x32xf32>, vector<8x32xf32>, vector<8x32xf32> -> vector<8x160xf32>
    %cst_30 = arith.constant dense<0.000000e+00> : vector<8x168xf32>
    %29 = tpu.matmul %28, %0, %cst_30 {dimension_numbers = #tpu.dot_dimension_numbers<[1], [0], [0], [1], [0, 0, 1, 1], [], []>} : vector<8x160xf32>, vector<160x168xf32>, vector<8x168xf32> -> vector<8x168xf32>
    %30 = vector.broadcast %1 : vector<1x168xf32> to vector<8x168xf32>
    %31 = arith.addf %29, %30 : vector<8x168xf32>
    %32 = math.tanh %31 : vector<8x168xf32>
    %33 = arith.addf %17, %32 : vector<8x168xf32>
    %cst_31 = arith.constant dense<0.000000e+00> : vector<8x128xf32>
    %34 = tpu.matmul %33, %2, %cst_31 {dimension_numbers = #tpu.dot_dimension_numbers<[1], [0], [0], [1], [0, 0, 1, 1], [], []>} : vector<8x168xf32>, vector<168x128xf32>, vector<8x128xf32> -> vector<8x128xf32>
    %c0_32 = arith.constant 0 : index
    %c0_33 = arith.constant 0 : index
    %c0_34 = arith.constant 0 : index
    %35 = vector.load %arg15[%c0_32, %c0_33, %c0_34] : memref<14x8x128xf32, #tpu.memory_space<vmem>>, vector<1x8x128xf32>
    %36 = vector.shape_cast %35 : vector<1x8x128xf32> to vector<8x128xf32>
    %37 = vector.shape_cast %34 : vector<8x128xf32> to vector<1x8x128xf32>
    tpu.vector_store %arg15[%c0_32, %c0_33, %c0_34], %37 {strides = array<i32>} : memref<14x8x128xf32, #tpu.memory_space<vmem>>, vector<1x8x128xf32>,
    %c0_35 = arith.constant 0 : index
    %c2_36 = arith.constant 2 : index
    %c0_37 = arith.constant 0 : index
    %38 = vector.load %arg1[%c0_35, %c2_36, %c0_37] : memref<8x32x32xf32, #tpu.memory_space<vmem>>, vector<8x1x32xf32>
    %39 = vector.shape_cast %38 : vector<8x1x32xf32> to vector<8x32xf32>
    %c0_38 = arith.constant 0 : index
    %c3_39 = arith.constant 3 : index
    %c0_40 = arith.constant 0 : index
    %40 = vector.load %arg1[%c0_38, %c3_39, %c0_40] : memref<8x32x32xf32, #tpu.memory_space<vmem>>, vector<8x1x32xf32>
    %41 = vector.shape_cast %40 : vector<8x1x32xf32> to vector<8x32xf32>
    %c0_41 = arith.constant 0 : index
    %c4_42 = arith.constant 4 : index
    %c0_43 = arith.constant 0 : index
    %42 = vector.load %arg1[%c0_41, %c4_42, %c0_43] : memref<8x32x32xf32, #tpu.memory_space<vmem>>, vector<8x1x32xf32>
    %43 = vector.shape_cast %42 : vector<8x1x32xf32> to vector<8x32xf32>
    %c0_44 = arith.constant 0 : index
    %c5_45 = arith.constant 5 : index
    %c0_46 = arith.constant 0 : index
    %44 = vector.load %arg1[%c0_44, %c5_45, %c0_46] : memref<8x32x32xf32, #tpu.memory_space<vmem>>, vector<8x1x32xf32>
    %45 = vector.shape_cast %44 : vector<8x1x32xf32> to vector<8x32xf32>
    %c0_47 = arith.constant 0 : index
    %c6 = arith.constant 6 : index
    %c0_48 = arith.constant 0 : index
    %46 = vector.load %arg1[%c0_47, %c6, %c0_48] : memref<8x32x32xf32, #tpu.memory_space<vmem>>, vector<8x1x32xf32>
    %47 = vector.shape_cast %46 : vector<8x1x32xf32> to vector<8x32xf32>
    %48 = tpu.concatenate %39, %41, %43, %45, %47 in 1 : vector<8x32xf32>, vector<8x32xf32>, vector<8x32xf32>, vector<8x32xf32>, vector<8x32xf32> -> vector<8x160xf32>
    %cst_49 = arith.constant dense<0.000000e+00> : vector<8x168xf32>
    %49 = tpu.matmul %48, %0, %cst_49 {dimension_numbers = #tpu.dot_dimension_numbers<[1], [0], [0], [1], [0, 0, 1, 1], [], []>} : vector<8x160xf32>, vector<160x168xf32>, vector<8x168xf32> -> vector<8x168xf32>
    %50 = vector.broadcast %1 : vector<1x168xf32> to vector<8x168xf32>
    %51 = arith.addf %49, %50 : vector<8x168xf32>
    %52 = math.tanh %51 : vector<8x168xf32>
    %c0_50 = arith.constant 0 : index
    %c3_51 = arith.constant 3 : index
    %c0_52 = arith.constant 0 : index
    %53 = vector.load %arg1[%c0_50, %c3_51, %c0_52] : memref<8x32x32xf32, #tpu.memory_space<vmem>>, vector<8x1x32xf32>
    %54 = vector.shape_cast %53 : vector<8x1x32xf32> to vector<8x32xf32>
    %c0_53 = arith.constant 0 : index
    %c4_54 = arith.constant 4 : index
    %c0_55 = arith.constant 0 : index
    %55 = vector.load %arg1[%c0_53, %c4_54, %c0_55] : memref<8x32x32xf32, #tpu.memory_space<vmem>>, vector<8x1x32xf32>
    %56 = vector.shape_cast %55 : vector<8x1x32xf32> to vector<8x32xf32>
    %c0_56 = arith.constant 0 : index
    %c5_57 = arith.constant 5 : index
    %c0_58 = arith.constant 0 : index
    %57 = vector.load %arg1[%c0_56, %c5_57, %c0_58] : memref<8x32x32xf32, #tpu.memory_space<vmem>>, vector<8x1x32xf32>
    %58 = vector.shape_cast %57 : vector<8x1x32xf32> to vector<8x32xf32>
    %c0_59 = arith.constant 0 : index
    %c6_60 = arith.constant 6 : index
    %c0_61 = arith.constant 0 : index
    %59 = vector.load %arg1[%c0_59, %c6_60, %c0_61] : memref<8x32x32xf32, #tpu.memory_space<vmem>>, vector<8x1x32xf32>
    %60 = vector.shape_cast %59 : vector<8x1x32xf32> to vector<8x32xf32>
    %c0_62 = arith.constant 0 : index
    %c7 = arith.constant 7 : index
    %c0_63 = arith.constant 0 : index
    %61 = vector.load %arg1[%c0_62, %c7, %c0_63] : memref<8x32x32xf32, #tpu.memory_space<vmem>>, vector<8x1x32xf32>
    %62 = vector.shape_cast %61 : vector<8x1x32xf32> to vector<8x32xf32>
    %63 = tpu.concatenate %54, %56, %58, %60, %62 in 1 : vector<8x32xf32>, vector<8x32xf32>, vector<8x32xf32>, vector<8x32xf32>, vector<8x32xf32> -> vector<8x160xf32>
    %cst_64 = arith.constant dense<0.000000e+00> : vector<8x168xf32>
    %64 = tpu.matmul %63, %0, %cst_64 {dimension_numbers = #tpu.dot_dimension_numbers<[1], [0], [0], [1], [0, 0, 1, 1], [], []>} : vector<8x160xf32>, vector<160x168xf32>, vector<8x168xf32> -> vector<8x168xf32>
    %65 = vector.broadcast %1 : vector<1x168xf32> to vector<8x168xf32>
    %66 = arith.addf %64, %65 : vector<8x168xf32>
    %67 = math.tanh %66 : vector<8x168xf32>
    %68 = arith.addf %52, %67 : vector<8x168xf32>
    %cst_65 = arith.constant dense<0.000000e+00> : vector<8x128xf32>
    %69 = tpu.matmul %68, %2, %cst_65 {dimension_numbers = #tpu.dot_dimension_numbers<[1], [0], [0], [1], [0, 0, 1, 1], [], []>} : vector<8x168xf32>, vector<168x128xf32>, vector<8x128xf32> -> vector<8x128xf32>
    %c1_66 = arith.constant 1 : index
    %c0_67 = arith.constant 0 : index
    %c0_68 = arith.constant 0 : index
    %70 = vector.load %arg15[%c1_66, %c0_67, %c0_68] : memref<14x8x128xf32, #tpu.memory_space<vmem>>, vector<1x8x128xf32>
    %71 = vector.shape_cast %70 : vector<1x8x128xf32> to vector<8x128xf32>
    %72 = vector.shape_cast %69 : vector<8x128xf32> to vector<1x8x128xf32>
    tpu.vector_store %arg15[%c1_66, %c0_67, %c0_68], %72 {strides = array<i32>} : memref<14x8x128xf32, #tpu.memory_space<vmem>>, vector<1x8x128xf32>,
    %c0_69 = arith.constant 0 : index
    %c4_70 = arith.constant 4 : index
    %c0_71 = arith.constant 0 : index
    %73 = vector.load %arg1[%c0_69, %c4_70, %c0_71] : memref<8x32x32xf32, #tpu.memory_space<vmem>>, vector<8x1x32xf32>
    %74 = vector.shape_cast %73 : vector<8x1x32xf32> to vector<8x32xf32>
    %c0_72 = arith.constant 0 : index
    %c5_73 = arith.constant 5 : index
    %c0_74 = arith.constant 0 : index
    %75 = vector.load %arg1[%c0_72, %c5_73, %c0_74] : memref<8x32x32xf32, #tpu.memory_space<vmem>>, vector<8x1x32xf32>
    %76 = vector.shape_cast %75 : vector<8x1x32xf32> to vector<8x32xf32>
    %c0_75 = arith.constant 0 : index
    %c6_76 = arith.constant 6 : index
    %c0_77 = arith.constant 0 : index
    %77 = vector.load %arg1[%c0_75, %c6_76, %c0_77] : memref<8x32x32xf32, #tpu.memory_space<vmem>>, vector<8x1x32xf32>
    %78 = vector.shape_cast %77 : vector<8x1x32xf32> to vector<8x32xf32>
    %c0_78 = arith.constant 0 : index
    %c7_79 = arith.constant 7 : index
    %c0_80 = arith.constant 0 : index
    %79 = vector.load %arg1[%c0_78, %c7_79, %c0_80] : memref<8x32x32xf32, #tpu.memory_space<vmem>>, vector<8x1x32xf32>
    %80 = vector.shape_cast %79 : vector<8x1x32xf32> to vector<8x32xf32>
    %c0_81 = arith.constant 0 : index
    %c8 = arith.constant 8 : index
    %c0_82 = arith.constant 0 : index
    %81 = vector.load %arg1[%c0_81, %c8, %c0_82] : memref<8x32x32xf32, #tpu.memory_space<vmem>>, vector<8x1x32xf32>
    %82 = vector.shape_cast %81 : vector<8x1x32xf32> to vector<8x32xf32>
    %83 = tpu.concatenate %74, %76, %78, %80, %82 in 1 : vector<8x32xf32>, vector<8x32xf32>, vector<8x32xf32>, vector<8x32xf32>, vector<8x32xf32> -> vector<8x160xf32>
    %cst_83 = arith.constant dense<0.000000e+00> : vector<8x168xf32>
    %84 = tpu.matmul %83, %0, %cst_83 {dimension_numbers = #tpu.dot_dimension_numbers<[1], [0], [0], [1], [0, 0, 1, 1], [], []>} : vector<8x160xf32>, vector<160x168xf32>, vector<8x168xf32> -> vector<8x168xf32>
    %85 = vector.broadcast %1 : vector<1x168xf32> to vector<8x168xf32>
    %86 = arith.addf %84, %85 : vector<8x168xf32>
    %87 = math.tanh %86 : vector<8x168xf32>
    %c0_84 = arith.constant 0 : index
    %c5_85 = arith.constant 5 : index
    %c0_86 = arith.constant 0 : index
    %88 = vector.load %arg1[%c0_84, %c5_85, %c0_86] : memref<8x32x32xf32, #tpu.memory_space<vmem>>, vector<8x1x32xf32>
    %89 = vector.shape_cast %88 : vector<8x1x32xf32> to vector<8x32xf32>
    %c0_87 = arith.constant 0 : index
    %c6_88 = arith.constant 6 : index
    %c0_89 = arith.constant 0 : index
    %90 = vector.load %arg1[%c0_87, %c6_88, %c0_89] : memref<8x32x32xf32, #tpu.memory_space<vmem>>, vector<8x1x32xf32>
    %91 = vector.shape_cast %90 : vector<8x1x32xf32> to vector<8x32xf32>
    %c0_90 = arith.constant 0 : index
    %c7_91 = arith.constant 7 : index
    %c0_92 = arith.constant 0 : index
    %92 = vector.load %arg1[%c0_90, %c7_91, %c0_92] : memref<8x32x32xf32, #tpu.memory_space<vmem>>, vector<8x1x32xf32>
    %93 = vector.shape_cast %92 : vector<8x1x32xf32> to vector<8x32xf32>
    %c0_93 = arith.constant 0 : index
    %c8_94 = arith.constant 8 : index
    %c0_95 = arith.constant 0 : index
    %94 = vector.load %arg1[%c0_93, %c8_94, %c0_95] : memref<8x32x32xf32, #tpu.memory_space<vmem>>, vector<8x1x32xf32>
    %95 = vector.shape_cast %94 : vector<8x1x32xf32> to vector<8x32xf32>
    %c0_96 = arith.constant 0 : index
    %c9 = arith.constant 9 : index
    %c0_97 = arith.constant 0 : index
    %96 = vector.load %arg1[%c0_96, %c9, %c0_97] : memref<8x32x32xf32, #tpu.memory_space<vmem>>, vector<8x1x32xf32>
    %97 = vector.shape_cast %96 : vector<8x1x32xf32> to vector<8x32xf32>
    %98 = tpu.concatenate %89, %91, %93, %95, %97 in 1 : vector<8x32xf32>, vector<8x32xf32>, vector<8x32xf32>, vector<8x32xf32>, vector<8x32xf32> -> vector<8x160xf32>
    %cst_98 = arith.constant dense<0.000000e+00> : vector<8x168xf32>
    %99 = tpu.matmul %98, %0, %cst_98 {dimension_numbers = #tpu.dot_dimension_numbers<[1], [0], [0], [1], [0, 0, 1, 1], [], []>} : vector<8x160xf32>, vector<160x168xf32>, vector<8x168xf32> -> vector<8x168xf32>
    %100 = vector.broadcast %1 : vector<1x168xf32> to vector<8x168xf32>
    %101 = arith.addf %99, %100 : vector<8x168xf32>
    %102 = math.tanh %101 : vector<8x168xf32>
    %103 = arith.addf %87, %102 : vector<8x168xf32>
    %cst_99 = arith.constant dense<0.000000e+00> : vector<8x128xf32>
    %104 = tpu.matmul %103, %2, %cst_99 {dimension_numbers = #tpu.dot_dimension_numbers<[1], [0], [0], [1], [0, 0, 1, 1], [], []>} : vector<8x168xf32>, vector<168x128xf32>, vector<8x128xf32> -> vector<8x128xf32>
    %c2_100 = arith.constant 2 : index
    %c0_101 = arith.constant 0 : index
    %c0_102 = arith.constant 0 : index
    %105 = vector.load %arg15[%c2_100, %c0_101, %c0_102] : memref<14x8x128xf32, #tpu.memory_space<vmem>>, vector<1x8x128xf32>
    %106 = vector.shape_cast %105 : vector<1x8x128xf32> to vector<8x128xf32>
    %107 = vector.shape_cast %104 : vector<8x128xf32> to vector<1x8x128xf32>
    tpu.vector_store %arg15[%c2_100, %c0_101, %c0_102], %107 {strides = array<i32>} : memref<14x8x128xf32, #tpu.memory_space<vmem>>, vector<1x8x128xf32>,
    %c0_103 = arith.constant 0 : index
    %c6_104 = arith.constant 6 : index
    %c0_105 = arith.constant 0 : index
    %108 = vector.load %arg1[%c0_103, %c6_104, %c0_105] : memref<8x32x32xf32, #tpu.memory_space<vmem>>, vector<8x1x32xf32>
    %109 = vector.shape_cast %108 : vector<8x1x32xf32> to vector<8x32xf32>
    %c0_106 = arith.constant 0 : index
    %c7_107 = arith.constant 7 : index
    %c0_108 = arith.constant 0 : index
    %110 = vector.load %arg1[%c0_106, %c7_107, %c0_108] : memref<8x32x32xf32, #tpu.memory_space<vmem>>, vector<8x1x32xf32>
    %111 = vector.shape_cast %110 : vector<8x1x32xf32> to vector<8x32xf32>
    %c0_109 = arith.constant 0 : index
    %c8_110 = arith.constant 8 : index
    %c0_111 = arith.constant 0 : index
    %112 = vector.load %arg1[%c0_109, %c8_110, %c0_111] : memref<8x32x32xf32, #tpu.memory_space<vmem>>, vector<8x1x32xf32>
    %113 = vector.shape_cast %112 : vector<8x1x32xf32> to vector<8x32xf32>
    %c0_112 = arith.constant 0 : index
    %c9_113 = arith.constant 9 : index
    %c0_114 = arith.constant 0 : index
    %114 = vector.load %arg1[%c0_112, %c9_113, %c0_114] : memref<8x32x32xf32, #tpu.memory_space<vmem>>, vector<8x1x32xf32>
    %115 = vector.shape_cast %114 : vector<8x1x32xf32> to vector<8x32xf32>
    %c0_115 = arith.constant 0 : index
    %c10 = arith.constant 10 : index
    %c0_116 = arith.constant 0 : index
    %116 = vector.load %arg1[%c0_115, %c10, %c0_116] : memref<8x32x32xf32, #tpu.memory_space<vmem>>, vector<8x1x32xf32>
    %117 = vector.shape_cast %116 : vector<8x1x32xf32> to vector<8x32xf32>
    %118 = tpu.concatenate %109, %111, %113, %115, %117 in 1 : vector<8x32xf32>, vector<8x32xf32>, vector<8x32xf32>, vector<8x32xf32>, vector<8x32xf32> -> vector<8x160xf32>
    %cst_117 = arith.constant dense<0.000000e+00> : vector<8x168xf32>
    %119 = tpu.matmul %118, %0, %cst_117 {dimension_numbers = #tpu.dot_dimension_numbers<[1], [0], [0], [1], [0, 0, 1, 1], [], []>} : vector<8x160xf32>, vector<160x168xf32>, vector<8x168xf32> -> vector<8x168xf32>
    %120 = vector.broadcast %1 : vector<1x168xf32> to vector<8x168xf32>
    %121 = arith.addf %119, %120 : vector<8x168xf32>
    %122 = math.tanh %121 : vector<8x168xf32>
    %c0_118 = arith.constant 0 : index
    %c7_119 = arith.constant 7 : index
    %c0_120 = arith.constant 0 : index
    %123 = vector.load %arg1[%c0_118, %c7_119, %c0_120] : memref<8x32x32xf32, #tpu.memory_space<vmem>>, vector<8x1x32xf32>
    %124 = vector.shape_cast %123 : vector<8x1x32xf32> to vector<8x32xf32>
    %c0_121 = arith.constant 0 : index
    %c8_122 = arith.constant 8 : index
    %c0_123 = arith.constant 0 : index
    %125 = vector.load %arg1[%c0_121, %c8_122, %c0_123] : memref<8x32x32xf32, #tpu.memory_space<vmem>>, vector<8x1x32xf32>
    %126 = vector.shape_cast %125 : vector<8x1x32xf32> to vector<8x32xf32>
    %c0_124 = arith.constant 0 : index
    %c9_125 = arith.constant 9 : index
    %c0_126 = arith.constant 0 : index
    %127 = vector.load %arg1[%c0_124, %c9_125, %c0_126] : memref<8x32x32xf32, #tpu.memory_space<vmem>>, vector<8x1x32xf32>
    %128 = vector.shape_cast %127 : vector<8x1x32xf32> to vector<8x32xf32>
    %c0_127 = arith.constant 0 : index
    %c10_128 = arith.constant 10 : index
    %c0_129 = arith.constant 0 : index
    %129 = vector.load %arg1[%c0_127, %c10_128, %c0_129] : memref<8x32x32xf32, #tpu.memory_space<vmem>>, vector<8x1x32xf32>
    %130 = vector.shape_cast %129 : vector<8x1x32xf32> to vector<8x32xf32>
    %c0_130 = arith.constant 0 : index
    %c11 = arith.constant 11 : index
    %c0_131 = arith.constant 0 : index
    %131 = vector.load %arg1[%c0_130, %c11, %c0_131] : memref<8x32x32xf32, #tpu.memory_space<vmem>>, vector<8x1x32xf32>
    %132 = vector.shape_cast %131 : vector<8x1x32xf32> to vector<8x32xf32>
    %133 = tpu.concatenate %124, %126, %128, %130, %132 in 1 : vector<8x32xf32>, vector<8x32xf32>, vector<8x32xf32>, vector<8x32xf32>, vector<8x32xf32> -> vector<8x160xf32>
    %cst_132 = arith.constant dense<0.000000e+00> : vector<8x168xf32>
    %134 = tpu.matmul %133, %0, %cst_132 {dimension_numbers = #tpu.dot_dimension_numbers<[1], [0], [0], [1], [0, 0, 1, 1], [], []>} : vector<8x160xf32>, vector<160x168xf32>, vector<8x168xf32> -> vector<8x168xf32>
    %135 = vector.broadcast %1 : vector<1x168xf32> to vector<8x168xf32>
    %136 = arith.addf %134, %135 : vector<8x168xf32>
    %137 = math.tanh %136 : vector<8x168xf32>
    %138 = arith.addf %122, %137 : vector<8x168xf32>
    %cst_133 = arith.constant dense<0.000000e+00> : vector<8x128xf32>
    %139 = tpu.matmul %138, %2, %cst_133 {dimension_numbers = #tpu.dot_dimension_numbers<[1], [0], [0], [1], [0, 0, 1, 1], [], []>} : vector<8x168xf32>, vector<168x128xf32>, vector<8x128xf32> -> vector<8x128xf32>
    %c3_134 = arith.constant 3 : index
    %c0_135 = arith.constant 0 : index
    %c0_136 = arith.constant 0 : index
    %140 = vector.load %arg15[%c3_134, %c0_135, %c0_136] : memref<14x8x128xf32, #tpu.memory_space<vmem>>, vector<1x8x128xf32>
    %141 = vector.shape_cast %140 : vector<1x8x128xf32> to vector<8x128xf32>
    %142 = vector.shape_cast %139 : vector<8x128xf32> to vector<1x8x128xf32>
    tpu.vector_store %arg15[%c3_134, %c0_135, %c0_136], %142 {strides = array<i32>} : memref<14x8x128xf32, #tpu.memory_space<vmem>>, vector<1x8x128xf32>,
    %c0_137 = arith.constant 0 : index
    %c8_138 = arith.constant 8 : index
    %c0_139 = arith.constant 0 : index
    %143 = vector.load %arg1[%c0_137, %c8_138, %c0_139] : memref<8x32x32xf32, #tpu.memory_space<vmem>>, vector<8x1x32xf32>
    %144 = vector.shape_cast %143 : vector<8x1x32xf32> to vector<8x32xf32>
    %c0_140 = arith.constant 0 : index
    %c9_141 = arith.constant 9 : index
    %c0_142 = arith.constant 0 : index
    %145 = vector.load %arg1[%c0_140, %c9_141, %c0_142] : memref<8x32x32xf32, #tpu.memory_space<vmem>>, vector<8x1x32xf32>
    %146 = vector.shape_cast %145 : vector<8x1x32xf32> to vector<8x32xf32>
    %c0_143 = arith.constant 0 : index
    %c10_144 = arith.constant 10 : index
    %c0_145 = arith.constant 0 : index
    %147 = vector.load %arg1[%c0_143, %c10_144, %c0_145] : memref<8x32x32xf32, #tpu.memory_space<vmem>>, vector<8x1x32xf32>
    %148 = vector.shape_cast %147 : vector<8x1x32xf32> to vector<8x32xf32>
    %c0_146 = arith.constant 0 : index
    %c11_147 = arith.constant 11 : index
    %c0_148 = arith.constant 0 : index
    %149 = vector.load %arg1[%c0_146, %c11_147, %c0_148] : memref<8x32x32xf32, #tpu.memory_space<vmem>>, vector<8x1x32xf32>
    %150 = vector.shape_cast %149 : vector<8x1x32xf32> to vector<8x32xf32>
    %c0_149 = arith.constant 0 : index
    %c12 = arith.constant 12 : index
    %c0_150 = arith.constant 0 : index
    %151 = vector.load %arg1[%c0_149, %c12, %c0_150] : memref<8x32x32xf32, #tpu.memory_space<vmem>>, vector<8x1x32xf32>
    %152 = vector.shape_cast %151 : vector<8x1x32xf32> to vector<8x32xf32>
    %153 = tpu.concatenate %144, %146, %148, %150, %152 in 1 : vector<8x32xf32>, vector<8x32xf32>, vector<8x32xf32>, vector<8x32xf32>, vector<8x32xf32> -> vector<8x160xf32>
    %cst_151 = arith.constant dense<0.000000e+00> : vector<8x168xf32>
    %154 = tpu.matmul %153, %0, %cst_151 {dimension_numbers = #tpu.dot_dimension_numbers<[1], [0], [0], [1], [0, 0, 1, 1], [], []>} : vector<8x160xf32>, vector<160x168xf32>, vector<8x168xf32> -> vector<8x168xf32>
    %155 = vector.broadcast %1 : vector<1x168xf32> to vector<8x168xf32>
    %156 = arith.addf %154, %155 : vector<8x168xf32>
    %157 = math.tanh %156 : vector<8x168xf32>
    %c0_152 = arith.constant 0 : index
    %c9_153 = arith.constant 9 : index
    %c0_154 = arith.constant 0 : index
    %158 = vector.load %arg1[%c0_152, %c9_153, %c0_154] : memref<8x32x32xf32, #tpu.memory_space<vmem>>, vector<8x1x32xf32>
    %159 = vector.shape_cast %158 : vector<8x1x32xf32> to vector<8x32xf32>
    %c0_155 = arith.constant 0 : index
    %c10_156 = arith.constant 10 : index
    %c0_157 = arith.constant 0 : index
    %160 = vector.load %arg1[%c0_155, %c10_156, %c0_157] : memref<8x32x32xf32, #tpu.memory_space<vmem>>, vector<8x1x32xf32>
    %161 = vector.shape_cast %160 : vector<8x1x32xf32> to vector<8x32xf32>
    %c0_158 = arith.constant 0 : index
    %c11_159 = arith.constant 11 : index
    %c0_160 = arith.constant 0 : index
    %162 = vector.load %arg1[%c0_158, %c11_159, %c0_160] : memref<8x32x32xf32, #tpu.memory_space<vmem>>, vector<8x1x32xf32>
    %163 = vector.shape_cast %162 : vector<8x1x32xf32> to vector<8x32xf32>
    %c0_161 = arith.constant 0 : index
    %c12_162 = arith.constant 12 : index
    %c0_163 = arith.constant 0 : index
    %164 = vector.load %arg1[%c0_161, %c12_162, %c0_163] : memref<8x32x32xf32, #tpu.memory_space<vmem>>, vector<8x1x32xf32>
    %165 = vector.shape_cast %164 : vector<8x1x32xf32> to vector<8x32xf32>
    %c0_164 = arith.constant 0 : index
    %c13 = arith.constant 13 : index
    %c0_165 = arith.constant 0 : index
    %166 = vector.load %arg1[%c0_164, %c13, %c0_165] : memref<8x32x32xf32, #tpu.memory_space<vmem>>, vector<8x1x32xf32>
    %167 = vector.shape_cast %166 : vector<8x1x32xf32> to vector<8x32xf32>
    %168 = tpu.concatenate %159, %161, %163, %165, %167 in 1 : vector<8x32xf32>, vector<8x32xf32>, vector<8x32xf32>, vector<8x32xf32>, vector<8x32xf32> -> vector<8x160xf32>
    %cst_166 = arith.constant dense<0.000000e+00> : vector<8x168xf32>
    %169 = tpu.matmul %168, %0, %cst_166 {dimension_numbers = #tpu.dot_dimension_numbers<[1], [0], [0], [1], [0, 0, 1, 1], [], []>} : vector<8x160xf32>, vector<160x168xf32>, vector<8x168xf32> -> vector<8x168xf32>
    %170 = vector.broadcast %1 : vector<1x168xf32> to vector<8x168xf32>
    %171 = arith.addf %169, %170 : vector<8x168xf32>
    %172 = math.tanh %171 : vector<8x168xf32>
    %173 = arith.addf %157, %172 : vector<8x168xf32>
    %cst_167 = arith.constant dense<0.000000e+00> : vector<8x128xf32>
    %174 = tpu.matmul %173, %2, %cst_167 {dimension_numbers = #tpu.dot_dimension_numbers<[1], [0], [0], [1], [0, 0, 1, 1], [], []>} : vector<8x168xf32>, vector<168x128xf32>, vector<8x128xf32> -> vector<8x128xf32>
    %c4_168 = arith.constant 4 : index
    %c0_169 = arith.constant 0 : index
    %c0_170 = arith.constant 0 : index
    %175 = vector.load %arg15[%c4_168, %c0_169, %c0_170] : memref<14x8x128xf32, #tpu.memory_space<vmem>>, vector<1x8x128xf32>
    %176 = vector.shape_cast %175 : vector<1x8x128xf32> to vector<8x128xf32>
    %177 = vector.shape_cast %174 : vector<8x128xf32> to vector<1x8x128xf32>
    tpu.vector_store %arg15[%c4_168, %c0_169, %c0_170], %177 {strides = array<i32>} : memref<14x8x128xf32, #tpu.memory_space<vmem>>, vector<1x8x128xf32>,
    %c0_171 = arith.constant 0 : index
    %c10_172 = arith.constant 10 : index
    %c0_173 = arith.constant 0 : index
    %178 = vector.load %arg1[%c0_171, %c10_172, %c0_173] : memref<8x32x32xf32, #tpu.memory_space<vmem>>, vector<8x1x32xf32>
    %179 = vector.shape_cast %178 : vector<8x1x32xf32> to vector<8x32xf32>
    %c0_174 = arith.constant 0 : index
    %c11_175 = arith.constant 11 : index
    %c0_176 = arith.constant 0 : index
    %180 = vector.load %arg1[%c0_174, %c11_175, %c0_176] : memref<8x32x32xf32, #tpu.memory_space<vmem>>, vector<8x1x32xf32>
    %181 = vector.shape_cast %180 : vector<8x1x32xf32> to vector<8x32xf32>
    %c0_177 = arith.constant 0 : index
    %c12_178 = arith.constant 12 : index
    %c0_179 = arith.constant 0 : index
    %182 = vector.load %arg1[%c0_177, %c12_178, %c0_179] : memref<8x32x32xf32, #tpu.memory_space<vmem>>, vector<8x1x32xf32>
    %183 = vector.shape_cast %182 : vector<8x1x32xf32> to vector<8x32xf32>
    %c0_180 = arith.constant 0 : index
    %c13_181 = arith.constant 13 : index
    %c0_182 = arith.constant 0 : index
    %184 = vector.load %arg1[%c0_180, %c13_181, %c0_182] : memref<8x32x32xf32, #tpu.memory_space<vmem>>, vector<8x1x32xf32>
    %185 = vector.shape_cast %184 : vector<8x1x32xf32> to vector<8x32xf32>
    %c0_183 = arith.constant 0 : index
    %c14 = arith.constant 14 : index
    %c0_184 = arith.constant 0 : index
    %186 = vector.load %arg1[%c0_183, %c14, %c0_184] : memref<8x32x32xf32, #tpu.memory_space<vmem>>, vector<8x1x32xf32>
    %187 = vector.shape_cast %186 : vector<8x1x32xf32> to vector<8x32xf32>
    %188 = tpu.concatenate %179, %181, %183, %185, %187 in 1 : vector<8x32xf32>, vector<8x32xf32>, vector<8x32xf32>, vector<8x32xf32>, vector<8x32xf32> -> vector<8x160xf32>
    %cst_185 = arith.constant dense<0.000000e+00> : vector<8x168xf32>
    %189 = tpu.matmul %188, %0, %cst_185 {dimension_numbers = #tpu.dot_dimension_numbers<[1], [0], [0], [1], [0, 0, 1, 1], [], []>} : vector<8x160xf32>, vector<160x168xf32>, vector<8x168xf32> -> vector<8x168xf32>
    %190 = vector.broadcast %1 : vector<1x168xf32> to vector<8x168xf32>
    %191 = arith.addf %189, %190 : vector<8x168xf32>
    %192 = math.tanh %191 : vector<8x168xf32>
    %c0_186 = arith.constant 0 : index
    %c11_187 = arith.constant 11 : index
    %c0_188 = arith.constant 0 : index
    %193 = vector.load %arg1[%c0_186, %c11_187, %c0_188] : memref<8x32x32xf32, #tpu.memory_space<vmem>>, vector<8x1x32xf32>
    %194 = vector.shape_cast %193 : vector<8x1x32xf32> to vector<8x32xf32>
    %c0_189 = arith.constant 0 : index
    %c12_190 = arith.constant 12 : index
    %c0_191 = arith.constant 0 : index
    %195 = vector.load %arg1[%c0_189, %c12_190, %c0_191] : memref<8x32x32xf32, #tpu.memory_space<vmem>>, vector<8x1x32xf32>
    %196 = vector.shape_cast %195 : vector<8x1x32xf32> to vector<8x32xf32>
    %c0_192 = arith.constant 0 : index
    %c13_193 = arith.constant 13 : index
    %c0_194 = arith.constant 0 : index
    %197 = vector.load %arg1[%c0_192, %c13_193, %c0_194] : memref<8x32x32xf32, #tpu.memory_space<vmem>>, vector<8x1x32xf32>
    %198 = vector.shape_cast %197 : vector<8x1x32xf32> to vector<8x32xf32>
    %c0_195 = arith.constant 0 : index
    %c14_196 = arith.constant 14 : index
    %c0_197 = arith.constant 0 : index
    %199 = vector.load %arg1[%c0_195, %c14_196, %c0_197] : memref<8x32x32xf32, #tpu.memory_space<vmem>>, vector<8x1x32xf32>
    %200 = vector.shape_cast %199 : vector<8x1x32xf32> to vector<8x32xf32>
    %c0_198 = arith.constant 0 : index
    %c15 = arith.constant 15 : index
    %c0_199 = arith.constant 0 : index
    %201 = vector.load %arg1[%c0_198, %c15, %c0_199] : memref<8x32x32xf32, #tpu.memory_space<vmem>>, vector<8x1x32xf32>
    %202 = vector.shape_cast %201 : vector<8x1x32xf32> to vector<8x32xf32>
    %203 = tpu.concatenate %194, %196, %198, %200, %202 in 1 : vector<8x32xf32>, vector<8x32xf32>, vector<8x32xf32>, vector<8x32xf32>, vector<8x32xf32> -> vector<8x160xf32>
    %cst_200 = arith.constant dense<0.000000e+00> : vector<8x168xf32>
    %204 = tpu.matmul %203, %0, %cst_200 {dimension_numbers = #tpu.dot_dimension_numbers<[1], [0], [0], [1], [0, 0, 1, 1], [], []>} : vector<8x160xf32>, vector<160x168xf32>, vector<8x168xf32> -> vector<8x168xf32>
    %205 = vector.broadcast %1 : vector<1x168xf32> to vector<8x168xf32>
    %206 = arith.addf %204, %205 : vector<8x168xf32>
    %207 = math.tanh %206 : vector<8x168xf32>
    %208 = arith.addf %192, %207 : vector<8x168xf32>
    %cst_201 = arith.constant dense<0.000000e+00> : vector<8x128xf32>
    %209 = tpu.matmul %208, %2, %cst_201 {dimension_numbers = #tpu.dot_dimension_numbers<[1], [0], [0], [1], [0, 0, 1, 1], [], []>} : vector<8x168xf32>, vector<168x128xf32>, vector<8x128xf32> -> vector<8x128xf32>
    %c5_202 = arith.constant 5 : index
    %c0_203 = arith.constant 0 : index
    %c0_204 = arith.constant 0 : index
    %210 = vector.load %arg15[%c5_202, %c0_203, %c0_204] : memref<14x8x128xf32, #tpu.memory_space<vmem>>, vector<1x8x128xf32>
    %211 = vector.shape_cast %210 : vector<1x8x128xf32> to vector<8x128xf32>
    %212 = vector.shape_cast %209 : vector<8x128xf32> to vector<1x8x128xf32>
    tpu.vector_store %arg15[%c5_202, %c0_203, %c0_204], %212 {strides = array<i32>} : memref<14x8x128xf32, #tpu.memory_space<vmem>>, vector<1x8x128xf32>,
    %c0_205 = arith.constant 0 : index
    %c12_206 = arith.constant 12 : index
    %c0_207 = arith.constant 0 : index
    %213 = vector.load %arg1[%c0_205, %c12_206, %c0_207] : memref<8x32x32xf32, #tpu.memory_space<vmem>>, vector<8x1x32xf32>
    %214 = vector.shape_cast %213 : vector<8x1x32xf32> to vector<8x32xf32>
    %c0_208 = arith.constant 0 : index
    %c13_209 = arith.constant 13 : index
    %c0_210 = arith.constant 0 : index
    %215 = vector.load %arg1[%c0_208, %c13_209, %c0_210] : memref<8x32x32xf32, #tpu.memory_space<vmem>>, vector<8x1x32xf32>
    %216 = vector.shape_cast %215 : vector<8x1x32xf32> to vector<8x32xf32>
    %c0_211 = arith.constant 0 : index
    %c14_212 = arith.constant 14 : index
    %c0_213 = arith.constant 0 : index
    %217 = vector.load %arg1[%c0_211, %c14_212, %c0_213] : memref<8x32x32xf32, #tpu.memory_space<vmem>>, vector<8x1x32xf32>
    %218 = vector.shape_cast %217 : vector<8x1x32xf32> to vector<8x32xf32>
    %c0_214 = arith.constant 0 : index
    %c15_215 = arith.constant 15 : index
    %c0_216 = arith.constant 0 : index
    %219 = vector.load %arg1[%c0_214, %c15_215, %c0_216] : memref<8x32x32xf32, #tpu.memory_space<vmem>>, vector<8x1x32xf32>
    %220 = vector.shape_cast %219 : vector<8x1x32xf32> to vector<8x32xf32>
    %c0_217 = arith.constant 0 : index
    %c16 = arith.constant 16 : index
    %c0_218 = arith.constant 0 : index
    %221 = vector.load %arg1[%c0_217, %c16, %c0_218] : memref<8x32x32xf32, #tpu.memory_space<vmem>>, vector<8x1x32xf32>
    %222 = vector.shape_cast %221 : vector<8x1x32xf32> to vector<8x32xf32>
    %223 = tpu.concatenate %214, %216, %218, %220, %222 in 1 : vector<8x32xf32>, vector<8x32xf32>, vector<8x32xf32>, vector<8x32xf32>, vector<8x32xf32> -> vector<8x160xf32>
    %cst_219 = arith.constant dense<0.000000e+00> : vector<8x168xf32>
    %224 = tpu.matmul %223, %0, %cst_219 {dimension_numbers = #tpu.dot_dimension_numbers<[1], [0], [0], [1], [0, 0, 1, 1], [], []>} : vector<8x160xf32>, vector<160x168xf32>, vector<8x168xf32> -> vector<8x168xf32>
    %225 = vector.broadcast %1 : vector<1x168xf32> to vector<8x168xf32>
    %226 = arith.addf %224, %225 : vector<8x168xf32>
    %227 = math.tanh %226 : vector<8x168xf32>
    %c0_220 = arith.constant 0 : index
    %c13_221 = arith.constant 13 : index
    %c0_222 = arith.constant 0 : index
    %228 = vector.load %arg1[%c0_220, %c13_221, %c0_222] : memref<8x32x32xf32, #tpu.memory_space<vmem>>, vector<8x1x32xf32>
    %229 = vector.shape_cast %228 : vector<8x1x32xf32> to vector<8x32xf32>
    %c0_223 = arith.constant 0 : index
    %c14_224 = arith.constant 14 : index
    %c0_225 = arith.constant 0 : index
    %230 = vector.load %arg1[%c0_223, %c14_224, %c0_225] : memref<8x32x32xf32, #tpu.memory_space<vmem>>, vector<8x1x32xf32>
    %231 = vector.shape_cast %230 : vector<8x1x32xf32> to vector<8x32xf32>
    %c0_226 = arith.constant 0 : index
    %c15_227 = arith.constant 15 : index
    %c0_228 = arith.constant 0 : index
    %232 = vector.load %arg1[%c0_226, %c15_227, %c0_228] : memref<8x32x32xf32, #tpu.memory_space<vmem>>, vector<8x1x32xf32>
    %233 = vector.shape_cast %232 : vector<8x1x32xf32> to vector<8x32xf32>
    %c0_229 = arith.constant 0 : index
    %c16_230 = arith.constant 16 : index
    %c0_231 = arith.constant 0 : index
    %234 = vector.load %arg1[%c0_229, %c16_230, %c0_231] : memref<8x32x32xf32, #tpu.memory_space<vmem>>, vector<8x1x32xf32>
    %235 = vector.shape_cast %234 : vector<8x1x32xf32> to vector<8x32xf32>
    %c0_232 = arith.constant 0 : index
    %c17 = arith.constant 17 : index
    %c0_233 = arith.constant 0 : index
    %236 = vector.load %arg1[%c0_232, %c17, %c0_233] : memref<8x32x32xf32, #tpu.memory_space<vmem>>, vector<8x1x32xf32>
    %237 = vector.shape_cast %236 : vector<8x1x32xf32> to vector<8x32xf32>
    %238 = tpu.concatenate %229, %231, %233, %235, %237 in 1 : vector<8x32xf32>, vector<8x32xf32>, vector<8x32xf32>, vector<8x32xf32>, vector<8x32xf32> -> vector<8x160xf32>
    %cst_234 = arith.constant dense<0.000000e+00> : vector<8x168xf32>
    %239 = tpu.matmul %238, %0, %cst_234 {dimension_numbers = #tpu.dot_dimension_numbers<[1], [0], [0], [1], [0, 0, 1, 1], [], []>} : vector<8x160xf32>, vector<160x168xf32>, vector<8x168xf32> -> vector<8x168xf32>
    %240 = vector.broadcast %1 : vector<1x168xf32> to vector<8x168xf32>
    %241 = arith.addf %239, %240 : vector<8x168xf32>
    %242 = math.tanh %241 : vector<8x168xf32>
    %243 = arith.addf %227, %242 : vector<8x168xf32>
    %cst_235 = arith.constant dense<0.000000e+00> : vector<8x128xf32>
    %244 = tpu.matmul %243, %2, %cst_235 {dimension_numbers = #tpu.dot_dimension_numbers<[1], [0], [0], [1], [0, 0, 1, 1], [], []>} : vector<8x168xf32>, vector<168x128xf32>, vector<8x128xf32> -> vector<8x128xf32>
    %c6_236 = arith.constant 6 : index
    %c0_237 = arith.constant 0 : index
    %c0_238 = arith.constant 0 : index
    %245 = vector.load %arg15[%c6_236, %c0_237, %c0_238] : memref<14x8x128xf32, #tpu.memory_space<vmem>>, vector<1x8x128xf32>
    %246 = vector.shape_cast %245 : vector<1x8x128xf32> to vector<8x128xf32>
    %247 = vector.shape_cast %244 : vector<8x128xf32> to vector<1x8x128xf32>
    tpu.vector_store %arg15[%c6_236, %c0_237, %c0_238], %247 {strides = array<i32>} : memref<14x8x128xf32, #tpu.memory_space<vmem>>, vector<1x8x128xf32>,
    %c0_239 = arith.constant 0 : index
    %c14_240 = arith.constant 14 : index
    %c0_241 = arith.constant 0 : index
    %248 = vector.load %arg1[%c0_239, %c14_240, %c0_241] : memref<8x32x32xf32, #tpu.memory_space<vmem>>, vector<8x1x32xf32>
    %249 = vector.shape_cast %248 : vector<8x1x32xf32> to vector<8x32xf32>
    %c0_242 = arith.constant 0 : index
    %c15_243 = arith.constant 15 : index
    %c0_244 = arith.constant 0 : index
    %250 = vector.load %arg1[%c0_242, %c15_243, %c0_244] : memref<8x32x32xf32, #tpu.memory_space<vmem>>, vector<8x1x32xf32>
    %251 = vector.shape_cast %250 : vector<8x1x32xf32> to vector<8x32xf32>
    %c0_245 = arith.constant 0 : index
    %c16_246 = arith.constant 16 : index
    %c0_247 = arith.constant 0 : index
    %252 = vector.load %arg1[%c0_245, %c16_246, %c0_247] : memref<8x32x32xf32, #tpu.memory_space<vmem>>, vector<8x1x32xf32>
    %253 = vector.shape_cast %252 : vector<8x1x32xf32> to vector<8x32xf32>
    %c0_248 = arith.constant 0 : index
    %c17_249 = arith.constant 17 : index
    %c0_250 = arith.constant 0 : index
    %254 = vector.load %arg1[%c0_248, %c17_249, %c0_250] : memref<8x32x32xf32, #tpu.memory_space<vmem>>, vector<8x1x32xf32>
    %255 = vector.shape_cast %254 : vector<8x1x32xf32> to vector<8x32xf32>
    %c0_251 = arith.constant 0 : index
    %c18 = arith.constant 18 : index
    %c0_252 = arith.constant 0 : index
    %256 = vector.load %arg1[%c0_251, %c18, %c0_252] : memref<8x32x32xf32, #tpu.memory_space<vmem>>, vector<8x1x32xf32>
    %257 = vector.shape_cast %256 : vector<8x1x32xf32> to vector<8x32xf32>
    %258 = tpu.concatenate %249, %251, %253, %255, %257 in 1 : vector<8x32xf32>, vector<8x32xf32>, vector<8x32xf32>, vector<8x32xf32>, vector<8x32xf32> -> vector<8x160xf32>
    %cst_253 = arith.constant dense<0.000000e+00> : vector<8x168xf32>
    %259 = tpu.matmul %258, %0, %cst_253 {dimension_numbers = #tpu.dot_dimension_numbers<[1], [0], [0], [1], [0, 0, 1, 1], [], []>} : vector<8x160xf32>, vector<160x168xf32>, vector<8x168xf32> -> vector<8x168xf32>
    %260 = vector.broadcast %1 : vector<1x168xf32> to vector<8x168xf32>
    %261 = arith.addf %259, %260 : vector<8x168xf32>
    %262 = math.tanh %261 : vector<8x168xf32>
    %c0_254 = arith.constant 0 : index
    %c15_255 = arith.constant 15 : index
    %c0_256 = arith.constant 0 : index
    %263 = vector.load %arg1[%c0_254, %c15_255, %c0_256] : memref<8x32x32xf32, #tpu.memory_space<vmem>>, vector<8x1x32xf32>
    %264 = vector.shape_cast %263 : vector<8x1x32xf32> to vector<8x32xf32>
    %c0_257 = arith.constant 0 : index
    %c16_258 = arith.constant 16 : index
    %c0_259 = arith.constant 0 : index
    %265 = vector.load %arg1[%c0_257, %c16_258, %c0_259] : memref<8x32x32xf32, #tpu.memory_space<vmem>>, vector<8x1x32xf32>
    %266 = vector.shape_cast %265 : vector<8x1x32xf32> to vector<8x32xf32>
    %c0_260 = arith.constant 0 : index
    %c17_261 = arith.constant 17 : index
    %c0_262 = arith.constant 0 : index
    %267 = vector.load %arg1[%c0_260, %c17_261, %c0_262] : memref<8x32x32xf32, #tpu.memory_space<vmem>>, vector<8x1x32xf32>
    %268 = vector.shape_cast %267 : vector<8x1x32xf32> to vector<8x32xf32>
    %c0_263 = arith.constant 0 : index
    %c18_264 = arith.constant 18 : index
    %c0_265 = arith.constant 0 : index
    %269 = vector.load %arg1[%c0_263, %c18_264, %c0_265] : memref<8x32x32xf32, #tpu.memory_space<vmem>>, vector<8x1x32xf32>
    %270 = vector.shape_cast %269 : vector<8x1x32xf32> to vector<8x32xf32>
    %c0_266 = arith.constant 0 : index
    %c19 = arith.constant 19 : index
    %c0_267 = arith.constant 0 : index
    %271 = vector.load %arg1[%c0_266, %c19, %c0_267] : memref<8x32x32xf32, #tpu.memory_space<vmem>>, vector<8x1x32xf32>
    %272 = vector.shape_cast %271 : vector<8x1x32xf32> to vector<8x32xf32>
    %273 = tpu.concatenate %264, %266, %268, %270, %272 in 1 : vector<8x32xf32>, vector<8x32xf32>, vector<8x32xf32>, vector<8x32xf32>, vector<8x32xf32> -> vector<8x160xf32>
    %cst_268 = arith.constant dense<0.000000e+00> : vector<8x168xf32>
    %274 = tpu.matmul %273, %0, %cst_268 {dimension_numbers = #tpu.dot_dimension_numbers<[1], [0], [0], [1], [0, 0, 1, 1], [], []>} : vector<8x160xf32>, vector<160x168xf32>, vector<8x168xf32> -> vector<8x168xf32>
    %275 = vector.broadcast %1 : vector<1x168xf32> to vector<8x168xf32>
    %276 = arith.addf %274, %275 : vector<8x168xf32>
    %277 = math.tanh %276 : vector<8x168xf32>
    %278 = arith.addf %262, %277 : vector<8x168xf32>
    %cst_269 = arith.constant dense<0.000000e+00> : vector<8x128xf32>
    %279 = tpu.matmul %278, %2, %cst_269 {dimension_numbers = #tpu.dot_dimension_numbers<[1], [0], [0], [1], [0, 0, 1, 1], [], []>} : vector<8x168xf32>, vector<168x128xf32>, vector<8x128xf32> -> vector<8x128xf32>
    %c7_270 = arith.constant 7 : index
    %c0_271 = arith.constant 0 : index
    %c0_272 = arith.constant 0 : index
    %280 = vector.load %arg15[%c7_270, %c0_271, %c0_272] : memref<14x8x128xf32, #tpu.memory_space<vmem>>, vector<1x8x128xf32>
    %281 = vector.shape_cast %280 : vector<1x8x128xf32> to vector<8x128xf32>
    %282 = vector.shape_cast %279 : vector<8x128xf32> to vector<1x8x128xf32>
    tpu.vector_store %arg15[%c7_270, %c0_271, %c0_272], %282 {strides = array<i32>} : memref<14x8x128xf32, #tpu.memory_space<vmem>>, vector<1x8x128xf32>,
    %c0_273 = arith.constant 0 : index
    %c16_274 = arith.constant 16 : index
    %c0_275 = arith.constant 0 : index
    %283 = vector.load %arg1[%c0_273, %c16_274, %c0_275] : memref<8x32x32xf32, #tpu.memory_space<vmem>>, vector<8x1x32xf32>
    %284 = vector.shape_cast %283 : vector<8x1x32xf32> to vector<8x32xf32>
    %c0_276 = arith.constant 0 : index
    %c17_277 = arith.constant 17 : index
    %c0_278 = arith.constant 0 : index
    %285 = vector.load %arg1[%c0_276, %c17_277, %c0_278] : memref<8x32x32xf32, #tpu.memory_space<vmem>>, vector<8x1x32xf32>
    %286 = vector.shape_cast %285 : vector<8x1x32xf32> to vector<8x32xf32>
    %c0_279 = arith.constant 0 : index
    %c18_280 = arith.constant 18 : index
    %c0_281 = arith.constant 0 : index
    %287 = vector.load %arg1[%c0_279, %c18_280, %c0_281] : memref<8x32x32xf32, #tpu.memory_space<vmem>>, vector<8x1x32xf32>
    %288 = vector.shape_cast %287 : vector<8x1x32xf32> to vector<8x32xf32>
    %c0_282 = arith.constant 0 : index
    %c19_283 = arith.constant 19 : index
    %c0_284 = arith.constant 0 : index
    %289 = vector.load %arg1[%c0_282, %c19_283, %c0_284] : memref<8x32x32xf32, #tpu.memory_space<vmem>>, vector<8x1x32xf32>
    %290 = vector.shape_cast %289 : vector<8x1x32xf32> to vector<8x32xf32>
    %c0_285 = arith.constant 0 : index
    %c20 = arith.constant 20 : index
    %c0_286 = arith.constant 0 : index
    %291 = vector.load %arg1[%c0_285, %c20, %c0_286] : memref<8x32x32xf32, #tpu.memory_space<vmem>>, vector<8x1x32xf32>
    %292 = vector.shape_cast %291 : vector<8x1x32xf32> to vector<8x32xf32>
    %293 = tpu.concatenate %284, %286, %288, %290, %292 in 1 : vector<8x32xf32>, vector<8x32xf32>, vector<8x32xf32>, vector<8x32xf32>, vector<8x32xf32> -> vector<8x160xf32>
    %cst_287 = arith.constant dense<0.000000e+00> : vector<8x168xf32>
    %294 = tpu.matmul %293, %0, %cst_287 {dimension_numbers = #tpu.dot_dimension_numbers<[1], [0], [0], [1], [0, 0, 1, 1], [], []>} : vector<8x160xf32>, vector<160x168xf32>, vector<8x168xf32> -> vector<8x168xf32>
    %295 = vector.broadcast %1 : vector<1x168xf32> to vector<8x168xf32>
    %296 = arith.addf %294, %295 : vector<8x168xf32>
    %297 = math.tanh %296 : vector<8x168xf32>
    %c0_288 = arith.constant 0 : index
    %c17_289 = arith.constant 17 : index
    %c0_290 = arith.constant 0 : index
    %298 = vector.load %arg1[%c0_288, %c17_289, %c0_290] : memref<8x32x32xf32, #tpu.memory_space<vmem>>, vector<8x1x32xf32>
    %299 = vector.shape_cast %298 : vector<8x1x32xf32> to vector<8x32xf32>
    %c0_291 = arith.constant 0 : index
    %c18_292 = arith.constant 18 : index
    %c0_293 = arith.constant 0 : index
    %300 = vector.load %arg1[%c0_291, %c18_292, %c0_293] : memref<8x32x32xf32, #tpu.memory_space<vmem>>, vector<8x1x32xf32>
    %301 = vector.shape_cast %300 : vector<8x1x32xf32> to vector<8x32xf32>
    %c0_294 = arith.constant 0 : index
    %c19_295 = arith.constant 19 : index
    %c0_296 = arith.constant 0 : index
    %302 = vector.load %arg1[%c0_294, %c19_295, %c0_296] : memref<8x32x32xf32, #tpu.memory_space<vmem>>, vector<8x1x32xf32>
    %303 = vector.shape_cast %302 : vector<8x1x32xf32> to vector<8x32xf32>
    %c0_297 = arith.constant 0 : index
    %c20_298 = arith.constant 20 : index
    %c0_299 = arith.constant 0 : index
    %304 = vector.load %arg1[%c0_297, %c20_298, %c0_299] : memref<8x32x32xf32, #tpu.memory_space<vmem>>, vector<8x1x32xf32>
    %305 = vector.shape_cast %304 : vector<8x1x32xf32> to vector<8x32xf32>
    %c0_300 = arith.constant 0 : index
    %c21 = arith.constant 21 : index
    %c0_301 = arith.constant 0 : index
    %306 = vector.load %arg1[%c0_300, %c21, %c0_301] : memref<8x32x32xf32, #tpu.memory_space<vmem>>, vector<8x1x32xf32>
    %307 = vector.shape_cast %306 : vector<8x1x32xf32> to vector<8x32xf32>
    %308 = tpu.concatenate %299, %301, %303, %305, %307 in 1 : vector<8x32xf32>, vector<8x32xf32>, vector<8x32xf32>, vector<8x32xf32>, vector<8x32xf32> -> vector<8x160xf32>
    %cst_302 = arith.constant dense<0.000000e+00> : vector<8x168xf32>
    %309 = tpu.matmul %308, %0, %cst_302 {dimension_numbers = #tpu.dot_dimension_numbers<[1], [0], [0], [1], [0, 0, 1, 1], [], []>} : vector<8x160xf32>, vector<160x168xf32>, vector<8x168xf32> -> vector<8x168xf32>
    %310 = vector.broadcast %1 : vector<1x168xf32> to vector<8x168xf32>
    %311 = arith.addf %309, %310 : vector<8x168xf32>
    %312 = math.tanh %311 : vector<8x168xf32>
    %313 = arith.addf %297, %312 : vector<8x168xf32>
    %cst_303 = arith.constant dense<0.000000e+00> : vector<8x128xf32>
    %314 = tpu.matmul %313, %2, %cst_303 {dimension_numbers = #tpu.dot_dimension_numbers<[1], [0], [0], [1], [0, 0, 1, 1], [], []>} : vector<8x168xf32>, vector<168x128xf32>, vector<8x128xf32> -> vector<8x128xf32>
    %c8_304 = arith.constant 8 : index
    %c0_305 = arith.constant 0 : index
    %c0_306 = arith.constant 0 : index
    %315 = vector.load %arg15[%c8_304, %c0_305, %c0_306] : memref<14x8x128xf32, #tpu.memory_space<vmem>>, vector<1x8x128xf32>
    %316 = vector.shape_cast %315 : vector<1x8x128xf32> to vector<8x128xf32>
    %317 = vector.shape_cast %314 : vector<8x128xf32> to vector<1x8x128xf32>
    tpu.vector_store %arg15[%c8_304, %c0_305, %c0_306], %317 {strides = array<i32>} : memref<14x8x128xf32, #tpu.memory_space<vmem>>, vector<1x8x128xf32>,
    %c0_307 = arith.constant 0 : index
    %c18_308 = arith.constant 18 : index
    %c0_309 = arith.constant 0 : index
    %318 = vector.load %arg1[%c0_307, %c18_308, %c0_309] : memref<8x32x32xf32, #tpu.memory_space<vmem>>, vector<8x1x32xf32>
    %319 = vector.shape_cast %318 : vector<8x1x32xf32> to vector<8x32xf32>
    %c0_310 = arith.constant 0 : index
    %c19_311 = arith.constant 19 : index
    %c0_312 = arith.constant 0 : index
    %320 = vector.load %arg1[%c0_310, %c19_311, %c0_312] : memref<8x32x32xf32, #tpu.memory_space<vmem>>, vector<8x1x32xf32>
    %321 = vector.shape_cast %320 : vector<8x1x32xf32> to vector<8x32xf32>
    %c0_313 = arith.constant 0 : index
    %c20_314 = arith.constant 20 : index
    %c0_315 = arith.constant 0 : index
    %322 = vector.load %arg1[%c0_313, %c20_314, %c0_315] : memref<8x32x32xf32, #tpu.memory_space<vmem>>, vector<8x1x32xf32>
    %323 = vector.shape_cast %322 : vector<8x1x32xf32> to vector<8x32xf32>
    %c0_316 = arith.constant 0 : index
    %c21_317 = arith.constant 21 : index
    %c0_318 = arith.constant 0 : index
    %324 = vector.load %arg1[%c0_316, %c21_317, %c0_318] : memref<8x32x32xf32, #tpu.memory_space<vmem>>, vector<8x1x32xf32>
    %325 = vector.shape_cast %324 : vector<8x1x32xf32> to vector<8x32xf32>
    %c0_319 = arith.constant 0 : index
    %c22 = arith.constant 22 : index
    %c0_320 = arith.constant 0 : index
    %326 = vector.load %arg1[%c0_319, %c22, %c0_320] : memref<8x32x32xf32, #tpu.memory_space<vmem>>, vector<8x1x32xf32>
    %327 = vector.shape_cast %326 : vector<8x1x32xf32> to vector<8x32xf32>
    %328 = tpu.concatenate %319, %321, %323, %325, %327 in 1 : vector<8x32xf32>, vector<8x32xf32>, vector<8x32xf32>, vector<8x32xf32>, vector<8x32xf32> -> vector<8x160xf32>
    %cst_321 = arith.constant dense<0.000000e+00> : vector<8x168xf32>
    %329 = tpu.matmul %328, %0, %cst_321 {dimension_numbers = #tpu.dot_dimension_numbers<[1], [0], [0], [1], [0, 0, 1, 1], [], []>} : vector<8x160xf32>, vector<160x168xf32>, vector<8x168xf32> -> vector<8x168xf32>
    %330 = vector.broadcast %1 : vector<1x168xf32> to vector<8x168xf32>
    %331 = arith.addf %329, %330 : vector<8x168xf32>
    %332 = math.tanh %331 : vector<8x168xf32>
    %c0_322 = arith.constant 0 : index
    %c19_323 = arith.constant 19 : index
    %c0_324 = arith.constant 0 : index
    %333 = vector.load %arg1[%c0_322, %c19_323, %c0_324] : memref<8x32x32xf32, #tpu.memory_space<vmem>>, vector<8x1x32xf32>
    %334 = vector.shape_cast %333 : vector<8x1x32xf32> to vector<8x32xf32>
    %c0_325 = arith.constant 0 : index
    %c20_326 = arith.constant 20 : index
    %c0_327 = arith.constant 0 : index
    %335 = vector.load %arg1[%c0_325, %c20_326, %c0_327] : memref<8x32x32xf32, #tpu.memory_space<vmem>>, vector<8x1x32xf32>
    %336 = vector.shape_cast %335 : vector<8x1x32xf32> to vector<8x32xf32>
    %c0_328 = arith.constant 0 : index
    %c21_329 = arith.constant 21 : index
    %c0_330 = arith.constant 0 : index
    %337 = vector.load %arg1[%c0_328, %c21_329, %c0_330] : memref<8x32x32xf32, #tpu.memory_space<vmem>>, vector<8x1x32xf32>
    %338 = vector.shape_cast %337 : vector<8x1x32xf32> to vector<8x32xf32>
    %c0_331 = arith.constant 0 : index
    %c22_332 = arith.constant 22 : index
    %c0_333 = arith.constant 0 : index
    %339 = vector.load %arg1[%c0_331, %c22_332, %c0_333] : memref<8x32x32xf32, #tpu.memory_space<vmem>>, vector<8x1x32xf32>
    %340 = vector.shape_cast %339 : vector<8x1x32xf32> to vector<8x32xf32>
    %c0_334 = arith.constant 0 : index
    %c23 = arith.constant 23 : index
    %c0_335 = arith.constant 0 : index
    %341 = vector.load %arg1[%c0_334, %c23, %c0_335] : memref<8x32x32xf32, #tpu.memory_space<vmem>>, vector<8x1x32xf32>
    %342 = vector.shape_cast %341 : vector<8x1x32xf32> to vector<8x32xf32>
    %343 = tpu.concatenate %334, %336, %338, %340, %342 in 1 : vector<8x32xf32>, vector<8x32xf32>, vector<8x32xf32>, vector<8x32xf32>, vector<8x32xf32> -> vector<8x160xf32>
    %cst_336 = arith.constant dense<0.000000e+00> : vector<8x168xf32>
    %344 = tpu.matmul %343, %0, %cst_336 {dimension_numbers = #tpu.dot_dimension_numbers<[1], [0], [0], [1], [0, 0, 1, 1], [], []>} : vector<8x160xf32>, vector<160x168xf32>, vector<8x168xf32> -> vector<8x168xf32>
    %345 = vector.broadcast %1 : vector<1x168xf32> to vector<8x168xf32>
    %346 = arith.addf %344, %345 : vector<8x168xf32>
    %347 = math.tanh %346 : vector<8x168xf32>
    %348 = arith.addf %332, %347 : vector<8x168xf32>
    %cst_337 = arith.constant dense<0.000000e+00> : vector<8x128xf32>
    %349 = tpu.matmul %348, %2, %cst_337 {dimension_numbers = #tpu.dot_dimension_numbers<[1], [0], [0], [1], [0, 0, 1, 1], [], []>} : vector<8x168xf32>, vector<168x128xf32>, vector<8x128xf32> -> vector<8x128xf32>
    %c9_338 = arith.constant 9 : index
    %c0_339 = arith.constant 0 : index
    %c0_340 = arith.constant 0 : index
    %350 = vector.load %arg15[%c9_338, %c0_339, %c0_340] : memref<14x8x128xf32, #tpu.memory_space<vmem>>, vector<1x8x128xf32>
    %351 = vector.shape_cast %350 : vector<1x8x128xf32> to vector<8x128xf32>
    %352 = vector.shape_cast %349 : vector<8x128xf32> to vector<1x8x128xf32>
    tpu.vector_store %arg15[%c9_338, %c0_339, %c0_340], %352 {strides = array<i32>} : memref<14x8x128xf32, #tpu.memory_space<vmem>>, vector<1x8x128xf32>,
    %c0_341 = arith.constant 0 : index
    %c20_342 = arith.constant 20 : index
    %c0_343 = arith.constant 0 : index
    %353 = vector.load %arg1[%c0_341, %c20_342, %c0_343] : memref<8x32x32xf32, #tpu.memory_space<vmem>>, vector<8x1x32xf32>
    %354 = vector.shape_cast %353 : vector<8x1x32xf32> to vector<8x32xf32>
    %c0_344 = arith.constant 0 : index
    %c21_345 = arith.constant 21 : index
    %c0_346 = arith.constant 0 : index
    %355 = vector.load %arg1[%c0_344, %c21_345, %c0_346] : memref<8x32x32xf32, #tpu.memory_space<vmem>>, vector<8x1x32xf32>
    %356 = vector.shape_cast %355 : vector<8x1x32xf32> to vector<8x32xf32>
    %c0_347 = arith.constant 0 : index
    %c22_348 = arith.constant 22 : index
    %c0_349 = arith.constant 0 : index
    %357 = vector.load %arg1[%c0_347, %c22_348, %c0_349] : memref<8x32x32xf32, #tpu.memory_space<vmem>>, vector<8x1x32xf32>
    %358 = vector.shape_cast %357 : vector<8x1x32xf32> to vector<8x32xf32>
    %c0_350 = arith.constant 0 : index
    %c23_351 = arith.constant 23 : index
    %c0_352 = arith.constant 0 : index
    %359 = vector.load %arg1[%c0_350, %c23_351, %c0_352] : memref<8x32x32xf32, #tpu.memory_space<vmem>>, vector<8x1x32xf32>
    %360 = vector.shape_cast %359 : vector<8x1x32xf32> to vector<8x32xf32>
    %c0_353 = arith.constant 0 : index
    %c24 = arith.constant 24 : index
    %c0_354 = arith.constant 0 : index
    %361 = vector.load %arg1[%c0_353, %c24, %c0_354] : memref<8x32x32xf32, #tpu.memory_space<vmem>>, vector<8x1x32xf32>
    %362 = vector.shape_cast %361 : vector<8x1x32xf32> to vector<8x32xf32>
    %363 = tpu.concatenate %354, %356, %358, %360, %362 in 1 : vector<8x32xf32>, vector<8x32xf32>, vector<8x32xf32>, vector<8x32xf32>, vector<8x32xf32> -> vector<8x160xf32>
    %cst_355 = arith.constant dense<0.000000e+00> : vector<8x168xf32>
    %364 = tpu.matmul %363, %0, %cst_355 {dimension_numbers = #tpu.dot_dimension_numbers<[1], [0], [0], [1], [0, 0, 1, 1], [], []>} : vector<8x160xf32>, vector<160x168xf32>, vector<8x168xf32> -> vector<8x168xf32>
    %365 = vector.broadcast %1 : vector<1x168xf32> to vector<8x168xf32>
    %366 = arith.addf %364, %365 : vector<8x168xf32>
    %367 = math.tanh %366 : vector<8x168xf32>
    %c0_356 = arith.constant 0 : index
    %c21_357 = arith.constant 21 : index
    %c0_358 = arith.constant 0 : index
    %368 = vector.load %arg1[%c0_356, %c21_357, %c0_358] : memref<8x32x32xf32, #tpu.memory_space<vmem>>, vector<8x1x32xf32>
    %369 = vector.shape_cast %368 : vector<8x1x32xf32> to vector<8x32xf32>
    %c0_359 = arith.constant 0 : index
    %c22_360 = arith.constant 22 : index
    %c0_361 = arith.constant 0 : index
    %370 = vector.load %arg1[%c0_359, %c22_360, %c0_361] : memref<8x32x32xf32, #tpu.memory_space<vmem>>, vector<8x1x32xf32>
    %371 = vector.shape_cast %370 : vector<8x1x32xf32> to vector<8x32xf32>
    %c0_362 = arith.constant 0 : index
    %c23_363 = arith.constant 23 : index
    %c0_364 = arith.constant 0 : index
    %372 = vector.load %arg1[%c0_362, %c23_363, %c0_364] : memref<8x32x32xf32, #tpu.memory_space<vmem>>, vector<8x1x32xf32>
    %373 = vector.shape_cast %372 : vector<8x1x32xf32> to vector<8x32xf32>
    %c0_365 = arith.constant 0 : index
    %c24_366 = arith.constant 24 : index
    %c0_367 = arith.constant 0 : index
    %374 = vector.load %arg1[%c0_365, %c24_366, %c0_367] : memref<8x32x32xf32, #tpu.memory_space<vmem>>, vector<8x1x32xf32>
    %375 = vector.shape_cast %374 : vector<8x1x32xf32> to vector<8x32xf32>
    %c0_368 = arith.constant 0 : index
    %c25 = arith.constant 25 : index
    %c0_369 = arith.constant 0 : index
    %376 = vector.load %arg1[%c0_368, %c25, %c0_369] : memref<8x32x32xf32, #tpu.memory_space<vmem>>, vector<8x1x32xf32>
    %377 = vector.shape_cast %376 : vector<8x1x32xf32> to vector<8x32xf32>
    %378 = tpu.concatenate %369, %371, %373, %375, %377 in 1 : vector<8x32xf32>, vector<8x32xf32>, vector<8x32xf32>, vector<8x32xf32>, vector<8x32xf32> -> vector<8x160xf32>
    %cst_370 = arith.constant dense<0.000000e+00> : vector<8x168xf32>
    %379 = tpu.matmul %378, %0, %cst_370 {dimension_numbers = #tpu.dot_dimension_numbers<[1], [0], [0], [1], [0, 0, 1, 1], [], []>} : vector<8x160xf32>, vector<160x168xf32>, vector<8x168xf32> -> vector<8x168xf32>
    %380 = vector.broadcast %1 : vector<1x168xf32> to vector<8x168xf32>
    %381 = arith.addf %379, %380 : vector<8x168xf32>
    %382 = math.tanh %381 : vector<8x168xf32>
    %383 = arith.addf %367, %382 : vector<8x168xf32>
    %cst_371 = arith.constant dense<0.000000e+00> : vector<8x128xf32>
    %384 = tpu.matmul %383, %2, %cst_371 {dimension_numbers = #tpu.dot_dimension_numbers<[1], [0], [0], [1], [0, 0, 1, 1], [], []>} : vector<8x168xf32>, vector<168x128xf32>, vector<8x128xf32> -> vector<8x128xf32>
    %c10_372 = arith.constant 10 : index
    %c0_373 = arith.constant 0 : index
    %c0_374 = arith.constant 0 : index
    %385 = vector.load %arg15[%c10_372, %c0_373, %c0_374] : memref<14x8x128xf32, #tpu.memory_space<vmem>>, vector<1x8x128xf32>
    %386 = vector.shape_cast %385 : vector<1x8x128xf32> to vector<8x128xf32>
    %387 = vector.shape_cast %384 : vector<8x128xf32> to vector<1x8x128xf32>
    tpu.vector_store %arg15[%c10_372, %c0_373, %c0_374], %387 {strides = array<i32>} : memref<14x8x128xf32, #tpu.memory_space<vmem>>, vector<1x8x128xf32>,
    %c0_375 = arith.constant 0 : index
    %c22_376 = arith.constant 22 : index
    %c0_377 = arith.constant 0 : index
    %388 = vector.load %arg1[%c0_375, %c22_376, %c0_377] : memref<8x32x32xf32, #tpu.memory_space<vmem>>, vector<8x1x32xf32>
    %389 = vector.shape_cast %388 : vector<8x1x32xf32> to vector<8x32xf32>
    %c0_378 = arith.constant 0 : index
    %c23_379 = arith.constant 23 : index
    %c0_380 = arith.constant 0 : index
    %390 = vector.load %arg1[%c0_378, %c23_379, %c0_380] : memref<8x32x32xf32, #tpu.memory_space<vmem>>, vector<8x1x32xf32>
    %391 = vector.shape_cast %390 : vector<8x1x32xf32> to vector<8x32xf32>
    %c0_381 = arith.constant 0 : index
    %c24_382 = arith.constant 24 : index
    %c0_383 = arith.constant 0 : index
    %392 = vector.load %arg1[%c0_381, %c24_382, %c0_383] : memref<8x32x32xf32, #tpu.memory_space<vmem>>, vector<8x1x32xf32>
    %393 = vector.shape_cast %392 : vector<8x1x32xf32> to vector<8x32xf32>
    %c0_384 = arith.constant 0 : index
    %c25_385 = arith.constant 25 : index
    %c0_386 = arith.constant 0 : index
    %394 = vector.load %arg1[%c0_384, %c25_385, %c0_386] : memref<8x32x32xf32, #tpu.memory_space<vmem>>, vector<8x1x32xf32>
    %395 = vector.shape_cast %394 : vector<8x1x32xf32> to vector<8x32xf32>
    %c0_387 = arith.constant 0 : index
    %c26 = arith.constant 26 : index
    %c0_388 = arith.constant 0 : index
    %396 = vector.load %arg1[%c0_387, %c26, %c0_388] : memref<8x32x32xf32, #tpu.memory_space<vmem>>, vector<8x1x32xf32>
    %397 = vector.shape_cast %396 : vector<8x1x32xf32> to vector<8x32xf32>
    %398 = tpu.concatenate %389, %391, %393, %395, %397 in 1 : vector<8x32xf32>, vector<8x32xf32>, vector<8x32xf32>, vector<8x32xf32>, vector<8x32xf32> -> vector<8x160xf32>
    %cst_389 = arith.constant dense<0.000000e+00> : vector<8x168xf32>
    %399 = tpu.matmul %398, %0, %cst_389 {dimension_numbers = #tpu.dot_dimension_numbers<[1], [0], [0], [1], [0, 0, 1, 1], [], []>} : vector<8x160xf32>, vector<160x168xf32>, vector<8x168xf32> -> vector<8x168xf32>
    %400 = vector.broadcast %1 : vector<1x168xf32> to vector<8x168xf32>
    %401 = arith.addf %399, %400 : vector<8x168xf32>
    %402 = math.tanh %401 : vector<8x168xf32>
    %c0_390 = arith.constant 0 : index
    %c23_391 = arith.constant 23 : index
    %c0_392 = arith.constant 0 : index
    %403 = vector.load %arg1[%c0_390, %c23_391, %c0_392] : memref<8x32x32xf32, #tpu.memory_space<vmem>>, vector<8x1x32xf32>
    %404 = vector.shape_cast %403 : vector<8x1x32xf32> to vector<8x32xf32>
    %c0_393 = arith.constant 0 : index
    %c24_394 = arith.constant 24 : index
    %c0_395 = arith.constant 0 : index
    %405 = vector.load %arg1[%c0_393, %c24_394, %c0_395] : memref<8x32x32xf32, #tpu.memory_space<vmem>>, vector<8x1x32xf32>
    %406 = vector.shape_cast %405 : vector<8x1x32xf32> to vector<8x32xf32>
    %c0_396 = arith.constant 0 : index
    %c25_397 = arith.constant 25 : index
    %c0_398 = arith.constant 0 : index
    %407 = vector.load %arg1[%c0_396, %c25_397, %c0_398] : memref<8x32x32xf32, #tpu.memory_space<vmem>>, vector<8x1x32xf32>
    %408 = vector.shape_cast %407 : vector<8x1x32xf32> to vector<8x32xf32>
    %c0_399 = arith.constant 0 : index
    %c26_400 = arith.constant 26 : index
    %c0_401 = arith.constant 0 : index
    %409 = vector.load %arg1[%c0_399, %c26_400, %c0_401] : memref<8x32x32xf32, #tpu.memory_space<vmem>>, vector<8x1x32xf32>
    %410 = vector.shape_cast %409 : vector<8x1x32xf32> to vector<8x32xf32>
    %c0_402 = arith.constant 0 : index
    %c27 = arith.constant 27 : index
    %c0_403 = arith.constant 0 : index
    %411 = vector.load %arg1[%c0_402, %c27, %c0_403] : memref<8x32x32xf32, #tpu.memory_space<vmem>>, vector<8x1x32xf32>
    %412 = vector.shape_cast %411 : vector<8x1x32xf32> to vector<8x32xf32>
    %413 = tpu.concatenate %404, %406, %408, %410, %412 in 1 : vector<8x32xf32>, vector<8x32xf32>, vector<8x32xf32>, vector<8x32xf32>, vector<8x32xf32> -> vector<8x160xf32>
    %cst_404 = arith.constant dense<0.000000e+00> : vector<8x168xf32>
    %414 = tpu.matmul %413, %0, %cst_404 {dimension_numbers = #tpu.dot_dimension_numbers<[1], [0], [0], [1], [0, 0, 1, 1], [], []>} : vector<8x160xf32>, vector<160x168xf32>, vector<8x168xf32> -> vector<8x168xf32>
    %415 = vector.broadcast %1 : vector<1x168xf32> to vector<8x168xf32>
    %416 = arith.addf %414, %415 : vector<8x168xf32>
    %417 = math.tanh %416 : vector<8x168xf32>
    %418 = arith.addf %402, %417 : vector<8x168xf32>
    %cst_405 = arith.constant dense<0.000000e+00> : vector<8x128xf32>
    %419 = tpu.matmul %418, %2, %cst_405 {dimension_numbers = #tpu.dot_dimension_numbers<[1], [0], [0], [1], [0, 0, 1, 1], [], []>} : vector<8x168xf32>, vector<168x128xf32>, vector<8x128xf32> -> vector<8x128xf32>
    %c11_406 = arith.constant 11 : index
    %c0_407 = arith.constant 0 : index
    %c0_408 = arith.constant 0 : index
    %420 = vector.load %arg15[%c11_406, %c0_407, %c0_408] : memref<14x8x128xf32, #tpu.memory_space<vmem>>, vector<1x8x128xf32>
    %421 = vector.shape_cast %420 : vector<1x8x128xf32> to vector<8x128xf32>
    %422 = vector.shape_cast %419 : vector<8x128xf32> to vector<1x8x128xf32>
    tpu.vector_store %arg15[%c11_406, %c0_407, %c0_408], %422 {strides = array<i32>} : memref<14x8x128xf32, #tpu.memory_space<vmem>>, vector<1x8x128xf32>,
    %c0_409 = arith.constant 0 : index
    %c24_410 = arith.constant 24 : index
    %c0_411 = arith.constant 0 : index
    %423 = vector.load %arg1[%c0_409, %c24_410, %c0_411] : memref<8x32x32xf32, #tpu.memory_space<vmem>>, vector<8x1x32xf32>
    %424 = vector.shape_cast %423 : vector<8x1x32xf32> to vector<8x32xf32>
    %c0_412 = arith.constant 0 : index
    %c25_413 = arith.constant 25 : index
    %c0_414 = arith.constant 0 : index
    %425 = vector.load %arg1[%c0_412, %c25_413, %c0_414] : memref<8x32x32xf32, #tpu.memory_space<vmem>>, vector<8x1x32xf32>
    %426 = vector.shape_cast %425 : vector<8x1x32xf32> to vector<8x32xf32>
    %c0_415 = arith.constant 0 : index
    %c26_416 = arith.constant 26 : index
    %c0_417 = arith.constant 0 : index
    %427 = vector.load %arg1[%c0_415, %c26_416, %c0_417] : memref<8x32x32xf32, #tpu.memory_space<vmem>>, vector<8x1x32xf32>
    %428 = vector.shape_cast %427 : vector<8x1x32xf32> to vector<8x32xf32>
    %c0_418 = arith.constant 0 : index
    %c27_419 = arith.constant 27 : index
    %c0_420 = arith.constant 0 : index
    %429 = vector.load %arg1[%c0_418, %c27_419, %c0_420] : memref<8x32x32xf32, #tpu.memory_space<vmem>>, vector<8x1x32xf32>
    %430 = vector.shape_cast %429 : vector<8x1x32xf32> to vector<8x32xf32>
    %c0_421 = arith.constant 0 : index
    %c28 = arith.constant 28 : index
    %c0_422 = arith.constant 0 : index
    %431 = vector.load %arg1[%c0_421, %c28, %c0_422] : memref<8x32x32xf32, #tpu.memory_space<vmem>>, vector<8x1x32xf32>
    %432 = vector.shape_cast %431 : vector<8x1x32xf32> to vector<8x32xf32>
    %433 = tpu.concatenate %424, %426, %428, %430, %432 in 1 : vector<8x32xf32>, vector<8x32xf32>, vector<8x32xf32>, vector<8x32xf32>, vector<8x32xf32> -> vector<8x160xf32>
    %cst_423 = arith.constant dense<0.000000e+00> : vector<8x168xf32>
    %434 = tpu.matmul %433, %0, %cst_423 {dimension_numbers = #tpu.dot_dimension_numbers<[1], [0], [0], [1], [0, 0, 1, 1], [], []>} : vector<8x160xf32>, vector<160x168xf32>, vector<8x168xf32> -> vector<8x168xf32>
    %435 = vector.broadcast %1 : vector<1x168xf32> to vector<8x168xf32>
    %436 = arith.addf %434, %435 : vector<8x168xf32>
    %437 = math.tanh %436 : vector<8x168xf32>
    %c0_424 = arith.constant 0 : index
    %c25_425 = arith.constant 25 : index
    %c0_426 = arith.constant 0 : index
    %438 = vector.load %arg1[%c0_424, %c25_425, %c0_426] : memref<8x32x32xf32, #tpu.memory_space<vmem>>, vector<8x1x32xf32>
    %439 = vector.shape_cast %438 : vector<8x1x32xf32> to vector<8x32xf32>
    %c0_427 = arith.constant 0 : index
    %c26_428 = arith.constant 26 : index
    %c0_429 = arith.constant 0 : index
    %440 = vector.load %arg1[%c0_427, %c26_428, %c0_429] : memref<8x32x32xf32, #tpu.memory_space<vmem>>, vector<8x1x32xf32>
    %441 = vector.shape_cast %440 : vector<8x1x32xf32> to vector<8x32xf32>
    %c0_430 = arith.constant 0 : index
    %c27_431 = arith.constant 27 : index
    %c0_432 = arith.constant 0 : index
    %442 = vector.load %arg1[%c0_430, %c27_431, %c0_432] : memref<8x32x32xf32, #tpu.memory_space<vmem>>, vector<8x1x32xf32>
    %443 = vector.shape_cast %442 : vector<8x1x32xf32> to vector<8x32xf32>
    %c0_433 = arith.constant 0 : index
    %c28_434 = arith.constant 28 : index
    %c0_435 = arith.constant 0 : index
    %444 = vector.load %arg1[%c0_433, %c28_434, %c0_435] : memref<8x32x32xf32, #tpu.memory_space<vmem>>, vector<8x1x32xf32>
    %445 = vector.shape_cast %444 : vector<8x1x32xf32> to vector<8x32xf32>
    %c0_436 = arith.constant 0 : index
    %c29 = arith.constant 29 : index
    %c0_437 = arith.constant 0 : index
    %446 = vector.load %arg1[%c0_436, %c29, %c0_437] : memref<8x32x32xf32, #tpu.memory_space<vmem>>, vector<8x1x32xf32>
    %447 = vector.shape_cast %446 : vector<8x1x32xf32> to vector<8x32xf32>
    %448 = tpu.concatenate %439, %441, %443, %445, %447 in 1 : vector<8x32xf32>, vector<8x32xf32>, vector<8x32xf32>, vector<8x32xf32>, vector<8x32xf32> -> vector<8x160xf32>
    %cst_438 = arith.constant dense<0.000000e+00> : vector<8x168xf32>
    %449 = tpu.matmul %448, %0, %cst_438 {dimension_numbers = #tpu.dot_dimension_numbers<[1], [0], [0], [1], [0, 0, 1, 1], [], []>} : vector<8x160xf32>, vector<160x168xf32>, vector<8x168xf32> -> vector<8x168xf32>
    %450 = vector.broadcast %1 : vector<1x168xf32> to vector<8x168xf32>
    %451 = arith.addf %449, %450 : vector<8x168xf32>
    %452 = math.tanh %451 : vector<8x168xf32>
    %453 = arith.addf %437, %452 : vector<8x168xf32>
    %cst_439 = arith.constant dense<0.000000e+00> : vector<8x128xf32>
    %454 = tpu.matmul %453, %2, %cst_439 {dimension_numbers = #tpu.dot_dimension_numbers<[1], [0], [0], [1], [0, 0, 1, 1], [], []>} : vector<8x168xf32>, vector<168x128xf32>, vector<8x128xf32> -> vector<8x128xf32>
    %c12_440 = arith.constant 12 : index
    %c0_441 = arith.constant 0 : index
    %c0_442 = arith.constant 0 : index
    %455 = vector.load %arg15[%c12_440, %c0_441, %c0_442] : memref<14x8x128xf32, #tpu.memory_space<vmem>>, vector<1x8x128xf32>
    %456 = vector.shape_cast %455 : vector<1x8x128xf32> to vector<8x128xf32>
    %457 = vector.shape_cast %454 : vector<8x128xf32> to vector<1x8x128xf32>
    tpu.vector_store %arg15[%c12_440, %c0_441, %c0_442], %457 {strides = array<i32>} : memref<14x8x128xf32, #tpu.memory_space<vmem>>, vector<1x8x128xf32>,
    %c0_443 = arith.constant 0 : index
    %c26_444 = arith.constant 26 : index
    %c0_445 = arith.constant 0 : index
    %458 = vector.load %arg1[%c0_443, %c26_444, %c0_445] : memref<8x32x32xf32, #tpu.memory_space<vmem>>, vector<8x1x32xf32>
    %459 = vector.shape_cast %458 : vector<8x1x32xf32> to vector<8x32xf32>
    %c0_446 = arith.constant 0 : index
    %c27_447 = arith.constant 27 : index
    %c0_448 = arith.constant 0 : index
    %460 = vector.load %arg1[%c0_446, %c27_447, %c0_448] : memref<8x32x32xf32, #tpu.memory_space<vmem>>, vector<8x1x32xf32>
    %461 = vector.shape_cast %460 : vector<8x1x32xf32> to vector<8x32xf32>
    %c0_449 = arith.constant 0 : index
    %c28_450 = arith.constant 28 : index
    %c0_451 = arith.constant 0 : index
    %462 = vector.load %arg1[%c0_449, %c28_450, %c0_451] : memref<8x32x32xf32, #tpu.memory_space<vmem>>, vector<8x1x32xf32>
    %463 = vector.shape_cast %462 : vector<8x1x32xf32> to vector<8x32xf32>
    %c0_452 = arith.constant 0 : index
    %c29_453 = arith.constant 29 : index
    %c0_454 = arith.constant 0 : index
    %464 = vector.load %arg1[%c0_452, %c29_453, %c0_454] : memref<8x32x32xf32, #tpu.memory_space<vmem>>, vector<8x1x32xf32>
    %465 = vector.shape_cast %464 : vector<8x1x32xf32> to vector<8x32xf32>
    %c0_455 = arith.constant 0 : index
    %c30 = arith.constant 30 : index
    %c0_456 = arith.constant 0 : index
    %466 = vector.load %arg1[%c0_455, %c30, %c0_456] : memref<8x32x32xf32, #tpu.memory_space<vmem>>, vector<8x1x32xf32>
    %467 = vector.shape_cast %466 : vector<8x1x32xf32> to vector<8x32xf32>
    %468 = tpu.concatenate %459, %461, %463, %465, %467 in 1 : vector<8x32xf32>, vector<8x32xf32>, vector<8x32xf32>, vector<8x32xf32>, vector<8x32xf32> -> vector<8x160xf32>
    %cst_457 = arith.constant dense<0.000000e+00> : vector<8x168xf32>
    %469 = tpu.matmul %468, %0, %cst_457 {dimension_numbers = #tpu.dot_dimension_numbers<[1], [0], [0], [1], [0, 0, 1, 1], [], []>} : vector<8x160xf32>, vector<160x168xf32>, vector<8x168xf32> -> vector<8x168xf32>
    %470 = vector.broadcast %1 : vector<1x168xf32> to vector<8x168xf32>
    %471 = arith.addf %469, %470 : vector<8x168xf32>
    %472 = math.tanh %471 : vector<8x168xf32>
    %c0_458 = arith.constant 0 : index
    %c27_459 = arith.constant 27 : index
    %c0_460 = arith.constant 0 : index
    %473 = vector.load %arg1[%c0_458, %c27_459, %c0_460] : memref<8x32x32xf32, #tpu.memory_space<vmem>>, vector<8x1x32xf32>
    %474 = vector.shape_cast %473 : vector<8x1x32xf32> to vector<8x32xf32>
    %c0_461 = arith.constant 0 : index
    %c28_462 = arith.constant 28 : index
    %c0_463 = arith.constant 0 : index
    %475 = vector.load %arg1[%c0_461, %c28_462, %c0_463] : memref<8x32x32xf32, #tpu.memory_space<vmem>>, vector<8x1x32xf32>
    %476 = vector.shape_cast %475 : vector<8x1x32xf32> to vector<8x32xf32>
    %c0_464 = arith.constant 0 : index
    %c29_465 = arith.constant 29 : index
    %c0_466 = arith.constant 0 : index
    %477 = vector.load %arg1[%c0_464, %c29_465, %c0_466] : memref<8x32x32xf32, #tpu.memory_space<vmem>>, vector<8x1x32xf32>
    %478 = vector.shape_cast %477 : vector<8x1x32xf32> to vector<8x32xf32>
    %c0_467 = arith.constant 0 : index
    %c30_468 = arith.constant 30 : index
    %c0_469 = arith.constant 0 : index
    %479 = vector.load %arg1[%c0_467, %c30_468, %c0_469] : memref<8x32x32xf32, #tpu.memory_space<vmem>>, vector<8x1x32xf32>
    %480 = vector.shape_cast %479 : vector<8x1x32xf32> to vector<8x32xf32>
    %c0_470 = arith.constant 0 : index
    %c31 = arith.constant 31 : index
    %c0_471 = arith.constant 0 : index
    %481 = vector.load %arg1[%c0_470, %c31, %c0_471] : memref<8x32x32xf32, #tpu.memory_space<vmem>>, vector<8x1x32xf32>
    %482 = vector.shape_cast %481 : vector<8x1x32xf32> to vector<8x32xf32>
    %483 = tpu.concatenate %474, %476, %478, %480, %482 in 1 : vector<8x32xf32>, vector<8x32xf32>, vector<8x32xf32>, vector<8x32xf32>, vector<8x32xf32> -> vector<8x160xf32>
    %cst_472 = arith.constant dense<0.000000e+00> : vector<8x168xf32>
    %484 = tpu.matmul %483, %0, %cst_472 {dimension_numbers = #tpu.dot_dimension_numbers<[1], [0], [0], [1], [0, 0, 1, 1], [], []>} : vector<8x160xf32>, vector<160x168xf32>, vector<8x168xf32> -> vector<8x168xf32>
    %485 = vector.broadcast %1 : vector<1x168xf32> to vector<8x168xf32>
    %486 = arith.addf %484, %485 : vector<8x168xf32>
    %487 = math.tanh %486 : vector<8x168xf32>
    %488 = arith.addf %472, %487 : vector<8x168xf32>
    %cst_473 = arith.constant dense<0.000000e+00> : vector<8x128xf32>
    %489 = tpu.matmul %488, %2, %cst_473 {dimension_numbers = #tpu.dot_dimension_numbers<[1], [0], [0], [1], [0, 0, 1, 1], [], []>} : vector<8x168xf32>, vector<168x128xf32>, vector<8x128xf32> -> vector<8x128xf32>
    %c13_474 = arith.constant 13 : index
    %c0_475 = arith.constant 0 : index
    %c0_476 = arith.constant 0 : index
    %490 = vector.load %arg15[%c13_474, %c0_475, %c0_476] : memref<14x8x128xf32, #tpu.memory_space<vmem>>, vector<1x8x128xf32>
    %491 = vector.shape_cast %490 : vector<1x8x128xf32> to vector<8x128xf32>
    %492 = vector.shape_cast %489 : vector<8x128xf32> to vector<1x8x128xf32>
    tpu.vector_store %arg15[%c13_474, %c0_475, %c0_476], %492 {strides = array<i32>} : memref<14x8x128xf32, #tpu.memory_space<vmem>>, vector<1x8x128xf32>,
    %c0_477 = arith.constant 0 : index
    %c0_478 = arith.constant 0 : index
    %493 = vector.load %arg5[%c0_477, %c0_478] : memref<640x160xf32, #tpu.memory_space<vmem>>, vector<640x160xf32>
    %c0_479 = arith.constant 0 : index
    %c0_480 = arith.constant 0 : index
    %494 = vector.load %arg6[%c0_479, %c0_480] : memref<1x160xf32, #tpu.memory_space<vmem>>, vector<1x160xf32>
    %c0_481 = arith.constant 0 : index
    %c0_482 = arith.constant 0 : index
    %495 = vector.load %arg7[%c0_481, %c0_482] : memref<160x128xf32, #tpu.memory_space<vmem>>, vector<160x128xf32>
    %c0_483 = arith.constant 0 : index
    %c0_484 = arith.constant 0 : index
    %c0_485 = arith.constant 0 : index
    %496 = vector.load %arg15[%c0_483, %c0_484, %c0_485] : memref<14x8x128xf32, #tpu.memory_space<vmem>>, vector<1x8x128xf32>
    %497 = vector.shape_cast %496 : vector<1x8x128xf32> to vector<8x128xf32>
    %c1_486 = arith.constant 1 : index
    %c0_487 = arith.constant 0 : index
    %c0_488 = arith.constant 0 : index
    %498 = vector.load %arg15[%c1_486, %c0_487, %c0_488] : memref<14x8x128xf32, #tpu.memory_space<vmem>>, vector<1x8x128xf32>
    %499 = vector.shape_cast %498 : vector<1x8x128xf32> to vector<8x128xf32>
    %c2_489 = arith.constant 2 : index
    %c0_490 = arith.constant 0 : index
    %c0_491 = arith.constant 0 : index
    %500 = vector.load %arg15[%c2_489, %c0_490, %c0_491] : memref<14x8x128xf32, #tpu.memory_space<vmem>>, vector<1x8x128xf32>
    %501 = vector.shape_cast %500 : vector<1x8x128xf32> to vector<8x128xf32>
    %c3_492 = arith.constant 3 : index
    %c0_493 = arith.constant 0 : index
    %c0_494 = arith.constant 0 : index
    %502 = vector.load %arg15[%c3_492, %c0_493, %c0_494] : memref<14x8x128xf32, #tpu.memory_space<vmem>>, vector<1x8x128xf32>
    %503 = vector.shape_cast %502 : vector<1x8x128xf32> to vector<8x128xf32>
    %c4_495 = arith.constant 4 : index
    %c0_496 = arith.constant 0 : index
    %c0_497 = arith.constant 0 : index
    %504 = vector.load %arg15[%c4_495, %c0_496, %c0_497] : memref<14x8x128xf32, #tpu.memory_space<vmem>>, vector<1x8x128xf32>
    %505 = vector.shape_cast %504 : vector<1x8x128xf32> to vector<8x128xf32>
    %506 = tpu.concatenate %497, %499, %501, %503, %505 in 1 : vector<8x128xf32>, vector<8x128xf32>, vector<8x128xf32>, vector<8x128xf32>, vector<8x128xf32> -> vector<8x640xf32>
    %cst_498 = arith.constant dense<0.000000e+00> : vector<8x160xf32>
    %507 = tpu.matmul %506, %493, %cst_498 {dimension_numbers = #tpu.dot_dimension_numbers<[1], [0], [0], [1], [0, 0, 1, 1], [], []>} : vector<8x640xf32>, vector<640x160xf32>, vector<8x160xf32> -> vector<8x160xf32>
    %508 = vector.broadcast %494 : vector<1x160xf32> to vector<8x160xf32>
    %509 = arith.addf %507, %508 : vector<8x160xf32>
    %510 = math.tanh %509 : vector<8x160xf32>
    %c1_499 = arith.constant 1 : index
    %c0_500 = arith.constant 0 : index
    %c0_501 = arith.constant 0 : index
    %511 = vector.load %arg15[%c1_499, %c0_500, %c0_501] : memref<14x8x128xf32, #tpu.memory_space<vmem>>, vector<1x8x128xf32>
    %512 = vector.shape_cast %511 : vector<1x8x128xf32> to vector<8x128xf32>
    %c2_502 = arith.constant 2 : index
    %c0_503 = arith.constant 0 : index
    %c0_504 = arith.constant 0 : index
    %513 = vector.load %arg15[%c2_502, %c0_503, %c0_504] : memref<14x8x128xf32, #tpu.memory_space<vmem>>, vector<1x8x128xf32>
    %514 = vector.shape_cast %513 : vector<1x8x128xf32> to vector<8x128xf32>
    %c3_505 = arith.constant 3 : index
    %c0_506 = arith.constant 0 : index
    %c0_507 = arith.constant 0 : index
    %515 = vector.load %arg15[%c3_505, %c0_506, %c0_507] : memref<14x8x128xf32, #tpu.memory_space<vmem>>, vector<1x8x128xf32>
    %516 = vector.shape_cast %515 : vector<1x8x128xf32> to vector<8x128xf32>
    %c4_508 = arith.constant 4 : index
    %c0_509 = arith.constant 0 : index
    %c0_510 = arith.constant 0 : index
    %517 = vector.load %arg15[%c4_508, %c0_509, %c0_510] : memref<14x8x128xf32, #tpu.memory_space<vmem>>, vector<1x8x128xf32>
    %518 = vector.shape_cast %517 : vector<1x8x128xf32> to vector<8x128xf32>
    %c5_511 = arith.constant 5 : index
    %c0_512 = arith.constant 0 : index
    %c0_513 = arith.constant 0 : index
    %519 = vector.load %arg15[%c5_511, %c0_512, %c0_513] : memref<14x8x128xf32, #tpu.memory_space<vmem>>, vector<1x8x128xf32>
    %520 = vector.shape_cast %519 : vector<1x8x128xf32> to vector<8x128xf32>
    %521 = tpu.concatenate %512, %514, %516, %518, %520 in 1 : vector<8x128xf32>, vector<8x128xf32>, vector<8x128xf32>, vector<8x128xf32>, vector<8x128xf32> -> vector<8x640xf32>
    %cst_514 = arith.constant dense<0.000000e+00> : vector<8x160xf32>
    %522 = tpu.matmul %521, %493, %cst_514 {dimension_numbers = #tpu.dot_dimension_numbers<[1], [0], [0], [1], [0, 0, 1, 1], [], []>} : vector<8x640xf32>, vector<640x160xf32>, vector<8x160xf32> -> vector<8x160xf32>
    %523 = vector.broadcast %494 : vector<1x160xf32> to vector<8x160xf32>
    %524 = arith.addf %522, %523 : vector<8x160xf32>
    %525 = math.tanh %524 : vector<8x160xf32>
    %526 = arith.addf %510, %525 : vector<8x160xf32>
    %cst_515 = arith.constant dense<0.000000e+00> : vector<8x128xf32>
    %527 = tpu.matmul %526, %495, %cst_515 {dimension_numbers = #tpu.dot_dimension_numbers<[1], [0], [0], [1], [0, 0, 1, 1], [], []>} : vector<8x160xf32>, vector<160x128xf32>, vector<8x128xf32> -> vector<8x128xf32>
    %c0_516 = arith.constant 0 : index
    %c0_517 = arith.constant 0 : index
    %c0_518 = arith.constant 0 : index
    %528 = vector.load %arg16[%c0_516, %c0_517, %c0_518] : memref<5x8x128xf32, #tpu.memory_space<vmem>>, vector<1x8x128xf32>
    %529 = vector.shape_cast %528 : vector<1x8x128xf32> to vector<8x128xf32>
    %530 = vector.shape_cast %527 : vector<8x128xf32> to vector<1x8x128xf32>
    tpu.vector_store %arg16[%c0_516, %c0_517, %c0_518], %530 {strides = array<i32>} : memref<5x8x128xf32, #tpu.memory_space<vmem>>, vector<1x8x128xf32>,
    %c2_519 = arith.constant 2 : index
    %c0_520 = arith.constant 0 : index
    %c0_521 = arith.constant 0 : index
    %531 = vector.load %arg15[%c2_519, %c0_520, %c0_521] : memref<14x8x128xf32, #tpu.memory_space<vmem>>, vector<1x8x128xf32>
    %532 = vector.shape_cast %531 : vector<1x8x128xf32> to vector<8x128xf32>
    %c3_522 = arith.constant 3 : index
    %c0_523 = arith.constant 0 : index
    %c0_524 = arith.constant 0 : index
    %533 = vector.load %arg15[%c3_522, %c0_523, %c0_524] : memref<14x8x128xf32, #tpu.memory_space<vmem>>, vector<1x8x128xf32>
    %534 = vector.shape_cast %533 : vector<1x8x128xf32> to vector<8x128xf32>
    %c4_525 = arith.constant 4 : index
    %c0_526 = arith.constant 0 : index
    %c0_527 = arith.constant 0 : index
    %535 = vector.load %arg15[%c4_525, %c0_526, %c0_527] : memref<14x8x128xf32, #tpu.memory_space<vmem>>, vector<1x8x128xf32>
    %536 = vector.shape_cast %535 : vector<1x8x128xf32> to vector<8x128xf32>
    %c5_528 = arith.constant 5 : index
    %c0_529 = arith.constant 0 : index
    %c0_530 = arith.constant 0 : index
    %537 = vector.load %arg15[%c5_528, %c0_529, %c0_530] : memref<14x8x128xf32, #tpu.memory_space<vmem>>, vector<1x8x128xf32>
    %538 = vector.shape_cast %537 : vector<1x8x128xf32> to vector<8x128xf32>
    %c6_531 = arith.constant 6 : index
    %c0_532 = arith.constant 0 : index
    %c0_533 = arith.constant 0 : index
    %539 = vector.load %arg15[%c6_531, %c0_532, %c0_533] : memref<14x8x128xf32, #tpu.memory_space<vmem>>, vector<1x8x128xf32>
    %540 = vector.shape_cast %539 : vector<1x8x128xf32> to vector<8x128xf32>
    %541 = tpu.concatenate %532, %534, %536, %538, %540 in 1 : vector<8x128xf32>, vector<8x128xf32>, vector<8x128xf32>, vector<8x128xf32>, vector<8x128xf32> -> vector<8x640xf32>
    %cst_534 = arith.constant dense<0.000000e+00> : vector<8x160xf32>
    %542 = tpu.matmul %541, %493, %cst_534 {dimension_numbers = #tpu.dot_dimension_numbers<[1], [0], [0], [1], [0, 0, 1, 1], [], []>} : vector<8x640xf32>, vector<640x160xf32>, vector<8x160xf32> -> vector<8x160xf32>
    %543 = vector.broadcast %494 : vector<1x160xf32> to vector<8x160xf32>
    %544 = arith.addf %542, %543 : vector<8x160xf32>
    %545 = math.tanh %544 : vector<8x160xf32>
    %c3_535 = arith.constant 3 : index
    %c0_536 = arith.constant 0 : index
    %c0_537 = arith.constant 0 : index
    %546 = vector.load %arg15[%c3_535, %c0_536, %c0_537] : memref<14x8x128xf32, #tpu.memory_space<vmem>>, vector<1x8x128xf32>
    %547 = vector.shape_cast %546 : vector<1x8x128xf32> to vector<8x128xf32>
    %c4_538 = arith.constant 4 : index
    %c0_539 = arith.constant 0 : index
    %c0_540 = arith.constant 0 : index
    %548 = vector.load %arg15[%c4_538, %c0_539, %c0_540] : memref<14x8x128xf32, #tpu.memory_space<vmem>>, vector<1x8x128xf32>
    %549 = vector.shape_cast %548 : vector<1x8x128xf32> to vector<8x128xf32>
    %c5_541 = arith.constant 5 : index
    %c0_542 = arith.constant 0 : index
    %c0_543 = arith.constant 0 : index
    %550 = vector.load %arg15[%c5_541, %c0_542, %c0_543] : memref<14x8x128xf32, #tpu.memory_space<vmem>>, vector<1x8x128xf32>
    %551 = vector.shape_cast %550 : vector<1x8x128xf32> to vector<8x128xf32>
    %c6_544 = arith.constant 6 : index
    %c0_545 = arith.constant 0 : index
    %c0_546 = arith.constant 0 : index
    %552 = vector.load %arg15[%c6_544, %c0_545, %c0_546] : memref<14x8x128xf32, #tpu.memory_space<vmem>>, vector<1x8x128xf32>
    %553 = vector.shape_cast %552 : vector<1x8x128xf32> to vector<8x128xf32>
    %c7_547 = arith.constant 7 : index
    %c0_548 = arith.constant 0 : index
    %c0_549 = arith.constant 0 : index
    %554 = vector.load %arg15[%c7_547, %c0_548, %c0_549] : memref<14x8x128xf32, #tpu.memory_space<vmem>>, vector<1x8x128xf32>
    %555 = vector.shape_cast %554 : vector<1x8x128xf32> to vector<8x128xf32>
    %556 = tpu.concatenate %547, %549, %551, %553, %555 in 1 : vector<8x128xf32>, vector<8x128xf32>, vector<8x128xf32>, vector<8x128xf32>, vector<8x128xf32> -> vector<8x640xf32>
    %cst_550 = arith.constant dense<0.000000e+00> : vector<8x160xf32>
    %557 = tpu.matmul %556, %493, %cst_550 {dimension_numbers = #tpu.dot_dimension_numbers<[1], [0], [0], [1], [0, 0, 1, 1], [], []>} : vector<8x640xf32>, vector<640x160xf32>, vector<8x160xf32> -> vector<8x160xf32>
    %558 = vector.broadcast %494 : vector<1x160xf32> to vector<8x160xf32>
    %559 = arith.addf %557, %558 : vector<8x160xf32>
    %560 = math.tanh %559 : vector<8x160xf32>
    %561 = arith.addf %545, %560 : vector<8x160xf32>
    %cst_551 = arith.constant dense<0.000000e+00> : vector<8x128xf32>
    %562 = tpu.matmul %561, %495, %cst_551 {dimension_numbers = #tpu.dot_dimension_numbers<[1], [0], [0], [1], [0, 0, 1, 1], [], []>} : vector<8x160xf32>, vector<160x128xf32>, vector<8x128xf32> -> vector<8x128xf32>
    %c1_552 = arith.constant 1 : index
    %c0_553 = arith.constant 0 : index
    %c0_554 = arith.constant 0 : index
    %563 = vector.load %arg16[%c1_552, %c0_553, %c0_554] : memref<5x8x128xf32, #tpu.memory_space<vmem>>, vector<1x8x128xf32>
    %564 = vector.shape_cast %563 : vector<1x8x128xf32> to vector<8x128xf32>
    %565 = vector.shape_cast %562 : vector<8x128xf32> to vector<1x8x128xf32>
    tpu.vector_store %arg16[%c1_552, %c0_553, %c0_554], %565 {strides = array<i32>} : memref<5x8x128xf32, #tpu.memory_space<vmem>>, vector<1x8x128xf32>,
    %c4_555 = arith.constant 4 : index
    %c0_556 = arith.constant 0 : index
    %c0_557 = arith.constant 0 : index
    %566 = vector.load %arg15[%c4_555, %c0_556, %c0_557] : memref<14x8x128xf32, #tpu.memory_space<vmem>>, vector<1x8x128xf32>
    %567 = vector.shape_cast %566 : vector<1x8x128xf32> to vector<8x128xf32>
    %c5_558 = arith.constant 5 : index
    %c0_559 = arith.constant 0 : index
    %c0_560 = arith.constant 0 : index
    %568 = vector.load %arg15[%c5_558, %c0_559, %c0_560] : memref<14x8x128xf32, #tpu.memory_space<vmem>>, vector<1x8x128xf32>
    %569 = vector.shape_cast %568 : vector<1x8x128xf32> to vector<8x128xf32>
    %c6_561 = arith.constant 6 : index
    %c0_562 = arith.constant 0 : index
    %c0_563 = arith.constant 0 : index
    %570 = vector.load %arg15[%c6_561, %c0_562, %c0_563] : memref<14x8x128xf32, #tpu.memory_space<vmem>>, vector<1x8x128xf32>
    %571 = vector.shape_cast %570 : vector<1x8x128xf32> to vector<8x128xf32>
    %c7_564 = arith.constant 7 : index
    %c0_565 = arith.constant 0 : index
    %c0_566 = arith.constant 0 : index
    %572 = vector.load %arg15[%c7_564, %c0_565, %c0_566] : memref<14x8x128xf32, #tpu.memory_space<vmem>>, vector<1x8x128xf32>
    %573 = vector.shape_cast %572 : vector<1x8x128xf32> to vector<8x128xf32>
    %c8_567 = arith.constant 8 : index
    %c0_568 = arith.constant 0 : index
    %c0_569 = arith.constant 0 : index
    %574 = vector.load %arg15[%c8_567, %c0_568, %c0_569] : memref<14x8x128xf32, #tpu.memory_space<vmem>>, vector<1x8x128xf32>
    %575 = vector.shape_cast %574 : vector<1x8x128xf32> to vector<8x128xf32>
    %576 = tpu.concatenate %567, %569, %571, %573, %575 in 1 : vector<8x128xf32>, vector<8x128xf32>, vector<8x128xf32>, vector<8x128xf32>, vector<8x128xf32> -> vector<8x640xf32>
    %cst_570 = arith.constant dense<0.000000e+00> : vector<8x160xf32>
    %577 = tpu.matmul %576, %493, %cst_570 {dimension_numbers = #tpu.dot_dimension_numbers<[1], [0], [0], [1], [0, 0, 1, 1], [], []>} : vector<8x640xf32>, vector<640x160xf32>, vector<8x160xf32> -> vector<8x160xf32>
    %578 = vector.broadcast %494 : vector<1x160xf32> to vector<8x160xf32>
    %579 = arith.addf %577, %578 : vector<8x160xf32>
    %580 = math.tanh %579 : vector<8x160xf32>
    %c5_571 = arith.constant 5 : index
    %c0_572 = arith.constant 0 : index
    %c0_573 = arith.constant 0 : index
    %581 = vector.load %arg15[%c5_571, %c0_572, %c0_573] : memref<14x8x128xf32, #tpu.memory_space<vmem>>, vector<1x8x128xf32>
    %582 = vector.shape_cast %581 : vector<1x8x128xf32> to vector<8x128xf32>
    %c6_574 = arith.constant 6 : index
    %c0_575 = arith.constant 0 : index
    %c0_576 = arith.constant 0 : index
    %583 = vector.load %arg15[%c6_574, %c0_575, %c0_576] : memref<14x8x128xf32, #tpu.memory_space<vmem>>, vector<1x8x128xf32>
    %584 = vector.shape_cast %583 : vector<1x8x128xf32> to vector<8x128xf32>
    %c7_577 = arith.constant 7 : index
    %c0_578 = arith.constant 0 : index
    %c0_579 = arith.constant 0 : index
    %585 = vector.load %arg15[%c7_577, %c0_578, %c0_579] : memref<14x8x128xf32, #tpu.memory_space<vmem>>, vector<1x8x128xf32>
    %586 = vector.shape_cast %585 : vector<1x8x128xf32> to vector<8x128xf32>
    %c8_580 = arith.constant 8 : index
    %c0_581 = arith.constant 0 : index
    %c0_582 = arith.constant 0 : index
    %587 = vector.load %arg15[%c8_580, %c0_581, %c0_582] : memref<14x8x128xf32, #tpu.memory_space<vmem>>, vector<1x8x128xf32>
    %588 = vector.shape_cast %587 : vector<1x8x128xf32> to vector<8x128xf32>
    %c9_583 = arith.constant 9 : index
    %c0_584 = arith.constant 0 : index
    %c0_585 = arith.constant 0 : index
    %589 = vector.load %arg15[%c9_583, %c0_584, %c0_585] : memref<14x8x128xf32, #tpu.memory_space<vmem>>, vector<1x8x128xf32>
    %590 = vector.shape_cast %589 : vector<1x8x128xf32> to vector<8x128xf32>
    %591 = tpu.concatenate %582, %584, %586, %588, %590 in 1 : vector<8x128xf32>, vector<8x128xf32>, vector<8x128xf32>, vector<8x128xf32>, vector<8x128xf32> -> vector<8x640xf32>
    %cst_586 = arith.constant dense<0.000000e+00> : vector<8x160xf32>
    %592 = tpu.matmul %591, %493, %cst_586 {dimension_numbers = #tpu.dot_dimension_numbers<[1], [0], [0], [1], [0, 0, 1, 1], [], []>} : vector<8x640xf32>, vector<640x160xf32>, vector<8x160xf32> -> vector<8x160xf32>
    %593 = vector.broadcast %494 : vector<1x160xf32> to vector<8x160xf32>
    %594 = arith.addf %592, %593 : vector<8x160xf32>
    %595 = math.tanh %594 : vector<8x160xf32>
    %596 = arith.addf %580, %595 : vector<8x160xf32>
    %cst_587 = arith.constant dense<0.000000e+00> : vector<8x128xf32>
    %597 = tpu.matmul %596, %495, %cst_587 {dimension_numbers = #tpu.dot_dimension_numbers<[1], [0], [0], [1], [0, 0, 1, 1], [], []>} : vector<8x160xf32>, vector<160x128xf32>, vector<8x128xf32> -> vector<8x128xf32>
    %c2_588 = arith.constant 2 : index
    %c0_589 = arith.constant 0 : index
    %c0_590 = arith.constant 0 : index
    %598 = vector.load %arg16[%c2_588, %c0_589, %c0_590] : memref<5x8x128xf32, #tpu.memory_space<vmem>>, vector<1x8x128xf32>
    %599 = vector.shape_cast %598 : vector<1x8x128xf32> to vector<8x128xf32>
    %600 = vector.shape_cast %597 : vector<8x128xf32> to vector<1x8x128xf32>
    tpu.vector_store %arg16[%c2_588, %c0_589, %c0_590], %600 {strides = array<i32>} : memref<5x8x128xf32, #tpu.memory_space<vmem>>, vector<1x8x128xf32>,
    %c6_591 = arith.constant 6 : index
    %c0_592 = arith.constant 0 : index
    %c0_593 = arith.constant 0 : index
    %601 = vector.load %arg15[%c6_591, %c0_592, %c0_593] : memref<14x8x128xf32, #tpu.memory_space<vmem>>, vector<1x8x128xf32>
    %602 = vector.shape_cast %601 : vector<1x8x128xf32> to vector<8x128xf32>
    %c7_594 = arith.constant 7 : index
    %c0_595 = arith.constant 0 : index
    %c0_596 = arith.constant 0 : index
    %603 = vector.load %arg15[%c7_594, %c0_595, %c0_596] : memref<14x8x128xf32, #tpu.memory_space<vmem>>, vector<1x8x128xf32>
    %604 = vector.shape_cast %603 : vector<1x8x128xf32> to vector<8x128xf32>
    %c8_597 = arith.constant 8 : index
    %c0_598 = arith.constant 0 : index
    %c0_599 = arith.constant 0 : index
    %605 = vector.load %arg15[%c8_597, %c0_598, %c0_599] : memref<14x8x128xf32, #tpu.memory_space<vmem>>, vector<1x8x128xf32>
    %606 = vector.shape_cast %605 : vector<1x8x128xf32> to vector<8x128xf32>
    %c9_600 = arith.constant 9 : index
    %c0_601 = arith.constant 0 : index
    %c0_602 = arith.constant 0 : index
    %607 = vector.load %arg15[%c9_600, %c0_601, %c0_602] : memref<14x8x128xf32, #tpu.memory_space<vmem>>, vector<1x8x128xf32>
    %608 = vector.shape_cast %607 : vector<1x8x128xf32> to vector<8x128xf32>
    %c10_603 = arith.constant 10 : index
    %c0_604 = arith.constant 0 : index
    %c0_605 = arith.constant 0 : index
    %609 = vector.load %arg15[%c10_603, %c0_604, %c0_605] : memref<14x8x128xf32, #tpu.memory_space<vmem>>, vector<1x8x128xf32>
    %610 = vector.shape_cast %609 : vector<1x8x128xf32> to vector<8x128xf32>
    %611 = tpu.concatenate %602, %604, %606, %608, %610 in 1 : vector<8x128xf32>, vector<8x128xf32>, vector<8x128xf32>, vector<8x128xf32>, vector<8x128xf32> -> vector<8x640xf32>
    %cst_606 = arith.constant dense<0.000000e+00> : vector<8x160xf32>
    %612 = tpu.matmul %611, %493, %cst_606 {dimension_numbers = #tpu.dot_dimension_numbers<[1], [0], [0], [1], [0, 0, 1, 1], [], []>} : vector<8x640xf32>, vector<640x160xf32>, vector<8x160xf32> -> vector<8x160xf32>
    %613 = vector.broadcast %494 : vector<1x160xf32> to vector<8x160xf32>
    %614 = arith.addf %612, %613 : vector<8x160xf32>
    %615 = math.tanh %614 : vector<8x160xf32>
    %c7_607 = arith.constant 7 : index
    %c0_608 = arith.constant 0 : index
    %c0_609 = arith.constant 0 : index
    %616 = vector.load %arg15[%c7_607, %c0_608, %c0_609] : memref<14x8x128xf32, #tpu.memory_space<vmem>>, vector<1x8x128xf32>
    %617 = vector.shape_cast %616 : vector<1x8x128xf32> to vector<8x128xf32>
    %c8_610 = arith.constant 8 : index
    %c0_611 = arith.constant 0 : index
    %c0_612 = arith.constant 0 : index
    %618 = vector.load %arg15[%c8_610, %c0_611, %c0_612] : memref<14x8x128xf32, #tpu.memory_space<vmem>>, vector<1x8x128xf32>
    %619 = vector.shape_cast %618 : vector<1x8x128xf32> to vector<8x128xf32>
    %c9_613 = arith.constant 9 : index
    %c0_614 = arith.constant 0 : index
    %c0_615 = arith.constant 0 : index
    %620 = vector.load %arg15[%c9_613, %c0_614, %c0_615] : memref<14x8x128xf32, #tpu.memory_space<vmem>>, vector<1x8x128xf32>
    %621 = vector.shape_cast %620 : vector<1x8x128xf32> to vector<8x128xf32>
    %c10_616 = arith.constant 10 : index
    %c0_617 = arith.constant 0 : index
    %c0_618 = arith.constant 0 : index
    %622 = vector.load %arg15[%c10_616, %c0_617, %c0_618] : memref<14x8x128xf32, #tpu.memory_space<vmem>>, vector<1x8x128xf32>
    %623 = vector.shape_cast %622 : vector<1x8x128xf32> to vector<8x128xf32>
    %c11_619 = arith.constant 11 : index
    %c0_620 = arith.constant 0 : index
    %c0_621 = arith.constant 0 : index
    %624 = vector.load %arg15[%c11_619, %c0_620, %c0_621] : memref<14x8x128xf32, #tpu.memory_space<vmem>>, vector<1x8x128xf32>
    %625 = vector.shape_cast %624 : vector<1x8x128xf32> to vector<8x128xf32>
    %626 = tpu.concatenate %617, %619, %621, %623, %625 in 1 : vector<8x128xf32>, vector<8x128xf32>, vector<8x128xf32>, vector<8x128xf32>, vector<8x128xf32> -> vector<8x640xf32>
    %cst_622 = arith.constant dense<0.000000e+00> : vector<8x160xf32>
    %627 = tpu.matmul %626, %493, %cst_622 {dimension_numbers = #tpu.dot_dimension_numbers<[1], [0], [0], [1], [0, 0, 1, 1], [], []>} : vector<8x640xf32>, vector<640x160xf32>, vector<8x160xf32> -> vector<8x160xf32>
    %628 = vector.broadcast %494 : vector<1x160xf32> to vector<8x160xf32>
    %629 = arith.addf %627, %628 : vector<8x160xf32>
    %630 = math.tanh %629 : vector<8x160xf32>
    %631 = arith.addf %615, %630 : vector<8x160xf32>
    %cst_623 = arith.constant dense<0.000000e+00> : vector<8x128xf32>
    %632 = tpu.matmul %631, %495, %cst_623 {dimension_numbers = #tpu.dot_dimension_numbers<[1], [0], [0], [1], [0, 0, 1, 1], [], []>} : vector<8x160xf32>, vector<160x128xf32>, vector<8x128xf32> -> vector<8x128xf32>
    %c3_624 = arith.constant 3 : index
    %c0_625 = arith.constant 0 : index
    %c0_626 = arith.constant 0 : index
    %633 = vector.load %arg16[%c3_624, %c0_625, %c0_626] : memref<5x8x128xf32, #tpu.memory_space<vmem>>, vector<1x8x128xf32>
    %634 = vector.shape_cast %633 : vector<1x8x128xf32> to vector<8x128xf32>
    %635 = vector.shape_cast %632 : vector<8x128xf32> to vector<1x8x128xf32>
    tpu.vector_store %arg16[%c3_624, %c0_625, %c0_626], %635 {strides = array<i32>} : memref<5x8x128xf32, #tpu.memory_space<vmem>>, vector<1x8x128xf32>,
    %c8_627 = arith.constant 8 : index
    %c0_628 = arith.constant 0 : index
    %c0_629 = arith.constant 0 : index
    %636 = vector.load %arg15[%c8_627, %c0_628, %c0_629] : memref<14x8x128xf32, #tpu.memory_space<vmem>>, vector<1x8x128xf32>
    %637 = vector.shape_cast %636 : vector<1x8x128xf32> to vector<8x128xf32>
    %c9_630 = arith.constant 9 : index
    %c0_631 = arith.constant 0 : index
    %c0_632 = arith.constant 0 : index
    %638 = vector.load %arg15[%c9_630, %c0_631, %c0_632] : memref<14x8x128xf32, #tpu.memory_space<vmem>>, vector<1x8x128xf32>
    %639 = vector.shape_cast %638 : vector<1x8x128xf32> to vector<8x128xf32>
    %c10_633 = arith.constant 10 : index
    %c0_634 = arith.constant 0 : index
    %c0_635 = arith.constant 0 : index
    %640 = vector.load %arg15[%c10_633, %c0_634, %c0_635] : memref<14x8x128xf32, #tpu.memory_space<vmem>>, vector<1x8x128xf32>
    %641 = vector.shape_cast %640 : vector<1x8x128xf32> to vector<8x128xf32>
    %c11_636 = arith.constant 11 : index
    %c0_637 = arith.constant 0 : index
    %c0_638 = arith.constant 0 : index
    %642 = vector.load %arg15[%c11_636, %c0_637, %c0_638] : memref<14x8x128xf32, #tpu.memory_space<vmem>>, vector<1x8x128xf32>
    %643 = vector.shape_cast %642 : vector<1x8x128xf32> to vector<8x128xf32>
    %c12_639 = arith.constant 12 : index
    %c0_640 = arith.constant 0 : index
    %c0_641 = arith.constant 0 : index
    %644 = vector.load %arg15[%c12_639, %c0_640, %c0_641] : memref<14x8x128xf32, #tpu.memory_space<vmem>>, vector<1x8x128xf32>
    %645 = vector.shape_cast %644 : vector<1x8x128xf32> to vector<8x128xf32>
    %646 = tpu.concatenate %637, %639, %641, %643, %645 in 1 : vector<8x128xf32>, vector<8x128xf32>, vector<8x128xf32>, vector<8x128xf32>, vector<8x128xf32> -> vector<8x640xf32>
    %cst_642 = arith.constant dense<0.000000e+00> : vector<8x160xf32>
    %647 = tpu.matmul %646, %493, %cst_642 {dimension_numbers = #tpu.dot_dimension_numbers<[1], [0], [0], [1], [0, 0, 1, 1], [], []>} : vector<8x640xf32>, vector<640x160xf32>, vector<8x160xf32> -> vector<8x160xf32>
    %648 = vector.broadcast %494 : vector<1x160xf32> to vector<8x160xf32>
    %649 = arith.addf %647, %648 : vector<8x160xf32>
    %650 = math.tanh %649 : vector<8x160xf32>
    %c9_643 = arith.constant 9 : index
    %c0_644 = arith.constant 0 : index
    %c0_645 = arith.constant 0 : index
    %651 = vector.load %arg15[%c9_643, %c0_644, %c0_645] : memref<14x8x128xf32, #tpu.memory_space<vmem>>, vector<1x8x128xf32>
    %652 = vector.shape_cast %651 : vector<1x8x128xf32> to vector<8x128xf32>
    %c10_646 = arith.constant 10 : index
    %c0_647 = arith.constant 0 : index
    %c0_648 = arith.constant 0 : index
    %653 = vector.load %arg15[%c10_646, %c0_647, %c0_648] : memref<14x8x128xf32, #tpu.memory_space<vmem>>, vector<1x8x128xf32>
    %654 = vector.shape_cast %653 : vector<1x8x128xf32> to vector<8x128xf32>
    %c11_649 = arith.constant 11 : index
    %c0_650 = arith.constant 0 : index
    %c0_651 = arith.constant 0 : index
    %655 = vector.load %arg15[%c11_649, %c0_650, %c0_651] : memref<14x8x128xf32, #tpu.memory_space<vmem>>, vector<1x8x128xf32>
    %656 = vector.shape_cast %655 : vector<1x8x128xf32> to vector<8x128xf32>
    %c12_652 = arith.constant 12 : index
    %c0_653 = arith.constant 0 : index
    %c0_654 = arith.constant 0 : index
    %657 = vector.load %arg15[%c12_652, %c0_653, %c0_654] : memref<14x8x128xf32, #tpu.memory_space<vmem>>, vector<1x8x128xf32>
    %658 = vector.shape_cast %657 : vector<1x8x128xf32> to vector<8x128xf32>
    %c13_655 = arith.constant 13 : index
    %c0_656 = arith.constant 0 : index
    %c0_657 = arith.constant 0 : index
    %659 = vector.load %arg15[%c13_655, %c0_656, %c0_657] : memref<14x8x128xf32, #tpu.memory_space<vmem>>, vector<1x8x128xf32>
    %660 = vector.shape_cast %659 : vector<1x8x128xf32> to vector<8x128xf32>
    %661 = tpu.concatenate %652, %654, %656, %658, %660 in 1 : vector<8x128xf32>, vector<8x128xf32>, vector<8x128xf32>, vector<8x128xf32>, vector<8x128xf32> -> vector<8x640xf32>
    %cst_658 = arith.constant dense<0.000000e+00> : vector<8x160xf32>
    %662 = tpu.matmul %661, %493, %cst_658 {dimension_numbers = #tpu.dot_dimension_numbers<[1], [0], [0], [1], [0, 0, 1, 1], [], []>} : vector<8x640xf32>, vector<640x160xf32>, vector<8x160xf32> -> vector<8x160xf32>
    %663 = vector.broadcast %494 : vector<1x160xf32> to vector<8x160xf32>
    %664 = arith.addf %662, %663 : vector<8x160xf32>
    %665 = math.tanh %664 : vector<8x160xf32>
    %666 = arith.addf %650, %665 : vector<8x160xf32>
    %cst_659 = arith.constant dense<0.000000e+00> : vector<8x128xf32>
    %667 = tpu.matmul %666, %495, %cst_659 {dimension_numbers = #tpu.dot_dimension_numbers<[1], [0], [0], [1], [0, 0, 1, 1], [], []>} : vector<8x160xf32>, vector<160x128xf32>, vector<8x128xf32> -> vector<8x128xf32>
    %c4_660 = arith.constant 4 : index
    %c0_661 = arith.constant 0 : index
    %c0_662 = arith.constant 0 : index
    %668 = vector.load %arg16[%c4_660, %c0_661, %c0_662] : memref<5x8x128xf32, #tpu.memory_space<vmem>>, vector<1x8x128xf32>
    %669 = vector.shape_cast %668 : vector<1x8x128xf32> to vector<8x128xf32>
    %670 = vector.shape_cast %667 : vector<8x128xf32> to vector<1x8x128xf32>
    tpu.vector_store %arg16[%c4_660, %c0_661, %c0_662], %670 {strides = array<i32>} : memref<5x8x128xf32, #tpu.memory_space<vmem>>, vector<1x8x128xf32>,
    %c0_663 = arith.constant 0 : index
    %c0_664 = arith.constant 0 : index
    %c0_665 = arith.constant 0 : index
    %671 = vector.load %arg16[%c0_663, %c0_664, %c0_665] : memref<5x8x128xf32, #tpu.memory_space<vmem>>, vector<1x8x128xf32>
    %672 = vector.shape_cast %671 : vector<1x8x128xf32> to vector<8x128xf32>
    %c1_666 = arith.constant 1 : index
    %c0_667 = arith.constant 0 : index
    %c0_668 = arith.constant 0 : index
    %673 = vector.load %arg16[%c1_666, %c0_667, %c0_668] : memref<5x8x128xf32, #tpu.memory_space<vmem>>, vector<1x8x128xf32>
    %674 = vector.shape_cast %673 : vector<1x8x128xf32> to vector<8x128xf32>
    %c2_669 = arith.constant 2 : index
    %c0_670 = arith.constant 0 : index
    %c0_671 = arith.constant 0 : index
    %675 = vector.load %arg16[%c2_669, %c0_670, %c0_671] : memref<5x8x128xf32, #tpu.memory_space<vmem>>, vector<1x8x128xf32>
    %676 = vector.shape_cast %675 : vector<1x8x128xf32> to vector<8x128xf32>
    %c3_672 = arith.constant 3 : index
    %c0_673 = arith.constant 0 : index
    %c0_674 = arith.constant 0 : index
    %677 = vector.load %arg16[%c3_672, %c0_673, %c0_674] : memref<5x8x128xf32, #tpu.memory_space<vmem>>, vector<1x8x128xf32>
    %678 = vector.shape_cast %677 : vector<1x8x128xf32> to vector<8x128xf32>
    %c4_675 = arith.constant 4 : index
    %c0_676 = arith.constant 0 : index
    %c0_677 = arith.constant 0 : index
    %679 = vector.load %arg16[%c4_675, %c0_676, %c0_677] : memref<5x8x128xf32, #tpu.memory_space<vmem>>, vector<1x8x128xf32>
    %680 = vector.shape_cast %679 : vector<1x8x128xf32> to vector<8x128xf32>
    %681 = tpu.concatenate %672, %674, %676, %678, %680 in 1 : vector<8x128xf32>, vector<8x128xf32>, vector<8x128xf32>, vector<8x128xf32>, vector<8x128xf32> -> vector<8x640xf32>
    %c0_678 = arith.constant 0 : index
    %c0_679 = arith.constant 0 : index
    %682 = vector.load %arg8[%c0_678, %c0_679] : memref<640x128xf32, #tpu.memory_space<vmem>>, vector<640x128xf32>
    %cst_680 = arith.constant dense<0.000000e+00> : vector<8x128xf32>
    %683 = tpu.matmul %681, %682, %cst_680 {dimension_numbers = #tpu.dot_dimension_numbers<[1], [0], [0], [1], [0, 0, 1, 1], [], []>} : vector<8x640xf32>, vector<640x128xf32>, vector<8x128xf32> -> vector<8x128xf32>
    %c0_681 = arith.constant 0 : index
    %c0_682 = arith.constant 0 : index
    %684 = vector.load %arg9[%c0_681, %c0_682] : memref<1x128xf32, #tpu.memory_space<vmem>>, vector<1x128xf32>
    %685 = vector.broadcast %684 : vector<1x128xf32> to vector<8x128xf32>
    %686 = arith.addf %683, %685 : vector<8x128xf32>
    %687 = math.tanh %686 : vector<8x128xf32>
    %c0_683 = arith.constant 0 : index
    %c0_684 = arith.constant 0 : index
    %688 = vector.load %arg10[%c0_683, %c0_684] : memref<128x128xf32, #tpu.memory_space<vmem>>, vector<128x128xf32>
    %cst_685 = arith.constant dense<0.000000e+00> : vector<8x128xf32>
    %689 = tpu.matmul %687, %688, %cst_685 {dimension_numbers = #tpu.dot_dimension_numbers<[1], [0], [0], [1], [0, 0, 1, 1], [], []>} : vector<8x128xf32>, vector<128x128xf32>, vector<8x128xf32> -> vector<8x128xf32>
    %c0_686 = arith.constant 0 : index
    %c0_687 = arith.constant 0 : index
    %690 = vector.load %arg11[%c0_686, %c0_687] : memref<1x128xf32, #tpu.memory_space<vmem>>, vector<1x128xf32>
    %691 = vector.broadcast %690 : vector<1x128xf32> to vector<8x128xf32>
    %692 = arith.addf %689, %691 : vector<8x128xf32>
    %693 = math.tanh %692 : vector<8x128xf32>
    %c0_688 = arith.constant 0 : index
    %c0_689 = arith.constant 0 : index
    %694 = vector.load %arg12[%c0_688, %c0_689] : memref<128x128xf32, #tpu.memory_space<vmem>>, vector<128x128xf32>
    %cst_690 = arith.constant dense<0.000000e+00> : vector<8x128xf32>
    %695 = tpu.matmul %693, %694, %cst_690 {dimension_numbers = #tpu.dot_dimension_numbers<[1], [0], [0], [1], [0, 0, 1, 1], [], []>} : vector<8x128xf32>, vector<128x128xf32>, vector<8x128xf32> -> vector<8x128xf32>
    %c0_691 = arith.constant 0 : index
    %c0_692 = arith.constant 0 : index
    %696 = vector.load %arg13[%c0_691, %c0_692] : memref<1x128xf32, #tpu.memory_space<vmem>>, vector<1x128xf32>
    %697 = vector.broadcast %696 : vector<1x128xf32> to vector<8x128xf32>
    %698 = arith.addf %695, %697 : vector<8x128xf32>
    %c0_693 = arith.constant 0 : index
    %c0_694 = arith.constant 0 : index
    %699 = vector.load %arg14[%c0_693, %c0_694] : memref<8x128xf32, #tpu.memory_space<vmem>>, vector<8x128xf32>
    tpu.vector_store %arg14[%c0_693, %c0_694], %698 {strides = array<i32>} : memref<8x128xf32, #tpu.memory_space<vmem>>, vector<8x128xf32>,
    return
  }
  func.func @transform_0(%arg0: i32) -> (i32, i32, i32) {
    %c0_i32 = arith.constant 0 : i32
    %c0_i32_0 = arith.constant 0 : i32
    %c0_i32_1 = arith.constant 0 : i32
    return %arg0, %c0_i32, %c0_i32_0 : i32, i32, i32
  }
  func.func @transform_1(%arg0: i32) -> (i32, i32) {
    %c0_i32 = arith.constant 0 : i32
    %c0_i32_0 = arith.constant 0 : i32
    %c0_i32_1 = arith.constant 0 : i32
    return %c0_i32, %c0_i32_0 : i32, i32
  }
  func.func @transform_2(%arg0: i32) -> (i32, i32) {
    %c0_i32 = arith.constant 0 : i32
    %c0_i32_0 = arith.constant 0 : i32
    %c0_i32_1 = arith.constant 0 : i32
    return %c0_i32, %c0_i32_0 : i32, i32
  }
  func.func @transform_3(%arg0: i32) -> (i32, i32) {
    %c0_i32 = arith.constant 0 : i32
    %c0_i32_0 = arith.constant 0 : i32
    %c0_i32_1 = arith.constant 0 : i32
    return %c0_i32, %c0_i32_0 : i32, i32
  }
  func.func @transform_4(%arg0: i32) -> (i32, i32) {
    %c0_i32 = arith.constant 0 : i32
    %c0_i32_0 = arith.constant 0 : i32
    %c0_i32_1 = arith.constant 0 : i32
    return %c0_i32, %c0_i32_0 : i32, i32
  }
  func.func @transform_5(%arg0: i32) -> (i32, i32) {
    %c0_i32 = arith.constant 0 : i32
    %c0_i32_0 = arith.constant 0 : i32
    %c0_i32_1 = arith.constant 0 : i32
    return %c0_i32, %c0_i32_0 : i32, i32
  }
  func.func @transform_6(%arg0: i32) -> (i32, i32) {
    %c0_i32 = arith.constant 0 : i32
    %c0_i32_0 = arith.constant 0 : i32
    %c0_i32_1 = arith.constant 0 : i32
    return %c0_i32, %c0_i32_0 : i32, i32
  }
  func.func @transform_7(%arg0: i32) -> (i32, i32) {
    %c0_i32 = arith.constant 0 : i32
    %c0_i32_0 = arith.constant 0 : i32
    %c0_i32_1 = arith.constant 0 : i32
    return %c0_i32, %c0_i32_0 : i32, i32
  }
  func.func @transform_8(%arg0: i32) -> (i32, i32) {
    %c0_i32 = arith.constant 0 : i32
    %c0_i32_0 = arith.constant 0 : i32
    %c0_i32_1 = arith.constant 0 : i32
    return %c0_i32, %c0_i32_0 : i32, i32
  }
  func.func @transform_9(%arg0: i32) -> (i32, i32) {
    %c0_i32 = arith.constant 0 : i32
    %c0_i32_0 = arith.constant 0 : i32
    %c0_i32_1 = arith.constant 0 : i32
    return %c0_i32, %c0_i32_0 : i32, i32
  }
  func.func @transform_10(%arg0: i32) -> (i32, i32) {
    %c0_i32 = arith.constant 0 : i32
    %c0_i32_0 = arith.constant 0 : i32
    %c0_i32_1 = arith.constant 0 : i32
    return %c0_i32, %c0_i32_0 : i32, i32
  }
  func.func @transform_11(%arg0: i32) -> (i32, i32) {
    %c0_i32 = arith.constant 0 : i32
    %c0_i32_0 = arith.constant 0 : i32
    %c0_i32_1 = arith.constant 0 : i32
    return %c0_i32, %c0_i32_0 : i32, i32
  }
  func.func @transform_12(%arg0: i32) -> (i32, i32) {
    %c0_i32 = arith.constant 0 : i32
    %c0_i32_0 = arith.constant 0 : i32
    %c0_i32_1 = arith.constant 0 : i32
    return %c0_i32, %c0_i32_0 : i32, i32
  }
  func.func @transform_13(%arg0: i32) -> (i32, i32) {
    %c0_i32 = arith.constant 0 : i32
    %c0_i32_0 = arith.constant 0 : i32
    return %arg0, %c0_i32 : i32, i32
  }
}

</mosaic_0001>

<llo_original>
// kernel: lenet5_forward.1
$region0: #{lenet5_forward.1}
  #allocation0 [shape = 'u32[]', space=smem, size = 0x4, offset = 0x4, fixed_abs, tag = 'smem constant byte address 0x4 - core index']
  #allocation1 [shape = 'u32[144,128]{1,0:T(1,128)}', space=vmem, size = 0x12000, scoped, tag = 'internal scratch']
  #allocation2 [shape = 'f32[14,8,128]{2,1,0:T(8,128)}', space=vmem, size = 0xe000, scoped, tag = 'scratch operand']
  #allocation3 [shape = 'f32[5,8,128]{2,1,0:T(8,128)}', space=vmem, size = 0x5000, scoped, tag = 'scratch operand']
  %s0 = inlined_call_operand.vmem [shape: f32[16,32,32], index: 0, kind: input, shape index: {}]
  %s1 = inlined_call_operand.vmem [shape: f32[160,168], index: 1, kind: input, shape index: {}]
  %s2 = inlined_call_operand.vmem [shape: f32[1,168], index: 2, kind: input, shape index: {}]
  %s3 = inlined_call_operand.vmem [shape: f32[168,128], index: 3, kind: input, shape index: {}]
  %s4 = inlined_call_operand.vmem [shape: f32[640,160], index: 4, kind: input, shape index: {}]
  %s5 = inlined_call_operand.vmem [shape: f32[1,160], index: 5, kind: input, shape index: {}]
  %s6 = inlined_call_operand.vmem [shape: f32[160,128], index: 6, kind: input, shape index: {}]
  %s7 = inlined_call_operand.vmem [shape: f32[640,128], index: 7, kind: input, shape index: {}]
  %s8 = inlined_call_operand.vmem [shape: f32[1,128], index: 8, kind: input, shape index: {}]
  %s9 = inlined_call_operand.vmem [shape: f32[128,128], index: 9, kind: input, shape index: {}]
  %s10 = inlined_call_operand.vmem [shape: f32[1,128], index: 10, kind: input, shape index: {}]
  %s11 = inlined_call_operand.vmem [shape: f32[128,128], index: 11, kind: input, shape index: {}]
  %s12 = inlined_call_operand.vmem [shape: f32[1,128], index: 12, kind: input, shape index: {}]
  %s13 = inlined_call_operand.vmem [shape: f32[16,128], index: 13, kind: output, shape index: {}]
  %s14 = sld [smem:[#allocation0]]
  $region85: #{lenet5_forward.1} parent=0
    _
  %s16 = ssub.s32 1, %s14
  %s17 = scalar_select 0, %s16, %s14
  loop: start=0, step=1, limit=4
  $region2: #{lenet5_forward.1} parent=0 // loop_pre_header
    _
  $region3: #{lenet5_forward.1} parent=0 // loop_header
    %s19 = sphi 0, %s23
    %p20 = scmp.ge.s32.totalorder %s19, 4
    %s29 = sphi 0, %s31
    %s32 = sphi 0, %s29
    %s33 = sphi 0, %s32
    %s49 = sphi 0, %s33
    %s53 = sphi 0, %s53
    %s55 = sphi 0, %s53
    %s56 = sphi 0, %s55
    %s70 = sphi 0, %s56
    %s74 = sphi 0, %s74
    %s76 = sphi 0, %s74
    %s77 = sphi 0, %s76
    %s91 = sphi 0, %s77
    %s95 = sphi 0, %s95
    %s97 = sphi 0, %s95
    %s98 = sphi 0, %s97
    %s112 = sphi 0, %s98
    %s116 = sphi 0, %s116
    %s118 = sphi 0, %s116
    %s119 = sphi 0, %s118
    %s133 = sphi 0, %s119
    %s137 = sphi 0, %s137
    %s139 = sphi 0, %s137
    %s140 = sphi 0, %s139
    %s154 = sphi 0, %s140
    %s158 = sphi 0, %s158
    %s160 = sphi 0, %s158
    %s161 = sphi 0, %s160
    %s175 = sphi 0, %s161
    %s179 = sphi 0, %s179
    %s181 = sphi 0, %s179
    %s182 = sphi 0, %s181
    %s196 = sphi 0, %s182
    %s200 = sphi 0, %s200
    %s202 = sphi 0, %s200
    %s203 = sphi 0, %s202
    %s217 = sphi 0, %s203
    %s221 = sphi 0, %s221
    %s223 = sphi 0, %s221
    %s224 = sphi 0, %s223
    %s238 = sphi 0, %s224
    %s242 = sphi 0, %s242
    %s244 = sphi 0, %s242
    %s245 = sphi 0, %s244
    %s259 = sphi 0, %s245
    %s263 = sphi 0, %s263
    %s265 = sphi 0, %s263
    %s266 = sphi 0, %s265
    %s280 = sphi 0, %s266
    %s284 = sphi 0, %s284
    %s286 = sphi 0, %s284
    %s287 = sphi 0, %s286
    %s301 = sphi 0, %s287
    %s307 = sphi 0, %s309
    %s310 = sphi 0, %s307
    %s311 = sphi 0, %s310
    %s327 = sphi 0, %s311
  $region4: #{lenet5_forward.1} parent=0 // loop_header_branch
    %22 = sbr.rel (%p20) target = $region8
  $region5: #{lenet5_forward.1} parent=0 // loop_body
    %s24 = ssub.s32 %s19, 1
    %s25 = ssub.s32 %s19, 2
    %s26 = sadd.s32 %s19, 1
    %s27 = ssub.s32 %s19, %s26
    %p28 = scmp.eq.s32.totalorder %s27, 0
    %s30 = sadd.s32 %s29, 1
    %s31 = scalar_select %p28, %s29, %s30
    %p34 = pneg %p28
    %p35 = scmp.eq.s32.totalorder %s19, 1
    %p36 = por %p34, %p35
    %p37 = scmp.ne.s32.totalorder %s29, %s32
    %p38 = scmp.eq.s32.totalorder %s19, 0
    %p39 = por %p37, %p38
    %p40 = scmp.ne.s32.totalorder %s29, %s32
    %p41 = scmp.eq.s32.totalorder %s24, 1
    %p42 = por %p40, %p41
    %p43 = scmp.ne.s32.totalorder %s32, %s33
    %p44 = scmp.eq.s32.totalorder %s24, 0
    %p45 = por %p43, %p44
    %p46 = scmp.ne.s32.totalorder %s32, %s33
    %p47 = scmp.eq.s32.totalorder %s25, 1
    %p48 = por %p46, %p47
    %p50 = scmp.ne.s32.totalorder %s33, %s49
    %p51 = scmp.eq.s32.totalorder %s25, 0
    %p52 = por %p50, %p51
    %s54 = sadd.s32 %s53, 1
    %p57 = scmp.eq.s32.totalorder %s19, 1
    %p58 = scmp.ne.s32.totalorder %s53, %s55
    %p59 = scmp.eq.s32.totalorder %s19, 0
    %p60 = por %p58, %p59
    %p61 = scmp.ne.s32.totalorder %s53, %s55
    %p62 = scmp.eq.s32.totalorder %s24, 1
    %p63 = por %p61, %p62
    %p64 = scmp.ne.s32.totalorder %s55, %s56
    %p65 = scmp.eq.s32.totalorder %s24, 0
    %p66 = por %p64, %p65
    %p67 = scmp.ne.s32.totalorder %s55, %s56
    %p68 = scmp.eq.s32.totalorder %s25, 1
    %p69 = por %p67, %p68
    %p71 = scmp.ne.s32.totalorder %s56, %s70
    %p72 = scmp.eq.s32.totalorder %s25, 0
    %p73 = por %p71, %p72
    %s75 = sadd.s32 %s74, 1
    %p78 = scmp.eq.s32.totalorder %s19, 1
    %p79 = scmp.ne.s32.totalorder %s74, %s76
    %p80 = scmp.eq.s32.totalorder %s19, 0
    %p81 = por %p79, %p80
    %p82 = scmp.ne.s32.totalorder %s74, %s76
    %p83 = scmp.eq.s32.totalorder %s24, 1
    %p84 = por %p82, %p83
    %p85 = scmp.ne.s32.totalorder %s76, %s77
    %p86 = scmp.eq.s32.totalorder %s24, 0
    %p87 = por %p85, %p86
    %p88 = scmp.ne.s32.totalorder %s76, %s77
    %p89 = scmp.eq.s32.totalorder %s25, 1
    %p90 = por %p88, %p89
    %p92 = scmp.ne.s32.totalorder %s77, %s91
    %p93 = scmp.eq.s32.totalorder %s25, 0
    %p94 = por %p92, %p93
    %s96 = sadd.s32 %s95, 1
    %p99 = scmp.eq.s32.totalorder %s19, 1
    %p100 = scmp.ne.s32.totalorder %s95, %s97
    %p101 = scmp.eq.s32.totalorder %s19, 0
    %p102 = por %p100, %p101
    %p103 = scmp.ne.s32.totalorder %s95, %s97
    %p104 = scmp.eq.s32.totalorder %s24, 1
    %p105 = por %p103, %p104
    %p106 = scmp.ne.s32.totalorder %s97, %s98
    %p107 = scmp.eq.s32.totalorder %s24, 0
    %p108 = por %p106, %p107
    %p109 = scmp.ne.s32.totalorder %s97, %s98
    %p110 = scmp.eq.s32.totalorder %s25, 1
    %p111 = por %p109, %p110
    %p113 = scmp.ne.s32.totalorder %s98, %s112
    %p114 = scmp.eq.s32.totalorder %s25, 0
    %p115 = por %p113, %p114
    %s117 = sadd.s32 %s116, 1
    %p120 = scmp.eq.s32.totalorder %s19, 1
    %p121 = scmp.ne.s32.totalorder %s116, %s118
    %p122 = scmp.eq.s32.totalorder %s19, 0
    %p123 = por %p121, %p122
    %p124 = scmp.ne.s32.totalorder %s116, %s118
    %p125 = scmp.eq.s32.totalorder %s24, 1
    %p126 = por %p124, %p125
    %p127 = scmp.ne.s32.totalorder %s118, %s119
    %p128 = scmp.eq.s32.totalorder %s24, 0
    %p129 = por %p127, %p128
    %p130 = scmp.ne.s32.totalorder %s118, %s119
    %p131 = scmp.eq.s32.totalorder %s25, 1
    %p132 = por %p130, %p131
    %p134 = scmp.ne.s32.totalorder %s119, %s133
    %p135 = scmp.eq.s32.totalorder %s25, 0
    %p136 = por %p134, %p135
    %s138 = sadd.s32 %s137, 1
    %p141 = scmp.eq.s32.totalorder %s19, 1
    %p142 = scmp.ne.s32.totalorder %s137, %s139
    %p143 = scmp.eq.s32.totalorder %s19, 0
    %p144 = por %p142, %p143
    %p145 = scmp.ne.s32.totalorder %s137, %s139
    %p146 = scmp.eq.s32.totalorder %s24, 1
    %p147 = por %p145, %p146
    %p148 = scmp.ne.s32.totalorder %s139, %s140
    %p149 = scmp.eq.s32.totalorder %s24, 0
    %p150 = por %p148, %p149
    %p151 = scmp.ne.s32.totalorder %s139, %s140
    %p152 = scmp.eq.s32.totalorder %s25, 1
    %p153 = por %p151, %p152
    %p155 = scmp.ne.s32.totalorder %s140, %s154
    %p156 = scmp.eq.s32.totalorder %s25, 0
    %p157 = por %p155, %p156
    %s159 = sadd.s32 %s158, 1
    %p162 = scmp.eq.s32.totalorder %s19, 1
    %p163 = scmp.ne.s32.totalorder %s158, %s160
    %p164 = scmp.eq.s32.totalorder %s19, 0
    %p165 = por %p163, %p164
    %p166 = scmp.ne.s32.totalorder %s158, %s160
    %p167 = scmp.eq.s32.totalorder %s24, 1
    %p168 = por %p166, %p167
    %p169 = scmp.ne.s32.totalorder %s160, %s161
    %p170 = scmp.eq.s32.totalorder %s24, 0
    %p171 = por %p169, %p170
    %p172 = scmp.ne.s32.totalorder %s160, %s161
    %p173 = scmp.eq.s32.totalorder %s25, 1
    %p174 = por %p172, %p173
    %p176 = scmp.ne.s32.totalorder %s161, %s175
    %p177 = scmp.eq.s32.totalorder %s25, 0
    %p178 = por %p176, %p177
    %s180 = sadd.s32 %s179, 1
    %p183 = scmp.eq.s32.totalorder %s19, 1
    %p184 = scmp.ne.s32.totalorder %s179, %s181
    %p185 = scmp.eq.s32.totalorder %s19, 0
    %p186 = por %p184, %p185
    %p187 = scmp.ne.s32.totalorder %s179, %s181
    %p188 = scmp.eq.s32.totalorder %s24, 1
    %p189 = por %p187, %p188
    %p190 = scmp.ne.s32.totalorder %s181, %s182
    %p191 = scmp.eq.s32.totalorder %s24, 0
    %p192 = por %p190, %p191
    %p193 = scmp.ne.s32.totalorder %s181, %s182
    %p194 = scmp.eq.s32.totalorder %s25, 1
    %p195 = por %p193, %p194
    %p197 = scmp.ne.s32.totalorder %s182, %s196
    %p198 = scmp.eq.s32.totalorder %s25, 0
    %p199 = por %p197, %p198
    %s201 = sadd.s32 %s200, 1
    %p204 = scmp.eq.s32.totalorder %s19, 1
    %p205 = scmp.ne.s32.totalorder %s200, %s202
    %p206 = scmp.eq.s32.totalorder %s19, 0
    %p207 = por %p205, %p206
    %p208 = scmp.ne.s32.totalorder %s200, %s202
    %p209 = scmp.eq.s32.totalorder %s24, 1
    %p210 = por %p208, %p209
    %p211 = scmp.ne.s32.totalorder %s202, %s203
    %p212 = scmp.eq.s32.totalorder %s24, 0
    %p213 = por %p211, %p212
    %p214 = scmp.ne.s32.totalorder %s202, %s203
    %p215 = scmp.eq.s32.totalorder %s25, 1
    %p216 = por %p214, %p215
    %p218 = scmp.ne.s32.totalorder %s203, %s217
    %p219 = scmp.eq.s32.totalorder %s25, 0
    %p220 = por %p218, %p219
    %s222 = sadd.s32 %s221, 1
    %p225 = scmp.eq.s32.totalorder %s19, 1
    %p226 = scmp.ne.s32.totalorder %s221, %s223
    %p227 = scmp.eq.s32.totalorder %s19, 0
    %p228 = por %p226, %p227
    %p229 = scmp.ne.s32.totalorder %s221, %s223
    %p230 = scmp.eq.s32.totalorder %s24, 1
    %p231 = por %p229, %p230
    %p232 = scmp.ne.s32.totalorder %s223, %s224
    %p233 = scmp.eq.s32.totalorder %s24, 0
    %p234 = por %p232, %p233
    %p235 = scmp.ne.s32.totalorder %s223, %s224
    %p236 = scmp.eq.s32.totalorder %s25, 1
    %p237 = por %p235, %p236
    %p239 = scmp.ne.s32.totalorder %s224, %s238
    %p240 = scmp.eq.s32.totalorder %s25, 0
    %p241 = por %p239, %p240
    %s243 = sadd.s32 %s242, 1
    %p246 = scmp.eq.s32.totalorder %s19, 1
    %p247 = scmp.ne.s32.totalorder %s242, %s244
    %p248 = scmp.eq.s32.totalorder %s19, 0
    %p249 = por %p247, %p248
    %p250 = scmp.ne.s32.totalorder %s242, %s244
    %p251 = scmp.eq.s32.totalorder %s24, 1
    %p252 = por %p250, %p251
    %p253 = scmp.ne.s32.totalorder %s244, %s245
    %p254 = scmp.eq.s32.totalorder %s24, 0
    %p255 = por %p253, %p254
    %p256 = scmp.ne.s32.totalorder %s244, %s245
    %p257 = scmp.eq.s32.totalorder %s25, 1
    %p258 = por %p256, %p257
    %p260 = scmp.ne.s32.totalorder %s245, %s259
    %p261 = scmp.eq.s32.totalorder %s25, 0
    %p262 = por %p260, %p261
    %s264 = sadd.s32 %s263, 1
    %p267 = scmp.eq.s32.totalorder %s19, 1
    %p268 = scmp.ne.s32.totalorder %s263, %s265
    %p269 = scmp.eq.s32.totalorder %s19, 0
    %p270 = por %p268, %p269
    %p271 = scmp.ne.s32.totalorder %s263, %s265
    %p272 = scmp.eq.s32.totalorder %s24, 1
    %p273 = por %p271, %p272
    %p274 = scmp.ne.s32.totalorder %s265, %s266
    %p275 = scmp.eq.s32.totalorder %s24, 0
    %p276 = por %p274, %p275
    %p277 = scmp.ne.s32.totalorder %s265, %s266
    %p278 = scmp.eq.s32.totalorder %s25, 1
    %p279 = por %p277, %p278
    %p281 = scmp.ne.s32.totalorder %s266, %s280
    %p282 = scmp.eq.s32.totalorder %s25, 0
    %p283 = por %p281, %p282
    %s285 = sadd.s32 %s284, 1
    %p288 = scmp.eq.s32.totalorder %s19, 1
    %p289 = scmp.ne.s32.totalorder %s284, %s286
    %p290 = scmp.eq.s32.totalorder %s19, 0
    %p291 = por %p289, %p290
    %p292 = scmp.ne.s32.totalorder %s284, %s286
    %p293 = scmp.eq.s32.totalorder %s24, 1
    %p294 = por %p292, %p293
    %p295 = scmp.ne.s32.totalorder %s286, %s287
    %p296 = scmp.eq.s32.totalorder %s24, 0
    %p297 = por %p295, %p296
    %p298 = scmp.ne.s32.totalorder %s286, %s287
    %p299 = scmp.eq.s32.totalorder %s25, 1
    %p300 = por %p298, %p299
    %p302 = scmp.ne.s32.totalorder %s287, %s301
    %p303 = scmp.eq.s32.totalorder %s25, 0
    %p304 = por %p302, %p303
    %s305 = ssub.s32 %s19, %s26
    %p306 = scmp.eq.s32.totalorder %s305, 0
    %s308 = sadd.s32 %s307, 1
    %s309 = scalar_select %p306, %s307, %s308
    %p312 = pneg %p306
    %p313 = scmp.eq.s32.totalorder %s19, 1
    %p314 = por %p312, %p313
    %p315 = scmp.ne.s32.totalorder %s307, %s310
    %p316 = scmp.eq.s32.totalorder %s19, 0
    %p317 = por %p315, %p316
    %p318 = scmp.ne.s32.totalorder %s307, %s310
    %p319 = scmp.eq.s32.totalorder %s24, 1
    %p320 = por %p318, %p319
    %p321 = scmp.ne.s32.totalorder %s310, %s311
    %p322 = scmp.eq.s32.totalorder %s24, 0
    %p323 = por %p321, %p322
    %p324 = scmp.ne.s32.totalorder %s310, %s311
    %p325 = scmp.eq.s32.totalorder %s25, 1
    %p326 = por %p324, %p325
    %p328 = scmp.ne.s32.totalorder %s311, %s327
    %p329 = scmp.eq.s32.totalorder %s25, 0
    %p330 = por %p328, %p329
    %p331 = scmp.le.s32.totalorder 1, %s19
    %p332 = scmp.lt.s32.totalorder %s19, 3
    %p333 = pnand %p331, %p332
    %p334 = pneg %p333
    // Predicated region
    $region9: #{lenet5_forward.1} parent=5 // pred_check
      _
    $region10: #{lenet5_forward.1} parent=5 // pred_check_branch
      %336 = sbr.rel (%p333) target = $region12
    $region11: #{lenet5_forward.1} parent=5 // pred_region
      %s337 = ssub.s32 %s19, 1
      // Predicated region
      $region13: #{lenet5_forward.1} parent=11 // pred_check
        %p338 = pneg %p66
      $region14: #{lenet5_forward.1} parent=11 // pred_check_branch
        %340 = sbr.rel (%p338) target = $region16
      $region15: #{lenet5_forward.1} parent=11 // pred_region
        _
      $region16: #{lenet5_forward.1} parent=11 // pred_fallthru
        _
      // Predicated region
      $region17: #{lenet5_forward.1} parent=11 // pred_check
        %p341 = pneg %p87
      $region18: #{lenet5_forward.1} parent=11 // pred_check_branch
        %343 = sbr.rel (%p341) target = $region20
      $region19: #{lenet5_forward.1} parent=11 // pred_region
        _
      $region20: #{lenet5_forward.1} parent=11 // pred_fallthru
        _
      // Predicated region
      $region21: #{lenet5_forward.1} parent=11 // pred_check
        %p344 = pneg %p108
      $region22: #{lenet5_forward.1} parent=11 // pred_check_branch
        %346 = sbr.rel (%p344) target = $region24
      $region23: #{lenet5_forward.1} parent=11 // pred_region
        _
      $region24: #{lenet5_forward.1} parent=11 // pred_fallthru
        _
      // Predicated region
      $region25: #{lenet5_forward.1} parent=11 // pred_check
        %p347 = pneg %p129
      $region26: #{lenet5_forward.1} parent=11 // pred_check_branch
        %349 = sbr.rel (%p347) target = $region28
      $region27: #{lenet5_forward.1} parent=11 // pred_region
        _
      $region28: #{lenet5_forward.1} parent=11 // pred_fallthru
        _
      // Predicated region
      $region29: #{lenet5_forward.1} parent=11 // pred_check
        %p350 = pneg %p150
      $region30: #{lenet5_forward.1} parent=11 // pred_check_branch
        %352 = sbr.rel (%p350) target = $region32
      $region31: #{lenet5_forward.1} parent=11 // pred_region
        _
      $region32: #{lenet5_forward.1} parent=11 // pred_fallthru
        _
      // Predicated region
      $region33: #{lenet5_forward.1} parent=11 // pred_check
        %p353 = pneg %p171
      $region34: #{lenet5_forward.1} parent=11 // pred_check_branch
        %355 = sbr.rel (%p353) target = $region36
      $region35: #{lenet5_forward.1} parent=11 // pred_region
        _
      $region36: #{lenet5_forward.1} parent=11 // pred_fallthru
        _
      // Predicated region
      $region37: #{lenet5_forward.1} parent=11 // pred_check
        %p356 = pneg %p192
      $region38: #{lenet5_forward.1} parent=11 // pred_check_branch
        %358 = sbr.rel (%p356) target = $region40
      $region39: #{lenet5_forward.1} parent=11 // pred_region
        _
      $region40: #{lenet5_forward.1} parent=11 // pred_fallthru
        _
      // Predicated region
      $region41: #{lenet5_forward.1} parent=11 // pred_check
        %p359 = pneg %p213
      $region42: #{lenet5_forward.1} parent=11 // pred_check_branch
        %361 = sbr.rel (%p359) target = $region44
      $region43: #{lenet5_forward.1} parent=11 // pred_region
        _
      $region44: #{lenet5_forward.1} parent=11 // pred_fallthru
        _
      // Predicated region
      $region45: #{lenet5_forward.1} parent=11 // pred_check
        %p362 = pneg %p234
      $region46: #{lenet5_forward.1} parent=11 // pred_check_branch
        %364 = sbr.rel (%p362) target = $region48
      $region47: #{lenet5_forward.1} parent=11 // pred_region
        _
      $region48: #{lenet5_forward.1} parent=11 // pred_fallthru
        _
      // Predicated region
      $region49: #{lenet5_forward.1} parent=11 // pred_check
        %p365 = pneg %p255
      $region50: #{lenet5_forward.1} parent=11 // pred_check_branch
        %367 = sbr.rel (%p365) target = $region52
      $region51: #{lenet5_forward.1} parent=11 // pred_region
        _
      $region52: #{lenet5_forward.1} parent=11 // pred_fallthru
        _
      // Predicated region
      $region53: #{lenet5_forward.1} parent=11 // pred_check
        %p368 = pneg %p276
      $region54: #{lenet5_forward.1} parent=11 // pred_check_branch
        %370 = sbr.rel (%p368) target = $region56
      $region55: #{lenet5_forward.1} parent=11 // pred_region
        _
      $region56: #{lenet5_forward.1} parent=11 // pred_fallthru
        _
      // Predicated region
      $region57: #{lenet5_forward.1} parent=11 // pred_check
        %p371 = pneg %p297
      $region58: #{lenet5_forward.1} parent=11 // pred_check_branch
        %373 = sbr.rel (%p371) target = $region60
      $region59: #{lenet5_forward.1} parent=11 // pred_region
        _
      $region60: #{lenet5_forward.1} parent=11 // pred_fallthru
        _
    $region12: #{lenet5_forward.1} parent=5 // pred_fallthru
      _
    %p374 = scmp.lt.s32.totalorder %s19, 2
    // Predicated region
    $region61: #{lenet5_forward.1} parent=5 // pred_check
      %p375 = pneg %p374
    $region62: #{lenet5_forward.1} parent=5 // pred_check_branch
      %377 = sbr.rel (%p375) target = $region64
    $region63: #{lenet5_forward.1} parent=5 // pred_region
      // Predicated region
      $region65: #{lenet5_forward.1} parent=63 // pred_check
        %p378 = pneg %p39
      $region66: #{lenet5_forward.1} parent=63 // pred_check_branch
        %380 = sbr.rel (%p378) target = $region68
      $region67: #{lenet5_forward.1} parent=63 // pred_region
        %s381 = smul.u32 8, %s19
        %p382 = scmp.lt.s32.totalorder %s381, 15
        %s383 = scalar_select %p382, %s381, 15
        %s384 = smul.addr %s383, 4
        %s385 = smul.addr %s384, 8
        %s386 = scalar_lea.vmem %s0, %s385
        %s387 = smul.u32 8, %s19
      $region68: #{lenet5_forward.1} parent=63 // pred_fallthru
        _
    $region64: #{lenet5_forward.1} parent=5 // pred_fallthru
      _
    %p388 = scmp.le.s32.totalorder 1, %s19
    %p389 = scmp.lt.s32.totalorder %s19, 3
    %p390 = pnand %p388, %p389
    %p391 = pneg %p390
    // Predicated region
    $region69: #{lenet5_forward.1} parent=5 // pred_check
      _
    $region70: #{lenet5_forward.1} parent=5 // pred_check_branch
      %393 = sbr.rel (%p390) target = $region72
    $region71: #{lenet5_forward.1} parent=5 // pred_region
      %s394 = ssub.s32 %s19, 1
      %s395 = smul.u32 8, %s24
      %p396 = scmp.lt.s32.totalorder %s395, 15
      %s397 = scalar_select %p396, %s395, 15
      %s398 = smul.addr %s397, 4
      %s399 = smul.addr %s398, 8
      %s400 = scalar_lea.vmem %s0, %s399
      %p401 = pneg %p45
      %p402 = pneg %p42
      %p403 = pneg %p66
      %p404 = pneg %p63
      %p405 = pneg %p87
      %p406 = pneg %p84
      %p407 = pneg %p108
      %p408 = pneg %p105
      %p409 = pneg %p129
      %p410 = pneg %p126
      %p411 = pneg %p150
      %p412 = pneg %p147
      %p413 = pneg %p171
      %p414 = pneg %p168
      %p415 = pneg %p192
      %p416 = pneg %p189
      %p417 = pneg %p213
      %p418 = pneg %p210
      %p419 = pneg %p234
      %p420 = pneg %p231
      %p421 = pneg %p255
      %p422 = pneg %p252
      %p423 = pneg %p276
      %p424 = pneg %p273
      %p425 = pneg %p297
      %p426 = pneg %p294
      %p427 = pneg %p323
      %p428 = pneg %p320
      %p429 = scmp.lt.s32.totalorder %s24, 1
      %s430 = scalar_select %p429, %s24, 1
      %s431 = smul.addr %s430, 8
      %s432 = scalar_lea.vmem %s13, %s431
      %s433 = smul.u32 8, %s24
      %p434 = scmp.lt.s32.totalorder %s433, 15
      %s435 = scalar_select %p434, %s433, 15
      %s436 = smul.addr %s435, 4
      %s437 = smul.addr %s436, 8
      %s438 = scalar_lea.vmem %s0, %s437
      %s439 = smul.u32 8, %s24
      %p440 = scmp.lt.s32.totalorder %s24, 1
      %s441 = scalar_select %p440, %s24, 1
      %s442 = smul.addr %s441, 8
      %s443 = scalar_lea.vmem %s13, %s442
      %v444 = vld [vmem:[%s1] sm:$0xff]
      %v445 = vld [vmem:[%s1 + $0x8] sm:$0xff]
      %v446 = vld [vmem:[%s1 + $0x10] sm:$0xff]
      %v447 = vld [vmem:[%s1 + $0x18] sm:$0xff]
      %v448 = vld [vmem:[%s1 + $0x20] sm:$0xff]
      %v449 = vld [vmem:[%s1 + $0x28] sm:$0xff]
      %v450 = vld [vmem:[%s1 + $0x30] sm:$0xff]
      %v451 = vld [vmem:[%s1 + $0x38] sm:$0xff]
      %v452 = vld [vmem:[%s1 + $0x40] sm:$0xff]
      %v453 = vld [vmem:[%s1 + $0x48] sm:$0xff]
      %v454 = vld [vmem:[%s1 + $0x50] sm:$0xff]
      %v455 = vld [vmem:[%s1 + $0x58] sm:$0xff]
      %v456 = vld [vmem:[%s1 + $0x60] sm:$0xff]
      %v457 = vld [vmem:[%s1 + $0x68] sm:$0xff]
      %v458 = vld [vmem:[%s1 + $0x70] sm:$0xff]
      %v459 = vld [vmem:[%s1 + $0x78] sm:$0xff]
      %v460 = vld [vmem:[%s1 + $0x80] sm:$0xff]
      %v461 = vld [vmem:[%s1 + $0x88] sm:$0xff]
      %v462 = vld [vmem:[%s1 + $0x90] sm:$0xff]
      %v463 = vld [vmem:[%s1 + $0x98] sm:$0xff]
      %v464 = vld [vmem:[%s1 + $0xa0] sm:$0xff]
      %v465 = vld [vmem:[%s1 + $0xa8] sm:$0xff]
      %v466 = vld [vmem:[%s1 + $0xb0] sm:$0xff]
      %v467 = vld [vmem:[%s1 + $0xb8] sm:$0xff]
      %v468 = vld [vmem:[%s1 + $0xc0] sm:$0xff]
      %v469 = vld [vmem:[%s1 + $0xc8] sm:$0xff]
      %v470 = vld [vmem:[%s1 + $0xd0] sm:$0xff]
      %v471 = vld [vmem:[%s1 + $0xd8] sm:$0xff]
      %v472 = vld [vmem:[%s1 + $0xe0] sm:$0xff]
      %v473 = vld [vmem:[%s1 + $0xe8] sm:$0xff]
      %v474 = vld [vmem:[%s1 + $0xf0] sm:$0xff]
      %v475 = vld [vmem:[%s1 + $0xf8] sm:$0xff]
      %v476 = vld [vmem:[%s1 + $0x100] sm:$0xff]
      %v477 = vld [vmem:[%s1 + $0x108] sm:$0xff]
      %v478 = vld [vmem:[%s1 + $0x110] sm:$0xff]
      %v479 = vld [vmem:[%s1 + $0x118] sm:$0xff]
      %v480 = vld [vmem:[%s1 + $0x120] sm:$0xff]
      %v481 = vld [vmem:[%s1 + $0x128] sm:$0xff]
      %v482 = vld [vmem:[%s1 + $0x130] sm:$0xff]
      %v483 = vld [vmem:[%s1 + $0x138] sm:$0xff]
      %v484 = vld [vmem:[%s2] sm:$0x3]
      %v485 = vld [vmem:[%s3] sm:$0xff]
      %v486 = vld [vmem:[%s3 + $0x8] sm:$0xff]
      %v487 = vld [vmem:[%s3 + $0x10] sm:$0xff]
      %v488 = vld [vmem:[%s3 + $0x18] sm:$0xff]
      %v489 = vld [vmem:[%s3 + $0x20] sm:$0xff]
      %v490 = vld [vmem:[%s3 + $0x28] sm:$0xff]
      %v491 = vld [vmem:[%s3 + $0x30] sm:$0xff]
      %v492 = vld [vmem:[%s3 + $0x38] sm:$0xff]
      %v493 = vld [vmem:[%s3 + $0x40] sm:$0xff]
      %v494 = vld [vmem:[%s3 + $0x48] sm:$0xff]
      %v495 = vld [vmem:[%s3 + $0x50] sm:$0xff]
      %v496 = vld [vmem:[%s3 + $0x58] sm:$0xff]
      %v497 = vld [vmem:[%s3 + $0x60] sm:$0xff]
      %v498 = vld [vmem:[%s3 + $0x68] sm:$0xff]
      %v499 = vld [vmem:[%s3 + $0x70] sm:$0xff]
      %v500 = vld [vmem:[%s3 + $0x78] sm:$0xff]
      %v501 = vld [vmem:[%s3 + $0x80] sm:$0xff]
      %v502 = vld [vmem:[%s3 + $0x88] sm:$0xff]
      %v503 = vld [vmem:[%s3 + $0x90] sm:$0xff]
      %v504 = vld [vmem:[%s3 + $0x98] sm:$0xff]
      %v505 = vld [vmem:[%s3 + $0xa0] sm:$0xff]
      %v506 = vld [vmem:[%s438] sm:$0x1]
      %v507 = vld [vmem:[%s438 + $0x20] sm:$0x1]
      %v508 = vld [vmem:[%s438 + $0x40] sm:$0x1]
      %v509 = vld [vmem:[%s438 + $0x60] sm:$0x1]
      %v510 = vld [vmem:[%s438 + $0x80] sm:$0x1]
      %v511 = vld [vmem:[%s438 + $0xa0] sm:$0x1]
      %v512 = vld [vmem:[%s438 + $0xc0] sm:$0x1]
      %v513 = vld [vmem:[%s438 + $0xe0] sm:$0x1]
      %v514 = vld [vmem:[%s438 + $0x1] sm:$0x1]
      %v515 = vld [vmem:[%s438 + $0x21] sm:$0x1]
      %v516 = vld [vmem:[%s438 + $0x41] sm:$0x1]
      %v517 = vld [vmem:[%s438 + $0x61] sm:$0x1]
      %v518 = vld [vmem:[%s438 + $0x81] sm:$0x1]
      %v519 = vld [vmem:[%s438 + $0xa1] sm:$0x1]
      %v520 = vld [vmem:[%s438 + $0xc1] sm:$0x1]
      %v521 = vld [vmem:[%s438 + $0xe1] sm:$0x1]
      %v522 = vld [vmem:[%s438 + $0x2] sm:$0x1]
      %v523 = vld [vmem:[%s438 + $0x22] sm:$0x1]
      %v524 = vld [vmem:[%s438 + $0x42] sm:$0x1]
      %v525 = vld [vmem:[%s438 + $0x62] sm:$0x1]
      %v526 = vld [vmem:[%s438 + $0x82] sm:$0x1]
      %v527 = vld [vmem:[%s438 + $0xa2] sm:$0x1]
      %v528 = vld [vmem:[%s438 + $0xc2] sm:$0x1]
      %v529 = vld [vmem:[%s438 + $0xe2] sm:$0x1]
      %v530 = vld [vmem:[%s438 + $0x3] sm:$0x1]
      %v531 = vld [vmem:[%s438 + $0x23] sm:$0x1]
      %v532 = vld [vmem:[%s438 + $0x43] sm:$0x1]
      %v533 = vld [vmem:[%s438 + $0x63] sm:$0x1]
      %v534 = vld [vmem:[%s438 + $0x83] sm:$0x1]
      %v535 = vld [vmem:[%s438 + $0xa3] sm:$0x1]
      %v536 = vld [vmem:[%s438 + $0xc3] sm:$0x1]
      %v537 = vld [vmem:[%s438 + $0xe3] sm:$0x1]
      %v538 = vld [vmem:[%s438 + $0x4] sm:$0x1]
      %v539 = vld [vmem:[%s438 + $0x24] sm:$0x1]
      %v540 = vld [vmem:[%s438 + $0x44] sm:$0x1]
      %v541 = vld [vmem:[%s438 + $0x64] sm:$0x1]
      %v542 = vld [vmem:[%s438 + $0x84] sm:$0x1]
      %v543 = vld [vmem:[%s438 + $0xa4] sm:$0x1]
      %v544 = vld [vmem:[%s438 + $0xc4] sm:$0x1]
      %v545 = vld [vmem:[%s438 + $0xe4] sm:$0x1]
      %v554 = vrot.slane %v507, 7
      %vm555 = vcmask 1041409
      %v556 = vsel %vm555, %v554, %v506
      %v557 = vrot.slane %v508, 6
      %vm558 = vcmask 1042434
      %v559 = vsel %vm558, %v557, %v556
      %v560 = vrot.slane %v509, 5
      %vm561 = vcmask 1043459
      %v562 = vsel %vm561, %v560, %v559
      %v563 = vrot.slane %v510, 4
      %vm564 = vcmask 1044484
      %v565 = vsel %vm564, %v563, %v562
      %v566 = vrot.slane %v511, 3
      %vm567 = vcmask 1045509
      %v568 = vsel %vm567, %v566, %v565
      %v569 = vrot.slane %v512, 2
      %vm570 = vcmask 1046534
      %v571 = vsel %vm570, %v569, %v568
      %v572 = vrot.slane %v513, 1
      %vm573 = vcmask 1047559
      %v574 = vsel %vm573, %v572, %v571
      %v584 = vrot.slane %v515, 7
      %v585 = vsel %vm555, %v584, %v514
      %v586 = vrot.slane %v516, 6
      %v587 = vsel %vm558, %v586, %v585
      %v588 = vrot.slane %v517, 5
      %v589 = vsel %vm561, %v588, %v587
      %v590 = vrot.slane %v518, 4
      %v591 = vsel %vm564, %v590, %v589
      %v592 = vrot.slane %v519, 3
      %v593 = vsel %vm567, %v592, %v591
      %v594 = vrot.slane %v520, 2
      %v595 = vsel %vm570, %v594, %v593
      %v596 = vrot.slane %v521, 1
      %v597 = vsel %vm573, %v596, %v595
      %598 = vrot.lane.b32.xlu0 %v597, 32
      %v599 = vpop.permute.xlu0 %598
      %v609 = vrot.slane %v523, 7
      %v610 = vsel %vm555, %v609, %v522
      %v611 = vrot.slane %v524, 6
      %v612 = vsel %vm558, %v611, %v610
      %v613 = vrot.slane %v525, 5
      %v614 = vsel %vm561, %v613, %v612
      %v615 = vrot.slane %v526, 4
      %v616 = vsel %vm564, %v615, %v614
      %v617 = vrot.slane %v527, 3
      %v618 = vsel %vm567, %v617, %v616
      %v619 = vrot.slane %v528, 2
      %v620 = vsel %vm570, %v619, %v618
      %v621 = vrot.slane %v529, 1
      %v622 = vsel %vm573, %v621, %v620
      %623 = vrot.lane.b32.xlu0 %v622, 64
      %v624 = vpop.permute.xlu0 %623
      %v634 = vrot.slane %v531, 7
      %v635 = vsel %vm555, %v634, %v530
      %v636 = vrot.slane %v532, 6
      %v637 = vsel %vm558, %v636, %v635
      %v638 = vrot.slane %v533, 5
      %v639 = vsel %vm561, %v638, %v637
      %v640 = vrot.slane %v534, 4
      %v641 = vsel %vm564, %v640, %v639
      %v642 = vrot.slane %v535, 3
      %v643 = vsel %vm567, %v642, %v641
      %v644 = vrot.slane %v536, 2
      %v645 = vsel %vm570, %v644, %v643
      %v646 = vrot.slane %v537, 1
      %v647 = vsel %vm573, %v646, %v645
      %648 = vrot.lane.b32.xlu0 %v647, 96
      %v649 = vpop.permute.xlu0 %648
      %v659 = vrot.slane %v539, 7
      %v660 = vsel %vm555, %v659, %v538
      %v661 = vrot.slane %v540, 6
      %v662 = vsel %vm558, %v661, %v660
      %v663 = vrot.slane %v541, 5
      %v664 = vsel %vm561, %v663, %v662
      %v665 = vrot.slane %v542, 4
      %v666 = vsel %vm564, %v665, %v664
      %v667 = vrot.slane %v543, 3
      %v668 = vsel %vm567, %v667, %v666
      %v669 = vrot.slane %v544, 2
      %v670 = vsel %vm570, %v669, %v668
      %v671 = vrot.slane %v545, 1
      %v672 = vsel %vm573, %v671, %v670
      %vm673 = vcmask 261120
      %v674 = vsel %vm673, %v574, %v599
      %vm675 = vcmask 523264
      %v676 = vsel %vm675, %v674, %v624
      %vm677 = vcmask 785408
      %v678 = vsel %vm677, %v676, %v649
      %v680 = vlaneseq
      %v681 = vshrl.u32 %v680, 7
      %v682 = vsub.s32 0, %v681
      %v683 = vrot.slane %v484, %v682
      %v684 = vlaneseq
      %v685 = vshrl.u32 %v684, 7
      %v686 = vsub.s32 1, %v685
      %v687 = vrot.slane %v484, %v686
      %v690 = vsel %vm673, %v672, 0
      %692 = vmatprep.subr.mxu0 %v475
      %693 = vmatpush1.msra.mxu0 %v474
      %694 = vmatprep.subr.mxu0 %v473
      %695 = vmatpush1.msra.mxu0 %v472
      %696 = vmatprep.subr.mxu0 %v471
      %697 = vmatpush1.msra.mxu0 %v470
      %698 = vmatprep.subr.mxu0 %v469
      %699 = vmatpush1.msra.mxu0 %v468
      %700 = vmatprep.subr.mxu0 %v467
      %701 = vmatpush1.msra.mxu0 %v466
      %702 = vmatprep.subr.mxu0 %v465
      %703 = vmatpush1.msra.mxu0 %v464
      %704 = vmatprep.subr.mxu0 %v463
      %705 = vmatpush1.msra.mxu0 %v462
      %706 = vmatprep.subr.mxu0 %v461
      %707 = vmatpush1.msra.mxu0 %v460
      %708 = vmatprep.subr.mxu0 %v459
      %709 = vmatpush1.msra.mxu0 %v458
      %710 = vmatprep.subr.mxu0 %v457
      %711 = vmatpush1.msra.mxu0 %v456
      %712 = vmatprep.subr.mxu0 %v455
      %713 = vmatpush1.msra.mxu0 %v454
      %714 = vmatprep.subr.mxu0 %v453
      %715 = vmatpush1.msra.mxu0 %v452
      %716 = vmatprep.subr.mxu0 %v451
      %717 = vmatpush1.msra.mxu0 %v450
      %718 = vmatprep.subr.mxu0 %v449
      %719 = vmatpush1.msra.mxu0 %v448
      %720 = vmatprep.subr.mxu0 %v447
      %721 = vmatpush1.msra.mxu0 %v446
      %722 = vmatprep.subr.mxu0 %v445
      %723 = vmatpush1.msra.mxu0 %v444
      %724 = vmatprep.subr.mxu0 0.0
      %725 = vmatpush2.msra.mxu0 0.0
      %726 = vmatprep.subr.mxu0 0.0
      %727 = vmatpush2.msra.mxu0 0.0
      %728 = vmatprep.subr.mxu0 0.0
      %729 = vmatpush2.msra.mxu0 0.0
      %730 = vmatprep.subr.mxu0 0.0
      %731 = vmatpush2.msra.mxu0 0.0
      %732 = vmatprep.subr.mxu0 0.0
      %733 = vmatpush2.msra.mxu0 0.0
      %734 = vmatprep.subr.mxu0 0.0
      %735 = vmatpush2.msra.mxu0 0.0
      %736 = vmatprep.subr.mxu0 0.0
      %737 = vmatpush2.msra.mxu0 0.0
      %738 = vmatprep.subr.mxu0 0.0
      %739 = vmatpush2.msra.mxu0 0.0
      %740 = vmatprep.subr.mxu0 0.0
      %741 = vmatpush2.msra.mxu0 0.0
      %742 = vmatprep.subr.mxu0 0.0
      %743 = vmatpush2.msra.mxu0 0.0
      %744 = vmatprep.subr.mxu0 0.0
      %745 = vmatpush2.msra.mxu0 0.0
      %746 = vmatprep.subr.mxu0 0.0
      %747 = vmatpush2.msra.mxu0 0.0
      %748 = vmatprep.subr.mxu0 %v483
      %749 = vmatpush2.msra.mxu0 %v482
      %750 = vmatprep.subr.mxu0 %v481
      %751 = vmatpush2.msra.mxu0 %v480
      %752 = vmatprep.subr.mxu0 %v479
      %753 = vmatpush2.msra.mxu0 %v478
      %754 = vmatprep.subr.mxu0 %v477
      %755 = vmatpush2.msra.mxu0 %v476
      %756 = vmatprep.mubr.f32.mxu0 %v690
      %757 = vmatmul.mubr.f32.gmra.mxu0 %v678
      %v758 = vpop.f32.mrf.mxu0
      %v759 = vadd.f32 %v683, %v758
      %v760 = vpop.f32.mrf.mxu0
      %v761 = vadd.f32 %v687, %v760
      %762 = vdwg.mxu0
      %v763 = vtanh.pop %v759
      %v764 = vtanh.pop %v761
      %v765 = vld [vmem:[%s438 + $0x5] sm:$0x1]
      %v766 = vld [vmem:[%s438 + $0x25] sm:$0x1]
      %v767 = vld [vmem:[%s438 + $0x45] sm:$0x1]
      %v768 = vld [vmem:[%s438 + $0x65] sm:$0x1]
      %v769 = vld [vmem:[%s438 + $0x85] sm:$0x1]
      %v770 = vld [vmem:[%s438 + $0xa5] sm:$0x1]
      %v771 = vld [vmem:[%s438 + $0xc5] sm:$0x1]
      %v772 = vld [vmem:[%s438 + $0xe5] sm:$0x1]
      %774 = vrot.lane.b32.xlu0 %v622, 32
      %v775 = vpop.permute.xlu0 %774
      %777 = vrot.lane.b32.xlu0 %v647, 64
      %v778 = vpop.permute.xlu0 %777
      %780 = vrot.lane.b32.xlu0 %v672, 96
      %v781 = vpop.permute.xlu0 %780
      %v791 = vrot.slane %v766, 7
      %v792 = vsel %vm555, %v791, %v765
      %v793 = vrot.slane %v767, 6
      %v794 = vsel %vm558, %v793, %v792
      %v795 = vrot.slane %v768, 5
      %v796 = vsel %vm561, %v795, %v794
      %v797 = vrot.slane %v769, 4
      %v798 = vsel %vm564, %v797, %v796
      %v799 = vrot.slane %v770, 3
      %v800 = vsel %vm567, %v799, %v798
      %v801 = vrot.slane %v771, 2
      %v802 = vsel %vm570, %v801, %v800
      %v803 = vrot.slane %v772, 1
      %v804 = vsel %vm573, %v803, %v802
      %v805 = vsel %vm673, %v597, %v775
      %v806 = vsel %vm675, %v805, %v778
      %v807 = vsel %vm677, %v806, %v781
      %v808 = vsel %vm673, %v804, 0
      %810 = vmatprep.subr.mxu0 %v475
      %811 = vmatpush1.msra.mxu0 %v474
      %812 = vmatprep.subr.mxu0 %v473
      %813 = vmatpush1.msra.mxu0 %v472
      %814 = vmatprep.subr.mxu0 %v471
      %815 = vmatpush1.msra.mxu0 %v470
      %816 = vmatprep.subr.mxu0 %v469
      %817 = vmatpush1.msra.mxu0 %v468
      %818 = vmatprep.subr.mxu0 %v467
      %819 = vmatpush1.msra.mxu0 %v466
      %820 = vmatprep.subr.mxu0 %v465
      %821 = vmatpush1.msra.mxu0 %v464
      %822 = vmatprep.subr.mxu0 %v463
      %823 = vmatpush1.msra.mxu0 %v462
      %824 = vmatprep.subr.mxu0 %v461
      %825 = vmatpush1.msra.mxu0 %v460
      %826 = vmatprep.subr.mxu0 %v459
      %827 = vmatpush1.msra.mxu0 %v458
      %828 = vmatprep.subr.mxu0 %v457
      %829 = vmatpush1.msra.mxu0 %v456
      %830 = vmatprep.subr.mxu0 %v455
      %831 = vmatpush1.msra.mxu0 %v454
      %832 = vmatprep.subr.mxu0 %v453
      %833 = vmatpush1.msra.mxu0 %v452
      %834 = vmatprep.subr.mxu0 %v451
      %835 = vmatpush1.msra.mxu0 %v450
      %836 = vmatprep.subr.mxu0 %v449
      %837 = vmatpush1.msra.mxu0 %v448
      %838 = vmatprep.subr.mxu0 %v447
      %839 = vmatpush1.msra.mxu0 %v446
      %840 = vmatprep.subr.mxu0 %v445
      %841 = vmatpush1.msra.mxu0 %v444
      %842 = vmatprep.subr.mxu0 0.0
      %843 = vmatpush2.msra.mxu0 0.0
      %844 = vmatprep.subr.mxu0 0.0
      %845 = vmatpush2.msra.mxu0 0.0
      %846 = vmatprep.subr.mxu0 0.0
      %847 = vmatpush2.msra.mxu0 0.0
      %848 = vmatprep.subr.mxu0 0.0
      %849 = vmatpush2.msra.mxu0 0.0
      %850 = vmatprep.subr.mxu0 0.0
      %851 = vmatpush2.msra.mxu0 0.0
      %852 = vmatprep.subr.mxu0 0.0
      %853 = vmatpush2.msra.mxu0 0.0
      %854 = vmatprep.subr.mxu0 0.0
      %855 = vmatpush2.msra.mxu0 0.0
      %856 = vmatprep.subr.mxu0 0.0
      %857 = vmatpush2.msra.mxu0 0.0
      %858 = vmatprep.subr.mxu0 0.0
      %859 = vmatpush2.msra.mxu0 0.0
      %860 = vmatprep.subr.mxu0 0.0
      %861 = vmatpush2.msra.mxu0 0.0
      %862 = vmatprep.subr.mxu0 0.0
      %863 = vmatpush2.msra.mxu0 0.0
      %864 = vmatprep.subr.mxu0 0.0
      %865 = vmatpush2.msra.mxu0 0.0
      %866 = vmatprep.subr.mxu0 %v483
      %867 = vmatpush2.msra.mxu0 %v482
      %868 = vmatprep.subr.mxu0 %v481
      %869 = vmatpush2.msra.mxu0 %v480
      %870 = vmatprep.subr.mxu0 %v479
      %871 = vmatpush2.msra.mxu0 %v478
      %872 = vmatprep.subr.mxu0 %v477
      %873 = vmatpush2.msra.mxu0 %v476
      %874 = vmatprep.mubr.f32.mxu0 %v808
      %875 = vmatmul.mubr.f32.gmra.mxu0 %v807
      %v876 = vpop.f32.mrf.mxu0
      %v877 = vadd.f32 %v683, %v876
      %v878 = vpop.f32.mrf.mxu0
      %v879 = vadd.f32 %v687, %v878
      %880 = vdwg.mxu0
      %v881 = vtanh.pop %v877
      %v882 = vtanh.pop %v879
      %v883 = vadd.f32 %v763, %v881
      %v884 = vadd.f32 %v764, %v882
      %vm885 = vcmask 326656
      %v887 = vsel %vm885, %v884, 0
      %889 = vmatprep.subr.mxu0 0.0
      %890 = vmatpush1.msra.mxu0 %v500
      %891 = vmatprep.subr.mxu0 0.0
      %892 = vmatpush1.msra.mxu0 %v499
      %893 = vmatprep.subr.mxu0 0.0
      %894 = vmatpush1.msra.mxu0 %v498
      %895 = vmatprep.subr.mxu0 0.0
      %896 = vmatpush1.msra.mxu0 %v497
      %897 = vmatprep.subr.mxu0 0.0
      %898 = vmatpush1.msra.mxu0 %v496
      %899 = vmatprep.subr.mxu0 0.0
      %900 = vmatpush1.msra.mxu0 %v495
      %901 = vmatprep.subr.mxu0 0.0
      %902 = vmatpush1.msra.mxu0 %v494
      %903 = vmatprep.subr.mxu0 0.0
      %904 = vmatpush1.msra.mxu0 %v493
      %905 = vmatprep.subr.mxu0 0.0
      %906 = vmatpush1.msra.mxu0 %v492
      %907 = vmatprep.subr.mxu0 0.0
      %908 = vmatpush1.msra.mxu0 %v491
      %909 = vmatprep.subr.mxu0 0.0
      %910 = vmatpush1.msra.mxu0 %v490
      %911 = vmatprep.subr.mxu0 0.0
      %912 = vmatpush1.msra.mxu0 %v489
      %913 = vmatprep.subr.mxu0 0.0
      %914 = vmatpush1.msra.mxu0 %v488
      %915 = vmatprep.subr.mxu0 0.0
      %916 = vmatpush1.msra.mxu0 %v487
      %917 = vmatprep.subr.mxu0 0.0
      %918 = vmatpush1.msra.mxu0 %v486
      %919 = vmatprep.subr.mxu0 0.0
      %920 = vmatpush1.msra.mxu0 %v485
      %921 = vmatprep.subr.mxu0 0.0
      %922 = vmatpush2.msra.mxu0 0.0
      %923 = vmatprep.subr.mxu0 0.0
      %924 = vmatpush2.msra.mxu0 0.0
      %925 = vmatprep.subr.mxu0 0.0
      %926 = vmatpush2.msra.mxu0 0.0
      %927 = vmatprep.subr.mxu0 0.0
      %928 = vmatpush2.msra.mxu0 0.0
      %929 = vmatprep.subr.mxu0 0.0
      %930 = vmatpush2.msra.mxu0 0.0
      %931 = vmatprep.subr.mxu0 0.0
      %932 = vmatpush2.msra.mxu0 0.0
      %933 = vmatprep.subr.mxu0 0.0
      %934 = vmatpush2.msra.mxu0 0.0
      %935 = vmatprep.subr.mxu0 0.0
      %936 = vmatpush2.msra.mxu0 0.0
      %937 = vmatprep.subr.mxu0 0.0
      %938 = vmatpush2.msra.mxu0 0.0
      %939 = vmatprep.subr.mxu0 0.0
      %940 = vmatpush2.msra.mxu0 0.0
      %941 = vmatprep.subr.mxu0 0.0
      %942 = vmatpush2.msra.mxu0 0.0
      %943 = vmatprep.subr.mxu0 0.0
      %944 = vmatpush2.msra.mxu0 %v505
      %945 = vmatprep.subr.mxu0 0.0
      %946 = vmatpush2.msra.mxu0 %v504
      %947 = vmatprep.subr.mxu0 0.0
      %948 = vmatpush2.msra.mxu0 %v503
      %949 = vmatprep.subr.mxu0 0.0
      %950 = vmatpush2.msra.mxu0 %v502
      %951 = vmatprep.subr.mxu0 0.0
      %952 = vmatpush2.msra.mxu0 %v501
      %953 = vmatprep.mubr.f32.mxu0 %v887
      %954 = vmatmul.mubr.f32.gmra.mxu0 %v883
      %v955 = vpop.f32.mrf.mxu0
      %v956 = vadd.f32 0.0, %v955
      %v957 = vpop.f32.mrf.mxu0
      %958 = vdwg.mxu0
      %959 = vst [vmem:[#allocation2] sm:$0xff] %v956
      %v960 = vld [vmem:[%s438 + $0x2] sm:$0x1]
      %v961 = vld [vmem:[%s438 + $0x22] sm:$0x1]
      %v962 = vld [vmem:[%s438 + $0x42] sm:$0x1]
      %v963 = vld [vmem:[%s438 + $0x62] sm:$0x1]
      %v964 = vld [vmem:[%s438 + $0x82] sm:$0x1]
      %v965 = vld [vmem:[%s438 + $0xa2] sm:$0x1]
      %v966 = vld [vmem:[%s438 + $0xc2] sm:$0x1]
      %v967 = vld [vmem:[%s438 + $0xe2] sm:$0x1]
      %v968 = vld [vmem:[%s438 + $0x3] sm:$0x1]
      %v969 = vld [vmem:[%s438 + $0x23] sm:$0x1]
      %v970 = vld [vmem:[%s438 + $0x43] sm:$0x1]
      %v971 = vld [vmem:[%s438 + $0x63] sm:$0x1]
      %v972 = vld [vmem:[%s438 + $0x83] sm:$0x1]
      %v973 = vld [vmem:[%s438 + $0xa3] sm:$0x1]
      %v974 = vld [vmem:[%s438 + $0xc3] sm:$0x1]
      %v975 = vld [vmem:[%s438 + $0xe3] sm:$0x1]
      %v976 = vld [vmem:[%s438 + $0x4] sm:$0x1]
      %v977 = vld [vmem:[%s438 + $0x24] sm:$0x1]
      %v978 = vld [vmem:[%s438 + $0x44] sm:$0x1]
      %v979 = vld [vmem:[%s438 + $0x64] sm:$0x1]
      %v980 = vld [vmem:[%s438 + $0x84] sm:$0x1]
      %v981 = vld [vmem:[%s438 + $0xa4] sm:$0x1]
      %v982 = vld [vmem:[%s438 + $0xc4] sm:$0x1]
      %v983 = vld [vmem:[%s438 + $0xe4] sm:$0x1]
      %v984 = vld [vmem:[%s438 + $0x5] sm:$0x1]
      %v985 = vld [vmem:[%s438 + $0x25] sm:$0x1]
      %v986 = vld [vmem:[%s438 + $0x45] sm:$0x1]
      %v987 = vld [vmem:[%s438 + $0x65] sm:$0x1]
      %v988 = vld [vmem:[%s438 + $0x85] sm:$0x1]
      %v989 = vld [vmem:[%s438 + $0xa5] sm:$0x1]
      %v990 = vld [vmem:[%s438 + $0xc5] sm:$0x1]
      %v991 = vld [vmem:[%s438 + $0xe5] sm:$0x1]
      %v992 = vld [vmem:[%s438 + $0x6] sm:$0x1]
      %v993 = vld [vmem:[%s438 + $0x26] sm:$0x1]
      %v994 = vld [vmem:[%s438 + $0x46] sm:$0x1]
      %v995 = vld [vmem:[%s438 + $0x66] sm:$0x1]
      %v996 = vld [vmem:[%s438 + $0x86] sm:$0x1]
      %v997 = vld [vmem:[%s438 + $0xa6] sm:$0x1]
      %v998 = vld [vmem:[%s438 + $0xc6] sm:$0x1]
      %v999 = vld [vmem:[%s438 + $0xe6] sm:$0x1]
      %v1008 = vrot.slane %v961, 7
      %v1009 = vsel %vm555, %v1008, %v960
      %v1010 = vrot.slane %v962, 6
      %v1011 = vsel %vm558, %v1010, %v1009
      %v1012 = vrot.slane %v963, 5
      %v1013 = vsel %vm561, %v1012, %v1011
      %v1014 = vrot.slane %v964, 4
      %v1015 = vsel %vm564, %v1014, %v1013
      %v1016 = vrot.slane %v965, 3
      %v1017 = vsel %vm567, %v1016, %v1015
      %v1018 = vrot.slane %v966, 2
      %v1019 = vsel %vm570, %v1018, %v1017
      %v1020 = vrot.slane %v967, 1
      %v1021 = vsel %vm573, %v1020, %v1019
      %v1031 = vrot.slane %v969, 7
      %v1032 = vsel %vm555, %v1031, %v968
      %v1033 = vrot.slane %v970, 6
      %v1034 = vsel %vm558, %v1033, %v1032
      %v1035 = vrot.slane %v971, 5
      %v1036 = vsel %vm561, %v1035, %v1034
      %v1037 = vrot.slane %v972, 4
      %v1038 = vsel %vm564, %v1037, %v1036
      %v1039 = vrot.slane %v973, 3
      %v1040 = vsel %vm567, %v1039, %v1038
      %v1041 = vrot.slane %v974, 2
      %v1042 = vsel %vm570, %v1041, %v1040
      %v1043 = vrot.slane %v975, 1
      %v1044 = vsel %vm573, %v1043, %v1042
      %1045 = vrot.lane.b32.xlu0 %v1044, 32
      %v1046 = vpop.permute.xlu0 %1045
      %v1056 = vrot.slane %v977, 7
      %v1057 = vsel %vm555, %v1056, %v976
      %v1058 = vrot.slane %v978, 6
      %v1059 = vsel %vm558, %v1058, %v1057
      %v1060 = vrot.slane %v979, 5
      %v1061 = vsel %vm561, %v1060, %v1059
      %v1062 = vrot.slane %v980, 4
      %v1063 = vsel %vm564, %v1062, %v1061
      %v1064 = vrot.slane %v981, 3
      %v1065 = vsel %vm567, %v1064, %v1063
      %v1066 = vrot.slane %v982, 2
      %v1067 = vsel %vm570, %v1066, %v1065
      %v1068 = vrot.slane %v983, 1
      %v1069 = vsel %vm573, %v1068, %v1067
      %1070 = vrot.lane.b32.xlu0 %v1069, 64
      %v1071 = vpop.permute.xlu0 %1070
      %v1081 = vrot.slane %v985, 7
      %v1082 = vsel %vm555, %v1081, %v984
      %v1083 = vrot.slane %v986, 6
      %v1084 = vsel %vm558, %v1083, %v1082
      %v1085 = vrot.slane %v987, 5
      %v1086 = vsel %vm561, %v1085, %v1084
      %v1087 = vrot.slane %v988, 4
      %v1088 = vsel %vm564, %v1087, %v1086
      %v1089 = vrot.slane %v989, 3
      %v1090 = vsel %vm567, %v1089, %v1088
      %v1091 = vrot.slane %v990, 2
      %v1092 = vsel %vm570, %v1091, %v1090
      %v1093 = vrot.slane %v991, 1
      %v1094 = vsel %vm573, %v1093, %v1092
      %1095 = vrot.lane.b32.xlu0 %v1094, 96
      %v1096 = vpop.permute.xlu0 %1095
      %v1106 = vrot.slane %v993, 7
      %v1107 = vsel %vm555, %v1106, %v992
      %v1108 = vrot.slane %v994, 6
      %v1109 = vsel %vm558, %v1108, %v1107
      %v1110 = vrot.slane %v995, 5
      %v1111 = vsel %vm561, %v1110, %v1109
      %v1112 = vrot.slane %v996, 4
      %v1113 = vsel %vm564, %v1112, %v1111
      %v1114 = vrot.slane %v997, 3
      %v1115 = vsel %vm567, %v1114, %v1113
      %v1116 = vrot.slane %v998, 2
      %v1117 = vsel %vm570, %v1116, %v1115
      %v1118 = vrot.slane %v999, 1
      %v1119 = vsel %vm573, %v1118, %v1117
      %v1120 = vsel %vm673, %v1021, %v1046
      %v1121 = vsel %vm675, %v1120, %v1071
      %v1122 = vsel %vm677, %v1121, %v1096
      %v1123 = vsel %vm673, %v1119, 0
      %1125 = vmatprep.subr.mxu0 %v475
      %1126 = vmatpush1.msra.mxu0 %v474
      %1127 = vmatprep.subr.mxu0 %v473
      %1128 = vmatpush1.msra.mxu0 %v472
      %1129 = vmatprep.subr.mxu0 %v471
      %1130 = vmatpush1.msra.mxu0 %v470
      %1131 = vmatprep.subr.mxu0 %v469
      %1132 = vmatpush1.msra.mxu0 %v468
      %1133 = vmatprep.subr.mxu0 %v467
      %1134 = vmatpush1.msra.mxu0 %v466
      %1135 = vmatprep.subr.mxu0 %v465
      %1136 = vmatpush1.msra.mxu0 %v464
      %1137 = vmatprep.subr.mxu0 %v463
      %1138 = vmatpush1.msra.mxu0 %v462
      %1139 = vmatprep.subr.mxu0 %v461
      %1140 = vmatpush1.msra.mxu0 %v460
      %1141 = vmatprep.subr.mxu0 %v459
      %1142 = vmatpush1.msra.mxu0 %v458
      %1143 = vmatprep.subr.mxu0 %v457
      %1144 = vmatpush1.msra.mxu0 %v456
      %1145 = vmatprep.subr.mxu0 %v455
      %1146 = vmatpush1.msra.mxu0 %v454
      %1147 = vmatprep.subr.mxu0 %v453
      %1148 = vmatpush1.msra.mxu0 %v452
      %1149 = vmatprep.subr.mxu0 %v451
      %1150 = vmatpush1.msra.mxu0 %v450
      %1151 = vmatprep.subr.mxu0 %v449
      %1152 = vmatpush1.msra.mxu0 %v448
      %1153 = vmatprep.subr.mxu0 %v447
      %1154 = vmatpush1.msra.mxu0 %v446
      %1155 = vmatprep.subr.mxu0 %v445
      %1156 = vmatpush1.msra.mxu0 %v444
      %1157 = vmatprep.subr.mxu0 0.0
      %1158 = vmatpush2.msra.mxu0 0.0
      %1159 = vmatprep.subr.mxu0 0.0
      %1160 = vmatpush2.msra.mxu0 0.0
      %1161 = vmatprep.subr.mxu0 0.0
      %1162 = vmatpush2.msra.mxu0 0.0
      %1163 = vmatprep.subr.mxu0 0.0
      %1164 = vmatpush2.msra.mxu0 0.0
      %1165 = vmatprep.subr.mxu0 0.0
      %1166 = vmatpush2.msra.mxu0 0.0
      %1167 = vmatprep.subr.mxu0 0.0
      %1168 = vmatpush2.msra.mxu0 0.0
      %1169 = vmatprep.subr.mxu0 0.0
      %1170 = vmatpush2.msra.mxu0 0.0
      %1171 = vmatprep.subr.mxu0 0.0
      %1172 = vmatpush2.msra.mxu0 0.0
      %1173 = vmatprep.subr.mxu0 0.0
      %1174 = vmatpush2.msra.mxu0 0.0
      %1175 = vmatprep.subr.mxu0 0.0
      %1176 = vmatpush2.msra.mxu0 0.0
      %1177 = vmatprep.subr.mxu0 0.0
      %1178 = vmatpush2.msra.mxu0 0.0
      %1179 = vmatprep.subr.mxu0 0.0
      %1180 = vmatpush2.msra.mxu0 0.0
      %1181 = vmatprep.subr.mxu0 %v483
      %1182 = vmatpush2.msra.mxu0 %v482
      %1183 = vmatprep.subr.mxu0 %v481
      %1184 = vmatpush2.msra.mxu0 %v480
      %1185 = vmatprep.subr.mxu0 %v479
      %1186 = vmatpush2.msra.mxu0 %v478
      %1187 = vmatprep.subr.mxu0 %v477
      %1188 = vmatpush2.msra.mxu0 %v476
      %1189 = vmatprep.mubr.f32.mxu0 %v1123
      %1190 = vmatmul.mubr.f32.gmra.mxu0 %v1122
      %v1191 = vpop.f32.mrf.mxu0
      %v1192 = vadd.f32 %v683, %v1191
      %v1193 = vpop.f32.mrf.mxu0
      %v1194 = vadd.f32 %v687, %v1193
      %1195 = vdwg.mxu0
      %v1196 = vtanh.pop %v1192
      %v1197 = vtanh.pop %v1194
      %v1198 = vld [vmem:[%s438 + $0x7] sm:$0x1]
      %v1199 = vld [vmem:[%s438 + $0x27] sm:$0x1]
      %v1200 = vld [vmem:[%s438 + $0x47] sm:$0x1]
      %v1201 = vld [vmem:[%s438 + $0x67] sm:$0x1]
      %v1202 = vld [vmem:[%s438 + $0x87] sm:$0x1]
      %v1203 = vld [vmem:[%s438 + $0xa7] sm:$0x1]
      %v1204 = vld [vmem:[%s438 + $0xc7] sm:$0x1]
      %v1205 = vld [vmem:[%s438 + $0xe7] sm:$0x1]
      %1207 = vrot.lane.b32.xlu0 %v1069, 32
      %v1208 = vpop.permute.xlu0 %1207
      %1210 = vrot.lane.b32.xlu0 %v1094, 64
      %v1211 = vpop.permute.xlu0 %1210
      %1213 = vrot.lane.b32.xlu0 %v1119, 96
      %v1214 = vpop.permute.xlu0 %1213
      %v1224 = vrot.slane %v1199, 7
      %v1225 = vsel %vm555, %v1224, %v1198
      %v1226 = vrot.slane %v1200, 6
      %v1227 = vsel %vm558, %v1226, %v1225
      %v1228 = vrot.slane %v1201, 5
      %v1229 = vsel %vm561, %v1228, %v1227
      %v1230 = vrot.slane %v1202, 4
      %v1231 = vsel %vm564, %v1230, %v1229
      %v1232 = vrot.slane %v1203, 3
      %v1233 = vsel %vm567, %v1232, %v1231
      %v1234 = vrot.slane %v1204, 2
      %v1235 = vsel %vm570, %v1234, %v1233
      %v1236 = vrot.slane %v1205, 1
      %v1237 = vsel %vm573, %v1236, %v1235
      %v1238 = vsel %vm673, %v1044, %v1208
      %v1239 = vsel %vm675, %v1238, %v1211
      %v1240 = vsel %vm677, %v1239, %v1214
      %v1241 = vsel %vm673, %v1237, 0
      %1243 = vmatprep.subr.mxu0 %v475
      %1244 = vmatpush1.msra.mxu0 %v474
      %1245 = vmatprep.subr.mxu0 %v473
      %1246 = vmatpush1.msra.mxu0 %v472
      %1247 = vmatprep.subr.mxu0 %v471
      %1248 = vmatpush1.msra.mxu0 %v470
      %1249 = vmatprep.subr.mxu0 %v469
      %1250 = vmatpush1.msra.mxu0 %v468
      %1251 = vmatprep.subr.mxu0 %v467
      %1252 = vmatpush1.msra.mxu0 %v466
      %1253 = vmatprep.subr.mxu0 %v465
      %1254 = vmatpush1.msra.mxu0 %v464
      %1255 = vmatprep.subr.mxu0 %v463
      %1256 = vmatpush1.msra.mxu0 %v462
      %1257 = vmatprep.subr.mxu0 %v461
      %1258 = vmatpush1.msra.mxu0 %v460
      %1259 = vmatprep.subr.mxu0 %v459
      %1260 = vmatpush1.msra.mxu0 %v458
      %1261 = vmatprep.subr.mxu0 %v457
      %1262 = vmatpush1.msra.mxu0 %v456
      %1263 = vmatprep.subr.mxu0 %v455
      %1264 = vmatpush1.msra.mxu0 %v454
      %1265 = vmatprep.subr.mxu0 %v453
      %1266 = vmatpush1.msra.mxu0 %v452
      %1267 = vmatprep.subr.mxu0 %v451
      %1268 = vmatpush1.msra.mxu0 %v450
      %1269 = vmatprep.subr.mxu0 %v449
      %1270 = vmatpush1.msra.mxu0 %v448
      %1271 = vmatprep.subr.mxu0 %v447
      %1272 = vmatpush1.msra.mxu0 %v446
      %1273 = vmatprep.subr.mxu0 %v445
      %1274 = vmatpush1.msra.mxu0 %v444
      %1275 = vmatprep.subr.mxu0 0.0
      %1276 = vmatpush2.msra.mxu0 0.0
      %1277 = vmatprep.subr.mxu0 0.0
      %1278 = vmatpush2.msra.mxu0 0.0
      %1279 = vmatprep.subr.mxu0 0.0
      %1280 = vmatpush2.msra.mxu0 0.0
      %1281 = vmatprep.subr.mxu0 0.0
      %1282 = vmatpush2.msra.mxu0 0.0
      %1283 = vmatprep.subr.mxu0 0.0
      %1284 = vmatpush2.msra.mxu0 0.0
      %1285 = vmatprep.subr.mxu0 0.0
      %1286 = vmatpush2.msra.mxu0 0.0
      %1287 = vmatprep.subr.mxu0 0.0
      %1288 = vmatpush2.msra.mxu0 0.0
      %1289 = vmatprep.subr.mxu0 0.0
      %1290 = vmatpush2.msra.mxu0 0.0
      %1291 = vmatprep.subr.mxu0 0.0
      %1292 = vmatpush2.msra.mxu0 0.0
      %1293 = vmatprep.subr.mxu0 0.0
      %1294 = vmatpush2.msra.mxu0 0.0
      %1295 = vmatprep.subr.mxu0 0.0
      %1296 = vmatpush2.msra.mxu0 0.0
      %1297 = vmatprep.subr.mxu0 0.0
      %1298 = vmatpush2.msra.mxu0 0.0
      %1299 = vmatprep.subr.mxu0 %v483
      %1300 = vmatpush2.msra.mxu0 %v482
      %1301 = vmatprep.subr.mxu0 %v481
      %1302 = vmatpush2.msra.mxu0 %v480
      %1303 = vmatprep.subr.mxu0 %v479
      %1304 = vmatpush2.msra.mxu0 %v478
      %1305 = vmatprep.subr.mxu0 %v477
      %1306 = vmatpush2.msra.mxu0 %v476
      %1307 = vmatprep.mubr.f32.mxu0 %v1241
      %1308 = vmatmul.mubr.f32.gmra.mxu0 %v1240
      %v1309 = vpop.f32.mrf.mxu0
      %v1310 = vadd.f32 %v683, %v1309
      %v1311 = vpop.f32.mrf.mxu0
      %v1312 = vadd.f32 %v687, %v1311
      %1313 = vdwg.mxu0
      %v1314 = vtanh.pop %v1310
      %v1315 = vtanh.pop %v1312
      %v1316 = vadd.f32 %v1196, %v1314
      %v1317 = vadd.f32 %v1197, %v1315
      %v1319 = vsel %vm885, %v1317, 0
      %1321 = vmatprep.subr.mxu0 0.0
      %1322 = vmatpush1.msra.mxu0 %v500
      %1323 = vmatprep.subr.mxu0 0.0
      %1324 = vmatpush1.msra.mxu0 %v499
      %1325 = vmatprep.subr.mxu0 0.0
      %1326 = vmatpush1.msra.mxu0 %v498
      %1327 = vmatprep.subr.mxu0 0.0
      %1328 = vmatpush1.msra.mxu0 %v497
      %1329 = vmatprep.subr.mxu0 0.0
      %1330 = vmatpush1.msra.mxu0 %v496
      %1331 = vmatprep.subr.mxu0 0.0
      %1332 = vmatpush1.msra.mxu0 %v495
      %1333 = vmatprep.subr.mxu0 0.0
      %1334 = vmatpush1.msra.mxu0 %v494
      %1335 = vmatprep.subr.mxu0 0.0
      %1336 = vmatpush1.msra.mxu0 %v493
      %1337 = vmatprep.subr.mxu0 0.0
      %1338 = vmatpush1.msra.mxu0 %v492
      %1339 = vmatprep.subr.mxu0 0.0
      %1340 = vmatpush1.msra.mxu0 %v491
      %1341 = vmatprep.subr.mxu0 0.0
      %1342 = vmatpush1.msra.mxu0 %v490
      %1343 = vmatprep.subr.mxu0 0.0
      %1344 = vmatpush1.msra.mxu0 %v489
      %1345 = vmatprep.subr.mxu0 0.0
      %1346 = vmatpush1.msra.mxu0 %v488
      %1347 = vmatprep.subr.mxu0 0.0
      %1348 = vmatpush1.msra.mxu0 %v487
      %1349 = vmatprep.subr.mxu0 0.0
      %1350 = vmatpush1.msra.mxu0 %v486
      %1351 = vmatprep.subr.mxu0 0.0
      %1352 = vmatpush1.msra.mxu0 %v485
      %1353 = vmatprep.subr.mxu0 0.0
      %1354 = vmatpush2.msra.mxu0 0.0
      %1355 = vmatprep.subr.mxu0 0.0
      %1356 = vmatpush2.msra.mxu0 0.0
      %1357 = vmatprep.subr.mxu0 0.0
      %1358 = vmatpush2.msra.mxu0 0.0
      %1359 = vmatprep.subr.mxu0 0.0
      %1360 = vmatpush2.msra.mxu0 0.0
      %1361 = vmatprep.subr.mxu0 0.0
      %1362 = vmatpush2.msra.mxu0 0.0
      %1363 = vmatprep.subr.mxu0 0.0
      %1364 = vmatpush2.msra.mxu0 0.0
      %1365 = vmatprep.subr.mxu0 0.0
      %1366 = vmatpush2.msra.mxu0 0.0
      %1367 = vmatprep.subr.mxu0 0.0
      %1368 = vmatpush2.msra.mxu0 0.0
      %1369 = vmatprep.subr.mxu0 0.0
      %1370 = vmatpush2.msra.mxu0 0.0
      %1371 = vmatprep.subr.mxu0 0.0
      %1372 = vmatpush2.msra.mxu0 0.0
      %1373 = vmatprep.subr.mxu0 0.0
      %1374 = vmatpush2.msra.mxu0 0.0
      %1375 = vmatprep.subr.mxu0 0.0
      %1376 = vmatpush2.msra.mxu0 %v505
      %1377 = vmatprep.subr.mxu0 0.0
      %1378 = vmatpush2.msra.mxu0 %v504
      %1379 = vmatprep.subr.mxu0 0.0
      %1380 = vmatpush2.msra.mxu0 %v503
      %1381 = vmatprep.subr.mxu0 0.0
      %1382 = vmatpush2.msra.mxu0 %v502
      %1383 = vmatprep.subr.mxu0 0.0
      %1384 = vmatpush2.msra.mxu0 %v501
      %1385 = vmatprep.mubr.f32.mxu0 %v1319
      %1386 = vmatmul.mubr.f32.gmra.mxu0 %v1316
      %v1387 = vpop.f32.mrf.mxu0
      %v1388 = vadd.f32 0.0, %v1387
      %v1389 = vpop.f32.mrf.mxu0
      %1390 = vdwg.mxu0
      %s1391 = scalar_lea.vmem [#allocation2], 8
      %1392 = vst [vmem:[%s1391] sm:$0xff] %v1388
      %v1393 = vld [vmem:[%s438 + $0x4] sm:$0x1]
      %v1394 = vld [vmem:[%s438 + $0x24] sm:$0x1]
      %v1395 = vld [vmem:[%s438 + $0x44] sm:$0x1]
      %v1396 = vld [vmem:[%s438 + $0x64] sm:$0x1]
      %v1397 = vld [vmem:[%s438 + $0x84] sm:$0x1]
      %v1398 = vld [vmem:[%s438 + $0xa4] sm:$0x1]
      %v1399 = vld [vmem:[%s438 + $0xc4] sm:$0x1]
      %v1400 = vld [vmem:[%s438 + $0xe4] sm:$0x1]
      %v1401 = vld [vmem:[%s438 + $0x5] sm:$0x1]
      %v1402 = vld [vmem:[%s438 + $0x25] sm:$0x1]
      %v1403 = vld [vmem:[%s438 + $0x45] sm:$0x1]
      %v1404 = vld [vmem:[%s438 + $0x65] sm:$0x1]
      %v1405 = vld [vmem:[%s438 + $0x85] sm:$0x1]
      %v1406 = vld [vmem:[%s438 + $0xa5] sm:$0x1]
      %v1407 = vld [vmem:[%s438 + $0xc5] sm:$0x1]
      %v1408 = vld [vmem:[%s438 + $0xe5] sm:$0x1]
      %v1409 = vld [vmem:[%s438 + $0x6] sm:$0x1]
      %v1410 = vld [vmem:[%s438 + $0x26] sm:$0x1]
      %v1411 = vld [vmem:[%s438 + $0x46] sm:$0x1]
      %v1412 = vld [vmem:[%s438 + $0x66] sm:$0x1]
      %v1413 = vld [vmem:[%s438 + $0x86] sm:$0x1]
      %v1414 = vld [vmem:[%s438 + $0xa6] sm:$0x1]
      %v1415 = vld [vmem:[%s438 + $0xc6] sm:$0x1]
      %v1416 = vld [vmem:[%s438 + $0xe6] sm:$0x1]
      %v1417 = vld [vmem:[%s438 + $0x7] sm:$0x1]
      %v1418 = vld [vmem:[%s438 + $0x27] sm:$0x1]
      %v1419 = vld [vmem:[%s438 + $0x47] sm:$0x1]
      %v1420 = vld [vmem:[%s438 + $0x67] sm:$0x1]
      %v1421 = vld [vmem:[%s438 + $0x87] sm:$0x1]
      %v1422 = vld [vmem:[%s438 + $0xa7] sm:$0x1]
      %v1423 = vld [vmem:[%s438 + $0xc7] sm:$0x1]
      %v1424 = vld [vmem:[%s438 + $0xe7] sm:$0x1]
      %v1425 = vld [vmem:[%s438 + $0x8] sm:$0x1]
      %v1426 = vld [vmem:[%s438 + $0x28] sm:$0x1]
      %v1427 = vld [vmem:[%s438 + $0x48] sm:$0x1]
      %v1428 = vld [vmem:[%s438 + $0x68] sm:$0x1]
      %v1429 = vld [vmem:[%s438 + $0x88] sm:$0x1]
      %v1430 = vld [vmem:[%s438 + $0xa8] sm:$0x1]
      %v1431 = vld [vmem:[%s438 + $0xc8] sm:$0x1]
      %v1432 = vld [vmem:[%s438 + $0xe8] sm:$0x1]
      %v1441 = vrot.slane %v1394, 7
      %v1442 = vsel %vm555, %v1441, %v1393
      %v1443 = vrot.slane %v1395, 6
      %v1444 = vsel %vm558, %v1443, %v1442
      %v1445 = vrot.slane %v1396, 5
      %v1446 = vsel %vm561, %v1445, %v1444
      %v1447 = vrot.slane %v1397, 4
      %v1448 = vsel %vm564, %v1447, %v1446
      %v1449 = vrot.slane %v1398, 3
      %v1450 = vsel %vm567, %v1449, %v1448
      %v1451 = vrot.slane %v1399, 2
      %v1452 = vsel %vm570, %v1451, %v1450
      %v1453 = vrot.slane %v1400, 1
      %v1454 = vsel %vm573, %v1453, %v1452
      %v1464 = vrot.slane %v1402, 7
      %v1465 = vsel %vm555, %v1464, %v1401
      %v1466 = vrot.slane %v1403, 6
      %v1467 = vsel %vm558, %v1466, %v1465
      %v1468 = vrot.slane %v1404, 5
      %v1469 = vsel %vm561, %v1468, %v1467
      %v1470 = vrot.slane %v1405, 4
      %v1471 = vsel %vm564, %v1470, %v1469
      %v1472 = vrot.slane %v1406, 3
      %v1473 = vsel %vm567, %v1472, %v1471
      %v1474 = vrot.slane %v1407, 2
      %v1475 = vsel %vm570, %v1474, %v1473
      %v1476 = vrot.slane %v1408, 1
      %v1477 = vsel %vm573, %v1476, %v1475
      %1478 = vrot.lane.b32.xlu0 %v1477, 32
      %v1479 = vpop.permute.xlu0 %1478
      %v1489 = vrot.slane %v1410, 7
      %v1490 = vsel %vm555, %v1489, %v1409
      %v1491 = vrot.slane %v1411, 6
      %v1492 = vsel %vm558, %v1491, %v1490
      %v1493 = vrot.slane %v1412, 5
      %v1494 = vsel %vm561, %v1493, %v1492
      %v1495 = vrot.slane %v1413, 4
      %v1496 = vsel %vm564, %v1495, %v1494
      %v1497 = vrot.slane %v1414, 3
      %v1498 = vsel %vm567, %v1497, %v1496
      %v1499 = vrot.slane %v1415, 2
      %v1500 = vsel %vm570, %v1499, %v1498
      %v1501 = vrot.slane %v1416, 1
      %v1502 = vsel %vm573, %v1501, %v1500
      %1503 = vrot.lane.b32.xlu0 %v1502, 64
      %v1504 = vpop.permute.xlu0 %1503
      %v1514 = vrot.slane %v1418, 7
      %v1515 = vsel %vm555, %v1514, %v1417
      %v1516 = vrot.slane %v1419, 6
      %v1517 = vsel %vm558, %v1516, %v1515
      %v1518 = vrot.slane %v1420, 5
      %v1519 = vsel %vm561, %v1518, %v1517
      %v1520 = vrot.slane %v1421, 4
      %v1521 = vsel %vm564, %v1520, %v1519
      %v1522 = vrot.slane %v1422, 3
      %v1523 = vsel %vm567, %v1522, %v1521
      %v1524 = vrot.slane %v1423, 2
      %v1525 = vsel %vm570, %v1524, %v1523
      %v1526 = vrot.slane %v1424, 1
      %v1527 = vsel %vm573, %v1526, %v1525
      %1528 = vrot.lane.b32.xlu0 %v1527, 96
      %v1529 = vpop.permute.xlu0 %1528
      %v1539 = vrot.slane %v1426, 7
      %v1540 = vsel %vm555, %v1539, %v1425
      %v1541 = vrot.slane %v1427, 6
      %v1542 = vsel %vm558, %v1541, %v1540
      %v1543 = vrot.slane %v1428, 5
      %v1544 = vsel %vm561, %v1543, %v1542
      %v1545 = vrot.slane %v1429, 4
      %v1546 = vsel %vm564, %v1545, %v1544
      %v1547 = vrot.slane %v1430, 3
      %v1548 = vsel %vm567, %v1547, %v1546
      %v1549 = vrot.slane %v1431, 2
      %v1550 = vsel %vm570, %v1549, %v1548
      %v1551 = vrot.slane %v1432, 1
      %v1552 = vsel %vm573, %v1551, %v1550
      %v1553 = vsel %vm673, %v1454, %v1479
      %v1554 = vsel %vm675, %v1553, %v1504
      %v1555 = vsel %vm677, %v1554, %v1529
      %v1556 = vsel %vm673, %v1552, 0
      %1558 = vmatprep.subr.mxu0 %v475
      %1559 = vmatpush1.msra.mxu0 %v474
      %1560 = vmatprep.subr.mxu0 %v473
      %1561 = vmatpush1.msra.mxu0 %v472
      %1562 = vmatprep.subr.mxu0 %v471
      %1563 = vmatpush1.msra.mxu0 %v470
      %1564 = vmatprep.subr.mxu0 %v469
      %1565 = vmatpush1.msra.mxu0 %v468
      %1566 = vmatprep.subr.mxu0 %v467
      %1567 = vmatpush1.msra.mxu0 %v466
      %1568 = vmatprep.subr.mxu0 %v465
      %1569 = vmatpush1.msra.mxu0 %v464
      %1570 = vmatprep.subr.mxu0 %v463
      %1571 = vmatpush1.msra.mxu0 %v462
      %1572 = vmatprep.subr.mxu0 %v461
      %1573 = vmatpush1.msra.mxu0 %v460
      %1574 = vmatprep.subr.mxu0 %v459
      %1575 = vmatpush1.msra.mxu0 %v458
      %1576 = vmatprep.subr.mxu0 %v457
      %1577 = vmatpush1.msra.mxu0 %v456
      %1578 = vmatprep.subr.mxu0 %v455
      %1579 = vmatpush1.msra.mxu0 %v454
      %1580 = vmatprep.subr.mxu0 %v453
      %1581 = vmatpush1.msra.mxu0 %v452
      %1582 = vmatprep.subr.mxu0 %v451
      %1583 = vmatpush1.msra.mxu0 %v450
      %1584 = vmatprep.subr.mxu0 %v449
      %1585 = vmatpush1.msra.mxu0 %v448
      %1586 = vmatprep.subr.mxu0 %v447
      %1587 = vmatpush1.msra.mxu0 %v446
      %1588 = vmatprep.subr.mxu0 %v445
      %1589 = vmatpush1.msra.mxu0 %v444
      %1590 = vmatprep.subr.mxu0 0.0
      %1591 = vmatpush2.msra.mxu0 0.0
      %1592 = vmatprep.subr.mxu0 0.0
      %1593 = vmatpush2.msra.mxu0 0.0
      %1594 = vmatprep.subr.mxu0 0.0
      %1595 = vmatpush2.msra.mxu0 0.0
      %1596 = vmatprep.subr.mxu0 0.0
      %1597 = vmatpush2.msra.mxu0 0.0
      %1598 = vmatprep.subr.mxu0 0.0
      %1599 = vmatpush2.msra.mxu0 0.0
      %1600 = vmatprep.subr.mxu0 0.0
      %1601 = vmatpush2.msra.mxu0 0.0
      %1602 = vmatprep.subr.mxu0 0.0
      %1603 = vmatpush2.msra.mxu0 0.0
      %1604 = vmatprep.subr.mxu0 0.0
      %1605 = vmatpush2.msra.mxu0 0.0
      %1606 = vmatprep.subr.mxu0 0.0
      %1607 = vmatpush2.msra.mxu0 0.0
      %1608 = vmatprep.subr.mxu0 0.0
      %1609 = vmatpush2.msra.mxu0 0.0
      %1610 = vmatprep.subr.mxu0 0.0
      %1611 = vmatpush2.msra.mxu0 0.0
      %1612 = vmatprep.subr.mxu0 0.0
      %1613 = vmatpush2.msra.mxu0 0.0
      %1614 = vmatprep.subr.mxu0 %v483
      %1615 = vmatpush2.msra.mxu0 %v482
      %1616 = vmatprep.subr.mxu0 %v481
      %1617 = vmatpush2.msra.mxu0 %v480
      %1618 = vmatprep.subr.mxu0 %v479
      %1619 = vmatpush2.msra.mxu0 %v478
      %1620 = vmatprep.subr.mxu0 %v477
      %1621 = vmatpush2.msra.mxu0 %v476
      %1622 = vmatprep.mubr.f32.mxu0 %v1556
      %1623 = vmatmul.mubr.f32.gmra.mxu0 %v1555
      %v1624 = vpop.f32.mrf.mxu0
      %v1625 = vadd.f32 %v683, %v1624
      %v1626 = vpop.f32.mrf.mxu0
      %v1627 = vadd.f32 %v687, %v1626
      %1628 = vdwg.mxu0
      %v1629 = vtanh.pop %v1625
      %v1630 = vtanh.pop %v1627
      %v1631 = vld [vmem:[%s438 + $0x9] sm:$0x1]
      %v1632 = vld [vmem:[%s438 + $0x29] sm:$0x1]
      %v1633 = vld [vmem:[%s438 + $0x49] sm:$0x1]
      %v1634 = vld [vmem:[%s438 + $0x69] sm:$0x1]
      %v1635 = vld [vmem:[%s438 + $0x89] sm:$0x1]
      %v1636 = vld [vmem:[%s438 + $0xa9] sm:$0x1]
      %v1637 = vld [vmem:[%s438 + $0xc9] sm:$0x1]
      %v1638 = vld [vmem:[%s438 + $0xe9] sm:$0x1]
      %1640 = vrot.lane.b32.xlu0 %v1502, 32
      %v1641 = vpop.permute.xlu0 %1640
      %1643 = vrot.lane.b32.xlu0 %v1527, 64
      %v1644 = vpop.permute.xlu0 %1643
      %1646 = vrot.lane.b32.xlu0 %v1552, 96
      %v1647 = vpop.permute.xlu0 %1646
      %v1657 = vrot.slane %v1632, 7
      %v1658 = vsel %vm555, %v1657, %v1631
      %v1659 = vrot.slane %v1633, 6
      %v1660 = vsel %vm558, %v1659, %v1658
      %v1661 = vrot.slane %v1634, 5
      %v1662 = vsel %vm561, %v1661, %v1660
      %v1663 = vrot.slane %v1635, 4
      %v1664 = vsel %vm564, %v1663, %v1662
      %v1665 = vrot.slane %v1636, 3
      %v1666 = vsel %vm567, %v1665, %v1664
      %v1667 = vrot.slane %v1637, 2
      %v1668 = vsel %vm570, %v1667, %v1666
      %v1669 = vrot.slane %v1638, 1
      %v1670 = vsel %vm573, %v1669, %v1668
      %v1671 = vsel %vm673, %v1477, %v1641
      %v1672 = vsel %vm675, %v1671, %v1644
      %v1673 = vsel %vm677, %v1672, %v1647
      %v1674 = vsel %vm673, %v1670, 0
      %1676 = vmatprep.subr.mxu0 %v475
      %1677 = vmatpush1.msra.mxu0 %v474
      %1678 = vmatprep.subr.mxu0 %v473
      %1679 = vmatpush1.msra.mxu0 %v472
      %1680 = vmatprep.subr.mxu0 %v471
      %1681 = vmatpush1.msra.mxu0 %v470
      %1682 = vmatprep.subr.mxu0 %v469
      %1683 = vmatpush1.msra.mxu0 %v468
      %1684 = vmatprep.subr.mxu0 %v467
      %1685 = vmatpush1.msra.mxu0 %v466
      %1686 = vmatprep.subr.mxu0 %v465
      %1687 = vmatpush1.msra.mxu0 %v464
      %1688 = vmatprep.subr.mxu0 %v463
      %1689 = vmatpush1.msra.mxu0 %v462
      %1690 = vmatprep.subr.mxu0 %v461
      %1691 = vmatpush1.msra.mxu0 %v460
      %1692 = vmatprep.subr.mxu0 %v459
      %1693 = vmatpush1.msra.mxu0 %v458
      %1694 = vmatprep.subr.mxu0 %v457
      %1695 = vmatpush1.msra.mxu0 %v456
      %1696 = vmatprep.subr.mxu0 %v455
      %1697 = vmatpush1.msra.mxu0 %v454
      %1698 = vmatprep.subr.mxu0 %v453
      %1699 = vmatpush1.msra.mxu0 %v452
      %1700 = vmatprep.subr.mxu0 %v451
      %1701 = vmatpush1.msra.mxu0 %v450
      %1702 = vmatprep.subr.mxu0 %v449
      %1703 = vmatpush1.msra.mxu0 %v448
      %1704 = vmatprep.subr.mxu0 %v447
      %1705 = vmatpush1.msra.mxu0 %v446
      %1706 = vmatprep.subr.mxu0 %v445
      %1707 = vmatpush1.msra.mxu0 %v444
      %1708 = vmatprep.subr.mxu0 0.0
      %1709 = vmatpush2.msra.mxu0 0.0
      %1710 = vmatprep.subr.mxu0 0.0
      %1711 = vmatpush2.msra.mxu0 0.0
      %1712 = vmatprep.subr.mxu0 0.0
      %1713 = vmatpush2.msra.mxu0 0.0
      %1714 = vmatprep.subr.mxu0 0.0
      %1715 = vmatpush2.msra.mxu0 0.0
      %1716 = vmatprep.subr.mxu0 0.0
      %1717 = vmatpush2.msra.mxu0 0.0
      %1718 = vmatprep.subr.mxu0 0.0
      %1719 = vmatpush2.msra.mxu0 0.0
      %1720 = vmatprep.subr.mxu0 0.0
      %1721 = vmatpush2.msra.mxu0 0.0
      %1722 = vmatprep.subr.mxu0 0.0
      %1723 = vmatpush2.msra.mxu0 0.0
      %1724 = vmatprep.subr.mxu0 0.0
      %1725 = vmatpush2.msra.mxu0 0.0
      %1726 = vmatprep.subr.mxu0 0.0
      %1727 = vmatpush2.msra.mxu0 0.0
      %1728 = vmatprep.subr.mxu0 0.0
      %1729 = vmatpush2.msra.mxu0 0.0
      %1730 = vmatprep.subr.mxu0 0.0
      %1731 = vmatpush2.msra.mxu0 0.0
      %1732 = vmatprep.subr.mxu0 %v483
      %1733 = vmatpush2.msra.mxu0 %v482
      %1734 = vmatprep.subr.mxu0 %v481
      %1735 = vmatpush2.msra.mxu0 %v480
      %1736 = vmatprep.subr.mxu0 %v479
      %1737 = vmatpush2.msra.mxu0 %v478
      %1738 = vmatprep.subr.mxu0 %v477
      %1739 = vmatpush2.msra.mxu0 %v476
      %1740 = vmatprep.mubr.f32.mxu0 %v1674
      %1741 = vmatmul.mubr.f32.gmra.mxu0 %v1673
      %v1742 = vpop.f32.mrf.mxu0
      %v1743 = vadd.f32 %v683, %v1742
      %v1744 = vpop.f32.mrf.mxu0
      %v1745 = vadd.f32 %v687, %v1744
      %1746 = vdwg.mxu0
      %v1747 = vtanh.pop %v1743
      %v1748 = vtanh.pop %v1745
      %v1749 = vadd.f32 %v1629, %v1747
      %v1750 = vadd.f32 %v1630, %v1748
      %v1752 = vsel %vm885, %v1750, 0
      %1754 = vmatprep.subr.mxu0 0.0
      %1755 = vmatpush1.msra.mxu0 %v500
      %1756 = vmatprep.subr.mxu0 0.0
      %1757 = vmatpush1.msra.mxu0 %v499
      %1758 = vmatprep.subr.mxu0 0.0
      %1759 = vmatpush1.msra.mxu0 %v498
      %1760 = vmatprep.subr.mxu0 0.0
      %1761 = vmatpush1.msra.mxu0 %v497
      %1762 = vmatprep.subr.mxu0 0.0
      %1763 = vmatpush1.msra.mxu0 %v496
      %1764 = vmatprep.subr.mxu0 0.0
      %1765 = vmatpush1.msra.mxu0 %v495
      %1766 = vmatprep.subr.mxu0 0.0
      %1767 = vmatpush1.msra.mxu0 %v494
      %1768 = vmatprep.subr.mxu0 0.0
      %1769 = vmatpush1.msra.mxu0 %v493
      %1770 = vmatprep.subr.mxu0 0.0
      %1771 = vmatpush1.msra.mxu0 %v492
      %1772 = vmatprep.subr.mxu0 0.0
      %1773 = vmatpush1.msra.mxu0 %v491
      %1774 = vmatprep.subr.mxu0 0.0
      %1775 = vmatpush1.msra.mxu0 %v490
      %1776 = vmatprep.subr.mxu0 0.0
      %1777 = vmatpush1.msra.mxu0 %v489
      %1778 = vmatprep.subr.mxu0 0.0
      %1779 = vmatpush1.msra.mxu0 %v488
      %1780 = vmatprep.subr.mxu0 0.0
      %1781 = vmatpush1.msra.mxu0 %v487
      %1782 = vmatprep.subr.mxu0 0.0
      %1783 = vmatpush1.msra.mxu0 %v486
      %1784 = vmatprep.subr.mxu0 0.0
      %1785 = vmatpush1.msra.mxu0 %v485
      %1786 = vmatprep.subr.mxu0 0.0
      %1787 = vmatpush2.msra.mxu0 0.0
      %1788 = vmatprep.subr.mxu0 0.0
      %1789 = vmatpush2.msra.mxu0 0.0
      %1790 = vmatprep.subr.mxu0 0.0
      %1791 = vmatpush2.msra.mxu0 0.0
      %1792 = vmatprep.subr.mxu0 0.0
      %1793 = vmatpush2.msra.mxu0 0.0
      %1794 = vmatprep.subr.mxu0 0.0
      %1795 = vmatpush2.msra.mxu0 0.0
      %1796 = vmatprep.subr.mxu0 0.0
      %1797 = vmatpush2.msra.mxu0 0.0
      %1798 = vmatprep.subr.mxu0 0.0
      %1799 = vmatpush2.msra.mxu0 0.0
      %1800 = vmatprep.subr.mxu0 0.0
      %1801 = vmatpush2.msra.mxu0 0.0
      %1802 = vmatprep.subr.mxu0 0.0
      %1803 = vmatpush2.msra.mxu0 0.0
      %1804 = vmatprep.subr.mxu0 0.0
      %1805 = vmatpush2.msra.mxu0 0.0
      %1806 = vmatprep.subr.mxu0 0.0
      %1807 = vmatpush2.msra.mxu0 0.0
      %1808 = vmatprep.subr.mxu0 0.0
      %1809 = vmatpush2.msra.mxu0 %v505
      %1810 = vmatprep.subr.mxu0 0.0
      %1811 = vmatpush2.msra.mxu0 %v504
      %1812 = vmatprep.subr.mxu0 0.0
      %1813 = vmatpush2.msra.mxu0 %v503
      %1814 = vmatprep.subr.mxu0 0.0
      %1815 = vmatpush2.msra.mxu0 %v502
      %1816 = vmatprep.subr.mxu0 0.0
      %1817 = vmatpush2.msra.mxu0 %v501
      %1818 = vmatprep.mubr.f32.mxu0 %v1752
      %1819 = vmatmul.mubr.f32.gmra.mxu0 %v1749
      %v1820 = vpop.f32.mrf.mxu0
      %v1821 = vadd.f32 0.0, %v1820
      %v1822 = vpop.f32.mrf.mxu0
      %1823 = vdwg.mxu0
      %s1824 = scalar_lea.vmem [#allocation2], 16
      %1825 = vst [vmem:[%s1824] sm:$0xff] %v1821
      %v1826 = vld [vmem:[%s438 + $0x6] sm:$0x1]
      %v1827 = vld [vmem:[%s438 + $0x26] sm:$0x1]
      %v1828 = vld [vmem:[%s438 + $0x46] sm:$0x1]
      %v1829 = vld [vmem:[%s438 + $0x66] sm:$0x1]
      %v1830 = vld [vmem:[%s438 + $0x86] sm:$0x1]
      %v1831 = vld [vmem:[%s438 + $0xa6] sm:$0x1]
      %v1832 = vld [vmem:[%s438 + $0xc6] sm:$0x1]
      %v1833 = vld [vmem:[%s438 + $0xe6] sm:$0x1]
      %v1834 = vld [vmem:[%s438 + $0x7] sm:$0x1]
      %v1835 = vld [vmem:[%s438 + $0x27] sm:$0x1]
      %v1836 = vld [vmem:[%s438 + $0x47] sm:$0x1]
      %v1837 = vld [vmem:[%s438 + $0x67] sm:$0x1]
      %v1838 = vld [vmem:[%s438 + $0x87] sm:$0x1]
      %v1839 = vld [vmem:[%s438 + $0xa7] sm:$0x1]
      %v1840 = vld [vmem:[%s438 + $0xc7] sm:$0x1]
      %v1841 = vld [vmem:[%s438 + $0xe7] sm:$0x1]
      %v1842 = vld [vmem:[%s438 + $0x8] sm:$0x1]
      %v1843 = vld [vmem:[%s438 + $0x28] sm:$0x1]
      %v1844 = vld [vmem:[%s438 + $0x48] sm:$0x1]
      %v1845 = vld [vmem:[%s438 + $0x68] sm:$0x1]
      %v1846 = vld [vmem:[%s438 + $0x88] sm:$0x1]
      %v1847 = vld [vmem:[%s438 + $0xa8] sm:$0x1]
      %v1848 = vld [vmem:[%s438 + $0xc8] sm:$0x1]
      %v1849 = vld [vmem:[%s438 + $0xe8] sm:$0x1]
      %v1850 = vld [vmem:[%s438 + $0x9] sm:$0x1]
      %v1851 = vld [vmem:[%s438 + $0x29] sm:$0x1]
      %v1852 = vld [vmem:[%s438 + $0x49] sm:$0x1]
      %v1853 = vld [vmem:[%s438 + $0x69] sm:$0x1]
      %v1854 = vld [vmem:[%s438 + $0x89] sm:$0x1]
      %v1855 = vld [vmem:[%s438 + $0xa9] sm:$0x1]
      %v1856 = vld [vmem:[%s438 + $0xc9] sm:$0x1]
      %v1857 = vld [vmem:[%s438 + $0xe9] sm:$0x1]
      %v1858 = vld [vmem:[%s438 + $0xa] sm:$0x1]
      %v1859 = vld [vmem:[%s438 + $0x2a] sm:$0x1]
      %v1860 = vld [vmem:[%s438 + $0x4a] sm:$0x1]
      %v1861 = vld [vmem:[%s438 + $0x6a] sm:$0x1]
      %v1862 = vld [vmem:[%s438 + $0x8a] sm:$0x1]
      %v1863 = vld [vmem:[%s438 + $0xaa] sm:$0x1]
      %v1864 = vld [vmem:[%s438 + $0xca] sm:$0x1]
      %v1865 = vld [vmem:[%s438 + $0xea] sm:$0x1]
      %v1874 = vrot.slane %v1827, 7
      %v1875 = vsel %vm555, %v1874, %v1826
      %v1876 = vrot.slane %v1828, 6
      %v1877 = vsel %vm558, %v1876, %v1875
      %v1878 = vrot.slane %v1829, 5
      %v1879 = vsel %vm561, %v1878, %v1877
      %v1880 = vrot.slane %v1830, 4
      %v1881 = vsel %vm564, %v1880, %v1879
      %v1882 = vrot.slane %v1831, 3
      %v1883 = vsel %vm567, %v1882, %v1881
      %v1884 = vrot.slane %v1832, 2
      %v1885 = vsel %vm570, %v1884, %v1883
      %v1886 = vrot.slane %v1833, 1
      %v1887 = vsel %vm573, %v1886, %v1885
      %v1897 = vrot.slane %v1835, 7
      %v1898 = vsel %vm555, %v1897, %v1834
      %v1899 = vrot.slane %v1836, 6
      %v1900 = vsel %vm558, %v1899, %v1898
      %v1901 = vrot.slane %v1837, 5
      %v1902 = vsel %vm561, %v1901, %v1900
      %v1903 = vrot.slane %v1838, 4
      %v1904 = vsel %vm564, %v1903, %v1902
      %v1905 = vrot.slane %v1839, 3
      %v1906 = vsel %vm567, %v1905, %v1904
      %v1907 = vrot.slane %v1840, 2
      %v1908 = vsel %vm570, %v1907, %v1906
      %v1909 = vrot.slane %v1841, 1
      %v1910 = vsel %vm573, %v1909, %v1908
      %1911 = vrot.lane.b32.xlu0 %v1910, 32
      %v1912 = vpop.permute.xlu0 %1911
      %v1922 = vrot.slane %v1843, 7
      %v1923 = vsel %vm555, %v1922, %v1842
      %v1924 = vrot.slane %v1844, 6
      %v1925 = vsel %vm558, %v1924, %v1923
      %v1926 = vrot.slane %v1845, 5
      %v1927 = vsel %vm561, %v1926, %v1925
      %v1928 = vrot.slane %v1846, 4
      %v1929 = vsel %vm564, %v1928, %v1927
      %v1930 = vrot.slane %v1847, 3
      %v1931 = vsel %vm567, %v1930, %v1929
      %v1932 = vrot.slane %v1848, 2
      %v1933 = vsel %vm570, %v1932, %v1931
      %v1934 = vrot.slane %v1849, 1
      %v1935 = vsel %vm573, %v1934, %v1933
      %1936 = vrot.lane.b32.xlu0 %v1935, 64
      %v1937 = vpop.permute.xlu0 %1936
      %v1947 = vrot.slane %v1851, 7
      %v1948 = vsel %vm555, %v1947, %v1850
      %v1949 = vrot.slane %v1852, 6
      %v1950 = vsel %vm558, %v1949, %v1948
      %v1951 = vrot.slane %v1853, 5
      %v1952 = vsel %vm561, %v1951, %v1950
      %v1953 = vrot.slane %v1854, 4
      %v1954 = vsel %vm564, %v1953, %v1952
      %v1955 = vrot.slane %v1855, 3
      %v1956 = vsel %vm567, %v1955, %v1954
      %v1957 = vrot.slane %v1856, 2
      %v1958 = vsel %vm570, %v1957, %v1956
      %v1959 = vrot.slane %v1857, 1
      %v1960 = vsel %vm573, %v1959, %v1958
      %1961 = vrot.lane.b32.xlu0 %v1960, 96
      %v1962 = vpop.permute.xlu0 %1961
      %v1972 = vrot.slane %v1859, 7
      %v1973 = vsel %vm555, %v1972, %v1858
      %v1974 = vrot.slane %v1860, 6
      %v1975 = vsel %vm558, %v1974, %v1973
      %v1976 = vrot.slane %v1861, 5
      %v1977 = vsel %vm561, %v1976, %v1975
      %v1978 = vrot.slane %v1862, 4
      %v1979 = vsel %vm564, %v1978, %v1977
      %v1980 = vrot.slane %v1863, 3
      %v1981 = vsel %vm567, %v1980, %v1979
      %v1982 = vrot.slane %v1864, 2
      %v1983 = vsel %vm570, %v1982, %v1981
      %v1984 = vrot.slane %v1865, 1
      %v1985 = vsel %vm573, %v1984, %v1983
      %v1986 = vsel %vm673, %v1887, %v1912
      %v1987 = vsel %vm675, %v1986, %v1937
      %v1988 = vsel %vm677, %v1987, %v1962
      %v1989 = vsel %vm673, %v1985, 0
      %1991 = vmatprep.subr.mxu0 %v475
      %1992 = vmatpush1.msra.mxu0 %v474
      %1993 = vmatprep.subr.mxu0 %v473
      %1994 = vmatpush1.msra.mxu0 %v472
      %1995 = vmatprep.subr.mxu0 %v471
      %1996 = vmatpush1.msra.mxu0 %v470
      %1997 = vmatprep.subr.mxu0 %v469
      %1998 = vmatpush1.msra.mxu0 %v468
      %1999 = vmatprep.subr.mxu0 %v467
      %2000 = vmatpush1.msra.mxu0 %v466
      %2001 = vmatprep.subr.mxu0 %v465
      %2002 = vmatpush1.msra.mxu0 %v464
      %2003 = vmatprep.subr.mxu0 %v463
      %2004 = vmatpush1.msra.mxu0 %v462
      %2005 = vmatprep.subr.mxu0 %v461
      %2006 = vmatpush1.msra.mxu0 %v460
      %2007 = vmatprep.subr.mxu0 %v459
      %2008 = vmatpush1.msra.mxu0 %v458
      %2009 = vmatprep.subr.mxu0 %v457
      %2010 = vmatpush1.msra.mxu0 %v456
      %2011 = vmatprep.subr.mxu0 %v455
      %2012 = vmatpush1.msra.mxu0 %v454
      %2013 = vmatprep.subr.mxu0 %v453
      %2014 = vmatpush1.msra.mxu0 %v452
      %2015 = vmatprep.subr.mxu0 %v451
      %2016 = vmatpush1.msra.mxu0 %v450
      %2017 = vmatprep.subr.mxu0 %v449
      %2018 = vmatpush1.msra.mxu0 %v448
      %2019 = vmatprep.subr.mxu0 %v447
      %2020 = vmatpush1.msra.mxu0 %v446
      %2021 = vmatprep.subr.mxu0 %v445
      %2022 = vmatpush1.msra.mxu0 %v444
      %2023 = vmatprep.subr.mxu0 0.0
      %2024 = vmatpush2.msra.mxu0 0.0
      %2025 = vmatprep.subr.mxu0 0.0
      %2026 = vmatpush2.msra.mxu0 0.0
      %2027 = vmatprep.subr.mxu0 0.0
      %2028 = vmatpush2.msra.mxu0 0.0
      %2029 = vmatprep.subr.mxu0 0.0
      %2030 = vmatpush2.msra.mxu0 0.0
      %2031 = vmatprep.subr.mxu0 0.0
      %2032 = vmatpush2.msra.mxu0 0.0
      %2033 = vmatprep.subr.mxu0 0.0
      %2034 = vmatpush2.msra.mxu0 0.0
      %2035 = vmatprep.subr.mxu0 0.0
      %2036 = vmatpush2.msra.mxu0 0.0
      %2037 = vmatprep.subr.mxu0 0.0
      %2038 = vmatpush2.msra.mxu0 0.0
      %2039 = vmatprep.subr.mxu0 0.0
      %2040 = vmatpush2.msra.mxu0 0.0
      %2041 = vmatprep.subr.mxu0 0.0
      %2042 = vmatpush2.msra.mxu0 0.0
      %2043 = vmatprep.subr.mxu0 0.0
      %2044 = vmatpush2.msra.mxu0 0.0
      %2045 = vmatprep.subr.mxu0 0.0
      %2046 = vmatpush2.msra.mxu0 0.0
      %2047 = vmatprep.subr.mxu0 %v483
      %2048 = vmatpush2.msra.mxu0 %v482
      %2049 = vmatprep.subr.mxu0 %v481
      %2050 = vmatpush2.msra.mxu0 %v480
      %2051 = vmatprep.subr.mxu0 %v479
      %2052 = vmatpush2.msra.mxu0 %v478
      %2053 = vmatprep.subr.mxu0 %v477
      %2054 = vmatpush2.msra.mxu0 %v476
      %2055 = vmatprep.mubr.f32.mxu0 %v1989
      %2056 = vmatmul.mubr.f32.gmra.mxu0 %v1988
      %v2057 = vpop.f32.mrf.mxu0
      %v2058 = vadd.f32 %v683, %v2057
      %v2059 = vpop.f32.mrf.mxu0
      %v2060 = vadd.f32 %v687, %v2059
      %2061 = vdwg.mxu0
      %v2062 = vtanh.pop %v2058
      %v2063 = vtanh.pop %v2060
      %v2064 = vld [vmem:[%s438 + $0xb] sm:$0x1]
      %v2065 = vld [vmem:[%s438 + $0x2b] sm:$0x1]
      %v2066 = vld [vmem:[%s438 + $0x4b] sm:$0x1]
      %v2067 = vld [vmem:[%s438 + $0x6b] sm:$0x1]
      %v2068 = vld [vmem:[%s438 + $0x8b] sm:$0x1]
      %v2069 = vld [vmem:[%s438 + $0xab] sm:$0x1]
      %v2070 = vld [vmem:[%s438 + $0xcb] sm:$0x1]
      %v2071 = vld [vmem:[%s438 + $0xeb] sm:$0x1]
      %2073 = vrot.lane.b32.xlu0 %v1935, 32
      %v2074 = vpop.permute.xlu0 %2073
      %2076 = vrot.lane.b32.xlu0 %v1960, 64
      %v2077 = vpop.permute.xlu0 %2076
      %2079 = vrot.lane.b32.xlu0 %v1985, 96
      %v2080 = vpop.permute.xlu0 %2079
      %v2090 = vrot.slane %v2065, 7
      %v2091 = vsel %vm555, %v2090, %v2064
      %v2092 = vrot.slane %v2066, 6
      %v2093 = vsel %vm558, %v2092, %v2091
      %v2094 = vrot.slane %v2067, 5
      %v2095 = vsel %vm561, %v2094, %v2093
      %v2096 = vrot.slane %v2068, 4
      %v2097 = vsel %vm564, %v2096, %v2095
      %v2098 = vrot.slane %v2069, 3
      %v2099 = vsel %vm567, %v2098, %v2097
      %v2100 = vrot.slane %v2070, 2
      %v2101 = vsel %vm570, %v2100, %v2099
      %v2102 = vrot.slane %v2071, 1
      %v2103 = vsel %vm573, %v2102, %v2101
      %v2104 = vsel %vm673, %v1910, %v2074
      %v2105 = vsel %vm675, %v2104, %v2077
      %v2106 = vsel %vm677, %v2105, %v2080
      %v2107 = vsel %vm673, %v2103, 0
      %2109 = vmatprep.subr.mxu0 %v475
      %2110 = vmatpush1.msra.mxu0 %v474
      %2111 = vmatprep.subr.mxu0 %v473
      %2112 = vmatpush1.msra.mxu0 %v472
      %2113 = vmatprep.subr.mxu0 %v471
      %2114 = vmatpush1.msra.mxu0 %v470
      %2115 = vmatprep.subr.mxu0 %v469
      %2116 = vmatpush1.msra.mxu0 %v468
      %2117 = vmatprep.subr.mxu0 %v467
      %2118 = vmatpush1.msra.mxu0 %v466
      %2119 = vmatprep.subr.mxu0 %v465
      %2120 = vmatpush1.msra.mxu0 %v464
      %2121 = vmatprep.subr.mxu0 %v463
      %2122 = vmatpush1.msra.mxu0 %v462
      %2123 = vmatprep.subr.mxu0 %v461
      %2124 = vmatpush1.msra.mxu0 %v460
      %2125 = vmatprep.subr.mxu0 %v459
      %2126 = vmatpush1.msra.mxu0 %v458
      %2127 = vmatprep.subr.mxu0 %v457
      %2128 = vmatpush1.msra.mxu0 %v456
      %2129 = vmatprep.subr.mxu0 %v455
      %2130 = vmatpush1.msra.mxu0 %v454
      %2131 = vmatprep.subr.mxu0 %v453
      %2132 = vmatpush1.msra.mxu0 %v452
      %2133 = vmatprep.subr.mxu0 %v451
      %2134 = vmatpush1.msra.mxu0 %v450
      %2135 = vmatprep.subr.mxu0 %v449
      %2136 = vmatpush1.msra.mxu0 %v448
      %2137 = vmatprep.subr.mxu0 %v447
      %2138 = vmatpush1.msra.mxu0 %v446
      %2139 = vmatprep.subr.mxu0 %v445
      %2140 = vmatpush1.msra.mxu0 %v444
      %2141 = vmatprep.subr.mxu0 0.0
      %2142 = vmatpush2.msra.mxu0 0.0
      %2143 = vmatprep.subr.mxu0 0.0
      %2144 = vmatpush2.msra.mxu0 0.0
      %2145 = vmatprep.subr.mxu0 0.0
      %2146 = vmatpush2.msra.mxu0 0.0
      %2147 = vmatprep.subr.mxu0 0.0
      %2148 = vmatpush2.msra.mxu0 0.0
      %2149 = vmatprep.subr.mxu0 0.0
      %2150 = vmatpush2.msra.mxu0 0.0
      %2151 = vmatprep.subr.mxu0 0.0
      %2152 = vmatpush2.msra.mxu0 0.0
      %2153 = vmatprep.subr.mxu0 0.0
      %2154 = vmatpush2.msra.mxu0 0.0
      %2155 = vmatprep.subr.mxu0 0.0
      %2156 = vmatpush2.msra.mxu0 0.0
      %2157 = vmatprep.subr.mxu0 0.0
      %2158 = vmatpush2.msra.mxu0 0.0
      %2159 = vmatprep.subr.mxu0 0.0
      %2160 = vmatpush2.msra.mxu0 0.0
      %2161 = vmatprep.subr.mxu0 0.0
      %2162 = vmatpush2.msra.mxu0 0.0
      %2163 = vmatprep.subr.mxu0 0.0
      %2164 = vmatpush2.msra.mxu0 0.0
      %2165 = vmatprep.subr.mxu0 %v483
      %2166 = vmatpush2.msra.mxu0 %v482
      %2167 = vmatprep.subr.mxu0 %v481
      %2168 = vmatpush2.msra.mxu0 %v480
      %2169 = vmatprep.subr.mxu0 %v479
      %2170 = vmatpush2.msra.mxu0 %v478
      %2171 = vmatprep.subr.mxu0 %v477
      %2172 = vmatpush2.msra.mxu0 %v476
      %2173 = vmatprep.mubr.f32.mxu0 %v2107
      %2174 = vmatmul.mubr.f32.gmra.mxu0 %v2106
      %v2175 = vpop.f32.mrf.mxu0
      %v2176 = vadd.f32 %v683, %v2175
      %v2177 = vpop.f32.mrf.mxu0
      %v2178 = vadd.f32 %v687, %v2177
      %2179 = vdwg.mxu0
      %v2180 = vtanh.pop %v2176
      %v2181 = vtanh.pop %v2178
      %v2182 = vadd.f32 %v2062, %v2180
      %v2183 = vadd.f32 %v2063, %v2181
      %v2185 = vsel %vm885, %v2183, 0
      %2187 = vmatprep.subr.mxu0 0.0
      %2188 = vmatpush1.msra.mxu0 %v500
      %2189 = vmatprep.subr.mxu0 0.0
      %2190 = vmatpush1.msra.mxu0 %v499
      %2191 = vmatprep.subr.mxu0 0.0
      %2192 = vmatpush1.msra.mxu0 %v498
      %2193 = vmatprep.subr.mxu0 0.0
      %2194 = vmatpush1.msra.mxu0 %v497
      %2195 = vmatprep.subr.mxu0 0.0
      %2196 = vmatpush1.msra.mxu0 %v496
      %2197 = vmatprep.subr.mxu0 0.0
      %2198 = vmatpush1.msra.mxu0 %v495
      %2199 = vmatprep.subr.mxu0 0.0
      %2200 = vmatpush1.msra.mxu0 %v494
      %2201 = vmatprep.subr.mxu0 0.0
      %2202 = vmatpush1.msra.mxu0 %v493
      %2203 = vmatprep.subr.mxu0 0.0
      %2204 = vmatpush1.msra.mxu0 %v492
      %2205 = vmatprep.subr.mxu0 0.0
      %2206 = vmatpush1.msra.mxu0 %v491
      %2207 = vmatprep.subr.mxu0 0.0
      %2208 = vmatpush1.msra.mxu0 %v490
      %2209 = vmatprep.subr.mxu0 0.0
      %2210 = vmatpush1.msra.mxu0 %v489
      %2211 = vmatprep.subr.mxu0 0.0
      %2212 = vmatpush1.msra.mxu0 %v488
      %2213 = vmatprep.subr.mxu0 0.0
      %2214 = vmatpush1.msra.mxu0 %v487
      %2215 = vmatprep.subr.mxu0 0.0
      %2216 = vmatpush1.msra.mxu0 %v486
      %2217 = vmatprep.subr.mxu0 0.0
      %2218 = vmatpush1.msra.mxu0 %v485
      %2219 = vmatprep.subr.mxu0 0.0
      %2220 = vmatpush2.msra.mxu0 0.0
      %2221 = vmatprep.subr.mxu0 0.0
      %2222 = vmatpush2.msra.mxu0 0.0
      %2223 = vmatprep.subr.mxu0 0.0
      %2224 = vmatpush2.msra.mxu0 0.0
      %2225 = vmatprep.subr.mxu0 0.0
      %2226 = vmatpush2.msra.mxu0 0.0
      %2227 = vmatprep.subr.mxu0 0.0
      %2228 = vmatpush2.msra.mxu0 0.0
      %2229 = vmatprep.subr.mxu0 0.0
      %2230 = vmatpush2.msra.mxu0 0.0
      %2231 = vmatprep.subr.mxu0 0.0
      %2232 = vmatpush2.msra.mxu0 0.0
      %2233 = vmatprep.subr.mxu0 0.0
      %2234 = vmatpush2.msra.mxu0 0.0
      %2235 = vmatprep.subr.mxu0 0.0
      %2236 = vmatpush2.msra.mxu0 0.0
      %2237 = vmatprep.subr.mxu0 0.0
      %2238 = vmatpush2.msra.mxu0 0.0
      %2239 = vmatprep.subr.mxu0 0.0
      %2240 = vmatpush2.msra.mxu0 0.0
      %2241 = vmatprep.subr.mxu0 0.0
      %2242 = vmatpush2.msra.mxu0 %v505
      %2243 = vmatprep.subr.mxu0 0.0
      %2244 = vmatpush2.msra.mxu0 %v504
      %2245 = vmatprep.subr.mxu0 0.0
      %2246 = vmatpush2.msra.mxu0 %v503
      %2247 = vmatprep.subr.mxu0 0.0
      %2248 = vmatpush2.msra.mxu0 %v502
      %2249 = vmatprep.subr.mxu0 0.0
      %2250 = vmatpush2.msra.mxu0 %v501
      %2251 = vmatprep.mubr.f32.mxu0 %v2185
      %2252 = vmatmul.mubr.f32.gmra.mxu0 %v2182
      %v2253 = vpop.f32.mrf.mxu0
      %v2254 = vadd.f32 0.0, %v2253
      %v2255 = vpop.f32.mrf.mxu0
      %2256 = vdwg.mxu0
      %s2257 = scalar_lea.vmem [#allocation2], 24
      %2258 = vst [vmem:[%s2257] sm:$0xff] %v2254
      %v2259 = vld [vmem:[%s438 + $0x8] sm:$0x1]
      %v2260 = vld [vmem:[%s438 + $0x28] sm:$0x1]
      %v2261 = vld [vmem:[%s438 + $0x48] sm:$0x1]
      %v2262 = vld [vmem:[%s438 + $0x68] sm:$0x1]
      %v2263 = vld [vmem:[%s438 + $0x88] sm:$0x1]
      %v2264 = vld [vmem:[%s438 + $0xa8] sm:$0x1]
      %v2265 = vld [vmem:[%s438 + $0xc8] sm:$0x1]
      %v2266 = vld [vmem:[%s438 + $0xe8] sm:$0x1]
      %v2267 = vld [vmem:[%s438 + $0x9] sm:$0x1]
      %v2268 = vld [vmem:[%s438 + $0x29] sm:$0x1]
      %v2269 = vld [vmem:[%s438 + $0x49] sm:$0x1]
      %v2270 = vld [vmem:[%s438 + $0x69] sm:$0x1]
      %v2271 = vld [vmem:[%s438 + $0x89] sm:$0x1]
      %v2272 = vld [vmem:[%s438 + $0xa9] sm:$0x1]
      %v2273 = vld [vmem:[%s438 + $0xc9] sm:$0x1]
      %v2274 = vld [vmem:[%s438 + $0xe9] sm:$0x1]
      %v2275 = vld [vmem:[%s438 + $0xa] sm:$0x1]
      %v2276 = vld [vmem:[%s438 + $0x2a] sm:$0x1]
      %v2277 = vld [vmem:[%s438 + $0x4a] sm:$0x1]
      %v2278 = vld [vmem:[%s438 + $0x6a] sm:$0x1]
      %v2279 = vld [vmem:[%s438 + $0x8a] sm:$0x1]
      %v2280 = vld [vmem:[%s438 + $0xaa] sm:$0x1]
      %v2281 = vld [vmem:[%s438 + $0xca] sm:$0x1]
      %v2282 = vld [vmem:[%s438 + $0xea] sm:$0x1]
      %v2283 = vld [vmem:[%s438 + $0xb] sm:$0x1]
      %v2284 = vld [vmem:[%s438 + $0x2b] sm:$0x1]
      %v2285 = vld [vmem:[%s438 + $0x4b] sm:$0x1]
      %v2286 = vld [vmem:[%s438 + $0x6b] sm:$0x1]
      %v2287 = vld [vmem:[%s438 + $0x8b] sm:$0x1]
      %v2288 = vld [vmem:[%s438 + $0xab] sm:$0x1]
      %v2289 = vld [vmem:[%s438 + $0xcb] sm:$0x1]
      %v2290 = vld [vmem:[%s438 + $0xeb] sm:$0x1]
      %v2291 = vld [vmem:[%s438 + $0xc] sm:$0x1]
      %v2292 = vld [vmem:[%s438 + $0x2c] sm:$0x1]
      %v2293 = vld [vmem:[%s438 + $0x4c] sm:$0x1]
      %v2294 = vld [vmem:[%s438 + $0x6c] sm:$0x1]
      %v2295 = vld [vmem:[%s438 + $0x8c] sm:$0x1]
      %v2296 = vld [vmem:[%s438 + $0xac] sm:$0x1]
      %v2297 = vld [vmem:[%s438 + $0xcc] sm:$0x1]
      %v2298 = vld [vmem:[%s438 + $0xec] sm:$0x1]
      %v2307 = vrot.slane %v2260, 7
      %v2308 = vsel %vm555, %v2307, %v2259
      %v2309 = vrot.slane %v2261, 6
      %v2310 = vsel %vm558, %v2309, %v2308
      %v2311 = vrot.slane %v2262, 5
      %v2312 = vsel %vm561, %v2311, %v2310
      %v2313 = vrot.slane %v2263, 4
      %v2314 = vsel %vm564, %v2313, %v2312
      %v2315 = vrot.slane %v2264, 3
      %v2316 = vsel %vm567, %v2315, %v2314
      %v2317 = vrot.slane %v2265, 2
      %v2318 = vsel %vm570, %v2317, %v2316
      %v2319 = vrot.slane %v2266, 1
      %v2320 = vsel %vm573, %v2319, %v2318
      %v2330 = vrot.slane %v2268, 7
      %v2331 = vsel %vm555, %v2330, %v2267
      %v2332 = vrot.slane %v2269, 6
      %v2333 = vsel %vm558, %v2332, %v2331
      %v2334 = vrot.slane %v2270, 5
      %v2335 = vsel %vm561, %v2334, %v2333
      %v2336 = vrot.slane %v2271, 4
      %v2337 = vsel %vm564, %v2336, %v2335
      %v2338 = vrot.slane %v2272, 3
      %v2339 = vsel %vm567, %v2338, %v2337
      %v2340 = vrot.slane %v2273, 2
      %v2341 = vsel %vm570, %v2340, %v2339
      %v2342 = vrot.slane %v2274, 1
      %v2343 = vsel %vm573, %v2342, %v2341
      %2344 = vrot.lane.b32.xlu0 %v2343, 32
      %v2345 = vpop.permute.xlu0 %2344
      %v2355 = vrot.slane %v2276, 7
      %v2356 = vsel %vm555, %v2355, %v2275
      %v2357 = vrot.slane %v2277, 6
      %v2358 = vsel %vm558, %v2357, %v2356
      %v2359 = vrot.slane %v2278, 5
      %v2360 = vsel %vm561, %v2359, %v2358
      %v2361 = vrot.slane %v2279, 4
      %v2362 = vsel %vm564, %v2361, %v2360
      %v2363 = vrot.slane %v2280, 3
      %v2364 = vsel %vm567, %v2363, %v2362
      %v2365 = vrot.slane %v2281, 2
      %v2366 = vsel %vm570, %v2365, %v2364
      %v2367 = vrot.slane %v2282, 1
      %v2368 = vsel %vm573, %v2367, %v2366
      %2369 = vrot.lane.b32.xlu0 %v2368, 64
      %v2370 = vpop.permute.xlu0 %2369
      %v2380 = vrot.slane %v2284, 7
      %v2381 = vsel %vm555, %v2380, %v2283
      %v2382 = vrot.slane %v2285, 6
      %v2383 = vsel %vm558, %v2382, %v2381
      %v2384 = vrot.slane %v2286, 5
      %v2385 = vsel %vm561, %v2384, %v2383
      %v2386 = vrot.slane %v2287, 4
      %v2387 = vsel %vm564, %v2386, %v2385
      %v2388 = vrot.slane %v2288, 3
      %v2389 = vsel %vm567, %v2388, %v2387
      %v2390 = vrot.slane %v2289, 2
      %v2391 = vsel %vm570, %v2390, %v2389
      %v2392 = vrot.slane %v2290, 1
      %v2393 = vsel %vm573, %v2392, %v2391
      %2394 = vrot.lane.b32.xlu0 %v2393, 96
      %v2395 = vpop.permute.xlu0 %2394
      %v2405 = vrot.slane %v2292, 7
      %v2406 = vsel %vm555, %v2405, %v2291
      %v2407 = vrot.slane %v2293, 6
      %v2408 = vsel %vm558, %v2407, %v2406
      %v2409 = vrot.slane %v2294, 5
      %v2410 = vsel %vm561, %v2409, %v2408
      %v2411 = vrot.slane %v2295, 4
      %v2412 = vsel %vm564, %v2411, %v2410
      %v2413 = vrot.slane %v2296, 3
      %v2414 = vsel %vm567, %v2413, %v2412
      %v2415 = vrot.slane %v2297, 2
      %v2416 = vsel %vm570, %v2415, %v2414
      %v2417 = vrot.slane %v2298, 1
      %v2418 = vsel %vm573, %v2417, %v2416
      %v2419 = vsel %vm673, %v2320, %v2345
      %v2420 = vsel %vm675, %v2419, %v2370
      %v2421 = vsel %vm677, %v2420, %v2395
      %v2422 = vsel %vm673, %v2418, 0
      %2424 = vmatprep.subr.mxu0 %v475
      %2425 = vmatpush1.msra.mxu0 %v474
      %2426 = vmatprep.subr.mxu0 %v473
      %2427 = vmatpush1.msra.mxu0 %v472
      %2428 = vmatprep.subr.mxu0 %v471
      %2429 = vmatpush1.msra.mxu0 %v470
      %2430 = vmatprep.subr.mxu0 %v469
      %2431 = vmatpush1.msra.mxu0 %v468
      %2432 = vmatprep.subr.mxu0 %v467
      %2433 = vmatpush1.msra.mxu0 %v466
      %2434 = vmatprep.subr.mxu0 %v465
      %2435 = vmatpush1.msra.mxu0 %v464
      %2436 = vmatprep.subr.mxu0 %v463
      %2437 = vmatpush1.msra.mxu0 %v462
      %2438 = vmatprep.subr.mxu0 %v461
      %2439 = vmatpush1.msra.mxu0 %v460
      %2440 = vmatprep.subr.mxu0 %v459
      %2441 = vmatpush1.msra.mxu0 %v458
      %2442 = vmatprep.subr.mxu0 %v457
      %2443 = vmatpush1.msra.mxu0 %v456
      %2444 = vmatprep.subr.mxu0 %v455
      %2445 = vmatpush1.msra.mxu0 %v454
      %2446 = vmatprep.subr.mxu0 %v453
      %2447 = vmatpush1.msra.mxu0 %v452
      %2448 = vmatprep.subr.mxu0 %v451
      %2449 = vmatpush1.msra.mxu0 %v450
      %2450 = vmatprep.subr.mxu0 %v449
      %2451 = vmatpush1.msra.mxu0 %v448
      %2452 = vmatprep.subr.mxu0 %v447
      %2453 = vmatpush1.msra.mxu0 %v446
      %2454 = vmatprep.subr.mxu0 %v445
      %2455 = vmatpush1.msra.mxu0 %v444
      %2456 = vmatprep.subr.mxu0 0.0
      %2457 = vmatpush2.msra.mxu0 0.0
      %2458 = vmatprep.subr.mxu0 0.0
      %2459 = vmatpush2.msra.mxu0 0.0
      %2460 = vmatprep.subr.mxu0 0.0
      %2461 = vmatpush2.msra.mxu0 0.0
      %2462 = vmatprep.subr.mxu0 0.0
      %2463 = vmatpush2.msra.mxu0 0.0
      %2464 = vmatprep.subr.mxu0 0.0
      %2465 = vmatpush2.msra.mxu0 0.0
      %2466 = vmatprep.subr.mxu0 0.0
      %2467 = vmatpush2.msra.mxu0 0.0
      %2468 = vmatprep.subr.mxu0 0.0
      %2469 = vmatpush2.msra.mxu0 0.0
      %2470 = vmatprep.subr.mxu0 0.0
      %2471 = vmatpush2.msra.mxu0 0.0
      %2472 = vmatprep.subr.mxu0 0.0
      %2473 = vmatpush2.msra.mxu0 0.0
      %2474 = vmatprep.subr.mxu0 0.0
      %2475 = vmatpush2.msra.mxu0 0.0
      %2476 = vmatprep.subr.mxu0 0.0
      %2477 = vmatpush2.msra.mxu0 0.0
      %2478 = vmatprep.subr.mxu0 0.0
      %2479 = vmatpush2.msra.mxu0 0.0
      %2480 = vmatprep.subr.mxu0 %v483
      %2481 = vmatpush2.msra.mxu0 %v482
      %2482 = vmatprep.subr.mxu0 %v481
      %2483 = vmatpush2.msra.mxu0 %v480
      %2484 = vmatprep.subr.mxu0 %v479
      %2485 = vmatpush2.msra.mxu0 %v478
      %2486 = vmatprep.subr.mxu0 %v477
      %2487 = vmatpush2.msra.mxu0 %v476
      %2488 = vmatprep.mubr.f32.mxu0 %v2422
      %2489 = vmatmul.mubr.f32.gmra.mxu0 %v2421
      %v2490 = vpop.f32.mrf.mxu0
      %v2491 = vadd.f32 %v683, %v2490
      %v2492 = vpop.f32.mrf.mxu0
      %v2493 = vadd.f32 %v687, %v2492
      %2494 = vdwg.mxu0
      %v2495 = vtanh.pop %v2491
      %v2496 = vtanh.pop %v2493
      %v2497 = vld [vmem:[%s438 + $0xd] sm:$0x1]
      %v2498 = vld [vmem:[%s438 + $0x2d] sm:$0x1]
      %v2499 = vld [vmem:[%s438 + $0x4d] sm:$0x1]
      %v2500 = vld [vmem:[%s438 + $0x6d] sm:$0x1]
      %v2501 = vld [vmem:[%s438 + $0x8d] sm:$0x1]
      %v2502 = vld [vmem:[%s438 + $0xad] sm:$0x1]
      %v2503 = vld [vmem:[%s438 + $0xcd] sm:$0x1]
      %v2504 = vld [vmem:[%s438 + $0xed] sm:$0x1]
      %2506 = vrot.lane.b32.xlu0 %v2368, 32
      %v2507 = vpop.permute.xlu0 %2506
      %2509 = vrot.lane.b32.xlu0 %v2393, 64
      %v2510 = vpop.permute.xlu0 %2509
      %2512 = vrot.lane.b32.xlu0 %v2418, 96
      %v2513 = vpop.permute.xlu0 %2512
      %v2523 = vrot.slane %v2498, 7
      %v2524 = vsel %vm555, %v2523, %v2497
      %v2525 = vrot.slane %v2499, 6
      %v2526 = vsel %vm558, %v2525, %v2524
      %v2527 = vrot.slane %v2500, 5
      %v2528 = vsel %vm561, %v2527, %v2526
      %v2529 = vrot.slane %v2501, 4
      %v2530 = vsel %vm564, %v2529, %v2528
      %v2531 = vrot.slane %v2502, 3
      %v2532 = vsel %vm567, %v2531, %v2530
      %v2533 = vrot.slane %v2503, 2
      %v2534 = vsel %vm570, %v2533, %v2532
      %v2535 = vrot.slane %v2504, 1
      %v2536 = vsel %vm573, %v2535, %v2534
      %v2537 = vsel %vm673, %v2343, %v2507
      %v2538 = vsel %vm675, %v2537, %v2510
      %v2539 = vsel %vm677, %v2538, %v2513
      %v2540 = vsel %vm673, %v2536, 0
      %2542 = vmatprep.subr.mxu0 %v475
      %2543 = vmatpush1.msra.mxu0 %v474
      %2544 = vmatprep.subr.mxu0 %v473
      %2545 = vmatpush1.msra.mxu0 %v472
      %2546 = vmatprep.subr.mxu0 %v471
      %2547 = vmatpush1.msra.mxu0 %v470
      %2548 = vmatprep.subr.mxu0 %v469
      %2549 = vmatpush1.msra.mxu0 %v468
      %2550 = vmatprep.subr.mxu0 %v467
      %2551 = vmatpush1.msra.mxu0 %v466
      %2552 = vmatprep.subr.mxu0 %v465
      %2553 = vmatpush1.msra.mxu0 %v464
      %2554 = vmatprep.subr.mxu0 %v463
      %2555 = vmatpush1.msra.mxu0 %v462
      %2556 = vmatprep.subr.mxu0 %v461
      %2557 = vmatpush1.msra.mxu0 %v460
      %2558 = vmatprep.subr.mxu0 %v459
      %2559 = vmatpush1.msra.mxu0 %v458
      %2560 = vmatprep.subr.mxu0 %v457
      %2561 = vmatpush1.msra.mxu0 %v456
      %2562 = vmatprep.subr.mxu0 %v455
      %2563 = vmatpush1.msra.mxu0 %v454
      %2564 = vmatprep.subr.mxu0 %v453
      %2565 = vmatpush1.msra.mxu0 %v452
      %2566 = vmatprep.subr.mxu0 %v451
      %2567 = vmatpush1.msra.mxu0 %v450
      %2568 = vmatprep.subr.mxu0 %v449
      %2569 = vmatpush1.msra.mxu0 %v448
      %2570 = vmatprep.subr.mxu0 %v447
      %2571 = vmatpush1.msra.mxu0 %v446
      %2572 = vmatprep.subr.mxu0 %v445
      %2573 = vmatpush1.msra.mxu0 %v444
      %2574 = vmatprep.subr.mxu0 0.0
      %2575 = vmatpush2.msra.mxu0 0.0
      %2576 = vmatprep.subr.mxu0 0.0
      %2577 = vmatpush2.msra.mxu0 0.0
      %2578 = vmatprep.subr.mxu0 0.0
      %2579 = vmatpush2.msra.mxu0 0.0
      %2580 = vmatprep.subr.mxu0 0.0
      %2581 = vmatpush2.msra.mxu0 0.0
      %2582 = vmatprep.subr.mxu0 0.0
      %2583 = vmatpush2.msra.mxu0 0.0
      %2584 = vmatprep.subr.mxu0 0.0
      %2585 = vmatpush2.msra.mxu0 0.0
      %2586 = vmatprep.subr.mxu0 0.0
      %2587 = vmatpush2.msra.mxu0 0.0
      %2588 = vmatprep.subr.mxu0 0.0
      %2589 = vmatpush2.msra.mxu0 0.0
      %2590 = vmatprep.subr.mxu0 0.0
      %2591 = vmatpush2.msra.mxu0 0.0
      %2592 = vmatprep.subr.mxu0 0.0
      %2593 = vmatpush2.msra.mxu0 0.0
      %2594 = vmatprep.subr.mxu0 0.0
      %2595 = vmatpush2.msra.mxu0 0.0
      %2596 = vmatprep.subr.mxu0 0.0
      %2597 = vmatpush2.msra.mxu0 0.0
      %2598 = vmatprep.subr.mxu0 %v483
      %2599 = vmatpush2.msra.mxu0 %v482
      %2600 = vmatprep.subr.mxu0 %v481
      %2601 = vmatpush2.msra.mxu0 %v480
      %2602 = vmatprep.subr.mxu0 %v479
      %2603 = vmatpush2.msra.mxu0 %v478
      %2604 = vmatprep.subr.mxu0 %v477
      %2605 = vmatpush2.msra.mxu0 %v476
      %2606 = vmatprep.mubr.f32.mxu0 %v2540
      %2607 = vmatmul.mubr.f32.gmra.mxu0 %v2539
      %v2608 = vpop.f32.mrf.mxu0
      %v2609 = vadd.f32 %v683, %v2608
      %v2610 = vpop.f32.mrf.mxu0
      %v2611 = vadd.f32 %v687, %v2610
      %2612 = vdwg.mxu0
      %v2613 = vtanh.pop %v2609
      %v2614 = vtanh.pop %v2611
      %v2615 = vadd.f32 %v2495, %v2613
      %v2616 = vadd.f32 %v2496, %v2614
      %v2618 = vsel %vm885, %v2616, 0
      %2620 = vmatprep.subr.mxu0 0.0
      %2621 = vmatpush1.msra.mxu0 %v500
      %2622 = vmatprep.subr.mxu0 0.0
      %2623 = vmatpush1.msra.mxu0 %v499
      %2624 = vmatprep.subr.mxu0 0.0
      %2625 = vmatpush1.msra.mxu0 %v498
      %2626 = vmatprep.subr.mxu0 0.0
      %2627 = vmatpush1.msra.mxu0 %v497
      %2628 = vmatprep.subr.mxu0 0.0
      %2629 = vmatpush1.msra.mxu0 %v496
      %2630 = vmatprep.subr.mxu0 0.0
      %2631 = vmatpush1.msra.mxu0 %v495
      %2632 = vmatprep.subr.mxu0 0.0
      %2633 = vmatpush1.msra.mxu0 %v494
      %2634 = vmatprep.subr.mxu0 0.0
      %2635 = vmatpush1.msra.mxu0 %v493
      %2636 = vmatprep.subr.mxu0 0.0
      %2637 = vmatpush1.msra.mxu0 %v492
      %2638 = vmatprep.subr.mxu0 0.0
      %2639 = vmatpush1.msra.mxu0 %v491
      %2640 = vmatprep.subr.mxu0 0.0
      %2641 = vmatpush1.msra.mxu0 %v490
      %2642 = vmatprep.subr.mxu0 0.0
      %2643 = vmatpush1.msra.mxu0 %v489
      %2644 = vmatprep.subr.mxu0 0.0
      %2645 = vmatpush1.msra.mxu0 %v488
      %2646 = vmatprep.subr.mxu0 0.0
      %2647 = vmatpush1.msra.mxu0 %v487
      %2648 = vmatprep.subr.mxu0 0.0
      %2649 = vmatpush1.msra.mxu0 %v486
      %2650 = vmatprep.subr.mxu0 0.0
      %2651 = vmatpush1.msra.mxu0 %v485
      %2652 = vmatprep.subr.mxu0 0.0
      %2653 = vmatpush2.msra.mxu0 0.0
      %2654 = vmatprep.subr.mxu0 0.0
      %2655 = vmatpush2.msra.mxu0 0.0
      %2656 = vmatprep.subr.mxu0 0.0
      %2657 = vmatpush2.msra.mxu0 0.0
      %2658 = vmatprep.subr.mxu0 0.0
      %2659 = vmatpush2.msra.mxu0 0.0
      %2660 = vmatprep.subr.mxu0 0.0
      %2661 = vmatpush2.msra.mxu0 0.0
      %2662 = vmatprep.subr.mxu0 0.0
      %2663 = vmatpush2.msra.mxu0 0.0
      %2664 = vmatprep.subr.mxu0 0.0
      %2665 = vmatpush2.msra.mxu0 0.0
      %2666 = vmatprep.subr.mxu0 0.0
      %2667 = vmatpush2.msra.mxu0 0.0
      %2668 = vmatprep.subr.mxu0 0.0
      %2669 = vmatpush2.msra.mxu0 0.0
      %2670 = vmatprep.subr.mxu0 0.0
      %2671 = vmatpush2.msra.mxu0 0.0
      %2672 = vmatprep.subr.mxu0 0.0
      %2673 = vmatpush2.msra.mxu0 0.0
      %2674 = vmatprep.subr.mxu0 0.0
      %2675 = vmatpush2.msra.mxu0 %v505
      %2676 = vmatprep.subr.mxu0 0.0
      %2677 = vmatpush2.msra.mxu0 %v504
      %2678 = vmatprep.subr.mxu0 0.0
      %2679 = vmatpush2.msra.mxu0 %v503
      %2680 = vmatprep.subr.mxu0 0.0
      %2681 = vmatpush2.msra.mxu0 %v502
      %2682 = vmatprep.subr.mxu0 0.0
      %2683 = vmatpush2.msra.mxu0 %v501
      %2684 = vmatprep.mubr.f32.mxu0 %v2618
      %2685 = vmatmul.mubr.f32.gmra.mxu0 %v2615
      %v2686 = vpop.f32.mrf.mxu0
      %v2687 = vadd.f32 0.0, %v2686
      %v2688 = vpop.f32.mrf.mxu0
      %2689 = vdwg.mxu0
      %s2690 = scalar_lea.vmem [#allocation2], 32
      %2691 = vst [vmem:[%s2690] sm:$0xff] %v2687
      %v2692 = vld [vmem:[%s438 + $0xa] sm:$0x1]
      %v2693 = vld [vmem:[%s438 + $0x2a] sm:$0x1]
      %v2694 = vld [vmem:[%s438 + $0x4a] sm:$0x1]
      %v2695 = vld [vmem:[%s438 + $0x6a] sm:$0x1]
      %v2696 = vld [vmem:[%s438 + $0x8a] sm:$0x1]
      %v2697 = vld [vmem:[%s438 + $0xaa] sm:$0x1]
      %v2698 = vld [vmem:[%s438 + $0xca] sm:$0x1]
      %v2699 = vld [vmem:[%s438 + $0xea] sm:$0x1]
      %v2700 = vld [vmem:[%s438 + $0xb] sm:$0x1]
      %v2701 = vld [vmem:[%s438 + $0x2b] sm:$0x1]
      %v2702 = vld [vmem:[%s438 + $0x4b] sm:$0x1]
      %v2703 = vld [vmem:[%s438 + $0x6b] sm:$0x1]
      %v2704 = vld [vmem:[%s438 + $0x8b] sm:$0x1]
      %v2705 = vld [vmem:[%s438 + $0xab] sm:$0x1]
      %v2706 = vld [vmem:[%s438 + $0xcb] sm:$0x1]
      %v2707 = vld [vmem:[%s438 + $0xeb] sm:$0x1]
      %v2708 = vld [vmem:[%s438 + $0xc] sm:$0x1]
      %v2709 = vld [vmem:[%s438 + $0x2c] sm:$0x1]
      %v2710 = vld [vmem:[%s438 + $0x4c] sm:$0x1]
      %v2711 = vld [vmem:[%s438 + $0x6c] sm:$0x1]
      %v2712 = vld [vmem:[%s438 + $0x8c] sm:$0x1]
      %v2713 = vld [vmem:[%s438 + $0xac] sm:$0x1]
      %v2714 = vld [vmem:[%s438 + $0xcc] sm:$0x1]
      %v2715 = vld [vmem:[%s438 + $0xec] sm:$0x1]
      %v2716 = vld [vmem:[%s438 + $0xd] sm:$0x1]
      %v2717 = vld [vmem:[%s438 + $0x2d] sm:$0x1]
      %v2718 = vld [vmem:[%s438 + $0x4d] sm:$0x1]
      %v2719 = vld [vmem:[%s438 + $0x6d] sm:$0x1]
      %v2720 = vld [vmem:[%s438 + $0x8d] sm:$0x1]
      %v2721 = vld [vmem:[%s438 + $0xad] sm:$0x1]
      %v2722 = vld [vmem:[%s438 + $0xcd] sm:$0x1]
      %v2723 = vld [vmem:[%s438 + $0xed] sm:$0x1]
      %v2724 = vld [vmem:[%s438 + $0xe] sm:$0x1]
      %v2725 = vld [vmem:[%s438 + $0x2e] sm:$0x1]
      %v2726 = vld [vmem:[%s438 + $0x4e] sm:$0x1]
      %v2727 = vld [vmem:[%s438 + $0x6e] sm:$0x1]
      %v2728 = vld [vmem:[%s438 + $0x8e] sm:$0x1]
      %v2729 = vld [vmem:[%s438 + $0xae] sm:$0x1]
      %v2730 = vld [vmem:[%s438 + $0xce] sm:$0x1]
      %v2731 = vld [vmem:[%s438 + $0xee] sm:$0x1]
      %v2740 = vrot.slane %v2693, 7
      %v2741 = vsel %vm555, %v2740, %v2692
      %v2742 = vrot.slane %v2694, 6
      %v2743 = vsel %vm558, %v2742, %v2741
      %v2744 = vrot.slane %v2695, 5
      %v2745 = vsel %vm561, %v2744, %v2743
      %v2746 = vrot.slane %v2696, 4
      %v2747 = vsel %vm564, %v2746, %v2745
      %v2748 = vrot.slane %v2697, 3
      %v2749 = vsel %vm567, %v2748, %v2747
      %v2750 = vrot.slane %v2698, 2
      %v2751 = vsel %vm570, %v2750, %v2749
      %v2752 = vrot.slane %v2699, 1
      %v2753 = vsel %vm573, %v2752, %v2751
      %v2763 = vrot.slane %v2701, 7
      %v2764 = vsel %vm555, %v2763, %v2700
      %v2765 = vrot.slane %v2702, 6
      %v2766 = vsel %vm558, %v2765, %v2764
      %v2767 = vrot.slane %v2703, 5
      %v2768 = vsel %vm561, %v2767, %v2766
      %v2769 = vrot.slane %v2704, 4
      %v2770 = vsel %vm564, %v2769, %v2768
      %v2771 = vrot.slane %v2705, 3
      %v2772 = vsel %vm567, %v2771, %v2770
      %v2773 = vrot.slane %v2706, 2
      %v2774 = vsel %vm570, %v2773, %v2772
      %v2775 = vrot.slane %v2707, 1
      %v2776 = vsel %vm573, %v2775, %v2774
      %2777 = vrot.lane.b32.xlu0 %v2776, 32
      %v2778 = vpop.permute.xlu0 %2777
      %v2788 = vrot.slane %v2709, 7
      %v2789 = vsel %vm555, %v2788, %v2708
      %v2790 = vrot.slane %v2710, 6
      %v2791 = vsel %vm558, %v2790, %v2789
      %v2792 = vrot.slane %v2711, 5
      %v2793 = vsel %vm561, %v2792, %v2791
      %v2794 = vrot.slane %v2712, 4
      %v2795 = vsel %vm564, %v2794, %v2793
      %v2796 = vrot.slane %v2713, 3
      %v2797 = vsel %vm567, %v2796, %v2795
      %v2798 = vrot.slane %v2714, 2
      %v2799 = vsel %vm570, %v2798, %v2797
      %v2800 = vrot.slane %v2715, 1
      %v2801 = vsel %vm573, %v2800, %v2799
      %2802 = vrot.lane.b32.xlu0 %v2801, 64
      %v2803 = vpop.permute.xlu0 %2802
      %v2813 = vrot.slane %v2717, 7
      %v2814 = vsel %vm555, %v2813, %v2716
      %v2815 = vrot.slane %v2718, 6
      %v2816 = vsel %vm558, %v2815, %v2814
      %v2817 = vrot.slane %v2719, 5
      %v2818 = vsel %vm561, %v2817, %v2816
      %v2819 = vrot.slane %v2720, 4
      %v2820 = vsel %vm564, %v2819, %v2818
      %v2821 = vrot.slane %v2721, 3
      %v2822 = vsel %vm567, %v2821, %v2820
      %v2823 = vrot.slane %v2722, 2
      %v2824 = vsel %vm570, %v2823, %v2822
      %v2825 = vrot.slane %v2723, 1
      %v2826 = vsel %vm573, %v2825, %v2824
      %2827 = vrot.lane.b32.xlu0 %v2826, 96
      %v2828 = vpop.permute.xlu0 %2827
      %v2838 = vrot.slane %v2725, 7
      %v2839 = vsel %vm555, %v2838, %v2724
      %v2840 = vrot.slane %v2726, 6
      %v2841 = vsel %vm558, %v2840, %v2839
      %v2842 = vrot.slane %v2727, 5
      %v2843 = vsel %vm561, %v2842, %v2841
      %v2844 = vrot.slane %v2728, 4
      %v2845 = vsel %vm564, %v2844, %v2843
      %v2846 = vrot.slane %v2729, 3
      %v2847 = vsel %vm567, %v2846, %v2845
      %v2848 = vrot.slane %v2730, 2
      %v2849 = vsel %vm570, %v2848, %v2847
      %v2850 = vrot.slane %v2731, 1
      %v2851 = vsel %vm573, %v2850, %v2849
      %v2852 = vsel %vm673, %v2753, %v2778
      %v2853 = vsel %vm675, %v2852, %v2803
      %v2854 = vsel %vm677, %v2853, %v2828
      %v2855 = vsel %vm673, %v2851, 0
      %2857 = vmatprep.subr.mxu0 %v475
      %2858 = vmatpush1.msra.mxu0 %v474
      %2859 = vmatprep.subr.mxu0 %v473
      %2860 = vmatpush1.msra.mxu0 %v472
      %2861 = vmatprep.subr.mxu0 %v471
      %2862 = vmatpush1.msra.mxu0 %v470
      %2863 = vmatprep.subr.mxu0 %v469
      %2864 = vmatpush1.msra.mxu0 %v468
      %2865 = vmatprep.subr.mxu0 %v467
      %2866 = vmatpush1.msra.mxu0 %v466
      %2867 = vmatprep.subr.mxu0 %v465
      %2868 = vmatpush1.msra.mxu0 %v464
      %2869 = vmatprep.subr.mxu0 %v463
      %2870 = vmatpush1.msra.mxu0 %v462
      %2871 = vmatprep.subr.mxu0 %v461
      %2872 = vmatpush1.msra.mxu0 %v460
      %2873 = vmatprep.subr.mxu0 %v459
      %2874 = vmatpush1.msra.mxu0 %v458
      %2875 = vmatprep.subr.mxu0 %v457
      %2876 = vmatpush1.msra.mxu0 %v456
      %2877 = vmatprep.subr.mxu0 %v455
      %2878 = vmatpush1.msra.mxu0 %v454
      %2879 = vmatprep.subr.mxu0 %v453
      %2880 = vmatpush1.msra.mxu0 %v452
      %2881 = vmatprep.subr.mxu0 %v451
      %2882 = vmatpush1.msra.mxu0 %v450
      %2883 = vmatprep.subr.mxu0 %v449
      %2884 = vmatpush1.msra.mxu0 %v448
      %2885 = vmatprep.subr.mxu0 %v447
      %2886 = vmatpush1.msra.mxu0 %v446
      %2887 = vmatprep.subr.mxu0 %v445
      %2888 = vmatpush1.msra.mxu0 %v444
      %2889 = vmatprep.subr.mxu0 0.0
      %2890 = vmatpush2.msra.mxu0 0.0
      %2891 = vmatprep.subr.mxu0 0.0
      %2892 = vmatpush2.msra.mxu0 0.0
      %2893 = vmatprep.subr.mxu0 0.0
      %2894 = vmatpush2.msra.mxu0 0.0
      %2895 = vmatprep.subr.mxu0 0.0
      %2896 = vmatpush2.msra.mxu0 0.0
      %2897 = vmatprep.subr.mxu0 0.0
      %2898 = vmatpush2.msra.mxu0 0.0
      %2899 = vmatprep.subr.mxu0 0.0
      %2900 = vmatpush2.msra.mxu0 0.0
      %2901 = vmatprep.subr.mxu0 0.0
      %2902 = vmatpush2.msra.mxu0 0.0
      %2903 = vmatprep.subr.mxu0 0.0
      %2904 = vmatpush2.msra.mxu0 0.0
      %2905 = vmatprep.subr.mxu0 0.0
      %2906 = vmatpush2.msra.mxu0 0.0
      %2907 = vmatprep.subr.mxu0 0.0
      %2908 = vmatpush2.msra.mxu0 0.0
      %2909 = vmatprep.subr.mxu0 0.0
      %2910 = vmatpush2.msra.mxu0 0.0
      %2911 = vmatprep.subr.mxu0 0.0
      %2912 = vmatpush2.msra.mxu0 0.0
      %2913 = vmatprep.subr.mxu0 %v483
      %2914 = vmatpush2.msra.mxu0 %v482
      %2915 = vmatprep.subr.mxu0 %v481
      %2916 = vmatpush2.msra.mxu0 %v480
      %2917 = vmatprep.subr.mxu0 %v479
      %2918 = vmatpush2.msra.mxu0 %v478
      %2919 = vmatprep.subr.mxu0 %v477
      %2920 = vmatpush2.msra.mxu0 %v476
      %2921 = vmatprep.mubr.f32.mxu0 %v2855
      %2922 = vmatmul.mubr.f32.gmra.mxu0 %v2854
      %v2923 = vpop.f32.mrf.mxu0
      %v2924 = vadd.f32 %v683, %v2923
      %v2925 = vpop.f32.mrf.mxu0
      %v2926 = vadd.f32 %v687, %v2925
      %2927 = vdwg.mxu0
      %v2928 = vtanh.pop %v2924
      %v2929 = vtanh.pop %v2926
      %v2930 = vld [vmem:[%s438 + $0xf] sm:$0x1]
      %v2931 = vld [vmem:[%s438 + $0x2f] sm:$0x1]
      %v2932 = vld [vmem:[%s438 + $0x4f] sm:$0x1]
      %v2933 = vld [vmem:[%s438 + $0x6f] sm:$0x1]
      %v2934 = vld [vmem:[%s438 + $0x8f] sm:$0x1]
      %v2935 = vld [vmem:[%s438 + $0xaf] sm:$0x1]
      %v2936 = vld [vmem:[%s438 + $0xcf] sm:$0x1]
      %v2937 = vld [vmem:[%s438 + $0xef] sm:$0x1]
      %2939 = vrot.lane.b32.xlu0 %v2801, 32
      %v2940 = vpop.permute.xlu0 %2939
      %2942 = vrot.lane.b32.xlu0 %v2826, 64
      %v2943 = vpop.permute.xlu0 %2942
      %2945 = vrot.lane.b32.xlu0 %v2851, 96
      %v2946 = vpop.permute.xlu0 %2945
      %v2956 = vrot.slane %v2931, 7
      %v2957 = vsel %vm555, %v2956, %v2930
      %v2958 = vrot.slane %v2932, 6
      %v2959 = vsel %vm558, %v2958, %v2957
      %v2960 = vrot.slane %v2933, 5
      %v2961 = vsel %vm561, %v2960, %v2959
      %v2962 = vrot.slane %v2934, 4
      %v2963 = vsel %vm564, %v2962, %v2961
      %v2964 = vrot.slane %v2935, 3
      %v2965 = vsel %vm567, %v2964, %v2963
      %v2966 = vrot.slane %v2936, 2
      %v2967 = vsel %vm570, %v2966, %v2965
      %v2968 = vrot.slane %v2937, 1
      %v2969 = vsel %vm573, %v2968, %v2967
      %v2970 = vsel %vm673, %v2776, %v2940
      %v2971 = vsel %vm675, %v2970, %v2943
      %v2972 = vsel %vm677, %v2971, %v2946
      %v2973 = vsel %vm673, %v2969, 0
      %2975 = vmatprep.subr.mxu0 %v475
      %2976 = vmatpush1.msra.mxu0 %v474
      %2977 = vmatprep.subr.mxu0 %v473
      %2978 = vmatpush1.msra.mxu0 %v472
      %2979 = vmatprep.subr.mxu0 %v471
      %2980 = vmatpush1.msra.mxu0 %v470
      %2981 = vmatprep.subr.mxu0 %v469
      %2982 = vmatpush1.msra.mxu0 %v468
      %2983 = vmatprep.subr.mxu0 %v467
      %2984 = vmatpush1.msra.mxu0 %v466
      %2985 = vmatprep.subr.mxu0 %v465
      %2986 = vmatpush1.msra.mxu0 %v464
      %2987 = vmatprep.subr.mxu0 %v463
      %2988 = vmatpush1.msra.mxu0 %v462
      %2989 = vmatprep.subr.mxu0 %v461
      %2990 = vmatpush1.msra.mxu0 %v460
      %2991 = vmatprep.subr.mxu0 %v459
      %2992 = vmatpush1.msra.mxu0 %v458
      %2993 = vmatprep.subr.mxu0 %v457
      %2994 = vmatpush1.msra.mxu0 %v456
      %2995 = vmatprep.subr.mxu0 %v455
      %2996 = vmatpush1.msra.mxu0 %v454
      %2997 = vmatprep.subr.mxu0 %v453
      %2998 = vmatpush1.msra.mxu0 %v452
      %2999 = vmatprep.subr.mxu0 %v451
      %3000 = vmatpush1.msra.mxu0 %v450
      %3001 = vmatprep.subr.mxu0 %v449
      %3002 = vmatpush1.msra.mxu0 %v448
      %3003 = vmatprep.subr.mxu0 %v447
      %3004 = vmatpush1.msra.mxu0 %v446
      %3005 = vmatprep.subr.mxu0 %v445
      %3006 = vmatpush1.msra.mxu0 %v444
      %3007 = vmatprep.subr.mxu0 0.0
      %3008 = vmatpush2.msra.mxu0 0.0
      %3009 = vmatprep.subr.mxu0 0.0
      %3010 = vmatpush2.msra.mxu0 0.0
      %3011 = vmatprep.subr.mxu0 0.0
      %3012 = vmatpush2.msra.mxu0 0.0
      %3013 = vmatprep.subr.mxu0 0.0
      %3014 = vmatpush2.msra.mxu0 0.0
      %3015 = vmatprep.subr.mxu0 0.0
      %3016 = vmatpush2.msra.mxu0 0.0
      %3017 = vmatprep.subr.mxu0 0.0
      %3018 = vmatpush2.msra.mxu0 0.0
      %3019 = vmatprep.subr.mxu0 0.0
      %3020 = vmatpush2.msra.mxu0 0.0
      %3021 = vmatprep.subr.mxu0 0.0
      %3022 = vmatpush2.msra.mxu0 0.0
      %3023 = vmatprep.subr.mxu0 0.0
      %3024 = vmatpush2.msra.mxu0 0.0
      %3025 = vmatprep.subr.mxu0 0.0
      %3026 = vmatpush2.msra.mxu0 0.0
      %3027 = vmatprep.subr.mxu0 0.0
      %3028 = vmatpush2.msra.mxu0 0.0
      %3029 = vmatprep.subr.mxu0 0.0
      %3030 = vmatpush2.msra.mxu0 0.0
      %3031 = vmatprep.subr.mxu0 %v483
      %3032 = vmatpush2.msra.mxu0 %v482
      %3033 = vmatprep.subr.mxu0 %v481
      %3034 = vmatpush2.msra.mxu0 %v480
      %3035 = vmatprep.subr.mxu0 %v479
      %3036 = vmatpush2.msra.mxu0 %v478
      %3037 = vmatprep.subr.mxu0 %v477
      %3038 = vmatpush2.msra.mxu0 %v476
      %3039 = vmatprep.mubr.f32.mxu0 %v2973
      %3040 = vmatmul.mubr.f32.gmra.mxu0 %v2972
      %v3041 = vpop.f32.mrf.mxu0
      %v3042 = vadd.f32 %v683, %v3041
      %v3043 = vpop.f32.mrf.mxu0
      %v3044 = vadd.f32 %v687, %v3043
      %3045 = vdwg.mxu0
      %v3046 = vtanh.pop %v3042
      %v3047 = vtanh.pop %v3044
      %v3048 = vadd.f32 %v2928, %v3046
      %v3049 = vadd.f32 %v2929, %v3047
      %v3051 = vsel %vm885, %v3049, 0
      %3053 = vmatprep.subr.mxu0 0.0
      %3054 = vmatpush1.msra.mxu0 %v500
      %3055 = vmatprep.subr.mxu0 0.0
      %3056 = vmatpush1.msra.mxu0 %v499
      %3057 = vmatprep.subr.mxu0 0.0
      %3058 = vmatpush1.msra.mxu0 %v498
      %3059 = vmatprep.subr.mxu0 0.0
      %3060 = vmatpush1.msra.mxu0 %v497
      %3061 = vmatprep.subr.mxu0 0.0
      %3062 = vmatpush1.msra.mxu0 %v496
      %3063 = vmatprep.subr.mxu0 0.0
      %3064 = vmatpush1.msra.mxu0 %v495
      %3065 = vmatprep.subr.mxu0 0.0
      %3066 = vmatpush1.msra.mxu0 %v494
      %3067 = vmatprep.subr.mxu0 0.0
      %3068 = vmatpush1.msra.mxu0 %v493
      %3069 = vmatprep.subr.mxu0 0.0
      %3070 = vmatpush1.msra.mxu0 %v492
      %3071 = vmatprep.subr.mxu0 0.0
      %3072 = vmatpush1.msra.mxu0 %v491
      %3073 = vmatprep.subr.mxu0 0.0
      %3074 = vmatpush1.msra.mxu0 %v490
      %3075 = vmatprep.subr.mxu0 0.0
      %3076 = vmatpush1.msra.mxu0 %v489
      %3077 = vmatprep.subr.mxu0 0.0
      %3078 = vmatpush1.msra.mxu0 %v488
      %3079 = vmatprep.subr.mxu0 0.0
      %3080 = vmatpush1.msra.mxu0 %v487
      %3081 = vmatprep.subr.mxu0 0.0
      %3082 = vmatpush1.msra.mxu0 %v486
      %3083 = vmatprep.subr.mxu0 0.0
      %3084 = vmatpush1.msra.mxu0 %v485
      %3085 = vmatprep.subr.mxu0 0.0
      %3086 = vmatpush2.msra.mxu0 0.0
      %3087 = vmatprep.subr.mxu0 0.0
      %3088 = vmatpush2.msra.mxu0 0.0
      %3089 = vmatprep.subr.mxu0 0.0
      %3090 = vmatpush2.msra.mxu0 0.0
      %3091 = vmatprep.subr.mxu0 0.0
      %3092 = vmatpush2.msra.mxu0 0.0
      %3093 = vmatprep.subr.mxu0 0.0
      %3094 = vmatpush2.msra.mxu0 0.0
      %3095 = vmatprep.subr.mxu0 0.0
      %3096 = vmatpush2.msra.mxu0 0.0
      %3097 = vmatprep.subr.mxu0 0.0
      %3098 = vmatpush2.msra.mxu0 0.0
      %3099 = vmatprep.subr.mxu0 0.0
      %3100 = vmatpush2.msra.mxu0 0.0
      %3101 = vmatprep.subr.mxu0 0.0
      %3102 = vmatpush2.msra.mxu0 0.0
      %3103 = vmatprep.subr.mxu0 0.0
      %3104 = vmatpush2.msra.mxu0 0.0
      %3105 = vmatprep.subr.mxu0 0.0
      %3106 = vmatpush2.msra.mxu0 0.0
      %3107 = vmatprep.subr.mxu0 0.0
      %3108 = vmatpush2.msra.mxu0 %v505
      %3109 = vmatprep.subr.mxu0 0.0
      %3110 = vmatpush2.msra.mxu0 %v504
      %3111 = vmatprep.subr.mxu0 0.0
      %3112 = vmatpush2.msra.mxu0 %v503
      %3113 = vmatprep.subr.mxu0 0.0
      %3114 = vmatpush2.msra.mxu0 %v502
      %3115 = vmatprep.subr.mxu0 0.0
      %3116 = vmatpush2.msra.mxu0 %v501
      %3117 = vmatprep.mubr.f32.mxu0 %v3051
      %3118 = vmatmul.mubr.f32.gmra.mxu0 %v3048
      %v3119 = vpop.f32.mrf.mxu0
      %v3120 = vadd.f32 0.0, %v3119
      %v3121 = vpop.f32.mrf.mxu0
      %3122 = vdwg.mxu0
      %s3123 = scalar_lea.vmem [#allocation2], 40
      %3124 = vst [vmem:[%s3123] sm:$0xff] %v3120
      %v3125 = vld [vmem:[%s438 + $0xc] sm:$0x1]
      %v3126 = vld [vmem:[%s438 + $0x2c] sm:$0x1]
      %v3127 = vld [vmem:[%s438 + $0x4c] sm:$0x1]
      %v3128 = vld [vmem:[%s438 + $0x6c] sm:$0x1]
      %v3129 = vld [vmem:[%s438 + $0x8c] sm:$0x1]
      %v3130 = vld [vmem:[%s438 + $0xac] sm:$0x1]
      %v3131 = vld [vmem:[%s438 + $0xcc] sm:$0x1]
      %v3132 = vld [vmem:[%s438 + $0xec] sm:$0x1]
      %v3133 = vld [vmem:[%s438 + $0xd] sm:$0x1]
      %v3134 = vld [vmem:[%s438 + $0x2d] sm:$0x1]
      %v3135 = vld [vmem:[%s438 + $0x4d] sm:$0x1]
      %v3136 = vld [vmem:[%s438 + $0x6d] sm:$0x1]
      %v3137 = vld [vmem:[%s438 + $0x8d] sm:$0x1]
      %v3138 = vld [vmem:[%s438 + $0xad] sm:$0x1]
      %v3139 = vld [vmem:[%s438 + $0xcd] sm:$0x1]
      %v3140 = vld [vmem:[%s438 + $0xed] sm:$0x1]
      %v3141 = vld [vmem:[%s438 + $0xe] sm:$0x1]
      %v3142 = vld [vmem:[%s438 + $0x2e] sm:$0x1]
      %v3143 = vld [vmem:[%s438 + $0x4e] sm:$0x1]
      %v3144 = vld [vmem:[%s438 + $0x6e] sm:$0x1]
      %v3145 = vld [vmem:[%s438 + $0x8e] sm:$0x1]
      %v3146 = vld [vmem:[%s438 + $0xae] sm:$0x1]
      %v3147 = vld [vmem:[%s438 + $0xce] sm:$0x1]
      %v3148 = vld [vmem:[%s438 + $0xee] sm:$0x1]
      %v3149 = vld [vmem:[%s438 + $0xf] sm:$0x1]
      %v3150 = vld [vmem:[%s438 + $0x2f] sm:$0x1]
      %v3151 = vld [vmem:[%s438 + $0x4f] sm:$0x1]
      %v3152 = vld [vmem:[%s438 + $0x6f] sm:$0x1]
      %v3153 = vld [vmem:[%s438 + $0x8f] sm:$0x1]
      %v3154 = vld [vmem:[%s438 + $0xaf] sm:$0x1]
      %v3155 = vld [vmem:[%s438 + $0xcf] sm:$0x1]
      %v3156 = vld [vmem:[%s438 + $0xef] sm:$0x1]
      %v3157 = vld [vmem:[%s438 + $0x10] sm:$0x1]
      %v3158 = vld [vmem:[%s438 + $0x30] sm:$0x1]
      %v3159 = vld [vmem:[%s438 + $0x50] sm:$0x1]
      %v3160 = vld [vmem:[%s438 + $0x70] sm:$0x1]
      %v3161 = vld [vmem:[%s438 + $0x90] sm:$0x1]
      %v3162 = vld [vmem:[%s438 + $0xb0] sm:$0x1]
      %v3163 = vld [vmem:[%s438 + $0xd0] sm:$0x1]
      %v3164 = vld [vmem:[%s438 + $0xf0] sm:$0x1]
      %v3173 = vrot.slane %v3126, 7
      %v3174 = vsel %vm555, %v3173, %v3125
      %v3175 = vrot.slane %v3127, 6
      %v3176 = vsel %vm558, %v3175, %v3174
      %v3177 = vrot.slane %v3128, 5
      %v3178 = vsel %vm561, %v3177, %v3176
      %v3179 = vrot.slane %v3129, 4
      %v3180 = vsel %vm564, %v3179, %v3178
      %v3181 = vrot.slane %v3130, 3
      %v3182 = vsel %vm567, %v3181, %v3180
      %v3183 = vrot.slane %v3131, 2
      %v3184 = vsel %vm570, %v3183, %v3182
      %v3185 = vrot.slane %v3132, 1
      %v3186 = vsel %vm573, %v3185, %v3184
      %v3196 = vrot.slane %v3134, 7
      %v3197 = vsel %vm555, %v3196, %v3133
      %v3198 = vrot.slane %v3135, 6
      %v3199 = vsel %vm558, %v3198, %v3197
      %v3200 = vrot.slane %v3136, 5
      %v3201 = vsel %vm561, %v3200, %v3199
      %v3202 = vrot.slane %v3137, 4
      %v3203 = vsel %vm564, %v3202, %v3201
      %v3204 = vrot.slane %v3138, 3
      %v3205 = vsel %vm567, %v3204, %v3203
      %v3206 = vrot.slane %v3139, 2
      %v3207 = vsel %vm570, %v3206, %v3205
      %v3208 = vrot.slane %v3140, 1
      %v3209 = vsel %vm573, %v3208, %v3207
      %3210 = vrot.lane.b32.xlu0 %v3209, 32
      %v3211 = vpop.permute.xlu0 %3210
      %v3221 = vrot.slane %v3142, 7
      %v3222 = vsel %vm555, %v3221, %v3141
      %v3223 = vrot.slane %v3143, 6
      %v3224 = vsel %vm558, %v3223, %v3222
      %v3225 = vrot.slane %v3144, 5
      %v3226 = vsel %vm561, %v3225, %v3224
      %v3227 = vrot.slane %v3145, 4
      %v3228 = vsel %vm564, %v3227, %v3226
      %v3229 = vrot.slane %v3146, 3
      %v3230 = vsel %vm567, %v3229, %v3228
      %v3231 = vrot.slane %v3147, 2
      %v3232 = vsel %vm570, %v3231, %v3230
      %v3233 = vrot.slane %v3148, 1
      %v3234 = vsel %vm573, %v3233, %v3232
      %3235 = vrot.lane.b32.xlu0 %v3234, 64
      %v3236 = vpop.permute.xlu0 %3235
      %v3246 = vrot.slane %v3150, 7
      %v3247 = vsel %vm555, %v3246, %v3149
      %v3248 = vrot.slane %v3151, 6
      %v3249 = vsel %vm558, %v3248, %v3247
      %v3250 = vrot.slane %v3152, 5
      %v3251 = vsel %vm561, %v3250, %v3249
      %v3252 = vrot.slane %v3153, 4
      %v3253 = vsel %vm564, %v3252, %v3251
      %v3254 = vrot.slane %v3154, 3
      %v3255 = vsel %vm567, %v3254, %v3253
      %v3256 = vrot.slane %v3155, 2
      %v3257 = vsel %vm570, %v3256, %v3255
      %v3258 = vrot.slane %v3156, 1
      %v3259 = vsel %vm573, %v3258, %v3257
      %3260 = vrot.lane.b32.xlu0 %v3259, 96
      %v3261 = vpop.permute.xlu0 %3260
      %v3271 = vrot.slane %v3158, 7
      %v3272 = vsel %vm555, %v3271, %v3157
      %v3273 = vrot.slane %v3159, 6
      %v3274 = vsel %vm558, %v3273, %v3272
      %v3275 = vrot.slane %v3160, 5
      %v3276 = vsel %vm561, %v3275, %v3274
      %v3277 = vrot.slane %v3161, 4
      %v3278 = vsel %vm564, %v3277, %v3276
      %v3279 = vrot.slane %v3162, 3
      %v3280 = vsel %vm567, %v3279, %v3278
      %v3281 = vrot.slane %v3163, 2
      %v3282 = vsel %vm570, %v3281, %v3280
      %v3283 = vrot.slane %v3164, 1
      %v3284 = vsel %vm573, %v3283, %v3282
      %v3285 = vsel %vm673, %v3186, %v3211
      %v3286 = vsel %vm675, %v3285, %v3236
      %v3287 = vsel %vm677, %v3286, %v3261
      %v3288 = vsel %vm673, %v3284, 0
      %3290 = vmatprep.subr.mxu0 %v475
      %3291 = vmatpush1.msra.mxu0 %v474
      %3292 = vmatprep.subr.mxu0 %v473
      %3293 = vmatpush1.msra.mxu0 %v472
      %3294 = vmatprep.subr.mxu0 %v471
      %3295 = vmatpush1.msra.mxu0 %v470
      %3296 = vmatprep.subr.mxu0 %v469
      %3297 = vmatpush1.msra.mxu0 %v468
      %3298 = vmatprep.subr.mxu0 %v467
      %3299 = vmatpush1.msra.mxu0 %v466
      %3300 = vmatprep.subr.mxu0 %v465
      %3301 = vmatpush1.msra.mxu0 %v464
      %3302 = vmatprep.subr.mxu0 %v463
      %3303 = vmatpush1.msra.mxu0 %v462
      %3304 = vmatprep.subr.mxu0 %v461
      %3305 = vmatpush1.msra.mxu0 %v460
      %3306 = vmatprep.subr.mxu0 %v459
      %3307 = vmatpush1.msra.mxu0 %v458
      %3308 = vmatprep.subr.mxu0 %v457
      %3309 = vmatpush1.msra.mxu0 %v456
      %3310 = vmatprep.subr.mxu0 %v455
      %3311 = vmatpush1.msra.mxu0 %v454
      %3312 = vmatprep.subr.mxu0 %v453
      %3313 = vmatpush1.msra.mxu0 %v452
      %3314 = vmatprep.subr.mxu0 %v451
      %3315 = vmatpush1.msra.mxu0 %v450
      %3316 = vmatprep.subr.mxu0 %v449
      %3317 = vmatpush1.msra.mxu0 %v448
      %3318 = vmatprep.subr.mxu0 %v447
      %3319 = vmatpush1.msra.mxu0 %v446
      %3320 = vmatprep.subr.mxu0 %v445
      %3321 = vmatpush1.msra.mxu0 %v444
      %3322 = vmatprep.subr.mxu0 0.0
      %3323 = vmatpush2.msra.mxu0 0.0
      %3324 = vmatprep.subr.mxu0 0.0
      %3325 = vmatpush2.msra.mxu0 0.0
      %3326 = vmatprep.subr.mxu0 0.0
      %3327 = vmatpush2.msra.mxu0 0.0
      %3328 = vmatprep.subr.mxu0 0.0
      %3329 = vmatpush2.msra.mxu0 0.0
      %3330 = vmatprep.subr.mxu0 0.0
      %3331 = vmatpush2.msra.mxu0 0.0
      %3332 = vmatprep.subr.mxu0 0.0
      %3333 = vmatpush2.msra.mxu0 0.0
      %3334 = vmatprep.subr.mxu0 0.0
      %3335 = vmatpush2.msra.mxu0 0.0
      %3336 = vmatprep.subr.mxu0 0.0
      %3337 = vmatpush2.msra.mxu0 0.0
      %3338 = vmatprep.subr.mxu0 0.0
      %3339 = vmatpush2.msra.mxu0 0.0
      %3340 = vmatprep.subr.mxu0 0.0
      %3341 = vmatpush2.msra.mxu0 0.0
      %3342 = vmatprep.subr.mxu0 0.0
      %3343 = vmatpush2.msra.mxu0 0.0
      %3344 = vmatprep.subr.mxu0 0.0
      %3345 = vmatpush2.msra.mxu0 0.0
      %3346 = vmatprep.subr.mxu0 %v483
      %3347 = vmatpush2.msra.mxu0 %v482
      %3348 = vmatprep.subr.mxu0 %v481
      %3349 = vmatpush2.msra.mxu0 %v480
      %3350 = vmatprep.subr.mxu0 %v479
      %3351 = vmatpush2.msra.mxu0 %v478
      %3352 = vmatprep.subr.mxu0 %v477
      %3353 = vmatpush2.msra.mxu0 %v476
      %3354 = vmatprep.mubr.f32.mxu0 %v3288
      %3355 = vmatmul.mubr.f32.gmra.mxu0 %v3287
      %v3356 = vpop.f32.mrf.mxu0
      %v3357 = vadd.f32 %v683, %v3356
      %v3358 = vpop.f32.mrf.mxu0
      %v3359 = vadd.f32 %v687, %v3358
      %3360 = vdwg.mxu0
      %v3361 = vtanh.pop %v3357
      %v3362 = vtanh.pop %v3359
      %v3363 = vld [vmem:[%s438 + $0x11] sm:$0x1]
      %v3364 = vld [vmem:[%s438 + $0x31] sm:$0x1]
      %v3365 = vld [vmem:[%s438 + $0x51] sm:$0x1]
      %v3366 = vld [vmem:[%s438 + $0x71] sm:$0x1]
      %v3367 = vld [vmem:[%s438 + $0x91] sm:$0x1]
      %v3368 = vld [vmem:[%s438 + $0xb1] sm:$0x1]
      %v3369 = vld [vmem:[%s438 + $0xd1] sm:$0x1]
      %v3370 = vld [vmem:[%s438 + $0xf1] sm:$0x1]
      %3372 = vrot.lane.b32.xlu0 %v3234, 32
      %v3373 = vpop.permute.xlu0 %3372
      %3375 = vrot.lane.b32.xlu0 %v3259, 64
      %v3376 = vpop.permute.xlu0 %3375
      %3378 = vrot.lane.b32.xlu0 %v3284, 96
      %v3379 = vpop.permute.xlu0 %3378
      %v3389 = vrot.slane %v3364, 7
      %v3390 = vsel %vm555, %v3389, %v3363
      %v3391 = vrot.slane %v3365, 6
      %v3392 = vsel %vm558, %v3391, %v3390
      %v3393 = vrot.slane %v3366, 5
      %v3394 = vsel %vm561, %v3393, %v3392
      %v3395 = vrot.slane %v3367, 4
      %v3396 = vsel %vm564, %v3395, %v3394
      %v3397 = vrot.slane %v3368, 3
      %v3398 = vsel %vm567, %v3397, %v3396
      %v3399 = vrot.slane %v3369, 2
      %v3400 = vsel %vm570, %v3399, %v3398
      %v3401 = vrot.slane %v3370, 1
      %v3402 = vsel %vm573, %v3401, %v3400
      %v3403 = vsel %vm673, %v3209, %v3373
      %v3404 = vsel %vm675, %v3403, %v3376
      %v3405 = vsel %vm677, %v3404, %v3379
      %v3406 = vsel %vm673, %v3402, 0
      %3408 = vmatprep.subr.mxu0 %v475
      %3409 = vmatpush1.msra.mxu0 %v474
      %3410 = vmatprep.subr.mxu0 %v473
      %3411 = vmatpush1.msra.mxu0 %v472
      %3412 = vmatprep.subr.mxu0 %v471
      %3413 = vmatpush1.msra.mxu0 %v470
      %3414 = vmatprep.subr.mxu0 %v469
      %3415 = vmatpush1.msra.mxu0 %v468
      %3416 = vmatprep.subr.mxu0 %v467
      %3417 = vmatpush1.msra.mxu0 %v466
      %3418 = vmatprep.subr.mxu0 %v465
      %3419 = vmatpush1.msra.mxu0 %v464
      %3420 = vmatprep.subr.mxu0 %v463
      %3421 = vmatpush1.msra.mxu0 %v462
      %3422 = vmatprep.subr.mxu0 %v461
      %3423 = vmatpush1.msra.mxu0 %v460
      %3424 = vmatprep.subr.mxu0 %v459
      %3425 = vmatpush1.msra.mxu0 %v458
      %3426 = vmatprep.subr.mxu0 %v457
      %3427 = vmatpush1.msra.mxu0 %v456
      %3428 = vmatprep.subr.mxu0 %v455
      %3429 = vmatpush1.msra.mxu0 %v454
      %3430 = vmatprep.subr.mxu0 %v453
      %3431 = vmatpush1.msra.mxu0 %v452
      %3432 = vmatprep.subr.mxu0 %v451
      %3433 = vmatpush1.msra.mxu0 %v450
      %3434 = vmatprep.subr.mxu0 %v449
      %3435 = vmatpush1.msra.mxu0 %v448
      %3436 = vmatprep.subr.mxu0 %v447
      %3437 = vmatpush1.msra.mxu0 %v446
      %3438 = vmatprep.subr.mxu0 %v445
      %3439 = vmatpush1.msra.mxu0 %v444
      %3440 = vmatprep.subr.mxu0 0.0
      %3441 = vmatpush2.msra.mxu0 0.0
      %3442 = vmatprep.subr.mxu0 0.0
      %3443 = vmatpush2.msra.mxu0 0.0
      %3444 = vmatprep.subr.mxu0 0.0
      %3445 = vmatpush2.msra.mxu0 0.0
      %3446 = vmatprep.subr.mxu0 0.0
      %3447 = vmatpush2.msra.mxu0 0.0
      %3448 = vmatprep.subr.mxu0 0.0
      %3449 = vmatpush2.msra.mxu0 0.0
      %3450 = vmatprep.subr.mxu0 0.0
      %3451 = vmatpush2.msra.mxu0 0.0
      %3452 = vmatprep.subr.mxu0 0.0
      %3453 = vmatpush2.msra.mxu0 0.0
      %3454 = vmatprep.subr.mxu0 0.0
      %3455 = vmatpush2.msra.mxu0 0.0
      %3456 = vmatprep.subr.mxu0 0.0
      %3457 = vmatpush2.msra.mxu0 0.0
      %3458 = vmatprep.subr.mxu0 0.0
      %3459 = vmatpush2.msra.mxu0 0.0
      %3460 = vmatprep.subr.mxu0 0.0
      %3461 = vmatpush2.msra.mxu0 0.0
      %3462 = vmatprep.subr.mxu0 0.0
      %3463 = vmatpush2.msra.mxu0 0.0
      %3464 = vmatprep.subr.mxu0 %v483
      %3465 = vmatpush2.msra.mxu0 %v482
      %3466 = vmatprep.subr.mxu0 %v481
      %3467 = vmatpush2.msra.mxu0 %v480
      %3468 = vmatprep.subr.mxu0 %v479
      %3469 = vmatpush2.msra.mxu0 %v478
      %3470 = vmatprep.subr.mxu0 %v477
      %3471 = vmatpush2.msra.mxu0 %v476
      %3472 = vmatprep.mubr.f32.mxu0 %v3406
      %3473 = vmatmul.mubr.f32.gmra.mxu0 %v3405
      %v3474 = vpop.f32.mrf.mxu0
      %v3475 = vadd.f32 %v683, %v3474
      %v3476 = vpop.f32.mrf.mxu0
      %v3477 = vadd.f32 %v687, %v3476
      %3478 = vdwg.mxu0
      %v3479 = vtanh.pop %v3475
      %v3480 = vtanh.pop %v3477
      %v3481 = vadd.f32 %v3361, %v3479
      %v3482 = vadd.f32 %v3362, %v3480
      %v3484 = vsel %vm885, %v3482, 0
      %3486 = vmatprep.subr.mxu0 0.0
      %3487 = vmatpush1.msra.mxu0 %v500
      %3488 = vmatprep.subr.mxu0 0.0
      %3489 = vmatpush1.msra.mxu0 %v499
      %3490 = vmatprep.subr.mxu0 0.0
      %3491 = vmatpush1.msra.mxu0 %v498
      %3492 = vmatprep.subr.mxu0 0.0
      %3493 = vmatpush1.msra.mxu0 %v497
      %3494 = vmatprep.subr.mxu0 0.0
      %3495 = vmatpush1.msra.mxu0 %v496
      %3496 = vmatprep.subr.mxu0 0.0
      %3497 = vmatpush1.msra.mxu0 %v495
      %3498 = vmatprep.subr.mxu0 0.0
      %3499 = vmatpush1.msra.mxu0 %v494
      %3500 = vmatprep.subr.mxu0 0.0
      %3501 = vmatpush1.msra.mxu0 %v493
      %3502 = vmatprep.subr.mxu0 0.0
      %3503 = vmatpush1.msra.mxu0 %v492
      %3504 = vmatprep.subr.mxu0 0.0
      %3505 = vmatpush1.msra.mxu0 %v491
      %3506 = vmatprep.subr.mxu0 0.0
      %3507 = vmatpush1.msra.mxu0 %v490
      %3508 = vmatprep.subr.mxu0 0.0
      %3509 = vmatpush1.msra.mxu0 %v489
      %3510 = vmatprep.subr.mxu0 0.0
      %3511 = vmatpush1.msra.mxu0 %v488
      %3512 = vmatprep.subr.mxu0 0.0
      %3513 = vmatpush1.msra.mxu0 %v487
      %3514 = vmatprep.subr.mxu0 0.0
      %3515 = vmatpush1.msra.mxu0 %v486
      %3516 = vmatprep.subr.mxu0 0.0
      %3517 = vmatpush1.msra.mxu0 %v485
      %3518 = vmatprep.subr.mxu0 0.0
      %3519 = vmatpush2.msra.mxu0 0.0
      %3520 = vmatprep.subr.mxu0 0.0
      %3521 = vmatpush2.msra.mxu0 0.0
      %3522 = vmatprep.subr.mxu0 0.0
      %3523 = vmatpush2.msra.mxu0 0.0
      %3524 = vmatprep.subr.mxu0 0.0
      %3525 = vmatpush2.msra.mxu0 0.0
      %3526 = vmatprep.subr.mxu0 0.0
      %3527 = vmatpush2.msra.mxu0 0.0
      %3528 = vmatprep.subr.mxu0 0.0
      %3529 = vmatpush2.msra.mxu0 0.0
      %3530 = vmatprep.subr.mxu0 0.0
      %3531 = vmatpush2.msra.mxu0 0.0
      %3532 = vmatprep.subr.mxu0 0.0
      %3533 = vmatpush2.msra.mxu0 0.0
      %3534 = vmatprep.subr.mxu0 0.0
      %3535 = vmatpush2.msra.mxu0 0.0
      %3536 = vmatprep.subr.mxu0 0.0
      %3537 = vmatpush2.msra.mxu0 0.0
      %3538 = vmatprep.subr.mxu0 0.0
      %3539 = vmatpush2.msra.mxu0 0.0
      %3540 = vmatprep.subr.mxu0 0.0
      %3541 = vmatpush2.msra.mxu0 %v505
      %3542 = vmatprep.subr.mxu0 0.0
      %3543 = vmatpush2.msra.mxu0 %v504
      %3544 = vmatprep.subr.mxu0 0.0
      %3545 = vmatpush2.msra.mxu0 %v503
      %3546 = vmatprep.subr.mxu0 0.0
      %3547 = vmatpush2.msra.mxu0 %v502
      %3548 = vmatprep.subr.mxu0 0.0
      %3549 = vmatpush2.msra.mxu0 %v501
      %3550 = vmatprep.mubr.f32.mxu0 %v3484
      %3551 = vmatmul.mubr.f32.gmra.mxu0 %v3481
      %v3552 = vpop.f32.mrf.mxu0
      %v3553 = vadd.f32 0.0, %v3552
      %v3554 = vpop.f32.mrf.mxu0
      %3555 = vdwg.mxu0
      %s3556 = scalar_lea.vmem [#allocation2], 48
      %3557 = vst [vmem:[%s3556] sm:$0xff] %v3553
      %v3558 = vld [vmem:[%s438 + $0xe] sm:$0x1]
      %v3559 = vld [vmem:[%s438 + $0x2e] sm:$0x1]
      %v3560 = vld [vmem:[%s438 + $0x4e] sm:$0x1]
      %v3561 = vld [vmem:[%s438 + $0x6e] sm:$0x1]
      %v3562 = vld [vmem:[%s438 + $0x8e] sm:$0x1]
      %v3563 = vld [vmem:[%s438 + $0xae] sm:$0x1]
      %v3564 = vld [vmem:[%s438 + $0xce] sm:$0x1]
      %v3565 = vld [vmem:[%s438 + $0xee] sm:$0x1]
      %v3566 = vld [vmem:[%s438 + $0xf] sm:$0x1]
      %v3567 = vld [vmem:[%s438 + $0x2f] sm:$0x1]
      %v3568 = vld [vmem:[%s438 + $0x4f] sm:$0x1]
      %v3569 = vld [vmem:[%s438 + $0x6f] sm:$0x1]
      %v3570 = vld [vmem:[%s438 + $0x8f] sm:$0x1]
      %v3571 = vld [vmem:[%s438 + $0xaf] sm:$0x1]
      %v3572 = vld [vmem:[%s438 + $0xcf] sm:$0x1]
      %v3573 = vld [vmem:[%s438 + $0xef] sm:$0x1]
      %v3574 = vld [vmem:[%s438 + $0x10] sm:$0x1]
      %v3575 = vld [vmem:[%s438 + $0x30] sm:$0x1]
      %v3576 = vld [vmem:[%s438 + $0x50] sm:$0x1]
      %v3577 = vld [vmem:[%s438 + $0x70] sm:$0x1]
      %v3578 = vld [vmem:[%s438 + $0x90] sm:$0x1]
      %v3579 = vld [vmem:[%s438 + $0xb0] sm:$0x1]
      %v3580 = vld [vmem:[%s438 + $0xd0] sm:$0x1]
      %v3581 = vld [vmem:[%s438 + $0xf0] sm:$0x1]
      %v3582 = vld [vmem:[%s438 + $0x11] sm:$0x1]
      %v3583 = vld [vmem:[%s438 + $0x31] sm:$0x1]
      %v3584 = vld [vmem:[%s438 + $0x51] sm:$0x1]
      %v3585 = vld [vmem:[%s438 + $0x71] sm:$0x1]
      %v3586 = vld [vmem:[%s438 + $0x91] sm:$0x1]
      %v3587 = vld [vmem:[%s438 + $0xb1] sm:$0x1]
      %v3588 = vld [vmem:[%s438 + $0xd1] sm:$0x1]
      %v3589 = vld [vmem:[%s438 + $0xf1] sm:$0x1]
      %v3590 = vld [vmem:[%s438 + $0x12] sm:$0x1]
      %v3591 = vld [vmem:[%s438 + $0x32] sm:$0x1]
      %v3592 = vld [vmem:[%s438 + $0x52] sm:$0x1]
      %v3593 = vld [vmem:[%s438 + $0x72] sm:$0x1]
      %v3594 = vld [vmem:[%s438 + $0x92] sm:$0x1]
      %v3595 = vld [vmem:[%s438 + $0xb2] sm:$0x1]
      %v3596 = vld [vmem:[%s438 + $0xd2] sm:$0x1]
      %v3597 = vld [vmem:[%s438 + $0xf2] sm:$0x1]
      %v3606 = vrot.slane %v3559, 7
      %v3607 = vsel %vm555, %v3606, %v3558
      %v3608 = vrot.slane %v3560, 6
      %v3609 = vsel %vm558, %v3608, %v3607
      %v3610 = vrot.slane %v3561, 5
      %v3611 = vsel %vm561, %v3610, %v3609
      %v3612 = vrot.slane %v3562, 4
      %v3613 = vsel %vm564, %v3612, %v3611
      %v3614 = vrot.slane %v3563, 3
      %v3615 = vsel %vm567, %v3614, %v3613
      %v3616 = vrot.slane %v3564, 2
      %v3617 = vsel %vm570, %v3616, %v3615
      %v3618 = vrot.slane %v3565, 1
      %v3619 = vsel %vm573, %v3618, %v3617
      %v3629 = vrot.slane %v3567, 7
      %v3630 = vsel %vm555, %v3629, %v3566
      %v3631 = vrot.slane %v3568, 6
      %v3632 = vsel %vm558, %v3631, %v3630
      %v3633 = vrot.slane %v3569, 5
      %v3634 = vsel %vm561, %v3633, %v3632
      %v3635 = vrot.slane %v3570, 4
      %v3636 = vsel %vm564, %v3635, %v3634
      %v3637 = vrot.slane %v3571, 3
      %v3638 = vsel %vm567, %v3637, %v3636
      %v3639 = vrot.slane %v3572, 2
      %v3640 = vsel %vm570, %v3639, %v3638
      %v3641 = vrot.slane %v3573, 1
      %v3642 = vsel %vm573, %v3641, %v3640
      %3643 = vrot.lane.b32.xlu0 %v3642, 32
      %v3644 = vpop.permute.xlu0 %3643
      %v3654 = vrot.slane %v3575, 7
      %v3655 = vsel %vm555, %v3654, %v3574
      %v3656 = vrot.slane %v3576, 6
      %v3657 = vsel %vm558, %v3656, %v3655
      %v3658 = vrot.slane %v3577, 5
      %v3659 = vsel %vm561, %v3658, %v3657
      %v3660 = vrot.slane %v3578, 4
      %v3661 = vsel %vm564, %v3660, %v3659
      %v3662 = vrot.slane %v3579, 3
      %v3663 = vsel %vm567, %v3662, %v3661
      %v3664 = vrot.slane %v3580, 2
      %v3665 = vsel %vm570, %v3664, %v3663
      %v3666 = vrot.slane %v3581, 1
      %v3667 = vsel %vm573, %v3666, %v3665
      %3668 = vrot.lane.b32.xlu0 %v3667, 64
      %v3669 = vpop.permute.xlu0 %3668
      %v3679 = vrot.slane %v3583, 7
      %v3680 = vsel %vm555, %v3679, %v3582
      %v3681 = vrot.slane %v3584, 6
      %v3682 = vsel %vm558, %v3681, %v3680
      %v3683 = vrot.slane %v3585, 5
      %v3684 = vsel %vm561, %v3683, %v3682
      %v3685 = vrot.slane %v3586, 4
      %v3686 = vsel %vm564, %v3685, %v3684
      %v3687 = vrot.slane %v3587, 3
      %v3688 = vsel %vm567, %v3687, %v3686
      %v3689 = vrot.slane %v3588, 2
      %v3690 = vsel %vm570, %v3689, %v3688
      %v3691 = vrot.slane %v3589, 1
      %v3692 = vsel %vm573, %v3691, %v3690
      %3693 = vrot.lane.b32.xlu0 %v3692, 96
      %v3694 = vpop.permute.xlu0 %3693
      %v3704 = vrot.slane %v3591, 7
      %v3705 = vsel %vm555, %v3704, %v3590
      %v3706 = vrot.slane %v3592, 6
      %v3707 = vsel %vm558, %v3706, %v3705
      %v3708 = vrot.slane %v3593, 5
      %v3709 = vsel %vm561, %v3708, %v3707
      %v3710 = vrot.slane %v3594, 4
      %v3711 = vsel %vm564, %v3710, %v3709
      %v3712 = vrot.slane %v3595, 3
      %v3713 = vsel %vm567, %v3712, %v3711
      %v3714 = vrot.slane %v3596, 2
      %v3715 = vsel %vm570, %v3714, %v3713
      %v3716 = vrot.slane %v3597, 1
      %v3717 = vsel %vm573, %v3716, %v3715
      %v3718 = vsel %vm673, %v3619, %v3644
      %v3719 = vsel %vm675, %v3718, %v3669
      %v3720 = vsel %vm677, %v3719, %v3694
      %v3721 = vsel %vm673, %v3717, 0
      %3723 = vmatprep.subr.mxu0 %v475
      %3724 = vmatpush1.msra.mxu0 %v474
      %3725 = vmatprep.subr.mxu0 %v473
      %3726 = vmatpush1.msra.mxu0 %v472
      %3727 = vmatprep.subr.mxu0 %v471
      %3728 = vmatpush1.msra.mxu0 %v470
      %3729 = vmatprep.subr.mxu0 %v469
      %3730 = vmatpush1.msra.mxu0 %v468
      %3731 = vmatprep.subr.mxu0 %v467
      %3732 = vmatpush1.msra.mxu0 %v466
      %3733 = vmatprep.subr.mxu0 %v465
      %3734 = vmatpush1.msra.mxu0 %v464
      %3735 = vmatprep.subr.mxu0 %v463
      %3736 = vmatpush1.msra.mxu0 %v462
      %3737 = vmatprep.subr.mxu0 %v461
      %3738 = vmatpush1.msra.mxu0 %v460
      %3739 = vmatprep.subr.mxu0 %v459
      %3740 = vmatpush1.msra.mxu0 %v458
      %3741 = vmatprep.subr.mxu0 %v457
      %3742 = vmatpush1.msra.mxu0 %v456
      %3743 = vmatprep.subr.mxu0 %v455
      %3744 = vmatpush1.msra.mxu0 %v454
      %3745 = vmatprep.subr.mxu0 %v453
      %3746 = vmatpush1.msra.mxu0 %v452
      %3747 = vmatprep.subr.mxu0 %v451
      %3748 = vmatpush1.msra.mxu0 %v450
      %3749 = vmatprep.subr.mxu0 %v449
      %3750 = vmatpush1.msra.mxu0 %v448
      %3751 = vmatprep.subr.mxu0 %v447
      %3752 = vmatpush1.msra.mxu0 %v446
      %3753 = vmatprep.subr.mxu0 %v445
      %3754 = vmatpush1.msra.mxu0 %v444
      %3755 = vmatprep.subr.mxu0 0.0
      %3756 = vmatpush2.msra.mxu0 0.0
      %3757 = vmatprep.subr.mxu0 0.0
      %3758 = vmatpush2.msra.mxu0 0.0
      %3759 = vmatprep.subr.mxu0 0.0
      %3760 = vmatpush2.msra.mxu0 0.0
      %3761 = vmatprep.subr.mxu0 0.0
      %3762 = vmatpush2.msra.mxu0 0.0
      %3763 = vmatprep.subr.mxu0 0.0
      %3764 = vmatpush2.msra.mxu0 0.0
      %3765 = vmatprep.subr.mxu0 0.0
      %3766 = vmatpush2.msra.mxu0 0.0
      %3767 = vmatprep.subr.mxu0 0.0
      %3768 = vmatpush2.msra.mxu0 0.0
      %3769 = vmatprep.subr.mxu0 0.0
      %3770 = vmatpush2.msra.mxu0 0.0
      %3771 = vmatprep.subr.mxu0 0.0
      %3772 = vmatpush2.msra.mxu0 0.0
      %3773 = vmatprep.subr.mxu0 0.0
      %3774 = vmatpush2.msra.mxu0 0.0
      %3775 = vmatprep.subr.mxu0 0.0
      %3776 = vmatpush2.msra.mxu0 0.0
      %3777 = vmatprep.subr.mxu0 0.0
      %3778 = vmatpush2.msra.mxu0 0.0
      %3779 = vmatprep.subr.mxu0 %v483
      %3780 = vmatpush2.msra.mxu0 %v482
      %3781 = vmatprep.subr.mxu0 %v481
      %3782 = vmatpush2.msra.mxu0 %v480
      %3783 = vmatprep.subr.mxu0 %v479
      %3784 = vmatpush2.msra.mxu0 %v478
      %3785 = vmatprep.subr.mxu0 %v477
      %3786 = vmatpush2.msra.mxu0 %v476
      %3787 = vmatprep.mubr.f32.mxu0 %v3721
      %3788 = vmatmul.mubr.f32.gmra.mxu0 %v3720
      %v3789 = vpop.f32.mrf.mxu0
      %v3790 = vadd.f32 %v683, %v3789
      %v3791 = vpop.f32.mrf.mxu0
      %v3792 = vadd.f32 %v687, %v3791
      %3793 = vdwg.mxu0
      %v3794 = vtanh.pop %v3790
      %v3795 = vtanh.pop %v3792
      %v3796 = vld [vmem:[%s438 + $0x13] sm:$0x1]
      %v3797 = vld [vmem:[%s438 + $0x33] sm:$0x1]
      %v3798 = vld [vmem:[%s438 + $0x53] sm:$0x1]
      %v3799 = vld [vmem:[%s438 + $0x73] sm:$0x1]
      %v3800 = vld [vmem:[%s438 + $0x93] sm:$0x1]
      %v3801 = vld [vmem:[%s438 + $0xb3] sm:$0x1]
      %v3802 = vld [vmem:[%s438 + $0xd3] sm:$0x1]
      %v3803 = vld [vmem:[%s438 + $0xf3] sm:$0x1]
      %3805 = vrot.lane.b32.xlu0 %v3667, 32
      %v3806 = vpop.permute.xlu0 %3805
      %3808 = vrot.lane.b32.xlu0 %v3692, 64
      %v3809 = vpop.permute.xlu0 %3808
      %3811 = vrot.lane.b32.xlu0 %v3717, 96
      %v3812 = vpop.permute.xlu0 %3811
      %v3822 = vrot.slane %v3797, 7
      %v3823 = vsel %vm555, %v3822, %v3796
      %v3824 = vrot.slane %v3798, 6
      %v3825 = vsel %vm558, %v3824, %v3823
      %v3826 = vrot.slane %v3799, 5
      %v3827 = vsel %vm561, %v3826, %v3825
      %v3828 = vrot.slane %v3800, 4
      %v3829 = vsel %vm564, %v3828, %v3827
      %v3830 = vrot.slane %v3801, 3
      %v3831 = vsel %vm567, %v3830, %v3829
      %v3832 = vrot.slane %v3802, 2
      %v3833 = vsel %vm570, %v3832, %v3831
      %v3834 = vrot.slane %v3803, 1
      %v3835 = vsel %vm573, %v3834, %v3833
      %v3836 = vsel %vm673, %v3642, %v3806
      %v3837 = vsel %vm675, %v3836, %v3809
      %v3838 = vsel %vm677, %v3837, %v3812
      %v3839 = vsel %vm673, %v3835, 0
      %3841 = vmatprep.subr.mxu0 %v475
      %3842 = vmatpush1.msra.mxu0 %v474
      %3843 = vmatprep.subr.mxu0 %v473
      %3844 = vmatpush1.msra.mxu0 %v472
      %3845 = vmatprep.subr.mxu0 %v471
      %3846 = vmatpush1.msra.mxu0 %v470
      %3847 = vmatprep.subr.mxu0 %v469
      %3848 = vmatpush1.msra.mxu0 %v468
      %3849 = vmatprep.subr.mxu0 %v467
      %3850 = vmatpush1.msra.mxu0 %v466
      %3851 = vmatprep.subr.mxu0 %v465
      %3852 = vmatpush1.msra.mxu0 %v464
      %3853 = vmatprep.subr.mxu0 %v463
      %3854 = vmatpush1.msra.mxu0 %v462
      %3855 = vmatprep.subr.mxu0 %v461
      %3856 = vmatpush1.msra.mxu0 %v460
      %3857 = vmatprep.subr.mxu0 %v459
      %3858 = vmatpush1.msra.mxu0 %v458
      %3859 = vmatprep.subr.mxu0 %v457
      %3860 = vmatpush1.msra.mxu0 %v456
      %3861 = vmatprep.subr.mxu0 %v455
      %3862 = vmatpush1.msra.mxu0 %v454
      %3863 = vmatprep.subr.mxu0 %v453
      %3864 = vmatpush1.msra.mxu0 %v452
      %3865 = vmatprep.subr.mxu0 %v451
      %3866 = vmatpush1.msra.mxu0 %v450
      %3867 = vmatprep.subr.mxu0 %v449
      %3868 = vmatpush1.msra.mxu0 %v448
      %3869 = vmatprep.subr.mxu0 %v447
      %3870 = vmatpush1.msra.mxu0 %v446
      %3871 = vmatprep.subr.mxu0 %v445
      %3872 = vmatpush1.msra.mxu0 %v444
      %3873 = vmatprep.subr.mxu0 0.0
      %3874 = vmatpush2.msra.mxu0 0.0
      %3875 = vmatprep.subr.mxu0 0.0
      %3876 = vmatpush2.msra.mxu0 0.0
      %3877 = vmatprep.subr.mxu0 0.0
      %3878 = vmatpush2.msra.mxu0 0.0
      %3879 = vmatprep.subr.mxu0 0.0
      %3880 = vmatpush2.msra.mxu0 0.0
      %3881 = vmatprep.subr.mxu0 0.0
      %3882 = vmatpush2.msra.mxu0 0.0
      %3883 = vmatprep.subr.mxu0 0.0
      %3884 = vmatpush2.msra.mxu0 0.0
      %3885 = vmatprep.subr.mxu0 0.0
      %3886 = vmatpush2.msra.mxu0 0.0
      %3887 = vmatprep.subr.mxu0 0.0
      %3888 = vmatpush2.msra.mxu0 0.0
      %3889 = vmatprep.subr.mxu0 0.0
      %3890 = vmatpush2.msra.mxu0 0.0
      %3891 = vmatprep.subr.mxu0 0.0
      %3892 = vmatpush2.msra.mxu0 0.0
      %3893 = vmatprep.subr.mxu0 0.0
      %3894 = vmatpush2.msra.mxu0 0.0
      %3895 = vmatprep.subr.mxu0 0.0
      %3896 = vmatpush2.msra.mxu0 0.0
      %3897 = vmatprep.subr.mxu0 %v483
      %3898 = vmatpush2.msra.mxu0 %v482
      %3899 = vmatprep.subr.mxu0 %v481
      %3900 = vmatpush2.msra.mxu0 %v480
      %3901 = vmatprep.subr.mxu0 %v479
      %3902 = vmatpush2.msra.mxu0 %v478
      %3903 = vmatprep.subr.mxu0 %v477
      %3904 = vmatpush2.msra.mxu0 %v476
      %3905 = vmatprep.mubr.f32.mxu0 %v3839
      %3906 = vmatmul.mubr.f32.gmra.mxu0 %v3838
      %v3907 = vpop.f32.mrf.mxu0
      %v3908 = vadd.f32 %v683, %v3907
      %v3909 = vpop.f32.mrf.mxu0
      %v3910 = vadd.f32 %v687, %v3909
      %3911 = vdwg.mxu0
      %v3912 = vtanh.pop %v3908
      %v3913 = vtanh.pop %v3910
      %v3914 = vadd.f32 %v3794, %v3912
      %v3915 = vadd.f32 %v3795, %v3913
      %v3917 = vsel %vm885, %v3915, 0
      %3919 = vmatprep.subr.mxu0 0.0
      %3920 = vmatpush1.msra.mxu0 %v500
      %3921 = vmatprep.subr.mxu0 0.0
      %3922 = vmatpush1.msra.mxu0 %v499
      %3923 = vmatprep.subr.mxu0 0.0
      %3924 = vmatpush1.msra.mxu0 %v498
      %3925 = vmatprep.subr.mxu0 0.0
      %3926 = vmatpush1.msra.mxu0 %v497
      %3927 = vmatprep.subr.mxu0 0.0
      %3928 = vmatpush1.msra.mxu0 %v496
      %3929 = vmatprep.subr.mxu0 0.0
      %3930 = vmatpush1.msra.mxu0 %v495
      %3931 = vmatprep.subr.mxu0 0.0
      %3932 = vmatpush1.msra.mxu0 %v494
      %3933 = vmatprep.subr.mxu0 0.0
      %3934 = vmatpush1.msra.mxu0 %v493
      %3935 = vmatprep.subr.mxu0 0.0
      %3936 = vmatpush1.msra.mxu0 %v492
      %3937 = vmatprep.subr.mxu0 0.0
      %3938 = vmatpush1.msra.mxu0 %v491
      %3939 = vmatprep.subr.mxu0 0.0
      %3940 = vmatpush1.msra.mxu0 %v490
      %3941 = vmatprep.subr.mxu0 0.0
      %3942 = vmatpush1.msra.mxu0 %v489
      %3943 = vmatprep.subr.mxu0 0.0
      %3944 = vmatpush1.msra.mxu0 %v488
      %3945 = vmatprep.subr.mxu0 0.0
      %3946 = vmatpush1.msra.mxu0 %v487
      %3947 = vmatprep.subr.mxu0 0.0
      %3948 = vmatpush1.msra.mxu0 %v486
      %3949 = vmatprep.subr.mxu0 0.0
      %3950 = vmatpush1.msra.mxu0 %v485
      %3951 = vmatprep.subr.mxu0 0.0
      %3952 = vmatpush2.msra.mxu0 0.0
      %3953 = vmatprep.subr.mxu0 0.0
      %3954 = vmatpush2.msra.mxu0 0.0
      %3955 = vmatprep.subr.mxu0 0.0
      %3956 = vmatpush2.msra.mxu0 0.0
      %3957 = vmatprep.subr.mxu0 0.0
      %3958 = vmatpush2.msra.mxu0 0.0
      %3959 = vmatprep.subr.mxu0 0.0
      %3960 = vmatpush2.msra.mxu0 0.0
      %3961 = vmatprep.subr.mxu0 0.0
      %3962 = vmatpush2.msra.mxu0 0.0
      %3963 = vmatprep.subr.mxu0 0.0
      %3964 = vmatpush2.msra.mxu0 0.0
      %3965 = vmatprep.subr.mxu0 0.0
      %3966 = vmatpush2.msra.mxu0 0.0
      %3967 = vmatprep.subr.mxu0 0.0
      %3968 = vmatpush2.msra.mxu0 0.0
      %3969 = vmatprep.subr.mxu0 0.0
      %3970 = vmatpush2.msra.mxu0 0.0
      %3971 = vmatprep.subr.mxu0 0.0
      %3972 = vmatpush2.msra.mxu0 0.0
      %3973 = vmatprep.subr.mxu0 0.0
      %3974 = vmatpush2.msra.mxu0 %v505
      %3975 = vmatprep.subr.mxu0 0.0
      %3976 = vmatpush2.msra.mxu0 %v504
      %3977 = vmatprep.subr.mxu0 0.0
      %3978 = vmatpush2.msra.mxu0 %v503
      %3979 = vmatprep.subr.mxu0 0.0
      %3980 = vmatpush2.msra.mxu0 %v502
      %3981 = vmatprep.subr.mxu0 0.0
      %3982 = vmatpush2.msra.mxu0 %v501
      %3983 = vmatprep.mubr.f32.mxu0 %v3917
      %3984 = vmatmul.mubr.f32.gmra.mxu0 %v3914
      %v3985 = vpop.f32.mrf.mxu0
      %v3986 = vadd.f32 0.0, %v3985
      %v3987 = vpop.f32.mrf.mxu0
      %3988 = vdwg.mxu0
      %s3989 = scalar_lea.vmem [#allocation2], 56
      %3990 = vst [vmem:[%s3989] sm:$0xff] %v3986
      %v3991 = vld [vmem:[%s438 + $0x10] sm:$0x1]
      %v3992 = vld [vmem:[%s438 + $0x30] sm:$0x1]
      %v3993 = vld [vmem:[%s438 + $0x50] sm:$0x1]
      %v3994 = vld [vmem:[%s438 + $0x70] sm:$0x1]
      %v3995 = vld [vmem:[%s438 + $0x90] sm:$0x1]
      %v3996 = vld [vmem:[%s438 + $0xb0] sm:$0x1]
      %v3997 = vld [vmem:[%s438 + $0xd0] sm:$0x1]
      %v3998 = vld [vmem:[%s438 + $0xf0] sm:$0x1]
      %v3999 = vld [vmem:[%s438 + $0x11] sm:$0x1]
      %v4000 = vld [vmem:[%s438 + $0x31] sm:$0x1]
      %v4001 = vld [vmem:[%s438 + $0x51] sm:$0x1]
      %v4002 = vld [vmem:[%s438 + $0x71] sm:$0x1]
      %v4003 = vld [vmem:[%s438 + $0x91] sm:$0x1]
      %v4004 = vld [vmem:[%s438 + $0xb1] sm:$0x1]
      %v4005 = vld [vmem:[%s438 + $0xd1] sm:$0x1]
      %v4006 = vld [vmem:[%s438 + $0xf1] sm:$0x1]
      %v4007 = vld [vmem:[%s438 + $0x12] sm:$0x1]
      %v4008 = vld [vmem:[%s438 + $0x32] sm:$0x1]
      %v4009 = vld [vmem:[%s438 + $0x52] sm:$0x1]
      %v4010 = vld [vmem:[%s438 + $0x72] sm:$0x1]
      %v4011 = vld [vmem:[%s438 + $0x92] sm:$0x1]
      %v4012 = vld [vmem:[%s438 + $0xb2] sm:$0x1]
      %v4013 = vld [vmem:[%s438 + $0xd2] sm:$0x1]
      %v4014 = vld [vmem:[%s438 + $0xf2] sm:$0x1]
      %v4015 = vld [vmem:[%s438 + $0x13] sm:$0x1]
      %v4016 = vld [vmem:[%s438 + $0x33] sm:$0x1]
      %v4017 = vld [vmem:[%s438 + $0x53] sm:$0x1]
      %v4018 = vld [vmem:[%s438 + $0x73] sm:$0x1]
      %v4019 = vld [vmem:[%s438 + $0x93] sm:$0x1]
      %v4020 = vld [vmem:[%s438 + $0xb3] sm:$0x1]
      %v4021 = vld [vmem:[%s438 + $0xd3] sm:$0x1]
      %v4022 = vld [vmem:[%s438 + $0xf3] sm:$0x1]
      %v4023 = vld [vmem:[%s438 + $0x14] sm:$0x1]
      %v4024 = vld [vmem:[%s438 + $0x34] sm:$0x1]
      %v4025 = vld [vmem:[%s438 + $0x54] sm:$0x1]
      %v4026 = vld [vmem:[%s438 + $0x74] sm:$0x1]
      %v4027 = vld [vmem:[%s438 + $0x94] sm:$0x1]
      %v4028 = vld [vmem:[%s438 + $0xb4] sm:$0x1]
      %v4029 = vld [vmem:[%s438 + $0xd4] sm:$0x1]
      %v4030 = vld [vmem:[%s438 + $0xf4] sm:$0x1]
      %v4039 = vrot.slane %v3992, 7
      %v4040 = vsel %vm555, %v4039, %v3991
      %v4041 = vrot.slane %v3993, 6
      %v4042 = vsel %vm558, %v4041, %v4040
      %v4043 = vrot.slane %v3994, 5
      %v4044 = vsel %vm561, %v4043, %v4042
      %v4045 = vrot.slane %v3995, 4
      %v4046 = vsel %vm564, %v4045, %v4044
      %v4047 = vrot.slane %v3996, 3
      %v4048 = vsel %vm567, %v4047, %v4046
      %v4049 = vrot.slane %v3997, 2
      %v4050 = vsel %vm570, %v4049, %v4048
      %v4051 = vrot.slane %v3998, 1
      %v4052 = vsel %vm573, %v4051, %v4050
      %v4062 = vrot.slane %v4000, 7
      %v4063 = vsel %vm555, %v4062, %v3999
      %v4064 = vrot.slane %v4001, 6
      %v4065 = vsel %vm558, %v4064, %v4063
      %v4066 = vrot.slane %v4002, 5
      %v4067 = vsel %vm561, %v4066, %v4065
      %v4068 = vrot.slane %v4003, 4
      %v4069 = vsel %vm564, %v4068, %v4067
      %v4070 = vrot.slane %v4004, 3
      %v4071 = vsel %vm567, %v4070, %v4069
      %v4072 = vrot.slane %v4005, 2
      %v4073 = vsel %vm570, %v4072, %v4071
      %v4074 = vrot.slane %v4006, 1
      %v4075 = vsel %vm573, %v4074, %v4073
      %4076 = vrot.lane.b32.xlu0 %v4075, 32
      %v4077 = vpop.permute.xlu0 %4076
      %v4087 = vrot.slane %v4008, 7
      %v4088 = vsel %vm555, %v4087, %v4007
      %v4089 = vrot.slane %v4009, 6
      %v4090 = vsel %vm558, %v4089, %v4088
      %v4091 = vrot.slane %v4010, 5
      %v4092 = vsel %vm561, %v4091, %v4090
      %v4093 = vrot.slane %v4011, 4
      %v4094 = vsel %vm564, %v4093, %v4092
      %v4095 = vrot.slane %v4012, 3
      %v4096 = vsel %vm567, %v4095, %v4094
      %v4097 = vrot.slane %v4013, 2
      %v4098 = vsel %vm570, %v4097, %v4096
      %v4099 = vrot.slane %v4014, 1
      %v4100 = vsel %vm573, %v4099, %v4098
      %4101 = vrot.lane.b32.xlu0 %v4100, 64
      %v4102 = vpop.permute.xlu0 %4101
      %v4112 = vrot.slane %v4016, 7
      %v4113 = vsel %vm555, %v4112, %v4015
      %v4114 = vrot.slane %v4017, 6
      %v4115 = vsel %vm558, %v4114, %v4113
      %v4116 = vrot.slane %v4018, 5
      %v4117 = vsel %vm561, %v4116, %v4115
      %v4118 = vrot.slane %v4019, 4
      %v4119 = vsel %vm564, %v4118, %v4117
      %v4120 = vrot.slane %v4020, 3
      %v4121 = vsel %vm567, %v4120, %v4119
      %v4122 = vrot.slane %v4021, 2
      %v4123 = vsel %vm570, %v4122, %v4121
      %v4124 = vrot.slane %v4022, 1
      %v4125 = vsel %vm573, %v4124, %v4123
      %4126 = vrot.lane.b32.xlu0 %v4125, 96
      %v4127 = vpop.permute.xlu0 %4126
      %v4137 = vrot.slane %v4024, 7
      %v4138 = vsel %vm555, %v4137, %v4023
      %v4139 = vrot.slane %v4025, 6
      %v4140 = vsel %vm558, %v4139, %v4138
      %v4141 = vrot.slane %v4026, 5
      %v4142 = vsel %vm561, %v4141, %v4140
      %v4143 = vrot.slane %v4027, 4
      %v4144 = vsel %vm564, %v4143, %v4142
      %v4145 = vrot.slane %v4028, 3
      %v4146 = vsel %vm567, %v4145, %v4144
      %v4147 = vrot.slane %v4029, 2
      %v4148 = vsel %vm570, %v4147, %v4146
      %v4149 = vrot.slane %v4030, 1
      %v4150 = vsel %vm573, %v4149, %v4148
      %v4151 = vsel %vm673, %v4052, %v4077
      %v4152 = vsel %vm675, %v4151, %v4102
      %v4153 = vsel %vm677, %v4152, %v4127
      %v4154 = vsel %vm673, %v4150, 0
      %4156 = vmatprep.subr.mxu0 %v475
      %4157 = vmatpush1.msra.mxu0 %v474
      %4158 = vmatprep.subr.mxu0 %v473
      %4159 = vmatpush1.msra.mxu0 %v472
      %4160 = vmatprep.subr.mxu0 %v471
      %4161 = vmatpush1.msra.mxu0 %v470
      %4162 = vmatprep.subr.mxu0 %v469
      %4163 = vmatpush1.msra.mxu0 %v468
      %4164 = vmatprep.subr.mxu0 %v467
      %4165 = vmatpush1.msra.mxu0 %v466
      %4166 = vmatprep.subr.mxu0 %v465
      %4167 = vmatpush1.msra.mxu0 %v464
      %4168 = vmatprep.subr.mxu0 %v463
      %4169 = vmatpush1.msra.mxu0 %v462
      %4170 = vmatprep.subr.mxu0 %v461
      %4171 = vmatpush1.msra.mxu0 %v460
      %4172 = vmatprep.subr.mxu0 %v459
      %4173 = vmatpush1.msra.mxu0 %v458
      %4174 = vmatprep.subr.mxu0 %v457
      %4175 = vmatpush1.msra.mxu0 %v456
      %4176 = vmatprep.subr.mxu0 %v455
      %4177 = vmatpush1.msra.mxu0 %v454
      %4178 = vmatprep.subr.mxu0 %v453
      %4179 = vmatpush1.msra.mxu0 %v452
      %4180 = vmatprep.subr.mxu0 %v451
      %4181 = vmatpush1.msra.mxu0 %v450
      %4182 = vmatprep.subr.mxu0 %v449
      %4183 = vmatpush1.msra.mxu0 %v448
      %4184 = vmatprep.subr.mxu0 %v447
      %4185 = vmatpush1.msra.mxu0 %v446
      %4186 = vmatprep.subr.mxu0 %v445
      %4187 = vmatpush1.msra.mxu0 %v444
      %4188 = vmatprep.subr.mxu0 0.0
      %4189 = vmatpush2.msra.mxu0 0.0
      %4190 = vmatprep.subr.mxu0 0.0
      %4191 = vmatpush2.msra.mxu0 0.0
      %4192 = vmatprep.subr.mxu0 0.0
      %4193 = vmatpush2.msra.mxu0 0.0
      %4194 = vmatprep.subr.mxu0 0.0
      %4195 = vmatpush2.msra.mxu0 0.0
      %4196 = vmatprep.subr.mxu0 0.0
      %4197 = vmatpush2.msra.mxu0 0.0
      %4198 = vmatprep.subr.mxu0 0.0
      %4199 = vmatpush2.msra.mxu0 0.0
      %4200 = vmatprep.subr.mxu0 0.0
      %4201 = vmatpush2.msra.mxu0 0.0
      %4202 = vmatprep.subr.mxu0 0.0
      %4203 = vmatpush2.msra.mxu0 0.0
      %4204 = vmatprep.subr.mxu0 0.0
      %4205 = vmatpush2.msra.mxu0 0.0
      %4206 = vmatprep.subr.mxu0 0.0
      %4207 = vmatpush2.msra.mxu0 0.0
      %4208 = vmatprep.subr.mxu0 0.0
      %4209 = vmatpush2.msra.mxu0 0.0
      %4210 = vmatprep.subr.mxu0 0.0
      %4211 = vmatpush2.msra.mxu0 0.0
      %4212 = vmatprep.subr.mxu0 %v483
      %4213 = vmatpush2.msra.mxu0 %v482
      %4214 = vmatprep.subr.mxu0 %v481
      %4215 = vmatpush2.msra.mxu0 %v480
      %4216 = vmatprep.subr.mxu0 %v479
      %4217 = vmatpush2.msra.mxu0 %v478
      %4218 = vmatprep.subr.mxu0 %v477
      %4219 = vmatpush2.msra.mxu0 %v476
      %4220 = vmatprep.mubr.f32.mxu0 %v4154
      %4221 = vmatmul.mubr.f32.gmra.mxu0 %v4153
      %v4222 = vpop.f32.mrf.mxu0
      %v4223 = vadd.f32 %v683, %v4222
      %v4224 = vpop.f32.mrf.mxu0
      %v4225 = vadd.f32 %v687, %v4224
      %4226 = vdwg.mxu0
      %v4227 = vtanh.pop %v4223
      %v4228 = vtanh.pop %v4225
      %v4229 = vld [vmem:[%s438 + $0x15] sm:$0x1]
      %v4230 = vld [vmem:[%s438 + $0x35] sm:$0x1]
      %v4231 = vld [vmem:[%s438 + $0x55] sm:$0x1]
      %v4232 = vld [vmem:[%s438 + $0x75] sm:$0x1]
      %v4233 = vld [vmem:[%s438 + $0x95] sm:$0x1]
      %v4234 = vld [vmem:[%s438 + $0xb5] sm:$0x1]
      %v4235 = vld [vmem:[%s438 + $0xd5] sm:$0x1]
      %v4236 = vld [vmem:[%s438 + $0xf5] sm:$0x1]
      %4238 = vrot.lane.b32.xlu0 %v4100, 32
      %v4239 = vpop.permute.xlu0 %4238
      %4241 = vrot.lane.b32.xlu0 %v4125, 64
      %v4242 = vpop.permute.xlu0 %4241
      %4244 = vrot.lane.b32.xlu0 %v4150, 96
      %v4245 = vpop.permute.xlu0 %4244
      %v4255 = vrot.slane %v4230, 7
      %v4256 = vsel %vm555, %v4255, %v4229
      %v4257 = vrot.slane %v4231, 6
      %v4258 = vsel %vm558, %v4257, %v4256
      %v4259 = vrot.slane %v4232, 5
      %v4260 = vsel %vm561, %v4259, %v4258
      %v4261 = vrot.slane %v4233, 4
      %v4262 = vsel %vm564, %v4261, %v4260
      %v4263 = vrot.slane %v4234, 3
      %v4264 = vsel %vm567, %v4263, %v4262
      %v4265 = vrot.slane %v4235, 2
      %v4266 = vsel %vm570, %v4265, %v4264
      %v4267 = vrot.slane %v4236, 1
      %v4268 = vsel %vm573, %v4267, %v4266
      %v4269 = vsel %vm673, %v4075, %v4239
      %v4270 = vsel %vm675, %v4269, %v4242
      %v4271 = vsel %vm677, %v4270, %v4245
      %v4272 = vsel %vm673, %v4268, 0
      %4274 = vmatprep.subr.mxu0 %v475
      %4275 = vmatpush1.msra.mxu0 %v474
      %4276 = vmatprep.subr.mxu0 %v473
      %4277 = vmatpush1.msra.mxu0 %v472
      %4278 = vmatprep.subr.mxu0 %v471
      %4279 = vmatpush1.msra.mxu0 %v470
      %4280 = vmatprep.subr.mxu0 %v469
      %4281 = vmatpush1.msra.mxu0 %v468
      %4282 = vmatprep.subr.mxu0 %v467
      %4283 = vmatpush1.msra.mxu0 %v466
      %4284 = vmatprep.subr.mxu0 %v465
      %4285 = vmatpush1.msra.mxu0 %v464
      %4286 = vmatprep.subr.mxu0 %v463
      %4287 = vmatpush1.msra.mxu0 %v462
      %4288 = vmatprep.subr.mxu0 %v461
      %4289 = vmatpush1.msra.mxu0 %v460
      %4290 = vmatprep.subr.mxu0 %v459
      %4291 = vmatpush1.msra.mxu0 %v458
      %4292 = vmatprep.subr.mxu0 %v457
      %4293 = vmatpush1.msra.mxu0 %v456
      %4294 = vmatprep.subr.mxu0 %v455
      %4295 = vmatpush1.msra.mxu0 %v454
      %4296 = vmatprep.subr.mxu0 %v453
      %4297 = vmatpush1.msra.mxu0 %v452
      %4298 = vmatprep.subr.mxu0 %v451
      %4299 = vmatpush1.msra.mxu0 %v450
      %4300 = vmatprep.subr.mxu0 %v449
      %4301 = vmatpush1.msra.mxu0 %v448
      %4302 = vmatprep.subr.mxu0 %v447
      %4303 = vmatpush1.msra.mxu0 %v446
      %4304 = vmatprep.subr.mxu0 %v445
      %4305 = vmatpush1.msra.mxu0 %v444
      %4306 = vmatprep.subr.mxu0 0.0
      %4307 = vmatpush2.msra.mxu0 0.0
      %4308 = vmatprep.subr.mxu0 0.0
      %4309 = vmatpush2.msra.mxu0 0.0
      %4310 = vmatprep.subr.mxu0 0.0
      %4311 = vmatpush2.msra.mxu0 0.0
      %4312 = vmatprep.subr.mxu0 0.0
      %4313 = vmatpush2.msra.mxu0 0.0
      %4314 = vmatprep.subr.mxu0 0.0
      %4315 = vmatpush2.msra.mxu0 0.0
      %4316 = vmatprep.subr.mxu0 0.0
      %4317 = vmatpush2.msra.mxu0 0.0
      %4318 = vmatprep.subr.mxu0 0.0
      %4319 = vmatpush2.msra.mxu0 0.0
      %4320 = vmatprep.subr.mxu0 0.0
      %4321 = vmatpush2.msra.mxu0 0.0
      %4322 = vmatprep.subr.mxu0 0.0
      %4323 = vmatpush2.msra.mxu0 0.0
      %4324 = vmatprep.subr.mxu0 0.0
      %4325 = vmatpush2.msra.mxu0 0.0
      %4326 = vmatprep.subr.mxu0 0.0
      %4327 = vmatpush2.msra.mxu0 0.0
      %4328 = vmatprep.subr.mxu0 0.0
      %4329 = vmatpush2.msra.mxu0 0.0
      %4330 = vmatprep.subr.mxu0 %v483
      %4331 = vmatpush2.msra.mxu0 %v482
      %4332 = vmatprep.subr.mxu0 %v481
      %4333 = vmatpush2.msra.mxu0 %v480
      %4334 = vmatprep.subr.mxu0 %v479
      %4335 = vmatpush2.msra.mxu0 %v478
      %4336 = vmatprep.subr.mxu0 %v477
      %4337 = vmatpush2.msra.mxu0 %v476
      %4338 = vmatprep.mubr.f32.mxu0 %v4272
      %4339 = vmatmul.mubr.f32.gmra.mxu0 %v4271
      %v4340 = vpop.f32.mrf.mxu0
      %v4341 = vadd.f32 %v683, %v4340
      %v4342 = vpop.f32.mrf.mxu0
      %v4343 = vadd.f32 %v687, %v4342
      %4344 = vdwg.mxu0
      %v4345 = vtanh.pop %v4341
      %v4346 = vtanh.pop %v4343
      %v4347 = vadd.f32 %v4227, %v4345
      %v4348 = vadd.f32 %v4228, %v4346
      %v4350 = vsel %vm885, %v4348, 0
      %4352 = vmatprep.subr.mxu0 0.0
      %4353 = vmatpush1.msra.mxu0 %v500
      %4354 = vmatprep.subr.mxu0 0.0
      %4355 = vmatpush1.msra.mxu0 %v499
      %4356 = vmatprep.subr.mxu0 0.0
      %4357 = vmatpush1.msra.mxu0 %v498
      %4358 = vmatprep.subr.mxu0 0.0
      %4359 = vmatpush1.msra.mxu0 %v497
      %4360 = vmatprep.subr.mxu0 0.0
      %4361 = vmatpush1.msra.mxu0 %v496
      %4362 = vmatprep.subr.mxu0 0.0
      %4363 = vmatpush1.msra.mxu0 %v495
      %4364 = vmatprep.subr.mxu0 0.0
      %4365 = vmatpush1.msra.mxu0 %v494
      %4366 = vmatprep.subr.mxu0 0.0
      %4367 = vmatpush1.msra.mxu0 %v493
      %4368 = vmatprep.subr.mxu0 0.0
      %4369 = vmatpush1.msra.mxu0 %v492
      %4370 = vmatprep.subr.mxu0 0.0
      %4371 = vmatpush1.msra.mxu0 %v491
      %4372 = vmatprep.subr.mxu0 0.0
      %4373 = vmatpush1.msra.mxu0 %v490
      %4374 = vmatprep.subr.mxu0 0.0
      %4375 = vmatpush1.msra.mxu0 %v489
      %4376 = vmatprep.subr.mxu0 0.0
      %4377 = vmatpush1.msra.mxu0 %v488
      %4378 = vmatprep.subr.mxu0 0.0
      %4379 = vmatpush1.msra.mxu0 %v487
      %4380 = vmatprep.subr.mxu0 0.0
      %4381 = vmatpush1.msra.mxu0 %v486
      %4382 = vmatprep.subr.mxu0 0.0
      %4383 = vmatpush1.msra.mxu0 %v485
      %4384 = vmatprep.subr.mxu0 0.0
      %4385 = vmatpush2.msra.mxu0 0.0
      %4386 = vmatprep.subr.mxu0 0.0
      %4387 = vmatpush2.msra.mxu0 0.0
      %4388 = vmatprep.subr.mxu0 0.0
      %4389 = vmatpush2.msra.mxu0 0.0
      %4390 = vmatprep.subr.mxu0 0.0
      %4391 = vmatpush2.msra.mxu0 0.0
      %4392 = vmatprep.subr.mxu0 0.0
      %4393 = vmatpush2.msra.mxu0 0.0
      %4394 = vmatprep.subr.mxu0 0.0
      %4395 = vmatpush2.msra.mxu0 0.0
      %4396 = vmatprep.subr.mxu0 0.0
      %4397 = vmatpush2.msra.mxu0 0.0
      %4398 = vmatprep.subr.mxu0 0.0
      %4399 = vmatpush2.msra.mxu0 0.0
      %4400 = vmatprep.subr.mxu0 0.0
      %4401 = vmatpush2.msra.mxu0 0.0
      %4402 = vmatprep.subr.mxu0 0.0
      %4403 = vmatpush2.msra.mxu0 0.0
      %4404 = vmatprep.subr.mxu0 0.0
      %4405 = vmatpush2.msra.mxu0 0.0
      %4406 = vmatprep.subr.mxu0 0.0
      %4407 = vmatpush2.msra.mxu0 %v505
      %4408 = vmatprep.subr.mxu0 0.0
      %4409 = vmatpush2.msra.mxu0 %v504
      %4410 = vmatprep.subr.mxu0 0.0
      %4411 = vmatpush2.msra.mxu0 %v503
      %4412 = vmatprep.subr.mxu0 0.0
      %4413 = vmatpush2.msra.mxu0 %v502
      %4414 = vmatprep.subr.mxu0 0.0
      %4415 = vmatpush2.msra.mxu0 %v501
      %4416 = vmatprep.mubr.f32.mxu0 %v4350
      %4417 = vmatmul.mubr.f32.gmra.mxu0 %v4347
      %v4418 = vpop.f32.mrf.mxu0
      %v4419 = vadd.f32 0.0, %v4418
      %v4420 = vpop.f32.mrf.mxu0
      %4421 = vdwg.mxu0
      %s4422 = scalar_lea.vmem [#allocation2], 64
      %4423 = vst [vmem:[%s4422] sm:$0xff] %v4419
      %v4424 = vld [vmem:[%s438 + $0x12] sm:$0x1]
      %v4425 = vld [vmem:[%s438 + $0x32] sm:$0x1]
      %v4426 = vld [vmem:[%s438 + $0x52] sm:$0x1]
      %v4427 = vld [vmem:[%s438 + $0x72] sm:$0x1]
      %v4428 = vld [vmem:[%s438 + $0x92] sm:$0x1]
      %v4429 = vld [vmem:[%s438 + $0xb2] sm:$0x1]
      %v4430 = vld [vmem:[%s438 + $0xd2] sm:$0x1]
      %v4431 = vld [vmem:[%s438 + $0xf2] sm:$0x1]
      %v4432 = vld [vmem:[%s438 + $0x13] sm:$0x1]
      %v4433 = vld [vmem:[%s438 + $0x33] sm:$0x1]
      %v4434 = vld [vmem:[%s438 + $0x53] sm:$0x1]
      %v4435 = vld [vmem:[%s438 + $0x73] sm:$0x1]
      %v4436 = vld [vmem:[%s438 + $0x93] sm:$0x1]
      %v4437 = vld [vmem:[%s438 + $0xb3] sm:$0x1]
      %v4438 = vld [vmem:[%s438 + $0xd3] sm:$0x1]
      %v4439 = vld [vmem:[%s438 + $0xf3] sm:$0x1]
      %v4440 = vld [vmem:[%s438 + $0x14] sm:$0x1]
      %v4441 = vld [vmem:[%s438 + $0x34] sm:$0x1]
      %v4442 = vld [vmem:[%s438 + $0x54] sm:$0x1]
      %v4443 = vld [vmem:[%s438 + $0x74] sm:$0x1]
      %v4444 = vld [vmem:[%s438 + $0x94] sm:$0x1]
      %v4445 = vld [vmem:[%s438 + $0xb4] sm:$0x1]
      %v4446 = vld [vmem:[%s438 + $0xd4] sm:$0x1]
      %v4447 = vld [vmem:[%s438 + $0xf4] sm:$0x1]
      %v4448 = vld [vmem:[%s438 + $0x15] sm:$0x1]
      %v4449 = vld [vmem:[%s438 + $0x35] sm:$0x1]
      %v4450 = vld [vmem:[%s438 + $0x55] sm:$0x1]
      %v4451 = vld [vmem:[%s438 + $0x75] sm:$0x1]
      %v4452 = vld [vmem:[%s438 + $0x95] sm:$0x1]
      %v4453 = vld [vmem:[%s438 + $0xb5] sm:$0x1]
      %v4454 = vld [vmem:[%s438 + $0xd5] sm:$0x1]
      %v4455 = vld [vmem:[%s438 + $0xf5] sm:$0x1]
      %v4456 = vld [vmem:[%s438 + $0x16] sm:$0x1]
      %v4457 = vld [vmem:[%s438 + $0x36] sm:$0x1]
      %v4458 = vld [vmem:[%s438 + $0x56] sm:$0x1]
      %v4459 = vld [vmem:[%s438 + $0x76] sm:$0x1]
      %v4460 = vld [vmem:[%s438 + $0x96] sm:$0x1]
      %v4461 = vld [vmem:[%s438 + $0xb6] sm:$0x1]
      %v4462 = vld [vmem:[%s438 + $0xd6] sm:$0x1]
      %v4463 = vld [vmem:[%s438 + $0xf6] sm:$0x1]
      %v4472 = vrot.slane %v4425, 7
      %v4473 = vsel %vm555, %v4472, %v4424
      %v4474 = vrot.slane %v4426, 6
      %v4475 = vsel %vm558, %v4474, %v4473
      %v4476 = vrot.slane %v4427, 5
      %v4477 = vsel %vm561, %v4476, %v4475
      %v4478 = vrot.slane %v4428, 4
      %v4479 = vsel %vm564, %v4478, %v4477
      %v4480 = vrot.slane %v4429, 3
      %v4481 = vsel %vm567, %v4480, %v4479
      %v4482 = vrot.slane %v4430, 2
      %v4483 = vsel %vm570, %v4482, %v4481
      %v4484 = vrot.slane %v4431, 1
      %v4485 = vsel %vm573, %v4484, %v4483
      %v4495 = vrot.slane %v4433, 7
      %v4496 = vsel %vm555, %v4495, %v4432
      %v4497 = vrot.slane %v4434, 6
      %v4498 = vsel %vm558, %v4497, %v4496
      %v4499 = vrot.slane %v4435, 5
      %v4500 = vsel %vm561, %v4499, %v4498
      %v4501 = vrot.slane %v4436, 4
      %v4502 = vsel %vm564, %v4501, %v4500
      %v4503 = vrot.slane %v4437, 3
      %v4504 = vsel %vm567, %v4503, %v4502
      %v4505 = vrot.slane %v4438, 2
      %v4506 = vsel %vm570, %v4505, %v4504
      %v4507 = vrot.slane %v4439, 1
      %v4508 = vsel %vm573, %v4507, %v4506
      %4509 = vrot.lane.b32.xlu0 %v4508, 32
      %v4510 = vpop.permute.xlu0 %4509
      %v4520 = vrot.slane %v4441, 7
      %v4521 = vsel %vm555, %v4520, %v4440
      %v4522 = vrot.slane %v4442, 6
      %v4523 = vsel %vm558, %v4522, %v4521
      %v4524 = vrot.slane %v4443, 5
      %v4525 = vsel %vm561, %v4524, %v4523
      %v4526 = vrot.slane %v4444, 4
      %v4527 = vsel %vm564, %v4526, %v4525
      %v4528 = vrot.slane %v4445, 3
      %v4529 = vsel %vm567, %v4528, %v4527
      %v4530 = vrot.slane %v4446, 2
      %v4531 = vsel %vm570, %v4530, %v4529
      %v4532 = vrot.slane %v4447, 1
      %v4533 = vsel %vm573, %v4532, %v4531
      %4534 = vrot.lane.b32.xlu0 %v4533, 64
      %v4535 = vpop.permute.xlu0 %4534
      %v4545 = vrot.slane %v4449, 7
      %v4546 = vsel %vm555, %v4545, %v4448
      %v4547 = vrot.slane %v4450, 6
      %v4548 = vsel %vm558, %v4547, %v4546
      %v4549 = vrot.slane %v4451, 5
      %v4550 = vsel %vm561, %v4549, %v4548
      %v4551 = vrot.slane %v4452, 4
      %v4552 = vsel %vm564, %v4551, %v4550
      %v4553 = vrot.slane %v4453, 3
      %v4554 = vsel %vm567, %v4553, %v4552
      %v4555 = vrot.slane %v4454, 2
      %v4556 = vsel %vm570, %v4555, %v4554
      %v4557 = vrot.slane %v4455, 1
      %v4558 = vsel %vm573, %v4557, %v4556
      %4559 = vrot.lane.b32.xlu0 %v4558, 96
      %v4560 = vpop.permute.xlu0 %4559
      %v4570 = vrot.slane %v4457, 7
      %v4571 = vsel %vm555, %v4570, %v4456
      %v4572 = vrot.slane %v4458, 6
      %v4573 = vsel %vm558, %v4572, %v4571
      %v4574 = vrot.slane %v4459, 5
      %v4575 = vsel %vm561, %v4574, %v4573
      %v4576 = vrot.slane %v4460, 4
      %v4577 = vsel %vm564, %v4576, %v4575
      %v4578 = vrot.slane %v4461, 3
      %v4579 = vsel %vm567, %v4578, %v4577
      %v4580 = vrot.slane %v4462, 2
      %v4581 = vsel %vm570, %v4580, %v4579
      %v4582 = vrot.slane %v4463, 1
      %v4583 = vsel %vm573, %v4582, %v4581
      %v4584 = vsel %vm673, %v4485, %v4510
      %v4585 = vsel %vm675, %v4584, %v4535
      %v4586 = vsel %vm677, %v4585, %v4560
      %v4587 = vsel %vm673, %v4583, 0
      %4589 = vmatprep.subr.mxu0 %v475
      %4590 = vmatpush1.msra.mxu0 %v474
      %4591 = vmatprep.subr.mxu0 %v473
      %4592 = vmatpush1.msra.mxu0 %v472
      %4593 = vmatprep.subr.mxu0 %v471
      %4594 = vmatpush1.msra.mxu0 %v470
      %4595 = vmatprep.subr.mxu0 %v469
      %4596 = vmatpush1.msra.mxu0 %v468
      %4597 = vmatprep.subr.mxu0 %v467
      %4598 = vmatpush1.msra.mxu0 %v466
      %4599 = vmatprep.subr.mxu0 %v465
      %4600 = vmatpush1.msra.mxu0 %v464
      %4601 = vmatprep.subr.mxu0 %v463
      %4602 = vmatpush1.msra.mxu0 %v462
      %4603 = vmatprep.subr.mxu0 %v461
      %4604 = vmatpush1.msra.mxu0 %v460
      %4605 = vmatprep.subr.mxu0 %v459
      %4606 = vmatpush1.msra.mxu0 %v458
      %4607 = vmatprep.subr.mxu0 %v457
      %4608 = vmatpush1.msra.mxu0 %v456
      %4609 = vmatprep.subr.mxu0 %v455
      %4610 = vmatpush1.msra.mxu0 %v454
      %4611 = vmatprep.subr.mxu0 %v453
      %4612 = vmatpush1.msra.mxu0 %v452
      %4613 = vmatprep.subr.mxu0 %v451
      %4614 = vmatpush1.msra.mxu0 %v450
      %4615 = vmatprep.subr.mxu0 %v449
      %4616 = vmatpush1.msra.mxu0 %v448
      %4617 = vmatprep.subr.mxu0 %v447
      %4618 = vmatpush1.msra.mxu0 %v446
      %4619 = vmatprep.subr.mxu0 %v445
      %4620 = vmatpush1.msra.mxu0 %v444
      %4621 = vmatprep.subr.mxu0 0.0
      %4622 = vmatpush2.msra.mxu0 0.0
      %4623 = vmatprep.subr.mxu0 0.0
      %4624 = vmatpush2.msra.mxu0 0.0
      %4625 = vmatprep.subr.mxu0 0.0
      %4626 = vmatpush2.msra.mxu0 0.0
      %4627 = vmatprep.subr.mxu0 0.0
      %4628 = vmatpush2.msra.mxu0 0.0
      %4629 = vmatprep.subr.mxu0 0.0
      %4630 = vmatpush2.msra.mxu0 0.0
      %4631 = vmatprep.subr.mxu0 0.0
      %4632 = vmatpush2.msra.mxu0 0.0
      %4633 = vmatprep.subr.mxu0 0.0
      %4634 = vmatpush2.msra.mxu0 0.0
      %4635 = vmatprep.subr.mxu0 0.0
      %4636 = vmatpush2.msra.mxu0 0.0
      %4637 = vmatprep.subr.mxu0 0.0
      %4638 = vmatpush2.msra.mxu0 0.0
      %4639 = vmatprep.subr.mxu0 0.0
      %4640 = vmatpush2.msra.mxu0 0.0
      %4641 = vmatprep.subr.mxu0 0.0
      %4642 = vmatpush2.msra.mxu0 0.0
      %4643 = vmatprep.subr.mxu0 0.0
      %4644 = vmatpush2.msra.mxu0 0.0
      %4645 = vmatprep.subr.mxu0 %v483
      %4646 = vmatpush2.msra.mxu0 %v482
      %4647 = vmatprep.subr.mxu0 %v481
      %4648 = vmatpush2.msra.mxu0 %v480
      %4649 = vmatprep.subr.mxu0 %v479
      %4650 = vmatpush2.msra.mxu0 %v478
      %4651 = vmatprep.subr.mxu0 %v477
      %4652 = vmatpush2.msra.mxu0 %v476
      %4653 = vmatprep.mubr.f32.mxu0 %v4587
      %4654 = vmatmul.mubr.f32.gmra.mxu0 %v4586
      %v4655 = vpop.f32.mrf.mxu0
      %v4656 = vadd.f32 %v683, %v4655
      %v4657 = vpop.f32.mrf.mxu0
      %v4658 = vadd.f32 %v687, %v4657
      %4659 = vdwg.mxu0
      %v4660 = vtanh.pop %v4656
      %v4661 = vtanh.pop %v4658
      %v4662 = vld [vmem:[%s438 + $0x17] sm:$0x1]
      %v4663 = vld [vmem:[%s438 + $0x37] sm:$0x1]
      %v4664 = vld [vmem:[%s438 + $0x57] sm:$0x1]
      %v4665 = vld [vmem:[%s438 + $0x77] sm:$0x1]
      %v4666 = vld [vmem:[%s438 + $0x97] sm:$0x1]
      %v4667 = vld [vmem:[%s438 + $0xb7] sm:$0x1]
      %v4668 = vld [vmem:[%s438 + $0xd7] sm:$0x1]
      %v4669 = vld [vmem:[%s438 + $0xf7] sm:$0x1]
      %4671 = vrot.lane.b32.xlu0 %v4533, 32
      %v4672 = vpop.permute.xlu0 %4671
      %4674 = vrot.lane.b32.xlu0 %v4558, 64
      %v4675 = vpop.permute.xlu0 %4674
      %4677 = vrot.lane.b32.xlu0 %v4583, 96
      %v4678 = vpop.permute.xlu0 %4677
      %v4688 = vrot.slane %v4663, 7
      %v4689 = vsel %vm555, %v4688, %v4662
      %v4690 = vrot.slane %v4664, 6
      %v4691 = vsel %vm558, %v4690, %v4689
      %v4692 = vrot.slane %v4665, 5
      %v4693 = vsel %vm561, %v4692, %v4691
      %v4694 = vrot.slane %v4666, 4
      %v4695 = vsel %vm564, %v4694, %v4693
      %v4696 = vrot.slane %v4667, 3
      %v4697 = vsel %vm567, %v4696, %v4695
      %v4698 = vrot.slane %v4668, 2
      %v4699 = vsel %vm570, %v4698, %v4697
      %v4700 = vrot.slane %v4669, 1
      %v4701 = vsel %vm573, %v4700, %v4699
      %v4702 = vsel %vm673, %v4508, %v4672
      %v4703 = vsel %vm675, %v4702, %v4675
      %v4704 = vsel %vm677, %v4703, %v4678
      %v4705 = vsel %vm673, %v4701, 0
      %4707 = vmatprep.subr.mxu0 %v475
      %4708 = vmatpush1.msra.mxu0 %v474
      %4709 = vmatprep.subr.mxu0 %v473
      %4710 = vmatpush1.msra.mxu0 %v472
      %4711 = vmatprep.subr.mxu0 %v471
      %4712 = vmatpush1.msra.mxu0 %v470
      %4713 = vmatprep.subr.mxu0 %v469
      %4714 = vmatpush1.msra.mxu0 %v468
      %4715 = vmatprep.subr.mxu0 %v467
      %4716 = vmatpush1.msra.mxu0 %v466
      %4717 = vmatprep.subr.mxu0 %v465
      %4718 = vmatpush1.msra.mxu0 %v464
      %4719 = vmatprep.subr.mxu0 %v463
      %4720 = vmatpush1.msra.mxu0 %v462
      %4721 = vmatprep.subr.mxu0 %v461
      %4722 = vmatpush1.msra.mxu0 %v460
      %4723 = vmatprep.subr.mxu0 %v459
      %4724 = vmatpush1.msra.mxu0 %v458
      %4725 = vmatprep.subr.mxu0 %v457
      %4726 = vmatpush1.msra.mxu0 %v456
      %4727 = vmatprep.subr.mxu0 %v455
      %4728 = vmatpush1.msra.mxu0 %v454
      %4729 = vmatprep.subr.mxu0 %v453
      %4730 = vmatpush1.msra.mxu0 %v452
      %4731 = vmatprep.subr.mxu0 %v451
      %4732 = vmatpush1.msra.mxu0 %v450
      %4733 = vmatprep.subr.mxu0 %v449
      %4734 = vmatpush1.msra.mxu0 %v448
      %4735 = vmatprep.subr.mxu0 %v447
      %4736 = vmatpush1.msra.mxu0 %v446
      %4737 = vmatprep.subr.mxu0 %v445
      %4738 = vmatpush1.msra.mxu0 %v444
      %4739 = vmatprep.subr.mxu0 0.0
      %4740 = vmatpush2.msra.mxu0 0.0
      %4741 = vmatprep.subr.mxu0 0.0
      %4742 = vmatpush2.msra.mxu0 0.0
      %4743 = vmatprep.subr.mxu0 0.0
      %4744 = vmatpush2.msra.mxu0 0.0
      %4745 = vmatprep.subr.mxu0 0.0
      %4746 = vmatpush2.msra.mxu0 0.0
      %4747 = vmatprep.subr.mxu0 0.0
      %4748 = vmatpush2.msra.mxu0 0.0
      %4749 = vmatprep.subr.mxu0 0.0
      %4750 = vmatpush2.msra.mxu0 0.0
      %4751 = vmatprep.subr.mxu0 0.0
      %4752 = vmatpush2.msra.mxu0 0.0
      %4753 = vmatprep.subr.mxu0 0.0
      %4754 = vmatpush2.msra.mxu0 0.0
      %4755 = vmatprep.subr.mxu0 0.0
      %4756 = vmatpush2.msra.mxu0 0.0
      %4757 = vmatprep.subr.mxu0 0.0
      %4758 = vmatpush2.msra.mxu0 0.0
      %4759 = vmatprep.subr.mxu0 0.0
      %4760 = vmatpush2.msra.mxu0 0.0
      %4761 = vmatprep.subr.mxu0 0.0
      %4762 = vmatpush2.msra.mxu0 0.0
      %4763 = vmatprep.subr.mxu0 %v483
      %4764 = vmatpush2.msra.mxu0 %v482
      %4765 = vmatprep.subr.mxu0 %v481
      %4766 = vmatpush2.msra.mxu0 %v480
      %4767 = vmatprep.subr.mxu0 %v479
      %4768 = vmatpush2.msra.mxu0 %v478
      %4769 = vmatprep.subr.mxu0 %v477
      %4770 = vmatpush2.msra.mxu0 %v476
      %4771 = vmatprep.mubr.f32.mxu0 %v4705
      %4772 = vmatmul.mubr.f32.gmra.mxu0 %v4704
      %v4773 = vpop.f32.mrf.mxu0
      %v4774 = vadd.f32 %v683, %v4773
      %v4775 = vpop.f32.mrf.mxu0
      %v4776 = vadd.f32 %v687, %v4775
      %4777 = vdwg.mxu0
      %v4778 = vtanh.pop %v4774
      %v4779 = vtanh.pop %v4776
      %v4780 = vadd.f32 %v4660, %v4778
      %v4781 = vadd.f32 %v4661, %v4779
      %v4783 = vsel %vm885, %v4781, 0
      %4785 = vmatprep.subr.mxu0 0.0
      %4786 = vmatpush1.msra.mxu0 %v500
      %4787 = vmatprep.subr.mxu0 0.0
      %4788 = vmatpush1.msra.mxu0 %v499
      %4789 = vmatprep.subr.mxu0 0.0
      %4790 = vmatpush1.msra.mxu0 %v498
      %4791 = vmatprep.subr.mxu0 0.0
      %4792 = vmatpush1.msra.mxu0 %v497
      %4793 = vmatprep.subr.mxu0 0.0
      %4794 = vmatpush1.msra.mxu0 %v496
      %4795 = vmatprep.subr.mxu0 0.0
      %4796 = vmatpush1.msra.mxu0 %v495
      %4797 = vmatprep.subr.mxu0 0.0
      %4798 = vmatpush1.msra.mxu0 %v494
      %4799 = vmatprep.subr.mxu0 0.0
      %4800 = vmatpush1.msra.mxu0 %v493
      %4801 = vmatprep.subr.mxu0 0.0
      %4802 = vmatpush1.msra.mxu0 %v492
      %4803 = vmatprep.subr.mxu0 0.0
      %4804 = vmatpush1.msra.mxu0 %v491
      %4805 = vmatprep.subr.mxu0 0.0
      %4806 = vmatpush1.msra.mxu0 %v490
      %4807 = vmatprep.subr.mxu0 0.0
      %4808 = vmatpush1.msra.mxu0 %v489
      %4809 = vmatprep.subr.mxu0 0.0
      %4810 = vmatpush1.msra.mxu0 %v488
      %4811 = vmatprep.subr.mxu0 0.0
      %4812 = vmatpush1.msra.mxu0 %v487
      %4813 = vmatprep.subr.mxu0 0.0
      %4814 = vmatpush1.msra.mxu0 %v486
      %4815 = vmatprep.subr.mxu0 0.0
      %4816 = vmatpush1.msra.mxu0 %v485
      %4817 = vmatprep.subr.mxu0 0.0
      %4818 = vmatpush2.msra.mxu0 0.0
      %4819 = vmatprep.subr.mxu0 0.0
      %4820 = vmatpush2.msra.mxu0 0.0
      %4821 = vmatprep.subr.mxu0 0.0
      %4822 = vmatpush2.msra.mxu0 0.0
      %4823 = vmatprep.subr.mxu0 0.0
      %4824 = vmatpush2.msra.mxu0 0.0
      %4825 = vmatprep.subr.mxu0 0.0
      %4826 = vmatpush2.msra.mxu0 0.0
      %4827 = vmatprep.subr.mxu0 0.0
      %4828 = vmatpush2.msra.mxu0 0.0
      %4829 = vmatprep.subr.mxu0 0.0
      %4830 = vmatpush2.msra.mxu0 0.0
      %4831 = vmatprep.subr.mxu0 0.0
      %4832 = vmatpush2.msra.mxu0 0.0
      %4833 = vmatprep.subr.mxu0 0.0
      %4834 = vmatpush2.msra.mxu0 0.0
      %4835 = vmatprep.subr.mxu0 0.0
      %4836 = vmatpush2.msra.mxu0 0.0
      %4837 = vmatprep.subr.mxu0 0.0
      %4838 = vmatpush2.msra.mxu0 0.0
      %4839 = vmatprep.subr.mxu0 0.0
      %4840 = vmatpush2.msra.mxu0 %v505
      %4841 = vmatprep.subr.mxu0 0.0
      %4842 = vmatpush2.msra.mxu0 %v504
      %4843 = vmatprep.subr.mxu0 0.0
      %4844 = vmatpush2.msra.mxu0 %v503
      %4845 = vmatprep.subr.mxu0 0.0
      %4846 = vmatpush2.msra.mxu0 %v502
      %4847 = vmatprep.subr.mxu0 0.0
      %4848 = vmatpush2.msra.mxu0 %v501
      %4849 = vmatprep.mubr.f32.mxu0 %v4783
      %4850 = vmatmul.mubr.f32.gmra.mxu0 %v4780
      %v4851 = vpop.f32.mrf.mxu0
      %v4852 = vadd.f32 0.0, %v4851
      %v4853 = vpop.f32.mrf.mxu0
      %4854 = vdwg.mxu0
      %s4855 = scalar_lea.vmem [#allocation2], 72
      %4856 = vst [vmem:[%s4855] sm:$0xff] %v4852
      %v4857 = vld [vmem:[%s438 + $0x14] sm:$0x1]
      %v4858 = vld [vmem:[%s438 + $0x34] sm:$0x1]
      %v4859 = vld [vmem:[%s438 + $0x54] sm:$0x1]
      %v4860 = vld [vmem:[%s438 + $0x74] sm:$0x1]
      %v4861 = vld [vmem:[%s438 + $0x94] sm:$0x1]
      %v4862 = vld [vmem:[%s438 + $0xb4] sm:$0x1]
      %v4863 = vld [vmem:[%s438 + $0xd4] sm:$0x1]
      %v4864 = vld [vmem:[%s438 + $0xf4] sm:$0x1]
      %v4865 = vld [vmem:[%s438 + $0x15] sm:$0x1]
      %v4866 = vld [vmem:[%s438 + $0x35] sm:$0x1]
      %v4867 = vld [vmem:[%s438 + $0x55] sm:$0x1]
      %v4868 = vld [vmem:[%s438 + $0x75] sm:$0x1]
      %v4869 = vld [vmem:[%s438 + $0x95] sm:$0x1]
      %v4870 = vld [vmem:[%s438 + $0xb5] sm:$0x1]
      %v4871 = vld [vmem:[%s438 + $0xd5] sm:$0x1]
      %v4872 = vld [vmem:[%s438 + $0xf5] sm:$0x1]
      %v4873 = vld [vmem:[%s438 + $0x16] sm:$0x1]
      %v4874 = vld [vmem:[%s438 + $0x36] sm:$0x1]
      %v4875 = vld [vmem:[%s438 + $0x56] sm:$0x1]
      %v4876 = vld [vmem:[%s438 + $0x76] sm:$0x1]
      %v4877 = vld [vmem:[%s438 + $0x96] sm:$0x1]
      %v4878 = vld [vmem:[%s438 + $0xb6] sm:$0x1]
      %v4879 = vld [vmem:[%s438 + $0xd6] sm:$0x1]
      %v4880 = vld [vmem:[%s438 + $0xf6] sm:$0x1]
      %v4881 = vld [vmem:[%s438 + $0x17] sm:$0x1]
      %v4882 = vld [vmem:[%s438 + $0x37] sm:$0x1]
      %v4883 = vld [vmem:[%s438 + $0x57] sm:$0x1]
      %v4884 = vld [vmem:[%s438 + $0x77] sm:$0x1]
      %v4885 = vld [vmem:[%s438 + $0x97] sm:$0x1]
      %v4886 = vld [vmem:[%s438 + $0xb7] sm:$0x1]
      %v4887 = vld [vmem:[%s438 + $0xd7] sm:$0x1]
      %v4888 = vld [vmem:[%s438 + $0xf7] sm:$0x1]
      %v4889 = vld [vmem:[%s438 + $0x18] sm:$0x1]
      %v4890 = vld [vmem:[%s438 + $0x38] sm:$0x1]
      %v4891 = vld [vmem:[%s438 + $0x58] sm:$0x1]
      %v4892 = vld [vmem:[%s438 + $0x78] sm:$0x1]
      %v4893 = vld [vmem:[%s438 + $0x98] sm:$0x1]
      %v4894 = vld [vmem:[%s438 + $0xb8] sm:$0x1]
      %v4895 = vld [vmem:[%s438 + $0xd8] sm:$0x1]
      %v4896 = vld [vmem:[%s438 + $0xf8] sm:$0x1]
      %v4905 = vrot.slane %v4858, 7
      %v4906 = vsel %vm555, %v4905, %v4857
      %v4907 = vrot.slane %v4859, 6
      %v4908 = vsel %vm558, %v4907, %v4906
      %v4909 = vrot.slane %v4860, 5
      %v4910 = vsel %vm561, %v4909, %v4908
      %v4911 = vrot.slane %v4861, 4
      %v4912 = vsel %vm564, %v4911, %v4910
      %v4913 = vrot.slane %v4862, 3
      %v4914 = vsel %vm567, %v4913, %v4912
      %v4915 = vrot.slane %v4863, 2
      %v4916 = vsel %vm570, %v4915, %v4914
      %v4917 = vrot.slane %v4864, 1
      %v4918 = vsel %vm573, %v4917, %v4916
      %v4928 = vrot.slane %v4866, 7
      %v4929 = vsel %vm555, %v4928, %v4865
      %v4930 = vrot.slane %v4867, 6
      %v4931 = vsel %vm558, %v4930, %v4929
      %v4932 = vrot.slane %v4868, 5
      %v4933 = vsel %vm561, %v4932, %v4931
      %v4934 = vrot.slane %v4869, 4
      %v4935 = vsel %vm564, %v4934, %v4933
      %v4936 = vrot.slane %v4870, 3
      %v4937 = vsel %vm567, %v4936, %v4935
      %v4938 = vrot.slane %v4871, 2
      %v4939 = vsel %vm570, %v4938, %v4937
      %v4940 = vrot.slane %v4872, 1
      %v4941 = vsel %vm573, %v4940, %v4939
      %4942 = vrot.lane.b32.xlu0 %v4941, 32
      %v4943 = vpop.permute.xlu0 %4942
      %v4953 = vrot.slane %v4874, 7
      %v4954 = vsel %vm555, %v4953, %v4873
      %v4955 = vrot.slane %v4875, 6
      %v4956 = vsel %vm558, %v4955, %v4954
      %v4957 = vrot.slane %v4876, 5
      %v4958 = vsel %vm561, %v4957, %v4956
      %v4959 = vrot.slane %v4877, 4
      %v4960 = vsel %vm564, %v4959, %v4958
      %v4961 = vrot.slane %v4878, 3
      %v4962 = vsel %vm567, %v4961, %v4960
      %v4963 = vrot.slane %v4879, 2
      %v4964 = vsel %vm570, %v4963, %v4962
      %v4965 = vrot.slane %v4880, 1
      %v4966 = vsel %vm573, %v4965, %v4964
      %4967 = vrot.lane.b32.xlu0 %v4966, 64
      %v4968 = vpop.permute.xlu0 %4967
      %v4978 = vrot.slane %v4882, 7
      %v4979 = vsel %vm555, %v4978, %v4881
      %v4980 = vrot.slane %v4883, 6
      %v4981 = vsel %vm558, %v4980, %v4979
      %v4982 = vrot.slane %v4884, 5
      %v4983 = vsel %vm561, %v4982, %v4981
      %v4984 = vrot.slane %v4885, 4
      %v4985 = vsel %vm564, %v4984, %v4983
      %v4986 = vrot.slane %v4886, 3
      %v4987 = vsel %vm567, %v4986, %v4985
      %v4988 = vrot.slane %v4887, 2
      %v4989 = vsel %vm570, %v4988, %v4987
      %v4990 = vrot.slane %v4888, 1
      %v4991 = vsel %vm573, %v4990, %v4989
      %4992 = vrot.lane.b32.xlu0 %v4991, 96
      %v4993 = vpop.permute.xlu0 %4992
      %v5003 = vrot.slane %v4890, 7
      %v5004 = vsel %vm555, %v5003, %v4889
      %v5005 = vrot.slane %v4891, 6
      %v5006 = vsel %vm558, %v5005, %v5004
      %v5007 = vrot.slane %v4892, 5
      %v5008 = vsel %vm561, %v5007, %v5006
      %v5009 = vrot.slane %v4893, 4
      %v5010 = vsel %vm564, %v5009, %v5008
      %v5011 = vrot.slane %v4894, 3
      %v5012 = vsel %vm567, %v5011, %v5010
      %v5013 = vrot.slane %v4895, 2
      %v5014 = vsel %vm570, %v5013, %v5012
      %v5015 = vrot.slane %v4896, 1
      %v5016 = vsel %vm573, %v5015, %v5014
      %v5017 = vsel %vm673, %v4918, %v4943
      %v5018 = vsel %vm675, %v5017, %v4968
      %v5019 = vsel %vm677, %v5018, %v4993
      %v5020 = vsel %vm673, %v5016, 0
      %5022 = vmatprep.subr.mxu0 %v475
      %5023 = vmatpush1.msra.mxu0 %v474
      %5024 = vmatprep.subr.mxu0 %v473
      %5025 = vmatpush1.msra.mxu0 %v472
      %5026 = vmatprep.subr.mxu0 %v471
      %5027 = vmatpush1.msra.mxu0 %v470
      %5028 = vmatprep.subr.mxu0 %v469
      %5029 = vmatpush1.msra.mxu0 %v468
      %5030 = vmatprep.subr.mxu0 %v467
      %5031 = vmatpush1.msra.mxu0 %v466
      %5032 = vmatprep.subr.mxu0 %v465
      %5033 = vmatpush1.msra.mxu0 %v464
      %5034 = vmatprep.subr.mxu0 %v463
      %5035 = vmatpush1.msra.mxu0 %v462
      %5036 = vmatprep.subr.mxu0 %v461
      %5037 = vmatpush1.msra.mxu0 %v460
      %5038 = vmatprep.subr.mxu0 %v459
      %5039 = vmatpush1.msra.mxu0 %v458
      %5040 = vmatprep.subr.mxu0 %v457
      %5041 = vmatpush1.msra.mxu0 %v456
      %5042 = vmatprep.subr.mxu0 %v455
      %5043 = vmatpush1.msra.mxu0 %v454
      %5044 = vmatprep.subr.mxu0 %v453
      %5045 = vmatpush1.msra.mxu0 %v452
      %5046 = vmatprep.subr.mxu0 %v451
      %5047 = vmatpush1.msra.mxu0 %v450
      %5048 = vmatprep.subr.mxu0 %v449
      %5049 = vmatpush1.msra.mxu0 %v448
      %5050 = vmatprep.subr.mxu0 %v447
      %5051 = vmatpush1.msra.mxu0 %v446
      %5052 = vmatprep.subr.mxu0 %v445
      %5053 = vmatpush1.msra.mxu0 %v444
      %5054 = vmatprep.subr.mxu0 0.0
      %5055 = vmatpush2.msra.mxu0 0.0
      %5056 = vmatprep.subr.mxu0 0.0
      %5057 = vmatpush2.msra.mxu0 0.0
      %5058 = vmatprep.subr.mxu0 0.0
      %5059 = vmatpush2.msra.mxu0 0.0
      %5060 = vmatprep.subr.mxu0 0.0
      %5061 = vmatpush2.msra.mxu0 0.0
      %5062 = vmatprep.subr.mxu0 0.0
      %5063 = vmatpush2.msra.mxu0 0.0
      %5064 = vmatprep.subr.mxu0 0.0
      %5065 = vmatpush2.msra.mxu0 0.0
      %5066 = vmatprep.subr.mxu0 0.0
      %5067 = vmatpush2.msra.mxu0 0.0
      %5068 = vmatprep.subr.mxu0 0.0
      %5069 = vmatpush2.msra.mxu0 0.0
      %5070 = vmatprep.subr.mxu0 0.0
      %5071 = vmatpush2.msra.mxu0 0.0
      %5072 = vmatprep.subr.mxu0 0.0
      %5073 = vmatpush2.msra.mxu0 0.0
      %5074 = vmatprep.subr.mxu0 0.0
      %5075 = vmatpush2.msra.mxu0 0.0
      %5076 = vmatprep.subr.mxu0 0.0
      %5077 = vmatpush2.msra.mxu0 0.0
      %5078 = vmatprep.subr.mxu0 %v483
      %5079 = vmatpush2.msra.mxu0 %v482
      %5080 = vmatprep.subr.mxu0 %v481
      %5081 = vmatpush2.msra.mxu0 %v480
      %5082 = vmatprep.subr.mxu0 %v479
      %5083 = vmatpush2.msra.mxu0 %v478
      %5084 = vmatprep.subr.mxu0 %v477
      %5085 = vmatpush2.msra.mxu0 %v476
      %5086 = vmatprep.mubr.f32.mxu0 %v5020
      %5087 = vmatmul.mubr.f32.gmra.mxu0 %v5019
      %v5088 = vpop.f32.mrf.mxu0
      %v5089 = vadd.f32 %v683, %v5088
      %v5090 = vpop.f32.mrf.mxu0
      %v5091 = vadd.f32 %v687, %v5090
      %5092 = vdwg.mxu0
      %v5093 = vtanh.pop %v5089
      %v5094 = vtanh.pop %v5091
      %v5095 = vld [vmem:[%s438 + $0x19] sm:$0x1]
      %v5096 = vld [vmem:[%s438 + $0x39] sm:$0x1]
      %v5097 = vld [vmem:[%s438 + $0x59] sm:$0x1]
      %v5098 = vld [vmem:[%s438 + $0x79] sm:$0x1]
      %v5099 = vld [vmem:[%s438 + $0x99] sm:$0x1]
      %v5100 = vld [vmem:[%s438 + $0xb9] sm:$0x1]
      %v5101 = vld [vmem:[%s438 + $0xd9] sm:$0x1]
      %v5102 = vld [vmem:[%s438 + $0xf9] sm:$0x1]
      %5104 = vrot.lane.b32.xlu0 %v4966, 32
      %v5105 = vpop.permute.xlu0 %5104
      %5107 = vrot.lane.b32.xlu0 %v4991, 64
      %v5108 = vpop.permute.xlu0 %5107
      %5110 = vrot.lane.b32.xlu0 %v5016, 96
      %v5111 = vpop.permute.xlu0 %5110
      %v5121 = vrot.slane %v5096, 7
      %v5122 = vsel %vm555, %v5121, %v5095
      %v5123 = vrot.slane %v5097, 6
      %v5124 = vsel %vm558, %v5123, %v5122
      %v5125 = vrot.slane %v5098, 5
      %v5126 = vsel %vm561, %v5125, %v5124
      %v5127 = vrot.slane %v5099, 4
      %v5128 = vsel %vm564, %v5127, %v5126
      %v5129 = vrot.slane %v5100, 3
      %v5130 = vsel %vm567, %v5129, %v5128
      %v5131 = vrot.slane %v5101, 2
      %v5132 = vsel %vm570, %v5131, %v5130
      %v5133 = vrot.slane %v5102, 1
      %v5134 = vsel %vm573, %v5133, %v5132
      %v5135 = vsel %vm673, %v4941, %v5105
      %v5136 = vsel %vm675, %v5135, %v5108
      %v5137 = vsel %vm677, %v5136, %v5111
      %v5138 = vsel %vm673, %v5134, 0
      %5140 = vmatprep.subr.mxu0 %v475
      %5141 = vmatpush1.msra.mxu0 %v474
      %5142 = vmatprep.subr.mxu0 %v473
      %5143 = vmatpush1.msra.mxu0 %v472
      %5144 = vmatprep.subr.mxu0 %v471
      %5145 = vmatpush1.msra.mxu0 %v470
      %5146 = vmatprep.subr.mxu0 %v469
      %5147 = vmatpush1.msra.mxu0 %v468
      %5148 = vmatprep.subr.mxu0 %v467
      %5149 = vmatpush1.msra.mxu0 %v466
      %5150 = vmatprep.subr.mxu0 %v465
      %5151 = vmatpush1.msra.mxu0 %v464
      %5152 = vmatprep.subr.mxu0 %v463
      %5153 = vmatpush1.msra.mxu0 %v462
      %5154 = vmatprep.subr.mxu0 %v461
      %5155 = vmatpush1.msra.mxu0 %v460
      %5156 = vmatprep.subr.mxu0 %v459
      %5157 = vmatpush1.msra.mxu0 %v458
      %5158 = vmatprep.subr.mxu0 %v457
      %5159 = vmatpush1.msra.mxu0 %v456
      %5160 = vmatprep.subr.mxu0 %v455
      %5161 = vmatpush1.msra.mxu0 %v454
      %5162 = vmatprep.subr.mxu0 %v453
      %5163 = vmatpush1.msra.mxu0 %v452
      %5164 = vmatprep.subr.mxu0 %v451
      %5165 = vmatpush1.msra.mxu0 %v450
      %5166 = vmatprep.subr.mxu0 %v449
      %5167 = vmatpush1.msra.mxu0 %v448
      %5168 = vmatprep.subr.mxu0 %v447
      %5169 = vmatpush1.msra.mxu0 %v446
      %5170 = vmatprep.subr.mxu0 %v445
      %5171 = vmatpush1.msra.mxu0 %v444
      %5172 = vmatprep.subr.mxu0 0.0
      %5173 = vmatpush2.msra.mxu0 0.0
      %5174 = vmatprep.subr.mxu0 0.0
      %5175 = vmatpush2.msra.mxu0 0.0
      %5176 = vmatprep.subr.mxu0 0.0
      %5177 = vmatpush2.msra.mxu0 0.0
      %5178 = vmatprep.subr.mxu0 0.0
      %5179 = vmatpush2.msra.mxu0 0.0
      %5180 = vmatprep.subr.mxu0 0.0
      %5181 = vmatpush2.msra.mxu0 0.0
      %5182 = vmatprep.subr.mxu0 0.0
      %5183 = vmatpush2.msra.mxu0 0.0
      %5184 = vmatprep.subr.mxu0 0.0
      %5185 = vmatpush2.msra.mxu0 0.0
      %5186 = vmatprep.subr.mxu0 0.0
      %5187 = vmatpush2.msra.mxu0 0.0
      %5188 = vmatprep.subr.mxu0 0.0
      %5189 = vmatpush2.msra.mxu0 0.0
      %5190 = vmatprep.subr.mxu0 0.0
      %5191 = vmatpush2.msra.mxu0 0.0
      %5192 = vmatprep.subr.mxu0 0.0
      %5193 = vmatpush2.msra.mxu0 0.0
      %5194 = vmatprep.subr.mxu0 0.0
      %5195 = vmatpush2.msra.mxu0 0.0
      %5196 = vmatprep.subr.mxu0 %v483
      %5197 = vmatpush2.msra.mxu0 %v482
      %5198 = vmatprep.subr.mxu0 %v481
      %5199 = vmatpush2.msra.mxu0 %v480
      %5200 = vmatprep.subr.mxu0 %v479
      %5201 = vmatpush2.msra.mxu0 %v478
      %5202 = vmatprep.subr.mxu0 %v477
      %5203 = vmatpush2.msra.mxu0 %v476
      %5204 = vmatprep.mubr.f32.mxu0 %v5138
      %5205 = vmatmul.mubr.f32.gmra.mxu0 %v5137
      %v5206 = vpop.f32.mrf.mxu0
      %v5207 = vadd.f32 %v683, %v5206
      %v5208 = vpop.f32.mrf.mxu0
      %v5209 = vadd.f32 %v687, %v5208
      %5210 = vdwg.mxu0
      %v5211 = vtanh.pop %v5207
      %v5212 = vtanh.pop %v5209
      %v5213 = vadd.f32 %v5093, %v5211
      %v5214 = vadd.f32 %v5094, %v5212
      %v5216 = vsel %vm885, %v5214, 0
      %5218 = vmatprep.subr.mxu0 0.0
      %5219 = vmatpush1.msra.mxu0 %v500
      %5220 = vmatprep.subr.mxu0 0.0
      %5221 = vmatpush1.msra.mxu0 %v499
      %5222 = vmatprep.subr.mxu0 0.0
      %5223 = vmatpush1.msra.mxu0 %v498
      %5224 = vmatprep.subr.mxu0 0.0
      %5225 = vmatpush1.msra.mxu0 %v497
      %5226 = vmatprep.subr.mxu0 0.0
      %5227 = vmatpush1.msra.mxu0 %v496
      %5228 = vmatprep.subr.mxu0 0.0
      %5229 = vmatpush1.msra.mxu0 %v495
      %5230 = vmatprep.subr.mxu0 0.0
      %5231 = vmatpush1.msra.mxu0 %v494
      %5232 = vmatprep.subr.mxu0 0.0
      %5233 = vmatpush1.msra.mxu0 %v493
      %5234 = vmatprep.subr.mxu0 0.0
      %5235 = vmatpush1.msra.mxu0 %v492
      %5236 = vmatprep.subr.mxu0 0.0
      %5237 = vmatpush1.msra.mxu0 %v491
      %5238 = vmatprep.subr.mxu0 0.0
      %5239 = vmatpush1.msra.mxu0 %v490
      %5240 = vmatprep.subr.mxu0 0.0
      %5241 = vmatpush1.msra.mxu0 %v489
      %5242 = vmatprep.subr.mxu0 0.0
      %5243 = vmatpush1.msra.mxu0 %v488
      %5244 = vmatprep.subr.mxu0 0.0
      %5245 = vmatpush1.msra.mxu0 %v487
      %5246 = vmatprep.subr.mxu0 0.0
      %5247 = vmatpush1.msra.mxu0 %v486
      %5248 = vmatprep.subr.mxu0 0.0
      %5249 = vmatpush1.msra.mxu0 %v485
      %5250 = vmatprep.subr.mxu0 0.0
      %5251 = vmatpush2.msra.mxu0 0.0
      %5252 = vmatprep.subr.mxu0 0.0
      %5253 = vmatpush2.msra.mxu0 0.0
      %5254 = vmatprep.subr.mxu0 0.0
      %5255 = vmatpush2.msra.mxu0 0.0
      %5256 = vmatprep.subr.mxu0 0.0
      %5257 = vmatpush2.msra.mxu0 0.0
      %5258 = vmatprep.subr.mxu0 0.0
      %5259 = vmatpush2.msra.mxu0 0.0
      %5260 = vmatprep.subr.mxu0 0.0
      %5261 = vmatpush2.msra.mxu0 0.0
      %5262 = vmatprep.subr.mxu0 0.0
      %5263 = vmatpush2.msra.mxu0 0.0
      %5264 = vmatprep.subr.mxu0 0.0
      %5265 = vmatpush2.msra.mxu0 0.0
      %5266 = vmatprep.subr.mxu0 0.0
      %5267 = vmatpush2.msra.mxu0 0.0
      %5268 = vmatprep.subr.mxu0 0.0
      %5269 = vmatpush2.msra.mxu0 0.0
      %5270 = vmatprep.subr.mxu0 0.0
      %5271 = vmatpush2.msra.mxu0 0.0
      %5272 = vmatprep.subr.mxu0 0.0
      %5273 = vmatpush2.msra.mxu0 %v505
      %5274 = vmatprep.subr.mxu0 0.0
      %5275 = vmatpush2.msra.mxu0 %v504
      %5276 = vmatprep.subr.mxu0 0.0
      %5277 = vmatpush2.msra.mxu0 %v503
      %5278 = vmatprep.subr.mxu0 0.0
      %5279 = vmatpush2.msra.mxu0 %v502
      %5280 = vmatprep.subr.mxu0 0.0
      %5281 = vmatpush2.msra.mxu0 %v501
      %5282 = vmatprep.mubr.f32.mxu0 %v5216
      %5283 = vmatmul.mubr.f32.gmra.mxu0 %v5213
      %v5284 = vpop.f32.mrf.mxu0
      %v5285 = vadd.f32 0.0, %v5284
      %v5286 = vpop.f32.mrf.mxu0
      %5287 = vdwg.mxu0
      %s5288 = scalar_lea.vmem [#allocation2], 80
      %5289 = vst [vmem:[%s5288] sm:$0xff] %v5285
      %v5290 = vld [vmem:[%s438 + $0x16] sm:$0x1]
      %v5291 = vld [vmem:[%s438 + $0x36] sm:$0x1]
      %v5292 = vld [vmem:[%s438 + $0x56] sm:$0x1]
      %v5293 = vld [vmem:[%s438 + $0x76] sm:$0x1]
      %v5294 = vld [vmem:[%s438 + $0x96] sm:$0x1]
      %v5295 = vld [vmem:[%s438 + $0xb6] sm:$0x1]
      %v5296 = vld [vmem:[%s438 + $0xd6] sm:$0x1]
      %v5297 = vld [vmem:[%s438 + $0xf6] sm:$0x1]
      %v5298 = vld [vmem:[%s438 + $0x17] sm:$0x1]
      %v5299 = vld [vmem:[%s438 + $0x37] sm:$0x1]
      %v5300 = vld [vmem:[%s438 + $0x57] sm:$0x1]
      %v5301 = vld [vmem:[%s438 + $0x77] sm:$0x1]
      %v5302 = vld [vmem:[%s438 + $0x97] sm:$0x1]
      %v5303 = vld [vmem:[%s438 + $0xb7] sm:$0x1]
      %v5304 = vld [vmem:[%s438 + $0xd7] sm:$0x1]
      %v5305 = vld [vmem:[%s438 + $0xf7] sm:$0x1]
      %v5306 = vld [vmem:[%s438 + $0x18] sm:$0x1]
      %v5307 = vld [vmem:[%s438 + $0x38] sm:$0x1]
      %v5308 = vld [vmem:[%s438 + $0x58] sm:$0x1]
      %v5309 = vld [vmem:[%s438 + $0x78] sm:$0x1]
      %v5310 = vld [vmem:[%s438 + $0x98] sm:$0x1]
      %v5311 = vld [vmem:[%s438 + $0xb8] sm:$0x1]
      %v5312 = vld [vmem:[%s438 + $0xd8] sm:$0x1]
      %v5313 = vld [vmem:[%s438 + $0xf8] sm:$0x1]
      %v5314 = vld [vmem:[%s438 + $0x19] sm:$0x1]
      %v5315 = vld [vmem:[%s438 + $0x39] sm:$0x1]
      %v5316 = vld [vmem:[%s438 + $0x59] sm:$0x1]
      %v5317 = vld [vmem:[%s438 + $0x79] sm:$0x1]
      %v5318 = vld [vmem:[%s438 + $0x99] sm:$0x1]
      %v5319 = vld [vmem:[%s438 + $0xb9] sm:$0x1]
      %v5320 = vld [vmem:[%s438 + $0xd9] sm:$0x1]
      %v5321 = vld [vmem:[%s438 + $0xf9] sm:$0x1]
      %v5322 = vld [vmem:[%s438 + $0x1a] sm:$0x1]
      %v5323 = vld [vmem:[%s438 + $0x3a] sm:$0x1]
      %v5324 = vld [vmem:[%s438 + $0x5a] sm:$0x1]
      %v5325 = vld [vmem:[%s438 + $0x7a] sm:$0x1]
      %v5326 = vld [vmem:[%s438 + $0x9a] sm:$0x1]
      %v5327 = vld [vmem:[%s438 + $0xba] sm:$0x1]
      %v5328 = vld [vmem:[%s438 + $0xda] sm:$0x1]
      %v5329 = vld [vmem:[%s438 + $0xfa] sm:$0x1]
      %v5338 = vrot.slane %v5291, 7
      %v5339 = vsel %vm555, %v5338, %v5290
      %v5340 = vrot.slane %v5292, 6
      %v5341 = vsel %vm558, %v5340, %v5339
      %v5342 = vrot.slane %v5293, 5
      %v5343 = vsel %vm561, %v5342, %v5341
      %v5344 = vrot.slane %v5294, 4
      %v5345 = vsel %vm564, %v5344, %v5343
      %v5346 = vrot.slane %v5295, 3
      %v5347 = vsel %vm567, %v5346, %v5345
      %v5348 = vrot.slane %v5296, 2
      %v5349 = vsel %vm570, %v5348, %v5347
      %v5350 = vrot.slane %v5297, 1
      %v5351 = vsel %vm573, %v5350, %v5349
      %v5361 = vrot.slane %v5299, 7
      %v5362 = vsel %vm555, %v5361, %v5298
      %v5363 = vrot.slane %v5300, 6
      %v5364 = vsel %vm558, %v5363, %v5362
      %v5365 = vrot.slane %v5301, 5
      %v5366 = vsel %vm561, %v5365, %v5364
      %v5367 = vrot.slane %v5302, 4
      %v5368 = vsel %vm564, %v5367, %v5366
      %v5369 = vrot.slane %v5303, 3
      %v5370 = vsel %vm567, %v5369, %v5368
      %v5371 = vrot.slane %v5304, 2
      %v5372 = vsel %vm570, %v5371, %v5370
      %v5373 = vrot.slane %v5305, 1
      %v5374 = vsel %vm573, %v5373, %v5372
      %5375 = vrot.lane.b32.xlu0 %v5374, 32
      %v5376 = vpop.permute.xlu0 %5375
      %v5386 = vrot.slane %v5307, 7
      %v5387 = vsel %vm555, %v5386, %v5306
      %v5388 = vrot.slane %v5308, 6
      %v5389 = vsel %vm558, %v5388, %v5387
      %v5390 = vrot.slane %v5309, 5
      %v5391 = vsel %vm561, %v5390, %v5389
      %v5392 = vrot.slane %v5310, 4
      %v5393 = vsel %vm564, %v5392, %v5391
      %v5394 = vrot.slane %v5311, 3
      %v5395 = vsel %vm567, %v5394, %v5393
      %v5396 = vrot.slane %v5312, 2
      %v5397 = vsel %vm570, %v5396, %v5395
      %v5398 = vrot.slane %v5313, 1
      %v5399 = vsel %vm573, %v5398, %v5397
      %5400 = vrot.lane.b32.xlu0 %v5399, 64
      %v5401 = vpop.permute.xlu0 %5400
      %v5411 = vrot.slane %v5315, 7
      %v5412 = vsel %vm555, %v5411, %v5314
      %v5413 = vrot.slane %v5316, 6
      %v5414 = vsel %vm558, %v5413, %v5412
      %v5415 = vrot.slane %v5317, 5
      %v5416 = vsel %vm561, %v5415, %v5414
      %v5417 = vrot.slane %v5318, 4
      %v5418 = vsel %vm564, %v5417, %v5416
      %v5419 = vrot.slane %v5319, 3
      %v5420 = vsel %vm567, %v5419, %v5418
      %v5421 = vrot.slane %v5320, 2
      %v5422 = vsel %vm570, %v5421, %v5420
      %v5423 = vrot.slane %v5321, 1
      %v5424 = vsel %vm573, %v5423, %v5422
      %5425 = vrot.lane.b32.xlu0 %v5424, 96
      %v5426 = vpop.permute.xlu0 %5425
      %v5436 = vrot.slane %v5323, 7
      %v5437 = vsel %vm555, %v5436, %v5322
      %v5438 = vrot.slane %v5324, 6
      %v5439 = vsel %vm558, %v5438, %v5437
      %v5440 = vrot.slane %v5325, 5
      %v5441 = vsel %vm561, %v5440, %v5439
      %v5442 = vrot.slane %v5326, 4
      %v5443 = vsel %vm564, %v5442, %v5441
      %v5444 = vrot.slane %v5327, 3
      %v5445 = vsel %vm567, %v5444, %v5443
      %v5446 = vrot.slane %v5328, 2
      %v5447 = vsel %vm570, %v5446, %v5445
      %v5448 = vrot.slane %v5329, 1
      %v5449 = vsel %vm573, %v5448, %v5447
      %v5450 = vsel %vm673, %v5351, %v5376
      %v5451 = vsel %vm675, %v5450, %v5401
      %v5452 = vsel %vm677, %v5451, %v5426
      %v5453 = vsel %vm673, %v5449, 0
      %5455 = vmatprep.subr.mxu0 %v475
      %5456 = vmatpush1.msra.mxu0 %v474
      %5457 = vmatprep.subr.mxu0 %v473
      %5458 = vmatpush1.msra.mxu0 %v472
      %5459 = vmatprep.subr.mxu0 %v471
      %5460 = vmatpush1.msra.mxu0 %v470
      %5461 = vmatprep.subr.mxu0 %v469
      %5462 = vmatpush1.msra.mxu0 %v468
      %5463 = vmatprep.subr.mxu0 %v467
      %5464 = vmatpush1.msra.mxu0 %v466
      %5465 = vmatprep.subr.mxu0 %v465
      %5466 = vmatpush1.msra.mxu0 %v464
      %5467 = vmatprep.subr.mxu0 %v463
      %5468 = vmatpush1.msra.mxu0 %v462
      %5469 = vmatprep.subr.mxu0 %v461
      %5470 = vmatpush1.msra.mxu0 %v460
      %5471 = vmatprep.subr.mxu0 %v459
      %5472 = vmatpush1.msra.mxu0 %v458
      %5473 = vmatprep.subr.mxu0 %v457
      %5474 = vmatpush1.msra.mxu0 %v456
      %5475 = vmatprep.subr.mxu0 %v455
      %5476 = vmatpush1.msra.mxu0 %v454
      %5477 = vmatprep.subr.mxu0 %v453
      %5478 = vmatpush1.msra.mxu0 %v452
      %5479 = vmatprep.subr.mxu0 %v451
      %5480 = vmatpush1.msra.mxu0 %v450
      %5481 = vmatprep.subr.mxu0 %v449
      %5482 = vmatpush1.msra.mxu0 %v448
      %5483 = vmatprep.subr.mxu0 %v447
      %5484 = vmatpush1.msra.mxu0 %v446
      %5485 = vmatprep.subr.mxu0 %v445
      %5486 = vmatpush1.msra.mxu0 %v444
      %5487 = vmatprep.subr.mxu0 0.0
      %5488 = vmatpush2.msra.mxu0 0.0
      %5489 = vmatprep.subr.mxu0 0.0
      %5490 = vmatpush2.msra.mxu0 0.0
      %5491 = vmatprep.subr.mxu0 0.0
      %5492 = vmatpush2.msra.mxu0 0.0
      %5493 = vmatprep.subr.mxu0 0.0
      %5494 = vmatpush2.msra.mxu0 0.0
      %5495 = vmatprep.subr.mxu0 0.0
      %5496 = vmatpush2.msra.mxu0 0.0
      %5497 = vmatprep.subr.mxu0 0.0
      %5498 = vmatpush2.msra.mxu0 0.0
      %5499 = vmatprep.subr.mxu0 0.0
      %5500 = vmatpush2.msra.mxu0 0.0
      %5501 = vmatprep.subr.mxu0 0.0
      %5502 = vmatpush2.msra.mxu0 0.0
      %5503 = vmatprep.subr.mxu0 0.0
      %5504 = vmatpush2.msra.mxu0 0.0
      %5505 = vmatprep.subr.mxu0 0.0
      %5506 = vmatpush2.msra.mxu0 0.0
      %5507 = vmatprep.subr.mxu0 0.0
      %5508 = vmatpush2.msra.mxu0 0.0
      %5509 = vmatprep.subr.mxu0 0.0
      %5510 = vmatpush2.msra.mxu0 0.0
      %5511 = vmatprep.subr.mxu0 %v483
      %5512 = vmatpush2.msra.mxu0 %v482
      %5513 = vmatprep.subr.mxu0 %v481
      %5514 = vmatpush2.msra.mxu0 %v480
      %5515 = vmatprep.subr.mxu0 %v479
      %5516 = vmatpush2.msra.mxu0 %v478
      %5517 = vmatprep.subr.mxu0 %v477
      %5518 = vmatpush2.msra.mxu0 %v476
      %5519 = vmatprep.mubr.f32.mxu0 %v5453
      %5520 = vmatmul.mubr.f32.gmra.mxu0 %v5452
      %v5521 = vpop.f32.mrf.mxu0
      %v5522 = vadd.f32 %v683, %v5521
      %v5523 = vpop.f32.mrf.mxu0
      %v5524 = vadd.f32 %v687, %v5523
      %5525 = vdwg.mxu0
      %v5526 = vtanh.pop %v5522
      %v5527 = vtanh.pop %v5524
      %v5528 = vld [vmem:[%s438 + $0x1b] sm:$0x1]
      %v5529 = vld [vmem:[%s438 + $0x3b] sm:$0x1]
      %v5530 = vld [vmem:[%s438 + $0x5b] sm:$0x1]
      %v5531 = vld [vmem:[%s438 + $0x7b] sm:$0x1]
      %v5532 = vld [vmem:[%s438 + $0x9b] sm:$0x1]
      %v5533 = vld [vmem:[%s438 + $0xbb] sm:$0x1]
      %v5534 = vld [vmem:[%s438 + $0xdb] sm:$0x1]
      %v5535 = vld [vmem:[%s438 + $0xfb] sm:$0x1]
      %5537 = vrot.lane.b32.xlu0 %v5399, 32
      %v5538 = vpop.permute.xlu0 %5537
      %5540 = vrot.lane.b32.xlu0 %v5424, 64
      %v5541 = vpop.permute.xlu0 %5540
      %5543 = vrot.lane.b32.xlu0 %v5449, 96
      %v5544 = vpop.permute.xlu0 %5543
      %v5554 = vrot.slane %v5529, 7
      %v5555 = vsel %vm555, %v5554, %v5528
      %v5556 = vrot.slane %v5530, 6
      %v5557 = vsel %vm558, %v5556, %v5555
      %v5558 = vrot.slane %v5531, 5
      %v5559 = vsel %vm561, %v5558, %v5557
      %v5560 = vrot.slane %v5532, 4
      %v5561 = vsel %vm564, %v5560, %v5559
      %v5562 = vrot.slane %v5533, 3
      %v5563 = vsel %vm567, %v5562, %v5561
      %v5564 = vrot.slane %v5534, 2
      %v5565 = vsel %vm570, %v5564, %v5563
      %v5566 = vrot.slane %v5535, 1
      %v5567 = vsel %vm573, %v5566, %v5565
      %v5568 = vsel %vm673, %v5374, %v5538
      %v5569 = vsel %vm675, %v5568, %v5541
      %v5570 = vsel %vm677, %v5569, %v5544
      %v5571 = vsel %vm673, %v5567, 0
      %5573 = vmatprep.subr.mxu0 %v475
      %5574 = vmatpush1.msra.mxu0 %v474
      %5575 = vmatprep.subr.mxu0 %v473
      %5576 = vmatpush1.msra.mxu0 %v472
      %5577 = vmatprep.subr.mxu0 %v471
      %5578 = vmatpush1.msra.mxu0 %v470
      %5579 = vmatprep.subr.mxu0 %v469
      %5580 = vmatpush1.msra.mxu0 %v468
      %5581 = vmatprep.subr.mxu0 %v467
      %5582 = vmatpush1.msra.mxu0 %v466
      %5583 = vmatprep.subr.mxu0 %v465
      %5584 = vmatpush1.msra.mxu0 %v464
      %5585 = vmatprep.subr.mxu0 %v463
      %5586 = vmatpush1.msra.mxu0 %v462
      %5587 = vmatprep.subr.mxu0 %v461
      %5588 = vmatpush1.msra.mxu0 %v460
      %5589 = vmatprep.subr.mxu0 %v459
      %5590 = vmatpush1.msra.mxu0 %v458
      %5591 = vmatprep.subr.mxu0 %v457
      %5592 = vmatpush1.msra.mxu0 %v456
      %5593 = vmatprep.subr.mxu0 %v455
      %5594 = vmatpush1.msra.mxu0 %v454
      %5595 = vmatprep.subr.mxu0 %v453
      %5596 = vmatpush1.msra.mxu0 %v452
      %5597 = vmatprep.subr.mxu0 %v451
      %5598 = vmatpush1.msra.mxu0 %v450
      %5599 = vmatprep.subr.mxu0 %v449
      %5600 = vmatpush1.msra.mxu0 %v448
      %5601 = vmatprep.subr.mxu0 %v447
      %5602 = vmatpush1.msra.mxu0 %v446
      %5603 = vmatprep.subr.mxu0 %v445
      %5604 = vmatpush1.msra.mxu0 %v444
      %5605 = vmatprep.subr.mxu0 0.0
      %5606 = vmatpush2.msra.mxu0 0.0
      %5607 = vmatprep.subr.mxu0 0.0
      %5608 = vmatpush2.msra.mxu0 0.0
      %5609 = vmatprep.subr.mxu0 0.0
      %5610 = vmatpush2.msra.mxu0 0.0
      %5611 = vmatprep.subr.mxu0 0.0
      %5612 = vmatpush2.msra.mxu0 0.0
      %5613 = vmatprep.subr.mxu0 0.0
      %5614 = vmatpush2.msra.mxu0 0.0
      %5615 = vmatprep.subr.mxu0 0.0
      %5616 = vmatpush2.msra.mxu0 0.0
      %5617 = vmatprep.subr.mxu0 0.0
      %5618 = vmatpush2.msra.mxu0 0.0
      %5619 = vmatprep.subr.mxu0 0.0
      %5620 = vmatpush2.msra.mxu0 0.0
      %5621 = vmatprep.subr.mxu0 0.0
      %5622 = vmatpush2.msra.mxu0 0.0
      %5623 = vmatprep.subr.mxu0 0.0
      %5624 = vmatpush2.msra.mxu0 0.0
      %5625 = vmatprep.subr.mxu0 0.0
      %5626 = vmatpush2.msra.mxu0 0.0
      %5627 = vmatprep.subr.mxu0 0.0
      %5628 = vmatpush2.msra.mxu0 0.0
      %5629 = vmatprep.subr.mxu0 %v483
      %5630 = vmatpush2.msra.mxu0 %v482
      %5631 = vmatprep.subr.mxu0 %v481
      %5632 = vmatpush2.msra.mxu0 %v480
      %5633 = vmatprep.subr.mxu0 %v479
      %5634 = vmatpush2.msra.mxu0 %v478
      %5635 = vmatprep.subr.mxu0 %v477
      %5636 = vmatpush2.msra.mxu0 %v476
      %5637 = vmatprep.mubr.f32.mxu0 %v5571
      %5638 = vmatmul.mubr.f32.gmra.mxu0 %v5570
      %v5639 = vpop.f32.mrf.mxu0
      %v5640 = vadd.f32 %v683, %v5639
      %v5641 = vpop.f32.mrf.mxu0
      %v5642 = vadd.f32 %v687, %v5641
      %5643 = vdwg.mxu0
      %v5644 = vtanh.pop %v5640
      %v5645 = vtanh.pop %v5642
      %v5646 = vadd.f32 %v5526, %v5644
      %v5647 = vadd.f32 %v5527, %v5645
      %v5649 = vsel %vm885, %v5647, 0
      %5651 = vmatprep.subr.mxu0 0.0
      %5652 = vmatpush1.msra.mxu0 %v500
      %5653 = vmatprep.subr.mxu0 0.0
      %5654 = vmatpush1.msra.mxu0 %v499
      %5655 = vmatprep.subr.mxu0 0.0
      %5656 = vmatpush1.msra.mxu0 %v498
      %5657 = vmatprep.subr.mxu0 0.0
      %5658 = vmatpush1.msra.mxu0 %v497
      %5659 = vmatprep.subr.mxu0 0.0
      %5660 = vmatpush1.msra.mxu0 %v496
      %5661 = vmatprep.subr.mxu0 0.0
      %5662 = vmatpush1.msra.mxu0 %v495
      %5663 = vmatprep.subr.mxu0 0.0
      %5664 = vmatpush1.msra.mxu0 %v494
      %5665 = vmatprep.subr.mxu0 0.0
      %5666 = vmatpush1.msra.mxu0 %v493
      %5667 = vmatprep.subr.mxu0 0.0
      %5668 = vmatpush1.msra.mxu0 %v492
      %5669 = vmatprep.subr.mxu0 0.0
      %5670 = vmatpush1.msra.mxu0 %v491
      %5671 = vmatprep.subr.mxu0 0.0
      %5672 = vmatpush1.msra.mxu0 %v490
      %5673 = vmatprep.subr.mxu0 0.0
      %5674 = vmatpush1.msra.mxu0 %v489
      %5675 = vmatprep.subr.mxu0 0.0
      %5676 = vmatpush1.msra.mxu0 %v488
      %5677 = vmatprep.subr.mxu0 0.0
      %5678 = vmatpush1.msra.mxu0 %v487
      %5679 = vmatprep.subr.mxu0 0.0
      %5680 = vmatpush1.msra.mxu0 %v486
      %5681 = vmatprep.subr.mxu0 0.0
      %5682 = vmatpush1.msra.mxu0 %v485
      %5683 = vmatprep.subr.mxu0 0.0
      %5684 = vmatpush2.msra.mxu0 0.0
      %5685 = vmatprep.subr.mxu0 0.0
      %5686 = vmatpush2.msra.mxu0 0.0
      %5687 = vmatprep.subr.mxu0 0.0
      %5688 = vmatpush2.msra.mxu0 0.0
      %5689 = vmatprep.subr.mxu0 0.0
      %5690 = vmatpush2.msra.mxu0 0.0
      %5691 = vmatprep.subr.mxu0 0.0
      %5692 = vmatpush2.msra.mxu0 0.0
      %5693 = vmatprep.subr.mxu0 0.0
      %5694 = vmatpush2.msra.mxu0 0.0
      %5695 = vmatprep.subr.mxu0 0.0
      %5696 = vmatpush2.msra.mxu0 0.0
      %5697 = vmatprep.subr.mxu0 0.0
      %5698 = vmatpush2.msra.mxu0 0.0
      %5699 = vmatprep.subr.mxu0 0.0
      %5700 = vmatpush2.msra.mxu0 0.0
      %5701 = vmatprep.subr.mxu0 0.0
      %5702 = vmatpush2.msra.mxu0 0.0
      %5703 = vmatprep.subr.mxu0 0.0
      %5704 = vmatpush2.msra.mxu0 0.0
      %5705 = vmatprep.subr.mxu0 0.0
      %5706 = vmatpush2.msra.mxu0 %v505
      %5707 = vmatprep.subr.mxu0 0.0
      %5708 = vmatpush2.msra.mxu0 %v504
      %5709 = vmatprep.subr.mxu0 0.0
      %5710 = vmatpush2.msra.mxu0 %v503
      %5711 = vmatprep.subr.mxu0 0.0
      %5712 = vmatpush2.msra.mxu0 %v502
      %5713 = vmatprep.subr.mxu0 0.0
      %5714 = vmatpush2.msra.mxu0 %v501
      %5715 = vmatprep.mubr.f32.mxu0 %v5649
      %5716 = vmatmul.mubr.f32.gmra.mxu0 %v5646
      %v5717 = vpop.f32.mrf.mxu0
      %v5718 = vadd.f32 0.0, %v5717
      %v5719 = vpop.f32.mrf.mxu0
      %5720 = vdwg.mxu0
      %s5721 = scalar_lea.vmem [#allocation2], 88
      %5722 = vst [vmem:[%s5721] sm:$0xff] %v5718
      %v5723 = vld [vmem:[%s438 + $0x18] sm:$0x1]
      %v5724 = vld [vmem:[%s438 + $0x38] sm:$0x1]
      %v5725 = vld [vmem:[%s438 + $0x58] sm:$0x1]
      %v5726 = vld [vmem:[%s438 + $0x78] sm:$0x1]
      %v5727 = vld [vmem:[%s438 + $0x98] sm:$0x1]
      %v5728 = vld [vmem:[%s438 + $0xb8] sm:$0x1]
      %v5729 = vld [vmem:[%s438 + $0xd8] sm:$0x1]
      %v5730 = vld [vmem:[%s438 + $0xf8] sm:$0x1]
      %v5731 = vld [vmem:[%s438 + $0x19] sm:$0x1]
      %v5732 = vld [vmem:[%s438 + $0x39] sm:$0x1]
      %v5733 = vld [vmem:[%s438 + $0x59] sm:$0x1]
      %v5734 = vld [vmem:[%s438 + $0x79] sm:$0x1]
      %v5735 = vld [vmem:[%s438 + $0x99] sm:$0x1]
      %v5736 = vld [vmem:[%s438 + $0xb9] sm:$0x1]
      %v5737 = vld [vmem:[%s438 + $0xd9] sm:$0x1]
      %v5738 = vld [vmem:[%s438 + $0xf9] sm:$0x1]
      %v5739 = vld [vmem:[%s438 + $0x1a] sm:$0x1]
      %v5740 = vld [vmem:[%s438 + $0x3a] sm:$0x1]
      %v5741 = vld [vmem:[%s438 + $0x5a] sm:$0x1]
      %v5742 = vld [vmem:[%s438 + $0x7a] sm:$0x1]
      %v5743 = vld [vmem:[%s438 + $0x9a] sm:$0x1]
      %v5744 = vld [vmem:[%s438 + $0xba] sm:$0x1]
      %v5745 = vld [vmem:[%s438 + $0xda] sm:$0x1]
      %v5746 = vld [vmem:[%s438 + $0xfa] sm:$0x1]
      %v5747 = vld [vmem:[%s438 + $0x1b] sm:$0x1]
      %v5748 = vld [vmem:[%s438 + $0x3b] sm:$0x1]
      %v5749 = vld [vmem:[%s438 + $0x5b] sm:$0x1]
      %v5750 = vld [vmem:[%s438 + $0x7b] sm:$0x1]
      %v5751 = vld [vmem:[%s438 + $0x9b] sm:$0x1]
      %v5752 = vld [vmem:[%s438 + $0xbb] sm:$0x1]
      %v5753 = vld [vmem:[%s438 + $0xdb] sm:$0x1]
      %v5754 = vld [vmem:[%s438 + $0xfb] sm:$0x1]
      %v5755 = vld [vmem:[%s438 + $0x1c] sm:$0x1]
      %v5756 = vld [vmem:[%s438 + $0x3c] sm:$0x1]
      %v5757 = vld [vmem:[%s438 + $0x5c] sm:$0x1]
      %v5758 = vld [vmem:[%s438 + $0x7c] sm:$0x1]
      %v5759 = vld [vmem:[%s438 + $0x9c] sm:$0x1]
      %v5760 = vld [vmem:[%s438 + $0xbc] sm:$0x1]
      %v5761 = vld [vmem:[%s438 + $0xdc] sm:$0x1]
      %v5762 = vld [vmem:[%s438 + $0xfc] sm:$0x1]
      %v5771 = vrot.slane %v5724, 7
      %v5772 = vsel %vm555, %v5771, %v5723
      %v5773 = vrot.slane %v5725, 6
      %v5774 = vsel %vm558, %v5773, %v5772
      %v5775 = vrot.slane %v5726, 5
      %v5776 = vsel %vm561, %v5775, %v5774
      %v5777 = vrot.slane %v5727, 4
      %v5778 = vsel %vm564, %v5777, %v5776
      %v5779 = vrot.slane %v5728, 3
      %v5780 = vsel %vm567, %v5779, %v5778
      %v5781 = vrot.slane %v5729, 2
      %v5782 = vsel %vm570, %v5781, %v5780
      %v5783 = vrot.slane %v5730, 1
      %v5784 = vsel %vm573, %v5783, %v5782
      %v5794 = vrot.slane %v5732, 7
      %v5795 = vsel %vm555, %v5794, %v5731
      %v5796 = vrot.slane %v5733, 6
      %v5797 = vsel %vm558, %v5796, %v5795
      %v5798 = vrot.slane %v5734, 5
      %v5799 = vsel %vm561, %v5798, %v5797
      %v5800 = vrot.slane %v5735, 4
      %v5801 = vsel %vm564, %v5800, %v5799
      %v5802 = vrot.slane %v5736, 3
      %v5803 = vsel %vm567, %v5802, %v5801
      %v5804 = vrot.slane %v5737, 2
      %v5805 = vsel %vm570, %v5804, %v5803
      %v5806 = vrot.slane %v5738, 1
      %v5807 = vsel %vm573, %v5806, %v5805
      %5808 = vrot.lane.b32.xlu0 %v5807, 32
      %v5809 = vpop.permute.xlu0 %5808
      %v5819 = vrot.slane %v5740, 7
      %v5820 = vsel %vm555, %v5819, %v5739
      %v5821 = vrot.slane %v5741, 6
      %v5822 = vsel %vm558, %v5821, %v5820
      %v5823 = vrot.slane %v5742, 5
      %v5824 = vsel %vm561, %v5823, %v5822
      %v5825 = vrot.slane %v5743, 4
      %v5826 = vsel %vm564, %v5825, %v5824
      %v5827 = vrot.slane %v5744, 3
      %v5828 = vsel %vm567, %v5827, %v5826
      %v5829 = vrot.slane %v5745, 2
      %v5830 = vsel %vm570, %v5829, %v5828
      %v5831 = vrot.slane %v5746, 1
      %v5832 = vsel %vm573, %v5831, %v5830
      %5833 = vrot.lane.b32.xlu0 %v5832, 64
      %v5834 = vpop.permute.xlu0 %5833
      %v5844 = vrot.slane %v5748, 7
      %v5845 = vsel %vm555, %v5844, %v5747
      %v5846 = vrot.slane %v5749, 6
      %v5847 = vsel %vm558, %v5846, %v5845
      %v5848 = vrot.slane %v5750, 5
      %v5849 = vsel %vm561, %v5848, %v5847
      %v5850 = vrot.slane %v5751, 4
      %v5851 = vsel %vm564, %v5850, %v5849
      %v5852 = vrot.slane %v5752, 3
      %v5853 = vsel %vm567, %v5852, %v5851
      %v5854 = vrot.slane %v5753, 2
      %v5855 = vsel %vm570, %v5854, %v5853
      %v5856 = vrot.slane %v5754, 1
      %v5857 = vsel %vm573, %v5856, %v5855
      %5858 = vrot.lane.b32.xlu0 %v5857, 96
      %v5859 = vpop.permute.xlu0 %5858
      %v5869 = vrot.slane %v5756, 7
      %v5870 = vsel %vm555, %v5869, %v5755
      %v5871 = vrot.slane %v5757, 6
      %v5872 = vsel %vm558, %v5871, %v5870
      %v5873 = vrot.slane %v5758, 5
      %v5874 = vsel %vm561, %v5873, %v5872
      %v5875 = vrot.slane %v5759, 4
      %v5876 = vsel %vm564, %v5875, %v5874
      %v5877 = vrot.slane %v5760, 3
      %v5878 = vsel %vm567, %v5877, %v5876
      %v5879 = vrot.slane %v5761, 2
      %v5880 = vsel %vm570, %v5879, %v5878
      %v5881 = vrot.slane %v5762, 1
      %v5882 = vsel %vm573, %v5881, %v5880
      %v5883 = vsel %vm673, %v5784, %v5809
      %v5884 = vsel %vm675, %v5883, %v5834
      %v5885 = vsel %vm677, %v5884, %v5859
      %v5886 = vsel %vm673, %v5882, 0
      %5888 = vmatprep.subr.mxu0 %v475
      %5889 = vmatpush1.msra.mxu0 %v474
      %5890 = vmatprep.subr.mxu0 %v473
      %5891 = vmatpush1.msra.mxu0 %v472
      %5892 = vmatprep.subr.mxu0 %v471
      %5893 = vmatpush1.msra.mxu0 %v470
      %5894 = vmatprep.subr.mxu0 %v469
      %5895 = vmatpush1.msra.mxu0 %v468
      %5896 = vmatprep.subr.mxu0 %v467
      %5897 = vmatpush1.msra.mxu0 %v466
      %5898 = vmatprep.subr.mxu0 %v465
      %5899 = vmatpush1.msra.mxu0 %v464
      %5900 = vmatprep.subr.mxu0 %v463
      %5901 = vmatpush1.msra.mxu0 %v462
      %5902 = vmatprep.subr.mxu0 %v461
      %5903 = vmatpush1.msra.mxu0 %v460
      %5904 = vmatprep.subr.mxu0 %v459
      %5905 = vmatpush1.msra.mxu0 %v458
      %5906 = vmatprep.subr.mxu0 %v457
      %5907 = vmatpush1.msra.mxu0 %v456
      %5908 = vmatprep.subr.mxu0 %v455
      %5909 = vmatpush1.msra.mxu0 %v454
      %5910 = vmatprep.subr.mxu0 %v453
      %5911 = vmatpush1.msra.mxu0 %v452
      %5912 = vmatprep.subr.mxu0 %v451
      %5913 = vmatpush1.msra.mxu0 %v450
      %5914 = vmatprep.subr.mxu0 %v449
      %5915 = vmatpush1.msra.mxu0 %v448
      %5916 = vmatprep.subr.mxu0 %v447
      %5917 = vmatpush1.msra.mxu0 %v446
      %5918 = vmatprep.subr.mxu0 %v445
      %5919 = vmatpush1.msra.mxu0 %v444
      %5920 = vmatprep.subr.mxu0 0.0
      %5921 = vmatpush2.msra.mxu0 0.0
      %5922 = vmatprep.subr.mxu0 0.0
      %5923 = vmatpush2.msra.mxu0 0.0
      %5924 = vmatprep.subr.mxu0 0.0
      %5925 = vmatpush2.msra.mxu0 0.0
      %5926 = vmatprep.subr.mxu0 0.0
      %5927 = vmatpush2.msra.mxu0 0.0
      %5928 = vmatprep.subr.mxu0 0.0
      %5929 = vmatpush2.msra.mxu0 0.0
      %5930 = vmatprep.subr.mxu0 0.0
      %5931 = vmatpush2.msra.mxu0 0.0
      %5932 = vmatprep.subr.mxu0 0.0
      %5933 = vmatpush2.msra.mxu0 0.0
      %5934 = vmatprep.subr.mxu0 0.0
      %5935 = vmatpush2.msra.mxu0 0.0
      %5936 = vmatprep.subr.mxu0 0.0
      %5937 = vmatpush2.msra.mxu0 0.0
      %5938 = vmatprep.subr.mxu0 0.0
      %5939 = vmatpush2.msra.mxu0 0.0
      %5940 = vmatprep.subr.mxu0 0.0
      %5941 = vmatpush2.msra.mxu0 0.0
      %5942 = vmatprep.subr.mxu0 0.0
      %5943 = vmatpush2.msra.mxu0 0.0
      %5944 = vmatprep.subr.mxu0 %v483
      %5945 = vmatpush2.msra.mxu0 %v482
      %5946 = vmatprep.subr.mxu0 %v481
      %5947 = vmatpush2.msra.mxu0 %v480
      %5948 = vmatprep.subr.mxu0 %v479
      %5949 = vmatpush2.msra.mxu0 %v478
      %5950 = vmatprep.subr.mxu0 %v477
      %5951 = vmatpush2.msra.mxu0 %v476
      %5952 = vmatprep.mubr.f32.mxu0 %v5886
      %5953 = vmatmul.mubr.f32.gmra.mxu0 %v5885
      %v5954 = vpop.f32.mrf.mxu0
      %v5955 = vadd.f32 %v683, %v5954
      %v5956 = vpop.f32.mrf.mxu0
      %v5957 = vadd.f32 %v687, %v5956
      %5958 = vdwg.mxu0
      %v5959 = vtanh.pop %v5955
      %v5960 = vtanh.pop %v5957
      %v5961 = vld [vmem:[%s438 + $0x1d] sm:$0x1]
      %v5962 = vld [vmem:[%s438 + $0x3d] sm:$0x1]
      %v5963 = vld [vmem:[%s438 + $0x5d] sm:$0x1]
      %v5964 = vld [vmem:[%s438 + $0x7d] sm:$0x1]
      %v5965 = vld [vmem:[%s438 + $0x9d] sm:$0x1]
      %v5966 = vld [vmem:[%s438 + $0xbd] sm:$0x1]
      %v5967 = vld [vmem:[%s438 + $0xdd] sm:$0x1]
      %v5968 = vld [vmem:[%s438 + $0xfd] sm:$0x1]
      %5970 = vrot.lane.b32.xlu0 %v5832, 32
      %v5971 = vpop.permute.xlu0 %5970
      %5973 = vrot.lane.b32.xlu0 %v5857, 64
      %v5974 = vpop.permute.xlu0 %5973
      %5976 = vrot.lane.b32.xlu0 %v5882, 96
      %v5977 = vpop.permute.xlu0 %5976
      %v5987 = vrot.slane %v5962, 7
      %v5988 = vsel %vm555, %v5987, %v5961
      %v5989 = vrot.slane %v5963, 6
      %v5990 = vsel %vm558, %v5989, %v5988
      %v5991 = vrot.slane %v5964, 5
      %v5992 = vsel %vm561, %v5991, %v5990
      %v5993 = vrot.slane %v5965, 4
      %v5994 = vsel %vm564, %v5993, %v5992
      %v5995 = vrot.slane %v5966, 3
      %v5996 = vsel %vm567, %v5995, %v5994
      %v5997 = vrot.slane %v5967, 2
      %v5998 = vsel %vm570, %v5997, %v5996
      %v5999 = vrot.slane %v5968, 1
      %v6000 = vsel %vm573, %v5999, %v5998
      %v6001 = vsel %vm673, %v5807, %v5971
      %v6002 = vsel %vm675, %v6001, %v5974
      %v6003 = vsel %vm677, %v6002, %v5977
      %v6004 = vsel %vm673, %v6000, 0
      %6006 = vmatprep.subr.mxu0 %v475
      %6007 = vmatpush1.msra.mxu0 %v474
      %6008 = vmatprep.subr.mxu0 %v473
      %6009 = vmatpush1.msra.mxu0 %v472
      %6010 = vmatprep.subr.mxu0 %v471
      %6011 = vmatpush1.msra.mxu0 %v470
      %6012 = vmatprep.subr.mxu0 %v469
      %6013 = vmatpush1.msra.mxu0 %v468
      %6014 = vmatprep.subr.mxu0 %v467
      %6015 = vmatpush1.msra.mxu0 %v466
      %6016 = vmatprep.subr.mxu0 %v465
      %6017 = vmatpush1.msra.mxu0 %v464
      %6018 = vmatprep.subr.mxu0 %v463
      %6019 = vmatpush1.msra.mxu0 %v462
      %6020 = vmatprep.subr.mxu0 %v461
      %6021 = vmatpush1.msra.mxu0 %v460
      %6022 = vmatprep.subr.mxu0 %v459
      %6023 = vmatpush1.msra.mxu0 %v458
      %6024 = vmatprep.subr.mxu0 %v457
      %6025 = vmatpush1.msra.mxu0 %v456
      %6026 = vmatprep.subr.mxu0 %v455
      %6027 = vmatpush1.msra.mxu0 %v454
      %6028 = vmatprep.subr.mxu0 %v453
      %6029 = vmatpush1.msra.mxu0 %v452
      %6030 = vmatprep.subr.mxu0 %v451
      %6031 = vmatpush1.msra.mxu0 %v450
      %6032 = vmatprep.subr.mxu0 %v449
      %6033 = vmatpush1.msra.mxu0 %v448
      %6034 = vmatprep.subr.mxu0 %v447
      %6035 = vmatpush1.msra.mxu0 %v446
      %6036 = vmatprep.subr.mxu0 %v445
      %6037 = vmatpush1.msra.mxu0 %v444
      %6038 = vmatprep.subr.mxu0 0.0
      %6039 = vmatpush2.msra.mxu0 0.0
      %6040 = vmatprep.subr.mxu0 0.0
      %6041 = vmatpush2.msra.mxu0 0.0
      %6042 = vmatprep.subr.mxu0 0.0
      %6043 = vmatpush2.msra.mxu0 0.0
      %6044 = vmatprep.subr.mxu0 0.0
      %6045 = vmatpush2.msra.mxu0 0.0
      %6046 = vmatprep.subr.mxu0 0.0
      %6047 = vmatpush2.msra.mxu0 0.0
      %6048 = vmatprep.subr.mxu0 0.0
      %6049 = vmatpush2.msra.mxu0 0.0
      %6050 = vmatprep.subr.mxu0 0.0
      %6051 = vmatpush2.msra.mxu0 0.0
      %6052 = vmatprep.subr.mxu0 0.0
      %6053 = vmatpush2.msra.mxu0 0.0
      %6054 = vmatprep.subr.mxu0 0.0
      %6055 = vmatpush2.msra.mxu0 0.0
      %6056 = vmatprep.subr.mxu0 0.0
      %6057 = vmatpush2.msra.mxu0 0.0
      %6058 = vmatprep.subr.mxu0 0.0
      %6059 = vmatpush2.msra.mxu0 0.0
      %6060 = vmatprep.subr.mxu0 0.0
      %6061 = vmatpush2.msra.mxu0 0.0
      %6062 = vmatprep.subr.mxu0 %v483
      %6063 = vmatpush2.msra.mxu0 %v482
      %6064 = vmatprep.subr.mxu0 %v481
      %6065 = vmatpush2.msra.mxu0 %v480
      %6066 = vmatprep.subr.mxu0 %v479
      %6067 = vmatpush2.msra.mxu0 %v478
      %6068 = vmatprep.subr.mxu0 %v477
      %6069 = vmatpush2.msra.mxu0 %v476
      %6070 = vmatprep.mubr.f32.mxu0 %v6004
      %6071 = vmatmul.mubr.f32.gmra.mxu0 %v6003
      %v6072 = vpop.f32.mrf.mxu0
      %v6073 = vadd.f32 %v683, %v6072
      %v6074 = vpop.f32.mrf.mxu0
      %v6075 = vadd.f32 %v687, %v6074
      %6076 = vdwg.mxu0
      %v6077 = vtanh.pop %v6073
      %v6078 = vtanh.pop %v6075
      %v6079 = vadd.f32 %v5959, %v6077
      %v6080 = vadd.f32 %v5960, %v6078
      %v6082 = vsel %vm885, %v6080, 0
      %6084 = vmatprep.subr.mxu0 0.0
      %6085 = vmatpush1.msra.mxu0 %v500
      %6086 = vmatprep.subr.mxu0 0.0
      %6087 = vmatpush1.msra.mxu0 %v499
      %6088 = vmatprep.subr.mxu0 0.0
      %6089 = vmatpush1.msra.mxu0 %v498
      %6090 = vmatprep.subr.mxu0 0.0
      %6091 = vmatpush1.msra.mxu0 %v497
      %6092 = vmatprep.subr.mxu0 0.0
      %6093 = vmatpush1.msra.mxu0 %v496
      %6094 = vmatprep.subr.mxu0 0.0
      %6095 = vmatpush1.msra.mxu0 %v495
      %6096 = vmatprep.subr.mxu0 0.0
      %6097 = vmatpush1.msra.mxu0 %v494
      %6098 = vmatprep.subr.mxu0 0.0
      %6099 = vmatpush1.msra.mxu0 %v493
      %6100 = vmatprep.subr.mxu0 0.0
      %6101 = vmatpush1.msra.mxu0 %v492
      %6102 = vmatprep.subr.mxu0 0.0
      %6103 = vmatpush1.msra.mxu0 %v491
      %6104 = vmatprep.subr.mxu0 0.0
      %6105 = vmatpush1.msra.mxu0 %v490
      %6106 = vmatprep.subr.mxu0 0.0
      %6107 = vmatpush1.msra.mxu0 %v489
      %6108 = vmatprep.subr.mxu0 0.0
      %6109 = vmatpush1.msra.mxu0 %v488
      %6110 = vmatprep.subr.mxu0 0.0
      %6111 = vmatpush1.msra.mxu0 %v487
      %6112 = vmatprep.subr.mxu0 0.0
      %6113 = vmatpush1.msra.mxu0 %v486
      %6114 = vmatprep.subr.mxu0 0.0
      %6115 = vmatpush1.msra.mxu0 %v485
      %6116 = vmatprep.subr.mxu0 0.0
      %6117 = vmatpush2.msra.mxu0 0.0
      %6118 = vmatprep.subr.mxu0 0.0
      %6119 = vmatpush2.msra.mxu0 0.0
      %6120 = vmatprep.subr.mxu0 0.0
      %6121 = vmatpush2.msra.mxu0 0.0
      %6122 = vmatprep.subr.mxu0 0.0
      %6123 = vmatpush2.msra.mxu0 0.0
      %6124 = vmatprep.subr.mxu0 0.0
      %6125 = vmatpush2.msra.mxu0 0.0
      %6126 = vmatprep.subr.mxu0 0.0
      %6127 = vmatpush2.msra.mxu0 0.0
      %6128 = vmatprep.subr.mxu0 0.0
      %6129 = vmatpush2.msra.mxu0 0.0
      %6130 = vmatprep.subr.mxu0 0.0
      %6131 = vmatpush2.msra.mxu0 0.0
      %6132 = vmatprep.subr.mxu0 0.0
      %6133 = vmatpush2.msra.mxu0 0.0
      %6134 = vmatprep.subr.mxu0 0.0
      %6135 = vmatpush2.msra.mxu0 0.0
      %6136 = vmatprep.subr.mxu0 0.0
      %6137 = vmatpush2.msra.mxu0 0.0
      %6138 = vmatprep.subr.mxu0 0.0
      %6139 = vmatpush2.msra.mxu0 %v505
      %6140 = vmatprep.subr.mxu0 0.0
      %6141 = vmatpush2.msra.mxu0 %v504
      %6142 = vmatprep.subr.mxu0 0.0
      %6143 = vmatpush2.msra.mxu0 %v503
      %6144 = vmatprep.subr.mxu0 0.0
      %6145 = vmatpush2.msra.mxu0 %v502
      %6146 = vmatprep.subr.mxu0 0.0
      %6147 = vmatpush2.msra.mxu0 %v501
      %6148 = vmatprep.mubr.f32.mxu0 %v6082
      %6149 = vmatmul.mubr.f32.gmra.mxu0 %v6079
      %v6150 = vpop.f32.mrf.mxu0
      %v6151 = vadd.f32 0.0, %v6150
      %v6152 = vpop.f32.mrf.mxu0
      %6153 = vdwg.mxu0
      %s6154 = scalar_lea.vmem [#allocation2], 96
      %6155 = vst [vmem:[%s6154] sm:$0xff] %v6151
      %v6156 = vld [vmem:[%s438 + $0x1a] sm:$0x1]
      %v6157 = vld [vmem:[%s438 + $0x3a] sm:$0x1]
      %v6158 = vld [vmem:[%s438 + $0x5a] sm:$0x1]
      %v6159 = vld [vmem:[%s438 + $0x7a] sm:$0x1]
      %v6160 = vld [vmem:[%s438 + $0x9a] sm:$0x1]
      %v6161 = vld [vmem:[%s438 + $0xba] sm:$0x1]
      %v6162 = vld [vmem:[%s438 + $0xda] sm:$0x1]
      %v6163 = vld [vmem:[%s438 + $0xfa] sm:$0x1]
      %v6164 = vld [vmem:[%s438 + $0x1b] sm:$0x1]
      %v6165 = vld [vmem:[%s438 + $0x3b] sm:$0x1]
      %v6166 = vld [vmem:[%s438 + $0x5b] sm:$0x1]
      %v6167 = vld [vmem:[%s438 + $0x7b] sm:$0x1]
      %v6168 = vld [vmem:[%s438 + $0x9b] sm:$0x1]
      %v6169 = vld [vmem:[%s438 + $0xbb] sm:$0x1]
      %v6170 = vld [vmem:[%s438 + $0xdb] sm:$0x1]
      %v6171 = vld [vmem:[%s438 + $0xfb] sm:$0x1]
      %v6172 = vld [vmem:[%s438 + $0x1c] sm:$0x1]
      %v6173 = vld [vmem:[%s438 + $0x3c] sm:$0x1]
      %v6174 = vld [vmem:[%s438 + $0x5c] sm:$0x1]
      %v6175 = vld [vmem:[%s438 + $0x7c] sm:$0x1]
      %v6176 = vld [vmem:[%s438 + $0x9c] sm:$0x1]
      %v6177 = vld [vmem:[%s438 + $0xbc] sm:$0x1]
      %v6178 = vld [vmem:[%s438 + $0xdc] sm:$0x1]
      %v6179 = vld [vmem:[%s438 + $0xfc] sm:$0x1]
      %v6180 = vld [vmem:[%s438 + $0x1d] sm:$0x1]
      %v6181 = vld [vmem:[%s438 + $0x3d] sm:$0x1]
      %v6182 = vld [vmem:[%s438 + $0x5d] sm:$0x1]
      %v6183 = vld [vmem:[%s438 + $0x7d] sm:$0x1]
      %v6184 = vld [vmem:[%s438 + $0x9d] sm:$0x1]
      %v6185 = vld [vmem:[%s438 + $0xbd] sm:$0x1]
      %v6186 = vld [vmem:[%s438 + $0xdd] sm:$0x1]
      %v6187 = vld [vmem:[%s438 + $0xfd] sm:$0x1]
      %v6188 = vld [vmem:[%s438 + $0x1e] sm:$0x1]
      %v6189 = vld [vmem:[%s438 + $0x3e] sm:$0x1]
      %v6190 = vld [vmem:[%s438 + $0x5e] sm:$0x1]
      %v6191 = vld [vmem:[%s438 + $0x7e] sm:$0x1]
      %v6192 = vld [vmem:[%s438 + $0x9e] sm:$0x1]
      %v6193 = vld [vmem:[%s438 + $0xbe] sm:$0x1]
      %v6194 = vld [vmem:[%s438 + $0xde] sm:$0x1]
      %v6195 = vld [vmem:[%s438 + $0xfe] sm:$0x1]
      %v6204 = vrot.slane %v6157, 7
      %v6205 = vsel %vm555, %v6204, %v6156
      %v6206 = vrot.slane %v6158, 6
      %v6207 = vsel %vm558, %v6206, %v6205
      %v6208 = vrot.slane %v6159, 5
      %v6209 = vsel %vm561, %v6208, %v6207
      %v6210 = vrot.slane %v6160, 4
      %v6211 = vsel %vm564, %v6210, %v6209
      %v6212 = vrot.slane %v6161, 3
      %v6213 = vsel %vm567, %v6212, %v6211
      %v6214 = vrot.slane %v6162, 2
      %v6215 = vsel %vm570, %v6214, %v6213
      %v6216 = vrot.slane %v6163, 1
      %v6217 = vsel %vm573, %v6216, %v6215
      %v6227 = vrot.slane %v6165, 7
      %v6228 = vsel %vm555, %v6227, %v6164
      %v6229 = vrot.slane %v6166, 6
      %v6230 = vsel %vm558, %v6229, %v6228
      %v6231 = vrot.slane %v6167, 5
      %v6232 = vsel %vm561, %v6231, %v6230
      %v6233 = vrot.slane %v6168, 4
      %v6234 = vsel %vm564, %v6233, %v6232
      %v6235 = vrot.slane %v6169, 3
      %v6236 = vsel %vm567, %v6235, %v6234
      %v6237 = vrot.slane %v6170, 2
      %v6238 = vsel %vm570, %v6237, %v6236
      %v6239 = vrot.slane %v6171, 1
      %v6240 = vsel %vm573, %v6239, %v6238
      %6241 = vrot.lane.b32.xlu0 %v6240, 32
      %v6242 = vpop.permute.xlu0 %6241
      %v6252 = vrot.slane %v6173, 7
      %v6253 = vsel %vm555, %v6252, %v6172
      %v6254 = vrot.slane %v6174, 6
      %v6255 = vsel %vm558, %v6254, %v6253
      %v6256 = vrot.slane %v6175, 5
      %v6257 = vsel %vm561, %v6256, %v6255
      %v6258 = vrot.slane %v6176, 4
      %v6259 = vsel %vm564, %v6258, %v6257
      %v6260 = vrot.slane %v6177, 3
      %v6261 = vsel %vm567, %v6260, %v6259
      %v6262 = vrot.slane %v6178, 2
      %v6263 = vsel %vm570, %v6262, %v6261
      %v6264 = vrot.slane %v6179, 1
      %v6265 = vsel %vm573, %v6264, %v6263
      %6266 = vrot.lane.b32.xlu0 %v6265, 64
      %v6267 = vpop.permute.xlu0 %6266
      %v6277 = vrot.slane %v6181, 7
      %v6278 = vsel %vm555, %v6277, %v6180
      %v6279 = vrot.slane %v6182, 6
      %v6280 = vsel %vm558, %v6279, %v6278
      %v6281 = vrot.slane %v6183, 5
      %v6282 = vsel %vm561, %v6281, %v6280
      %v6283 = vrot.slane %v6184, 4
      %v6284 = vsel %vm564, %v6283, %v6282
      %v6285 = vrot.slane %v6185, 3
      %v6286 = vsel %vm567, %v6285, %v6284
      %v6287 = vrot.slane %v6186, 2
      %v6288 = vsel %vm570, %v6287, %v6286
      %v6289 = vrot.slane %v6187, 1
      %v6290 = vsel %vm573, %v6289, %v6288
      %6291 = vrot.lane.b32.xlu0 %v6290, 96
      %v6292 = vpop.permute.xlu0 %6291
      %v6302 = vrot.slane %v6189, 7
      %v6303 = vsel %vm555, %v6302, %v6188
      %v6304 = vrot.slane %v6190, 6
      %v6305 = vsel %vm558, %v6304, %v6303
      %v6306 = vrot.slane %v6191, 5
      %v6307 = vsel %vm561, %v6306, %v6305
      %v6308 = vrot.slane %v6192, 4
      %v6309 = vsel %vm564, %v6308, %v6307
      %v6310 = vrot.slane %v6193, 3
      %v6311 = vsel %vm567, %v6310, %v6309
      %v6312 = vrot.slane %v6194, 2
      %v6313 = vsel %vm570, %v6312, %v6311
      %v6314 = vrot.slane %v6195, 1
      %v6315 = vsel %vm573, %v6314, %v6313
      %v6316 = vsel %vm673, %v6217, %v6242
      %v6317 = vsel %vm675, %v6316, %v6267
      %v6318 = vsel %vm677, %v6317, %v6292
      %v6319 = vsel %vm673, %v6315, 0
      %6321 = vmatprep.subr.mxu0 %v475
      %6322 = vmatpush1.msra.mxu0 %v474
      %6323 = vmatprep.subr.mxu0 %v473
      %6324 = vmatpush1.msra.mxu0 %v472
      %6325 = vmatprep.subr.mxu0 %v471
      %6326 = vmatpush1.msra.mxu0 %v470
      %6327 = vmatprep.subr.mxu0 %v469
      %6328 = vmatpush1.msra.mxu0 %v468
      %6329 = vmatprep.subr.mxu0 %v467
      %6330 = vmatpush1.msra.mxu0 %v466
      %6331 = vmatprep.subr.mxu0 %v465
      %6332 = vmatpush1.msra.mxu0 %v464
      %6333 = vmatprep.subr.mxu0 %v463
      %6334 = vmatpush1.msra.mxu0 %v462
      %6335 = vmatprep.subr.mxu0 %v461
      %6336 = vmatpush1.msra.mxu0 %v460
      %6337 = vmatprep.subr.mxu0 %v459
      %6338 = vmatpush1.msra.mxu0 %v458
      %6339 = vmatprep.subr.mxu0 %v457
      %6340 = vmatpush1.msra.mxu0 %v456
      %6341 = vmatprep.subr.mxu0 %v455
      %6342 = vmatpush1.msra.mxu0 %v454
      %6343 = vmatprep.subr.mxu0 %v453
      %6344 = vmatpush1.msra.mxu0 %v452
      %6345 = vmatprep.subr.mxu0 %v451
      %6346 = vmatpush1.msra.mxu0 %v450
      %6347 = vmatprep.subr.mxu0 %v449
      %6348 = vmatpush1.msra.mxu0 %v448
      %6349 = vmatprep.subr.mxu0 %v447
      %6350 = vmatpush1.msra.mxu0 %v446
      %6351 = vmatprep.subr.mxu0 %v445
      %6352 = vmatpush1.msra.mxu0 %v444
      %6353 = vmatprep.subr.mxu0 0.0
      %6354 = vmatpush2.msra.mxu0 0.0
      %6355 = vmatprep.subr.mxu0 0.0
      %6356 = vmatpush2.msra.mxu0 0.0
      %6357 = vmatprep.subr.mxu0 0.0
      %6358 = vmatpush2.msra.mxu0 0.0
      %6359 = vmatprep.subr.mxu0 0.0
      %6360 = vmatpush2.msra.mxu0 0.0
      %6361 = vmatprep.subr.mxu0 0.0
      %6362 = vmatpush2.msra.mxu0 0.0
      %6363 = vmatprep.subr.mxu0 0.0
      %6364 = vmatpush2.msra.mxu0 0.0
      %6365 = vmatprep.subr.mxu0 0.0
      %6366 = vmatpush2.msra.mxu0 0.0
      %6367 = vmatprep.subr.mxu0 0.0
      %6368 = vmatpush2.msra.mxu0 0.0
      %6369 = vmatprep.subr.mxu0 0.0
      %6370 = vmatpush2.msra.mxu0 0.0
      %6371 = vmatprep.subr.mxu0 0.0
      %6372 = vmatpush2.msra.mxu0 0.0
      %6373 = vmatprep.subr.mxu0 0.0
      %6374 = vmatpush2.msra.mxu0 0.0
      %6375 = vmatprep.subr.mxu0 0.0
      %6376 = vmatpush2.msra.mxu0 0.0
      %6377 = vmatprep.subr.mxu0 %v483
      %6378 = vmatpush2.msra.mxu0 %v482
      %6379 = vmatprep.subr.mxu0 %v481
      %6380 = vmatpush2.msra.mxu0 %v480
      %6381 = vmatprep.subr.mxu0 %v479
      %6382 = vmatpush2.msra.mxu0 %v478
      %6383 = vmatprep.subr.mxu0 %v477
      %6384 = vmatpush2.msra.mxu0 %v476
      %6385 = vmatprep.mubr.f32.mxu0 %v6319
      %6386 = vmatmul.mubr.f32.gmra.mxu0 %v6318
      %v6387 = vpop.f32.mrf.mxu0
      %v6388 = vadd.f32 %v683, %v6387
      %v6389 = vpop.f32.mrf.mxu0
      %v6390 = vadd.f32 %v687, %v6389
      %6391 = vdwg.mxu0
      %v6392 = vtanh.pop %v6388
      %v6393 = vtanh.pop %v6390
      %v6394 = vld [vmem:[%s438 + $0x1f] sm:$0x1]
      %v6395 = vld [vmem:[%s438 + $0x3f] sm:$0x1]
      %v6396 = vld [vmem:[%s438 + $0x5f] sm:$0x1]
      %v6397 = vld [vmem:[%s438 + $0x7f] sm:$0x1]
      %v6398 = vld [vmem:[%s438 + $0x9f] sm:$0x1]
      %v6399 = vld [vmem:[%s438 + $0xbf] sm:$0x1]
      %v6400 = vld [vmem:[%s438 + $0xdf] sm:$0x1]
      %v6401 = vld [vmem:[%s438 + $0xff] sm:$0x1]
      %6403 = vrot.lane.b32.xlu0 %v6265, 32
      %v6404 = vpop.permute.xlu0 %6403
      %6406 = vrot.lane.b32.xlu0 %v6290, 64
      %v6407 = vpop.permute.xlu0 %6406
      %6409 = vrot.lane.b32.xlu0 %v6315, 96
      %v6410 = vpop.permute.xlu0 %6409
      %v6420 = vrot.slane %v6395, 7
      %v6421 = vsel %vm555, %v6420, %v6394
      %v6422 = vrot.slane %v6396, 6
      %v6423 = vsel %vm558, %v6422, %v6421
      %v6424 = vrot.slane %v6397, 5
      %v6425 = vsel %vm561, %v6424, %v6423
      %v6426 = vrot.slane %v6398, 4
      %v6427 = vsel %vm564, %v6426, %v6425
      %v6428 = vrot.slane %v6399, 3
      %v6429 = vsel %vm567, %v6428, %v6427
      %v6430 = vrot.slane %v6400, 2
      %v6431 = vsel %vm570, %v6430, %v6429
      %v6432 = vrot.slane %v6401, 1
      %v6433 = vsel %vm573, %v6432, %v6431
      %v6434 = vsel %vm673, %v6240, %v6404
      %v6435 = vsel %vm675, %v6434, %v6407
      %v6436 = vsel %vm677, %v6435, %v6410
      %v6437 = vsel %vm673, %v6433, 0
      %6439 = vmatprep.subr.mxu0 %v475
      %6440 = vmatpush1.msra.mxu0 %v474
      %6441 = vmatprep.subr.mxu0 %v473
      %6442 = vmatpush1.msra.mxu0 %v472
      %6443 = vmatprep.subr.mxu0 %v471
      %6444 = vmatpush1.msra.mxu0 %v470
      %6445 = vmatprep.subr.mxu0 %v469
      %6446 = vmatpush1.msra.mxu0 %v468
      %6447 = vmatprep.subr.mxu0 %v467
      %6448 = vmatpush1.msra.mxu0 %v466
      %6449 = vmatprep.subr.mxu0 %v465
      %6450 = vmatpush1.msra.mxu0 %v464
      %6451 = vmatprep.subr.mxu0 %v463
      %6452 = vmatpush1.msra.mxu0 %v462
      %6453 = vmatprep.subr.mxu0 %v461
      %6454 = vmatpush1.msra.mxu0 %v460
      %6455 = vmatprep.subr.mxu0 %v459
      %6456 = vmatpush1.msra.mxu0 %v458
      %6457 = vmatprep.subr.mxu0 %v457
      %6458 = vmatpush1.msra.mxu0 %v456
      %6459 = vmatprep.subr.mxu0 %v455
      %6460 = vmatpush1.msra.mxu0 %v454
      %6461 = vmatprep.subr.mxu0 %v453
      %6462 = vmatpush1.msra.mxu0 %v452
      %6463 = vmatprep.subr.mxu0 %v451
      %6464 = vmatpush1.msra.mxu0 %v450
      %6465 = vmatprep.subr.mxu0 %v449
      %6466 = vmatpush1.msra.mxu0 %v448
      %6467 = vmatprep.subr.mxu0 %v447
      %6468 = vmatpush1.msra.mxu0 %v446
      %6469 = vmatprep.subr.mxu0 %v445
      %6470 = vmatpush1.msra.mxu0 %v444
      %6471 = vmatprep.subr.mxu0 0.0
      %6472 = vmatpush2.msra.mxu0 0.0
      %6473 = vmatprep.subr.mxu0 0.0
      %6474 = vmatpush2.msra.mxu0 0.0
      %6475 = vmatprep.subr.mxu0 0.0
      %6476 = vmatpush2.msra.mxu0 0.0
      %6477 = vmatprep.subr.mxu0 0.0
      %6478 = vmatpush2.msra.mxu0 0.0
      %6479 = vmatprep.subr.mxu0 0.0
      %6480 = vmatpush2.msra.mxu0 0.0
      %6481 = vmatprep.subr.mxu0 0.0
      %6482 = vmatpush2.msra.mxu0 0.0
      %6483 = vmatprep.subr.mxu0 0.0
      %6484 = vmatpush2.msra.mxu0 0.0
      %6485 = vmatprep.subr.mxu0 0.0
      %6486 = vmatpush2.msra.mxu0 0.0
      %6487 = vmatprep.subr.mxu0 0.0
      %6488 = vmatpush2.msra.mxu0 0.0
      %6489 = vmatprep.subr.mxu0 0.0
      %6490 = vmatpush2.msra.mxu0 0.0
      %6491 = vmatprep.subr.mxu0 0.0
      %6492 = vmatpush2.msra.mxu0 0.0
      %6493 = vmatprep.subr.mxu0 0.0
      %6494 = vmatpush2.msra.mxu0 0.0
      %6495 = vmatprep.subr.mxu0 %v483
      %6496 = vmatpush2.msra.mxu0 %v482
      %6497 = vmatprep.subr.mxu0 %v481
      %6498 = vmatpush2.msra.mxu0 %v480
      %6499 = vmatprep.subr.mxu0 %v479
      %6500 = vmatpush2.msra.mxu0 %v478
      %6501 = vmatprep.subr.mxu0 %v477
      %6502 = vmatpush2.msra.mxu0 %v476
      %6503 = vmatprep.mubr.f32.mxu0 %v6437
      %6504 = vmatmul.mubr.f32.gmra.mxu0 %v6436
      %v6505 = vpop.f32.mrf.mxu0
      %v6506 = vadd.f32 %v683, %v6505
      %v6507 = vpop.f32.mrf.mxu0
      %v6508 = vadd.f32 %v687, %v6507
      %6509 = vdwg.mxu0
      %v6510 = vtanh.pop %v6506
      %v6511 = vtanh.pop %v6508
      %v6512 = vadd.f32 %v6392, %v6510
      %v6513 = vadd.f32 %v6393, %v6511
      %v6515 = vsel %vm885, %v6513, 0
      %6517 = vmatprep.subr.mxu0 0.0
      %6518 = vmatpush1.msra.mxu0 %v500
      %6519 = vmatprep.subr.mxu0 0.0
      %6520 = vmatpush1.msra.mxu0 %v499
      %6521 = vmatprep.subr.mxu0 0.0
      %6522 = vmatpush1.msra.mxu0 %v498
      %6523 = vmatprep.subr.mxu0 0.0
      %6524 = vmatpush1.msra.mxu0 %v497
      %6525 = vmatprep.subr.mxu0 0.0
      %6526 = vmatpush1.msra.mxu0 %v496
      %6527 = vmatprep.subr.mxu0 0.0
      %6528 = vmatpush1.msra.mxu0 %v495
      %6529 = vmatprep.subr.mxu0 0.0
      %6530 = vmatpush1.msra.mxu0 %v494
      %6531 = vmatprep.subr.mxu0 0.0
      %6532 = vmatpush1.msra.mxu0 %v493
      %6533 = vmatprep.subr.mxu0 0.0
      %6534 = vmatpush1.msra.mxu0 %v492
      %6535 = vmatprep.subr.mxu0 0.0
      %6536 = vmatpush1.msra.mxu0 %v491
      %6537 = vmatprep.subr.mxu0 0.0
      %6538 = vmatpush1.msra.mxu0 %v490
      %6539 = vmatprep.subr.mxu0 0.0
      %6540 = vmatpush1.msra.mxu0 %v489
      %6541 = vmatprep.subr.mxu0 0.0
      %6542 = vmatpush1.msra.mxu0 %v488
      %6543 = vmatprep.subr.mxu0 0.0
      %6544 = vmatpush1.msra.mxu0 %v487
      %6545 = vmatprep.subr.mxu0 0.0
      %6546 = vmatpush1.msra.mxu0 %v486
      %6547 = vmatprep.subr.mxu0 0.0
      %6548 = vmatpush1.msra.mxu0 %v485
      %6549 = vmatprep.subr.mxu0 0.0
      %6550 = vmatpush2.msra.mxu0 0.0
      %6551 = vmatprep.subr.mxu0 0.0
      %6552 = vmatpush2.msra.mxu0 0.0
      %6553 = vmatprep.subr.mxu0 0.0
      %6554 = vmatpush2.msra.mxu0 0.0
      %6555 = vmatprep.subr.mxu0 0.0
      %6556 = vmatpush2.msra.mxu0 0.0
      %6557 = vmatprep.subr.mxu0 0.0
      %6558 = vmatpush2.msra.mxu0 0.0
      %6559 = vmatprep.subr.mxu0 0.0
      %6560 = vmatpush2.msra.mxu0 0.0
      %6561 = vmatprep.subr.mxu0 0.0
      %6562 = vmatpush2.msra.mxu0 0.0
      %6563 = vmatprep.subr.mxu0 0.0
      %6564 = vmatpush2.msra.mxu0 0.0
      %6565 = vmatprep.subr.mxu0 0.0
      %6566 = vmatpush2.msra.mxu0 0.0
      %6567 = vmatprep.subr.mxu0 0.0
      %6568 = vmatpush2.msra.mxu0 0.0
      %6569 = vmatprep.subr.mxu0 0.0
      %6570 = vmatpush2.msra.mxu0 0.0
      %6571 = vmatprep.subr.mxu0 0.0
      %6572 = vmatpush2.msra.mxu0 %v505
      %6573 = vmatprep.subr.mxu0 0.0
      %6574 = vmatpush2.msra.mxu0 %v504
      %6575 = vmatprep.subr.mxu0 0.0
      %6576 = vmatpush2.msra.mxu0 %v503
      %6577 = vmatprep.subr.mxu0 0.0
      %6578 = vmatpush2.msra.mxu0 %v502
      %6579 = vmatprep.subr.mxu0 0.0
      %6580 = vmatpush2.msra.mxu0 %v501
      %6581 = vmatprep.mubr.f32.mxu0 %v6515
      %6582 = vmatmul.mubr.f32.gmra.mxu0 %v6512
      %v6583 = vpop.f32.mrf.mxu0
      %v6584 = vadd.f32 0.0, %v6583
      %v6585 = vpop.f32.mrf.mxu0
      %6586 = vdwg.mxu0
      %s6587 = scalar_lea.vmem [#allocation2], 104
      %6588 = vst [vmem:[%s6587] sm:$0xff] %v6584
      %v6589 = vld [vmem:[%s4] sm:$0xff]
      %v6590 = vld [vmem:[%s4 + $0x8] sm:$0xff]
      %v6591 = vld [vmem:[%s4 + $0x10] sm:$0xff]
      %v6592 = vld [vmem:[%s4 + $0x18] sm:$0xff]
      %v6593 = vld [vmem:[%s4 + $0x20] sm:$0xff]
      %v6594 = vld [vmem:[%s4 + $0x28] sm:$0xff]
      %v6595 = vld [vmem:[%s4 + $0x30] sm:$0xff]
      %v6596 = vld [vmem:[%s4 + $0x38] sm:$0xff]
      %v6597 = vld [vmem:[%s4 + $0x40] sm:$0xff]
      %v6598 = vld [vmem:[%s4 + $0x48] sm:$0xff]
      %v6599 = vld [vmem:[%s4 + $0x50] sm:$0xff]
      %v6600 = vld [vmem:[%s4 + $0x58] sm:$0xff]
      %v6601 = vld [vmem:[%s4 + $0x60] sm:$0xff]
      %v6602 = vld [vmem:[%s4 + $0x68] sm:$0xff]
      %v6603 = vld [vmem:[%s4 + $0x70] sm:$0xff]
      %v6604 = vld [vmem:[%s4 + $0x78] sm:$0xff]
      %v6605 = vld [vmem:[%s4 + $0x80] sm:$0xff]
      %v6606 = vld [vmem:[%s4 + $0x88] sm:$0xff]
      %v6607 = vld [vmem:[%s4 + $0x90] sm:$0xff]
      %v6608 = vld [vmem:[%s4 + $0x98] sm:$0xff]
      %v6609 = vld [vmem:[%s4 + $0xa0] sm:$0xff]
      %v6610 = vld [vmem:[%s4 + $0xa8] sm:$0xff]
      %v6611 = vld [vmem:[%s4 + $0xb0] sm:$0xff]
      %v6612 = vld [vmem:[%s4 + $0xb8] sm:$0xff]
      %v6613 = vld [vmem:[%s4 + $0xc0] sm:$0xff]
      %v6614 = vld [vmem:[%s4 + $0xc8] sm:$0xff]
      %v6615 = vld [vmem:[%s4 + $0xd0] sm:$0xff]
      %v6616 = vld [vmem:[%s4 + $0xd8] sm:$0xff]
      %v6617 = vld [vmem:[%s4 + $0xe0] sm:$0xff]
      %v6618 = vld [vmem:[%s4 + $0xe8] sm:$0xff]
      %v6619 = vld [vmem:[%s4 + $0xf0] sm:$0xff]
      %v6620 = vld [vmem:[%s4 + $0xf8] sm:$0xff]
      %v6621 = vld [vmem:[%s4 + $0x100] sm:$0xff]
      %v6622 = vld [vmem:[%s4 + $0x108] sm:$0xff]
      %v6623 = vld [vmem:[%s4 + $0x110] sm:$0xff]
      %v6624 = vld [vmem:[%s4 + $0x118] sm:$0xff]
      %v6625 = vld [vmem:[%s4 + $0x120] sm:$0xff]
      %v6626 = vld [vmem:[%s4 + $0x128] sm:$0xff]
      %v6627 = vld [vmem:[%s4 + $0x130] sm:$0xff]
      %v6628 = vld [vmem:[%s4 + $0x138] sm:$0xff]
      %v6629 = vld [vmem:[%s4 + $0x140] sm:$0xff]
      %v6630 = vld [vmem:[%s4 + $0x148] sm:$0xff]
      %v6631 = vld [vmem:[%s4 + $0x150] sm:$0xff]
      %v6632 = vld [vmem:[%s4 + $0x158] sm:$0xff]
      %v6633 = vld [vmem:[%s4 + $0x160] sm:$0xff]
      %v6634 = vld [vmem:[%s4 + $0x168] sm:$0xff]
      %v6635 = vld [vmem:[%s4 + $0x170] sm:$0xff]
      %v6636 = vld [vmem:[%s4 + $0x178] sm:$0xff]
      %v6637 = vld [vmem:[%s4 + $0x180] sm:$0xff]
      %v6638 = vld [vmem:[%s4 + $0x188] sm:$0xff]
      %v6639 = vld [vmem:[%s4 + $0x190] sm:$0xff]
      %v6640 = vld [vmem:[%s4 + $0x198] sm:$0xff]
      %v6641 = vld [vmem:[%s4 + $0x1a0] sm:$0xff]
      %v6642 = vld [vmem:[%s4 + $0x1a8] sm:$0xff]
      %v6643 = vld [vmem:[%s4 + $0x1b0] sm:$0xff]
      %v6644 = vld [vmem:[%s4 + $0x1b8] sm:$0xff]
      %v6645 = vld [vmem:[%s4 + $0x1c0] sm:$0xff]
      %v6646 = vld [vmem:[%s4 + $0x1c8] sm:$0xff]
      %v6647 = vld [vmem:[%s4 + $0x1d0] sm:$0xff]
      %v6648 = vld [vmem:[%s4 + $0x1d8] sm:$0xff]
      %v6649 = vld [vmem:[%s4 + $0x1e0] sm:$0xff]
      %v6650 = vld [vmem:[%s4 + $0x1e8] sm:$0xff]
      %v6651 = vld [vmem:[%s4 + $0x1f0] sm:$0xff]
      %v6652 = vld [vmem:[%s4 + $0x1f8] sm:$0xff]
      %v6653 = vld [vmem:[%s4 + $0x200] sm:$0xff]
      %v6654 = vld [vmem:[%s4 + $0x208] sm:$0xff]
      %v6655 = vld [vmem:[%s4 + $0x210] sm:$0xff]
      %v6656 = vld [vmem:[%s4 + $0x218] sm:$0xff]
      %v6657 = vld [vmem:[%s4 + $0x220] sm:$0xff]
      %v6658 = vld [vmem:[%s4 + $0x228] sm:$0xff]
      %v6659 = vld [vmem:[%s4 + $0x230] sm:$0xff]
      %v6660 = vld [vmem:[%s4 + $0x238] sm:$0xff]
      %v6661 = vld [vmem:[%s4 + $0x240] sm:$0xff]
      %v6662 = vld [vmem:[%s4 + $0x248] sm:$0xff]
      %v6663 = vld [vmem:[%s4 + $0x250] sm:$0xff]
      %v6664 = vld [vmem:[%s4 + $0x258] sm:$0xff]
      %v6665 = vld [vmem:[%s4 + $0x260] sm:$0xff]
      %v6666 = vld [vmem:[%s4 + $0x268] sm:$0xff]
      %v6667 = vld [vmem:[%s4 + $0x270] sm:$0xff]
      %v6668 = vld [vmem:[%s4 + $0x278] sm:$0xff]
      %v6669 = vld [vmem:[%s4 + $0x280] sm:$0xff]
      %v6670 = vld [vmem:[%s4 + $0x288] sm:$0xff]
      %v6671 = vld [vmem:[%s4 + $0x290] sm:$0xff]
      %v6672 = vld [vmem:[%s4 + $0x298] sm:$0xff]
      %v6673 = vld [vmem:[%s4 + $0x2a0] sm:$0xff]
      %v6674 = vld [vmem:[%s4 + $0x2a8] sm:$0xff]
      %v6675 = vld [vmem:[%s4 + $0x2b0] sm:$0xff]
      %v6676 = vld [vmem:[%s4 + $0x2b8] sm:$0xff]
      %v6677 = vld [vmem:[%s4 + $0x2c0] sm:$0xff]
      %v6678 = vld [vmem:[%s4 + $0x2c8] sm:$0xff]
      %v6679 = vld [vmem:[%s4 + $0x2d0] sm:$0xff]
      %v6680 = vld [vmem:[%s4 + $0x2d8] sm:$0xff]
      %v6681 = vld [vmem:[%s4 + $0x2e0] sm:$0xff]
      %v6682 = vld [vmem:[%s4 + $0x2e8] sm:$0xff]
      %v6683 = vld [vmem:[%s4 + $0x2f0] sm:$0xff]
      %v6684 = vld [vmem:[%s4 + $0x2f8] sm:$0xff]
      %v6685 = vld [vmem:[%s4 + $0x300] sm:$0xff]
      %v6686 = vld [vmem:[%s4 + $0x308] sm:$0xff]
      %v6687 = vld [vmem:[%s4 + $0x310] sm:$0xff]
      %v6688 = vld [vmem:[%s4 + $0x318] sm:$0xff]
      %v6689 = vld [vmem:[%s4 + $0x320] sm:$0xff]
      %v6690 = vld [vmem:[%s4 + $0x328] sm:$0xff]
      %v6691 = vld [vmem:[%s4 + $0x330] sm:$0xff]
      %v6692 = vld [vmem:[%s4 + $0x338] sm:$0xff]
      %v6693 = vld [vmem:[%s4 + $0x340] sm:$0xff]
      %v6694 = vld [vmem:[%s4 + $0x348] sm:$0xff]
      %v6695 = vld [vmem:[%s4 + $0x350] sm:$0xff]
      %v6696 = vld [vmem:[%s4 + $0x358] sm:$0xff]
      %v6697 = vld [vmem:[%s4 + $0x360] sm:$0xff]
      %v6698 = vld [vmem:[%s4 + $0x368] sm:$0xff]
      %v6699 = vld [vmem:[%s4 + $0x370] sm:$0xff]
      %v6700 = vld [vmem:[%s4 + $0x378] sm:$0xff]
      %v6701 = vld [vmem:[%s4 + $0x380] sm:$0xff]
      %v6702 = vld [vmem:[%s4 + $0x388] sm:$0xff]
      %v6703 = vld [vmem:[%s4 + $0x390] sm:$0xff]
      %v6704 = vld [vmem:[%s4 + $0x398] sm:$0xff]
      %v6705 = vld [vmem:[%s4 + $0x3a0] sm:$0xff]
      %v6706 = vld [vmem:[%s4 + $0x3a8] sm:$0xff]
      %v6707 = vld [vmem:[%s4 + $0x3b0] sm:$0xff]
      %v6708 = vld [vmem:[%s4 + $0x3b8] sm:$0xff]
      %v6709 = vld [vmem:[%s4 + $0x3c0] sm:$0xff]
      %v6710 = vld [vmem:[%s4 + $0x3c8] sm:$0xff]
      %v6711 = vld [vmem:[%s4 + $0x3d0] sm:$0xff]
      %v6712 = vld [vmem:[%s4 + $0x3d8] sm:$0xff]
      %v6713 = vld [vmem:[%s4 + $0x3e0] sm:$0xff]
      %v6714 = vld [vmem:[%s4 + $0x3e8] sm:$0xff]
      %v6715 = vld [vmem:[%s4 + $0x3f0] sm:$0xff]
      %v6716 = vld [vmem:[%s4 + $0x3f8] sm:$0xff]
      %v6717 = vld [vmem:[%s4 + $0x400] sm:$0xff]
      %v6718 = vld [vmem:[%s4 + $0x408] sm:$0xff]
      %v6719 = vld [vmem:[%s4 + $0x410] sm:$0xff]
      %v6720 = vld [vmem:[%s4 + $0x418] sm:$0xff]
      %v6721 = vld [vmem:[%s4 + $0x420] sm:$0xff]
      %v6722 = vld [vmem:[%s4 + $0x428] sm:$0xff]
      %v6723 = vld [vmem:[%s4 + $0x430] sm:$0xff]
      %v6724 = vld [vmem:[%s4 + $0x438] sm:$0xff]
      %v6725 = vld [vmem:[%s4 + $0x440] sm:$0xff]
      %v6726 = vld [vmem:[%s4 + $0x448] sm:$0xff]
      %v6727 = vld [vmem:[%s4 + $0x450] sm:$0xff]
      %v6728 = vld [vmem:[%s4 + $0x458] sm:$0xff]
      %v6729 = vld [vmem:[%s4 + $0x460] sm:$0xff]
      %v6730 = vld [vmem:[%s4 + $0x468] sm:$0xff]
      %v6731 = vld [vmem:[%s4 + $0x470] sm:$0xff]
      %v6732 = vld [vmem:[%s4 + $0x478] sm:$0xff]
      %v6733 = vld [vmem:[%s4 + $0x480] sm:$0xff]
      %v6734 = vld [vmem:[%s4 + $0x488] sm:$0xff]
      %v6735 = vld [vmem:[%s4 + $0x490] sm:$0xff]
      %v6736 = vld [vmem:[%s4 + $0x498] sm:$0xff]
      %v6737 = vld [vmem:[%s4 + $0x4a0] sm:$0xff]
      %v6738 = vld [vmem:[%s4 + $0x4a8] sm:$0xff]
      %v6739 = vld [vmem:[%s4 + $0x4b0] sm:$0xff]
      %v6740 = vld [vmem:[%s4 + $0x4b8] sm:$0xff]
      %v6741 = vld [vmem:[%s4 + $0x4c0] sm:$0xff]
      %v6742 = vld [vmem:[%s4 + $0x4c8] sm:$0xff]
      %v6743 = vld [vmem:[%s4 + $0x4d0] sm:$0xff]
      %v6744 = vld [vmem:[%s4 + $0x4d8] sm:$0xff]
      %v6745 = vld [vmem:[%s4 + $0x4e0] sm:$0xff]
      %v6746 = vld [vmem:[%s4 + $0x4e8] sm:$0xff]
      %v6747 = vld [vmem:[%s4 + $0x4f0] sm:$0xff]
      %v6748 = vld [vmem:[%s4 + $0x4f8] sm:$0xff]
      %v6749 = vld [vmem:[%s5] sm:$0x3]
      %v6750 = vld [vmem:[%s6] sm:$0xff]
      %v6751 = vld [vmem:[%s6 + $0x8] sm:$0xff]
      %v6752 = vld [vmem:[%s6 + $0x10] sm:$0xff]
      %v6753 = vld [vmem:[%s6 + $0x18] sm:$0xff]
      %v6754 = vld [vmem:[%s6 + $0x20] sm:$0xff]
      %v6755 = vld [vmem:[%s6 + $0x28] sm:$0xff]
      %v6756 = vld [vmem:[%s6 + $0x30] sm:$0xff]
      %v6757 = vld [vmem:[%s6 + $0x38] sm:$0xff]
      %v6758 = vld [vmem:[%s6 + $0x40] sm:$0xff]
      %v6759 = vld [vmem:[%s6 + $0x48] sm:$0xff]
      %v6760 = vld [vmem:[%s6 + $0x50] sm:$0xff]
      %v6761 = vld [vmem:[%s6 + $0x58] sm:$0xff]
      %v6762 = vld [vmem:[%s6 + $0x60] sm:$0xff]
      %v6763 = vld [vmem:[%s6 + $0x68] sm:$0xff]
      %v6764 = vld [vmem:[%s6 + $0x70] sm:$0xff]
      %v6765 = vld [vmem:[%s6 + $0x78] sm:$0xff]
      %v6766 = vld [vmem:[%s6 + $0x80] sm:$0xff]
      %v6767 = vld [vmem:[%s6 + $0x88] sm:$0xff]
      %v6768 = vld [vmem:[%s6 + $0x90] sm:$0xff]
      %v6769 = vld [vmem:[%s6 + $0x98] sm:$0xff]
      %v6770 = vld [vmem:[#allocation2] sm:$0xff]
      %v6771 = vld [vmem:[%s1391] sm:$0xff]
      %v6772 = vld [vmem:[%s1824] sm:$0xff]
      %v6773 = vld [vmem:[%s2257] sm:$0xff]
      %v6774 = vld [vmem:[%s2690] sm:$0xff]
      %v6776 = vlaneseq
      %v6777 = vshrl.u32 %v6776, 7
      %v6778 = vsub.s32 0, %v6777
      %v6779 = vrot.slane %v6749, %v6778
      %v6780 = vlaneseq
      %v6781 = vshrl.u32 %v6780, 7
      %v6782 = vsub.s32 1, %v6781
      %v6783 = vrot.slane %v6749, %v6782
      %6786 = vmatprep.subr.mxu0 %v6620
      %6787 = vmatpush1.msra.mxu0 %v6619
      %6788 = vmatprep.subr.mxu0 %v6618
      %6789 = vmatpush1.msra.mxu0 %v6617
      %6790 = vmatprep.subr.mxu0 %v6616
      %6791 = vmatpush1.msra.mxu0 %v6615
      %6792 = vmatprep.subr.mxu0 %v6614
      %6793 = vmatpush1.msra.mxu0 %v6613
      %6794 = vmatprep.subr.mxu0 %v6612
      %6795 = vmatpush1.msra.mxu0 %v6611
      %6796 = vmatprep.subr.mxu0 %v6610
      %6797 = vmatpush1.msra.mxu0 %v6609
      %6798 = vmatprep.subr.mxu0 %v6608
      %6799 = vmatpush1.msra.mxu0 %v6607
      %6800 = vmatprep.subr.mxu0 %v6606
      %6801 = vmatpush1.msra.mxu0 %v6605
      %6802 = vmatprep.subr.mxu0 %v6604
      %6803 = vmatpush1.msra.mxu0 %v6603
      %6804 = vmatprep.subr.mxu0 %v6602
      %6805 = vmatpush1.msra.mxu0 %v6601
      %6806 = vmatprep.subr.mxu0 %v6600
      %6807 = vmatpush1.msra.mxu0 %v6599
      %6808 = vmatprep.subr.mxu0 %v6598
      %6809 = vmatpush1.msra.mxu0 %v6597
      %6810 = vmatprep.subr.mxu0 %v6596
      %6811 = vmatpush1.msra.mxu0 %v6595
      %6812 = vmatprep.subr.mxu0 %v6594
      %6813 = vmatpush1.msra.mxu0 %v6593
      %6814 = vmatprep.subr.mxu0 %v6592
      %6815 = vmatpush1.msra.mxu0 %v6591
      %6816 = vmatprep.subr.mxu0 %v6590
      %6817 = vmatpush1.msra.mxu0 %v6589
      %6818 = vmatprep.subr.mxu0 %v6652
      %6819 = vmatpush2.msra.mxu0 %v6651
      %6820 = vmatprep.subr.mxu0 %v6650
      %6821 = vmatpush2.msra.mxu0 %v6649
      %6822 = vmatprep.subr.mxu0 %v6648
      %6823 = vmatpush2.msra.mxu0 %v6647
      %6824 = vmatprep.subr.mxu0 %v6646
      %6825 = vmatpush2.msra.mxu0 %v6645
      %6826 = vmatprep.subr.mxu0 %v6644
      %6827 = vmatpush2.msra.mxu0 %v6643
      %6828 = vmatprep.subr.mxu0 %v6642
      %6829 = vmatpush2.msra.mxu0 %v6641
      %6830 = vmatprep.subr.mxu0 %v6640
      %6831 = vmatpush2.msra.mxu0 %v6639
      %6832 = vmatprep.subr.mxu0 %v6638
      %6833 = vmatpush2.msra.mxu0 %v6637
      %6834 = vmatprep.subr.mxu0 %v6636
      %6835 = vmatpush2.msra.mxu0 %v6635
      %6836 = vmatprep.subr.mxu0 %v6634
      %6837 = vmatpush2.msra.mxu0 %v6633
      %6838 = vmatprep.subr.mxu0 %v6632
      %6839 = vmatpush2.msra.mxu0 %v6631
      %6840 = vmatprep.subr.mxu0 %v6630
      %6841 = vmatpush2.msra.mxu0 %v6629
      %6842 = vmatprep.subr.mxu0 %v6628
      %6843 = vmatpush2.msra.mxu0 %v6627
      %6844 = vmatprep.subr.mxu0 %v6626
      %6845 = vmatpush2.msra.mxu0 %v6625
      %6846 = vmatprep.subr.mxu0 %v6624
      %6847 = vmatpush2.msra.mxu0 %v6623
      %6848 = vmatprep.subr.mxu0 %v6622
      %6849 = vmatpush2.msra.mxu0 %v6621
      %6850 = vmatprep.mubr.f32.mxu0 %v6771
      %6851 = vmatmul.mubr.f32.gmra.mxu0 %v6770
      %v6852 = vpop.f32.mrf.mxu0
      %v6853 = vadd.f32 %v6779, %v6852
      %v6854 = vpop.f32.mrf.mxu0
      %v6855 = vadd.f32 %v6783, %v6854
      %6856 = vdwg.mxu0
      %6857 = vmatprep.subr.mxu0 %v6684
      %6858 = vmatpush1.msra.mxu0 %v6683
      %6859 = vmatprep.subr.mxu0 %v6682
      %6860 = vmatpush1.msra.mxu0 %v6681
      %6861 = vmatprep.subr.mxu0 %v6680
      %6862 = vmatpush1.msra.mxu0 %v6679
      %6863 = vmatprep.subr.mxu0 %v6678
      %6864 = vmatpush1.msra.mxu0 %v6677
      %6865 = vmatprep.subr.mxu0 %v6676
      %6866 = vmatpush1.msra.mxu0 %v6675
      %6867 = vmatprep.subr.mxu0 %v6674
      %6868 = vmatpush1.msra.mxu0 %v6673
      %6869 = vmatprep.subr.mxu0 %v6672
      %6870 = vmatpush1.msra.mxu0 %v6671
      %6871 = vmatprep.subr.mxu0 %v6670
      %6872 = vmatpush1.msra.mxu0 %v6669
      %6873 = vmatprep.subr.mxu0 %v6668
      %6874 = vmatpush1.msra.mxu0 %v6667
      %6875 = vmatprep.subr.mxu0 %v6666
      %6876 = vmatpush1.msra.mxu0 %v6665
      %6877 = vmatprep.subr.mxu0 %v6664
      %6878 = vmatpush1.msra.mxu0 %v6663
      %6879 = vmatprep.subr.mxu0 %v6662
      %6880 = vmatpush1.msra.mxu0 %v6661
      %6881 = vmatprep.subr.mxu0 %v6660
      %6882 = vmatpush1.msra.mxu0 %v6659
      %6883 = vmatprep.subr.mxu0 %v6658
      %6884 = vmatpush1.msra.mxu0 %v6657
      %6885 = vmatprep.subr.mxu0 %v6656
      %6886 = vmatpush1.msra.mxu0 %v6655
      %6887 = vmatprep.subr.mxu0 %v6654
      %6888 = vmatpush1.msra.mxu0 %v6653
      %6889 = vmatprep.subr.mxu0 %v6716
      %6890 = vmatpush2.msra.mxu0 %v6715
      %6891 = vmatprep.subr.mxu0 %v6714
      %6892 = vmatpush2.msra.mxu0 %v6713
      %6893 = vmatprep.subr.mxu0 %v6712
      %6894 = vmatpush2.msra.mxu0 %v6711
      %6895 = vmatprep.subr.mxu0 %v6710
      %6896 = vmatpush2.msra.mxu0 %v6709
      %6897 = vmatprep.subr.mxu0 %v6708
      %6898 = vmatpush2.msra.mxu0 %v6707
      %6899 = vmatprep.subr.mxu0 %v6706
      %6900 = vmatpush2.msra.mxu0 %v6705
      %6901 = vmatprep.subr.mxu0 %v6704
      %6902 = vmatpush2.msra.mxu0 %v6703
      %6903 = vmatprep.subr.mxu0 %v6702
      %6904 = vmatpush2.msra.mxu0 %v6701
      %6905 = vmatprep.subr.mxu0 %v6700
      %6906 = vmatpush2.msra.mxu0 %v6699
      %6907 = vmatprep.subr.mxu0 %v6698
      %6908 = vmatpush2.msra.mxu0 %v6697
      %6909 = vmatprep.subr.mxu0 %v6696
      %6910 = vmatpush2.msra.mxu0 %v6695
      %6911 = vmatprep.subr.mxu0 %v6694
      %6912 = vmatpush2.msra.mxu0 %v6693
      %6913 = vmatprep.subr.mxu0 %v6692
      %6914 = vmatpush2.msra.mxu0 %v6691
      %6915 = vmatprep.subr.mxu0 %v6690
      %6916 = vmatpush2.msra.mxu0 %v6689
      %6917 = vmatprep.subr.mxu0 %v6688
      %6918 = vmatpush2.msra.mxu0 %v6687
      %6919 = vmatprep.subr.mxu0 %v6686
      %6920 = vmatpush2.msra.mxu0 %v6685
      %6921 = vmatprep.mubr.f32.mxu0 %v6773
      %6922 = vmatmul.mubr.f32.gmra.mxu0 %v6772
      %v6923 = vpop.f32.mrf.mxu0
      %v6924 = vadd.f32 %v6853, %v6923
      %v6925 = vpop.f32.mrf.mxu0
      %v6926 = vadd.f32 %v6855, %v6925
      %6927 = vdwg.mxu0
      %6928 = vmatprep.subr.mxu0 %v6748
      %6929 = vmatpush1.msra.mxu0 %v6747
      %6930 = vmatprep.subr.mxu0 %v6746
      %6931 = vmatpush1.msra.mxu0 %v6745
      %6932 = vmatprep.subr.mxu0 %v6744
      %6933 = vmatpush1.msra.mxu0 %v6743
      %6934 = vmatprep.subr.mxu0 %v6742
      %6935 = vmatpush1.msra.mxu0 %v6741
      %6936 = vmatprep.subr.mxu0 %v6740
      %6937 = vmatpush1.msra.mxu0 %v6739
      %6938 = vmatprep.subr.mxu0 %v6738
      %6939 = vmatpush1.msra.mxu0 %v6737
      %6940 = vmatprep.subr.mxu0 %v6736
      %6941 = vmatpush1.msra.mxu0 %v6735
      %6942 = vmatprep.subr.mxu0 %v6734
      %6943 = vmatpush1.msra.mxu0 %v6733
      %6944 = vmatprep.subr.mxu0 %v6732
      %6945 = vmatpush1.msra.mxu0 %v6731
      %6946 = vmatprep.subr.mxu0 %v6730
      %6947 = vmatpush1.msra.mxu0 %v6729
      %6948 = vmatprep.subr.mxu0 %v6728
      %6949 = vmatpush1.msra.mxu0 %v6727
      %6950 = vmatprep.subr.mxu0 %v6726
      %6951 = vmatpush1.msra.mxu0 %v6725
      %6952 = vmatprep.subr.mxu0 %v6724
      %6953 = vmatpush1.msra.mxu0 %v6723
      %6954 = vmatprep.subr.mxu0 %v6722
      %6955 = vmatpush1.msra.mxu0 %v6721
      %6956 = vmatprep.subr.mxu0 %v6720
      %6957 = vmatpush1.msra.mxu0 %v6719
      %6958 = vmatprep.subr.mxu0 %v6718
      %6959 = vmatpush1.msra.mxu0 %v6717
      %6960 = vmatprep.subr.mxu0 0.0
      %6961 = vmatpush2.msra.mxu0 0.0
      %6962 = vmatprep.subr.mxu0 0.0
      %6963 = vmatpush2.msra.mxu0 0.0
      %6964 = vmatprep.subr.mxu0 0.0
      %6965 = vmatpush2.msra.mxu0 0.0
      %6966 = vmatprep.subr.mxu0 0.0
      %6967 = vmatpush2.msra.mxu0 0.0
      %6968 = vmatprep.subr.mxu0 0.0
      %6969 = vmatpush2.msra.mxu0 0.0
      %6970 = vmatprep.subr.mxu0 0.0
      %6971 = vmatpush2.msra.mxu0 0.0
      %6972 = vmatprep.subr.mxu0 0.0
      %6973 = vmatpush2.msra.mxu0 0.0
      %6974 = vmatprep.subr.mxu0 0.0
      %6975 = vmatpush2.msra.mxu0 0.0
      %6976 = vmatprep.subr.mxu0 0.0
      %6977 = vmatpush2.msra.mxu0 0.0
      %6978 = vmatprep.subr.mxu0 0.0
      %6979 = vmatpush2.msra.mxu0 0.0
      %6980 = vmatprep.subr.mxu0 0.0
      %6981 = vmatpush2.msra.mxu0 0.0
      %6982 = vmatprep.subr.mxu0 0.0
      %6983 = vmatpush2.msra.mxu0 0.0
      %6984 = vmatprep.subr.mxu0 0.0
      %6985 = vmatpush2.msra.mxu0 0.0
      %6986 = vmatprep.subr.mxu0 0.0
      %6987 = vmatpush2.msra.mxu0 0.0
      %6988 = vmatprep.subr.mxu0 0.0
      %6989 = vmatpush2.msra.mxu0 0.0
      %6990 = vmatprep.subr.mxu0 0.0
      %6991 = vmatpush2.msra.mxu0 0.0
      %6992 = vmatprep.mubr.f32.mxu0 0.0
      %6993 = vmatmul.mubr.f32.gmra.mxu0 %v6774
      %v6994 = vpop.f32.mrf.mxu0
      %v6995 = vadd.f32 %v6924, %v6994
      %v6996 = vpop.f32.mrf.mxu0
      %v6997 = vadd.f32 %v6926, %v6996
      %6998 = vdwg.mxu0
      %v6999 = vtanh.pop %v6995
      %v7000 = vtanh.pop %v6997
      %v7001 = vld [vmem:[%s3123] sm:$0xff]
      %7002 = vmatprep.subr.mxu0 %v6620
      %7003 = vmatpush1.msra.mxu0 %v6619
      %7004 = vmatprep.subr.mxu0 %v6618
      %7005 = vmatpush1.msra.mxu0 %v6617
      %7006 = vmatprep.subr.mxu0 %v6616
      %7007 = vmatpush1.msra.mxu0 %v6615
      %7008 = vmatprep.subr.mxu0 %v6614
      %7009 = vmatpush1.msra.mxu0 %v6613
      %7010 = vmatprep.subr.mxu0 %v6612
      %7011 = vmatpush1.msra.mxu0 %v6611
      %7012 = vmatprep.subr.mxu0 %v6610
      %7013 = vmatpush1.msra.mxu0 %v6609
      %7014 = vmatprep.subr.mxu0 %v6608
      %7015 = vmatpush1.msra.mxu0 %v6607
      %7016 = vmatprep.subr.mxu0 %v6606
      %7017 = vmatpush1.msra.mxu0 %v6605
      %7018 = vmatprep.subr.mxu0 %v6604
      %7019 = vmatpush1.msra.mxu0 %v6603
      %7020 = vmatprep.subr.mxu0 %v6602
      %7021 = vmatpush1.msra.mxu0 %v6601
      %7022 = vmatprep.subr.mxu0 %v6600
      %7023 = vmatpush1.msra.mxu0 %v6599
      %7024 = vmatprep.subr.mxu0 %v6598
      %7025 = vmatpush1.msra.mxu0 %v6597
      %7026 = vmatprep.subr.mxu0 %v6596
      %7027 = vmatpush1.msra.mxu0 %v6595
      %7028 = vmatprep.subr.mxu0 %v6594
      %7029 = vmatpush1.msra.mxu0 %v6593
      %7030 = vmatprep.subr.mxu0 %v6592
      %7031 = vmatpush1.msra.mxu0 %v6591
      %7032 = vmatprep.subr.mxu0 %v6590
      %7033 = vmatpush1.msra.mxu0 %v6589
      %7034 = vmatprep.subr.mxu0 %v6652
      %7035 = vmatpush2.msra.mxu0 %v6651
      %7036 = vmatprep.subr.mxu0 %v6650
      %7037 = vmatpush2.msra.mxu0 %v6649
      %7038 = vmatprep.subr.mxu0 %v6648
      %7039 = vmatpush2.msra.mxu0 %v6647
      %7040 = vmatprep.subr.mxu0 %v6646
      %7041 = vmatpush2.msra.mxu0 %v6645
      %7042 = vmatprep.subr.mxu0 %v6644
      %7043 = vmatpush2.msra.mxu0 %v6643
      %7044 = vmatprep.subr.mxu0 %v6642
      %7045 = vmatpush2.msra.mxu0 %v6641
      %7046 = vmatprep.subr.mxu0 %v6640
      %7047 = vmatpush2.msra.mxu0 %v6639
      %7048 = vmatprep.subr.mxu0 %v6638
      %7049 = vmatpush2.msra.mxu0 %v6637
      %7050 = vmatprep.subr.mxu0 %v6636
      %7051 = vmatpush2.msra.mxu0 %v6635
      %7052 = vmatprep.subr.mxu0 %v6634
      %7053 = vmatpush2.msra.mxu0 %v6633
      %7054 = vmatprep.subr.mxu0 %v6632
      %7055 = vmatpush2.msra.mxu0 %v6631
      %7056 = vmatprep.subr.mxu0 %v6630
      %7057 = vmatpush2.msra.mxu0 %v6629
      %7058 = vmatprep.subr.mxu0 %v6628
      %7059 = vmatpush2.msra.mxu0 %v6627
      %7060 = vmatprep.subr.mxu0 %v6626
      %7061 = vmatpush2.msra.mxu0 %v6625
      %7062 = vmatprep.subr.mxu0 %v6624
      %7063 = vmatpush2.msra.mxu0 %v6623
      %7064 = vmatprep.subr.mxu0 %v6622
      %7065 = vmatpush2.msra.mxu0 %v6621
      %7066 = vmatprep.mubr.f32.mxu0 %v6772
      %7067 = vmatmul.mubr.f32.gmra.mxu0 %v6771
      %v7068 = vpop.f32.mrf.mxu0
      %v7069 = vadd.f32 %v6779, %v7068
      %v7070 = vpop.f32.mrf.mxu0
      %v7071 = vadd.f32 %v6783, %v7070
      %7072 = vdwg.mxu0
      %7073 = vmatprep.subr.mxu0 %v6684
      %7074 = vmatpush1.msra.mxu0 %v6683
      %7075 = vmatprep.subr.mxu0 %v6682
      %7076 = vmatpush1.msra.mxu0 %v6681
      %7077 = vmatprep.subr.mxu0 %v6680
      %7078 = vmatpush1.msra.mxu0 %v6679
      %7079 = vmatprep.subr.mxu0 %v6678
      %7080 = vmatpush1.msra.mxu0 %v6677
      %7081 = vmatprep.subr.mxu0 %v6676
      %7082 = vmatpush1.msra.mxu0 %v6675
      %7083 = vmatprep.subr.mxu0 %v6674
      %7084 = vmatpush1.msra.mxu0 %v6673
      %7085 = vmatprep.subr.mxu0 %v6672
      %7086 = vmatpush1.msra.mxu0 %v6671
      %7087 = vmatprep.subr.mxu0 %v6670
      %7088 = vmatpush1.msra.mxu0 %v6669
      %7089 = vmatprep.subr.mxu0 %v6668
      %7090 = vmatpush1.msra.mxu0 %v6667
      %7091 = vmatprep.subr.mxu0 %v6666
      %7092 = vmatpush1.msra.mxu0 %v6665
      %7093 = vmatprep.subr.mxu0 %v6664
      %7094 = vmatpush1.msra.mxu0 %v6663
      %7095 = vmatprep.subr.mxu0 %v6662
      %7096 = vmatpush1.msra.mxu0 %v6661
      %7097 = vmatprep.subr.mxu0 %v6660
      %7098 = vmatpush1.msra.mxu0 %v6659
      %7099 = vmatprep.subr.mxu0 %v6658
      %7100 = vmatpush1.msra.mxu0 %v6657
      %7101 = vmatprep.subr.mxu0 %v6656
      %7102 = vmatpush1.msra.mxu0 %v6655
      %7103 = vmatprep.subr.mxu0 %v6654
      %7104 = vmatpush1.msra.mxu0 %v6653
      %7105 = vmatprep.subr.mxu0 %v6716
      %7106 = vmatpush2.msra.mxu0 %v6715
      %7107 = vmatprep.subr.mxu0 %v6714
      %7108 = vmatpush2.msra.mxu0 %v6713
      %7109 = vmatprep.subr.mxu0 %v6712
      %7110 = vmatpush2.msra.mxu0 %v6711
      %7111 = vmatprep.subr.mxu0 %v6710
      %7112 = vmatpush2.msra.mxu0 %v6709
      %7113 = vmatprep.subr.mxu0 %v6708
      %7114 = vmatpush2.msra.mxu0 %v6707
      %7115 = vmatprep.subr.mxu0 %v6706
      %7116 = vmatpush2.msra.mxu0 %v6705
      %7117 = vmatprep.subr.mxu0 %v6704
      %7118 = vmatpush2.msra.mxu0 %v6703
      %7119 = vmatprep.subr.mxu0 %v6702
      %7120 = vmatpush2.msra.mxu0 %v6701
      %7121 = vmatprep.subr.mxu0 %v6700
      %7122 = vmatpush2.msra.mxu0 %v6699
      %7123 = vmatprep.subr.mxu0 %v6698
      %7124 = vmatpush2.msra.mxu0 %v6697
      %7125 = vmatprep.subr.mxu0 %v6696
      %7126 = vmatpush2.msra.mxu0 %v6695
      %7127 = vmatprep.subr.mxu0 %v6694
      %7128 = vmatpush2.msra.mxu0 %v6693
      %7129 = vmatprep.subr.mxu0 %v6692
      %7130 = vmatpush2.msra.mxu0 %v6691
      %7131 = vmatprep.subr.mxu0 %v6690
      %7132 = vmatpush2.msra.mxu0 %v6689
      %7133 = vmatprep.subr.mxu0 %v6688
      %7134 = vmatpush2.msra.mxu0 %v6687
      %7135 = vmatprep.subr.mxu0 %v6686
      %7136 = vmatpush2.msra.mxu0 %v6685
      %7137 = vmatprep.mubr.f32.mxu0 %v6774
      %7138 = vmatmul.mubr.f32.gmra.mxu0 %v6773
      %v7139 = vpop.f32.mrf.mxu0
      %v7140 = vadd.f32 %v7069, %v7139
      %v7141 = vpop.f32.mrf.mxu0
      %v7142 = vadd.f32 %v7071, %v7141
      %7143 = vdwg.mxu0
      %7144 = vmatprep.subr.mxu0 %v6748
      %7145 = vmatpush1.msra.mxu0 %v6747
      %7146 = vmatprep.subr.mxu0 %v6746
      %7147 = vmatpush1.msra.mxu0 %v6745
      %7148 = vmatprep.subr.mxu0 %v6744
      %7149 = vmatpush1.msra.mxu0 %v6743
      %7150 = vmatprep.subr.mxu0 %v6742
      %7151 = vmatpush1.msra.mxu0 %v6741
      %7152 = vmatprep.subr.mxu0 %v6740
      %7153 = vmatpush1.msra.mxu0 %v6739
      %7154 = vmatprep.subr.mxu0 %v6738
      %7155 = vmatpush1.msra.mxu0 %v6737
      %7156 = vmatprep.subr.mxu0 %v6736
      %7157 = vmatpush1.msra.mxu0 %v6735
      %7158 = vmatprep.subr.mxu0 %v6734
      %7159 = vmatpush1.msra.mxu0 %v6733
      %7160 = vmatprep.subr.mxu0 %v6732
      %7161 = vmatpush1.msra.mxu0 %v6731
      %7162 = vmatprep.subr.mxu0 %v6730
      %7163 = vmatpush1.msra.mxu0 %v6729
      %7164 = vmatprep.subr.mxu0 %v6728
      %7165 = vmatpush1.msra.mxu0 %v6727
      %7166 = vmatprep.subr.mxu0 %v6726
      %7167 = vmatpush1.msra.mxu0 %v6725
      %7168 = vmatprep.subr.mxu0 %v6724
      %7169 = vmatpush1.msra.mxu0 %v6723
      %7170 = vmatprep.subr.mxu0 %v6722
      %7171 = vmatpush1.msra.mxu0 %v6721
      %7172 = vmatprep.subr.mxu0 %v6720
      %7173 = vmatpush1.msra.mxu0 %v6719
      %7174 = vmatprep.subr.mxu0 %v6718
      %7175 = vmatpush1.msra.mxu0 %v6717
      %7176 = vmatprep.subr.mxu0 0.0
      %7177 = vmatpush2.msra.mxu0 0.0
      %7178 = vmatprep.subr.mxu0 0.0
      %7179 = vmatpush2.msra.mxu0 0.0
      %7180 = vmatprep.subr.mxu0 0.0
      %7181 = vmatpush2.msra.mxu0 0.0
      %7182 = vmatprep.subr.mxu0 0.0
      %7183 = vmatpush2.msra.mxu0 0.0
      %7184 = vmatprep.subr.mxu0 0.0
      %7185 = vmatpush2.msra.mxu0 0.0
      %7186 = vmatprep.subr.mxu0 0.0
      %7187 = vmatpush2.msra.mxu0 0.0
      %7188 = vmatprep.subr.mxu0 0.0
      %7189 = vmatpush2.msra.mxu0 0.0
      %7190 = vmatprep.subr.mxu0 0.0
      %7191 = vmatpush2.msra.mxu0 0.0
      %7192 = vmatprep.subr.mxu0 0.0
      %7193 = vmatpush2.msra.mxu0 0.0
      %7194 = vmatprep.subr.mxu0 0.0
      %7195 = vmatpush2.msra.mxu0 0.0
      %7196 = vmatprep.subr.mxu0 0.0
      %7197 = vmatpush2.msra.mxu0 0.0
      %7198 = vmatprep.subr.mxu0 0.0
      %7199 = vmatpush2.msra.mxu0 0.0
      %7200 = vmatprep.subr.mxu0 0.0
      %7201 = vmatpush2.msra.mxu0 0.0
      %7202 = vmatprep.subr.mxu0 0.0
      %7203 = vmatpush2.msra.mxu0 0.0
      %7204 = vmatprep.subr.mxu0 0.0
      %7205 = vmatpush2.msra.mxu0 0.0
      %7206 = vmatprep.subr.mxu0 0.0
      %7207 = vmatpush2.msra.mxu0 0.0
      %7208 = vmatprep.mubr.f32.mxu0 0.0
      %7209 = vmatmul.mubr.f32.gmra.mxu0 %v7001
      %v7210 = vpop.f32.mrf.mxu0
      %v7211 = vadd.f32 %v7140, %v7210
      %v7212 = vpop.f32.mrf.mxu0
      %v7213 = vadd.f32 %v7142, %v7212
      %7214 = vdwg.mxu0
      %v7215 = vtanh.pop %v7211
      %v7216 = vtanh.pop %v7213
      %v7217 = vadd.f32 %v6999, %v7215
      %v7218 = vadd.f32 %v7000, %v7216
      %v7220 = vsel %vm673, %v7218, 0
      %7222 = vmatprep.subr.mxu0 0.0
      %7223 = vmatpush1.msra.mxu0 %v6765
      %7224 = vmatprep.subr.mxu0 0.0
      %7225 = vmatpush1.msra.mxu0 %v6764
      %7226 = vmatprep.subr.mxu0 0.0
      %7227 = vmatpush1.msra.mxu0 %v6763
      %7228 = vmatprep.subr.mxu0 0.0
      %7229 = vmatpush1.msra.mxu0 %v6762
      %7230 = vmatprep.subr.mxu0 0.0
      %7231 = vmatpush1.msra.mxu0 %v6761
      %7232 = vmatprep.subr.mxu0 0.0
      %7233 = vmatpush1.msra.mxu0 %v6760
      %7234 = vmatprep.subr.mxu0 0.0
      %7235 = vmatpush1.msra.mxu0 %v6759
      %7236 = vmatprep.subr.mxu0 0.0
      %7237 = vmatpush1.msra.mxu0 %v6758
      %7238 = vmatprep.subr.mxu0 0.0
      %7239 = vmatpush1.msra.mxu0 %v6757
      %7240 = vmatprep.subr.mxu0 0.0
      %7241 = vmatpush1.msra.mxu0 %v6756
      %7242 = vmatprep.subr.mxu0 0.0
      %7243 = vmatpush1.msra.mxu0 %v6755
      %7244 = vmatprep.subr.mxu0 0.0
      %7245 = vmatpush1.msra.mxu0 %v6754
      %7246 = vmatprep.subr.mxu0 0.0
      %7247 = vmatpush1.msra.mxu0 %v6753
      %7248 = vmatprep.subr.mxu0 0.0
      %7249 = vmatpush1.msra.mxu0 %v6752
      %7250 = vmatprep.subr.mxu0 0.0
      %7251 = vmatpush1.msra.mxu0 %v6751
      %7252 = vmatprep.subr.mxu0 0.0
      %7253 = vmatpush1.msra.mxu0 %v6750
      %7254 = vmatprep.subr.mxu0 0.0
      %7255 = vmatpush2.msra.mxu0 0.0
      %7256 = vmatprep.subr.mxu0 0.0
      %7257 = vmatpush2.msra.mxu0 0.0
      %7258 = vmatprep.subr.mxu0 0.0
      %7259 = vmatpush2.msra.mxu0 0.0
      %7260 = vmatprep.subr.mxu0 0.0
      %7261 = vmatpush2.msra.mxu0 0.0
      %7262 = vmatprep.subr.mxu0 0.0
      %7263 = vmatpush2.msra.mxu0 0.0
      %7264 = vmatprep.subr.mxu0 0.0
      %7265 = vmatpush2.msra.mxu0 0.0
      %7266 = vmatprep.subr.mxu0 0.0
      %7267 = vmatpush2.msra.mxu0 0.0
      %7268 = vmatprep.subr.mxu0 0.0
      %7269 = vmatpush2.msra.mxu0 0.0
      %7270 = vmatprep.subr.mxu0 0.0
      %7271 = vmatpush2.msra.mxu0 0.0
      %7272 = vmatprep.subr.mxu0 0.0
      %7273 = vmatpush2.msra.mxu0 0.0
      %7274 = vmatprep.subr.mxu0 0.0
      %7275 = vmatpush2.msra.mxu0 0.0
      %7276 = vmatprep.subr.mxu0 0.0
      %7277 = vmatpush2.msra.mxu0 0.0
      %7278 = vmatprep.subr.mxu0 0.0
      %7279 = vmatpush2.msra.mxu0 %v6769
      %7280 = vmatprep.subr.mxu0 0.0
      %7281 = vmatpush2.msra.mxu0 %v6768
      %7282 = vmatprep.subr.mxu0 0.0
      %7283 = vmatpush2.msra.mxu0 %v6767
      %7284 = vmatprep.subr.mxu0 0.0
      %7285 = vmatpush2.msra.mxu0 %v6766
      %7286 = vmatprep.mubr.f32.mxu0 %v7220
      %7287 = vmatmul.mubr.f32.gmra.mxu0 %v7217
      %v7288 = vpop.f32.mrf.mxu0
      %v7289 = vadd.f32 0.0, %v7288
      %v7290 = vpop.f32.mrf.mxu0
      %7291 = vdwg.mxu0
      %7292 = vst [vmem:[#allocation3] sm:$0xff] %v7289
      %v7293 = vld [vmem:[%s1824] sm:$0xff]
      %v7294 = vld [vmem:[%s2257] sm:$0xff]
      %v7295 = vld [vmem:[%s2690] sm:$0xff]
      %v7296 = vld [vmem:[%s3123] sm:$0xff]
      %v7297 = vld [vmem:[%s3556] sm:$0xff]
      %7298 = vmatprep.subr.mxu0 %v6620
      %7299 = vmatpush1.msra.mxu0 %v6619
      %7300 = vmatprep.subr.mxu0 %v6618
      %7301 = vmatpush1.msra.mxu0 %v6617
      %7302 = vmatprep.subr.mxu0 %v6616
      %7303 = vmatpush1.msra.mxu0 %v6615
      %7304 = vmatprep.subr.mxu0 %v6614
      %7305 = vmatpush1.msra.mxu0 %v6613
      %7306 = vmatprep.subr.mxu0 %v6612
      %7307 = vmatpush1.msra.mxu0 %v6611
      %7308 = vmatprep.subr.mxu0 %v6610
      %7309 = vmatpush1.msra.mxu0 %v6609
      %7310 = vmatprep.subr.mxu0 %v6608
      %7311 = vmatpush1.msra.mxu0 %v6607
      %7312 = vmatprep.subr.mxu0 %v6606
      %7313 = vmatpush1.msra.mxu0 %v6605
      %7314 = vmatprep.subr.mxu0 %v6604
      %7315 = vmatpush1.msra.mxu0 %v6603
      %7316 = vmatprep.subr.mxu0 %v6602
      %7317 = vmatpush1.msra.mxu0 %v6601
      %7318 = vmatprep.subr.mxu0 %v6600
      %7319 = vmatpush1.msra.mxu0 %v6599
      %7320 = vmatprep.subr.mxu0 %v6598
      %7321 = vmatpush1.msra.mxu0 %v6597
      %7322 = vmatprep.subr.mxu0 %v6596
      %7323 = vmatpush1.msra.mxu0 %v6595
      %7324 = vmatprep.subr.mxu0 %v6594
      %7325 = vmatpush1.msra.mxu0 %v6593
      %7326 = vmatprep.subr.mxu0 %v6592
      %7327 = vmatpush1.msra.mxu0 %v6591
      %7328 = vmatprep.subr.mxu0 %v6590
      %7329 = vmatpush1.msra.mxu0 %v6589
      %7330 = vmatprep.subr.mxu0 %v6652
      %7331 = vmatpush2.msra.mxu0 %v6651
      %7332 = vmatprep.subr.mxu0 %v6650
      %7333 = vmatpush2.msra.mxu0 %v6649
      %7334 = vmatprep.subr.mxu0 %v6648
      %7335 = vmatpush2.msra.mxu0 %v6647
      %7336 = vmatprep.subr.mxu0 %v6646
      %7337 = vmatpush2.msra.mxu0 %v6645
      %7338 = vmatprep.subr.mxu0 %v6644
      %7339 = vmatpush2.msra.mxu0 %v6643
      %7340 = vmatprep.subr.mxu0 %v6642
      %7341 = vmatpush2.msra.mxu0 %v6641
      %7342 = vmatprep.subr.mxu0 %v6640
      %7343 = vmatpush2.msra.mxu0 %v6639
      %7344 = vmatprep.subr.mxu0 %v6638
      %7345 = vmatpush2.msra.mxu0 %v6637
      %7346 = vmatprep.subr.mxu0 %v6636
      %7347 = vmatpush2.msra.mxu0 %v6635
      %7348 = vmatprep.subr.mxu0 %v6634
      %7349 = vmatpush2.msra.mxu0 %v6633
      %7350 = vmatprep.subr.mxu0 %v6632
      %7351 = vmatpush2.msra.mxu0 %v6631
      %7352 = vmatprep.subr.mxu0 %v6630
      %7353 = vmatpush2.msra.mxu0 %v6629
      %7354 = vmatprep.subr.mxu0 %v6628
      %7355 = vmatpush2.msra.mxu0 %v6627
      %7356 = vmatprep.subr.mxu0 %v6626
      %7357 = vmatpush2.msra.mxu0 %v6625
      %7358 = vmatprep.subr.mxu0 %v6624
      %7359 = vmatpush2.msra.mxu0 %v6623
      %7360 = vmatprep.subr.mxu0 %v6622
      %7361 = vmatpush2.msra.mxu0 %v6621
      %7362 = vmatprep.mubr.f32.mxu0 %v7294
      %7363 = vmatmul.mubr.f32.gmra.mxu0 %v7293
      %v7364 = vpop.f32.mrf.mxu0
      %v7365 = vadd.f32 %v6779, %v7364
      %v7366 = vpop.f32.mrf.mxu0
      %v7367 = vadd.f32 %v6783, %v7366
      %7368 = vdwg.mxu0
      %7369 = vmatprep.subr.mxu0 %v6684
      %7370 = vmatpush1.msra.mxu0 %v6683
      %7371 = vmatprep.subr.mxu0 %v6682
      %7372 = vmatpush1.msra.mxu0 %v6681
      %7373 = vmatprep.subr.mxu0 %v6680
      %7374 = vmatpush1.msra.mxu0 %v6679
      %7375 = vmatprep.subr.mxu0 %v6678
      %7376 = vmatpush1.msra.mxu0 %v6677
      %7377 = vmatprep.subr.mxu0 %v6676
      %7378 = vmatpush1.msra.mxu0 %v6675
      %7379 = vmatprep.subr.mxu0 %v6674
      %7380 = vmatpush1.msra.mxu0 %v6673
      %7381 = vmatprep.subr.mxu0 %v6672
      %7382 = vmatpush1.msra.mxu0 %v6671
      %7383 = vmatprep.subr.mxu0 %v6670
      %7384 = vmatpush1.msra.mxu0 %v6669
      %7385 = vmatprep.subr.mxu0 %v6668
      %7386 = vmatpush1.msra.mxu0 %v6667
      %7387 = vmatprep.subr.mxu0 %v6666
      %7388 = vmatpush1.msra.mxu0 %v6665
      %7389 = vmatprep.subr.mxu0 %v6664
      %7390 = vmatpush1.msra.mxu0 %v6663
      %7391 = vmatprep.subr.mxu0 %v6662
      %7392 = vmatpush1.msra.mxu0 %v6661
      %7393 = vmatprep.subr.mxu0 %v6660
      %7394 = vmatpush1.msra.mxu0 %v6659
      %7395 = vmatprep.subr.mxu0 %v6658
      %7396 = vmatpush1.msra.mxu0 %v6657
      %7397 = vmatprep.subr.mxu0 %v6656
      %7398 = vmatpush1.msra.mxu0 %v6655
      %7399 = vmatprep.subr.mxu0 %v6654
      %7400 = vmatpush1.msra.mxu0 %v6653
      %7401 = vmatprep.subr.mxu0 %v6716
      %7402 = vmatpush2.msra.mxu0 %v6715
      %7403 = vmatprep.subr.mxu0 %v6714
      %7404 = vmatpush2.msra.mxu0 %v6713
      %7405 = vmatprep.subr.mxu0 %v6712
      %7406 = vmatpush2.msra.mxu0 %v6711
      %7407 = vmatprep.subr.mxu0 %v6710
      %7408 = vmatpush2.msra.mxu0 %v6709
      %7409 = vmatprep.subr.mxu0 %v6708
      %7410 = vmatpush2.msra.mxu0 %v6707
      %7411 = vmatprep.subr.mxu0 %v6706
      %7412 = vmatpush2.msra.mxu0 %v6705
      %7413 = vmatprep.subr.mxu0 %v6704
      %7414 = vmatpush2.msra.mxu0 %v6703
      %7415 = vmatprep.subr.mxu0 %v6702
      %7416 = vmatpush2.msra.mxu0 %v6701
      %7417 = vmatprep.subr.mxu0 %v6700
      %7418 = vmatpush2.msra.mxu0 %v6699
      %7419 = vmatprep.subr.mxu0 %v6698
      %7420 = vmatpush2.msra.mxu0 %v6697
      %7421 = vmatprep.subr.mxu0 %v6696
      %7422 = vmatpush2.msra.mxu0 %v6695
      %7423 = vmatprep.subr.mxu0 %v6694
      %7424 = vmatpush2.msra.mxu0 %v6693
      %7425 = vmatprep.subr.mxu0 %v6692
      %7426 = vmatpush2.msra.mxu0 %v6691
      %7427 = vmatprep.subr.mxu0 %v6690
      %7428 = vmatpush2.msra.mxu0 %v6689
      %7429 = vmatprep.subr.mxu0 %v6688
      %7430 = vmatpush2.msra.mxu0 %v6687
      %7431 = vmatprep.subr.mxu0 %v6686
      %7432 = vmatpush2.msra.mxu0 %v6685
      %7433 = vmatprep.mubr.f32.mxu0 %v7296
      %7434 = vmatmul.mubr.f32.gmra.mxu0 %v7295
      %v7435 = vpop.f32.mrf.mxu0
      %v7436 = vadd.f32 %v7365, %v7435
      %v7437 = vpop.f32.mrf.mxu0
      %v7438 = vadd.f32 %v7367, %v7437
      %7439 = vdwg.mxu0
      %7440 = vmatprep.subr.mxu0 %v6748
      %7441 = vmatpush1.msra.mxu0 %v6747
      %7442 = vmatprep.subr.mxu0 %v6746
      %7443 = vmatpush1.msra.mxu0 %v6745
      %7444 = vmatprep.subr.mxu0 %v6744
      %7445 = vmatpush1.msra.mxu0 %v6743
      %7446 = vmatprep.subr.mxu0 %v6742
      %7447 = vmatpush1.msra.mxu0 %v6741
      %7448 = vmatprep.subr.mxu0 %v6740
      %7449 = vmatpush1.msra.mxu0 %v6739
      %7450 = vmatprep.subr.mxu0 %v6738
      %7451 = vmatpush1.msra.mxu0 %v6737
      %7452 = vmatprep.subr.mxu0 %v6736
      %7453 = vmatpush1.msra.mxu0 %v6735
      %7454 = vmatprep.subr.mxu0 %v6734
      %7455 = vmatpush1.msra.mxu0 %v6733
      %7456 = vmatprep.subr.mxu0 %v6732
      %7457 = vmatpush1.msra.mxu0 %v6731
      %7458 = vmatprep.subr.mxu0 %v6730
      %7459 = vmatpush1.msra.mxu0 %v6729
      %7460 = vmatprep.subr.mxu0 %v6728
      %7461 = vmatpush1.msra.mxu0 %v6727
      %7462 = vmatprep.subr.mxu0 %v6726
      %7463 = vmatpush1.msra.mxu0 %v6725
      %7464 = vmatprep.subr.mxu0 %v6724
      %7465 = vmatpush1.msra.mxu0 %v6723
      %7466 = vmatprep.subr.mxu0 %v6722
      %7467 = vmatpush1.msra.mxu0 %v6721
      %7468 = vmatprep.subr.mxu0 %v6720
      %7469 = vmatpush1.msra.mxu0 %v6719
      %7470 = vmatprep.subr.mxu0 %v6718
      %7471 = vmatpush1.msra.mxu0 %v6717
      %7472 = vmatprep.subr.mxu0 0.0
      %7473 = vmatpush2.msra.mxu0 0.0
      %7474 = vmatprep.subr.mxu0 0.0
      %7475 = vmatpush2.msra.mxu0 0.0
      %7476 = vmatprep.subr.mxu0 0.0
      %7477 = vmatpush2.msra.mxu0 0.0
      %7478 = vmatprep.subr.mxu0 0.0
      %7479 = vmatpush2.msra.mxu0 0.0
      %7480 = vmatprep.subr.mxu0 0.0
      %7481 = vmatpush2.msra.mxu0 0.0
      %7482 = vmatprep.subr.mxu0 0.0
      %7483 = vmatpush2.msra.mxu0 0.0
      %7484 = vmatprep.subr.mxu0 0.0
      %7485 = vmatpush2.msra.mxu0 0.0
      %7486 = vmatprep.subr.mxu0 0.0
      %7487 = vmatpush2.msra.mxu0 0.0
      %7488 = vmatprep.subr.mxu0 0.0
      %7489 = vmatpush2.msra.mxu0 0.0
      %7490 = vmatprep.subr.mxu0 0.0
      %7491 = vmatpush2.msra.mxu0 0.0
      %7492 = vmatprep.subr.mxu0 0.0
      %7493 = vmatpush2.msra.mxu0 0.0
      %7494 = vmatprep.subr.mxu0 0.0
      %7495 = vmatpush2.msra.mxu0 0.0
      %7496 = vmatprep.subr.mxu0 0.0
      %7497 = vmatpush2.msra.mxu0 0.0
      %7498 = vmatprep.subr.mxu0 0.0
      %7499 = vmatpush2.msra.mxu0 0.0
      %7500 = vmatprep.subr.mxu0 0.0
      %7501 = vmatpush2.msra.mxu0 0.0
      %7502 = vmatprep.subr.mxu0 0.0
      %7503 = vmatpush2.msra.mxu0 0.0
      %7504 = vmatprep.mubr.f32.mxu0 0.0
      %7505 = vmatmul.mubr.f32.gmra.mxu0 %v7297
      %v7506 = vpop.f32.mrf.mxu0
      %v7507 = vadd.f32 %v7436, %v7506
      %v7508 = vpop.f32.mrf.mxu0
      %v7509 = vadd.f32 %v7438, %v7508
      %7510 = vdwg.mxu0
      %v7511 = vtanh.pop %v7507
      %v7512 = vtanh.pop %v7509
      %v7513 = vld [vmem:[%s3989] sm:$0xff]
      %7514 = vmatprep.subr.mxu0 %v6620
      %7515 = vmatpush1.msra.mxu0 %v6619
      %7516 = vmatprep.subr.mxu0 %v6618
      %7517 = vmatpush1.msra.mxu0 %v6617
      %7518 = vmatprep.subr.mxu0 %v6616
      %7519 = vmatpush1.msra.mxu0 %v6615
      %7520 = vmatprep.subr.mxu0 %v6614
      %7521 = vmatpush1.msra.mxu0 %v6613
      %7522 = vmatprep.subr.mxu0 %v6612
      %7523 = vmatpush1.msra.mxu0 %v6611
      %7524 = vmatprep.subr.mxu0 %v6610
      %7525 = vmatpush1.msra.mxu0 %v6609
      %7526 = vmatprep.subr.mxu0 %v6608
      %7527 = vmatpush1.msra.mxu0 %v6607
      %7528 = vmatprep.subr.mxu0 %v6606
      %7529 = vmatpush1.msra.mxu0 %v6605
      %7530 = vmatprep.subr.mxu0 %v6604
      %7531 = vmatpush1.msra.mxu0 %v6603
      %7532 = vmatprep.subr.mxu0 %v6602
      %7533 = vmatpush1.msra.mxu0 %v6601
      %7534 = vmatprep.subr.mxu0 %v6600
      %7535 = vmatpush1.msra.mxu0 %v6599
      %7536 = vmatprep.subr.mxu0 %v6598
      %7537 = vmatpush1.msra.mxu0 %v6597
      %7538 = vmatprep.subr.mxu0 %v6596
      %7539 = vmatpush1.msra.mxu0 %v6595
      %7540 = vmatprep.subr.mxu0 %v6594
      %7541 = vmatpush1.msra.mxu0 %v6593
      %7542 = vmatprep.subr.mxu0 %v6592
      %7543 = vmatpush1.msra.mxu0 %v6591
      %7544 = vmatprep.subr.mxu0 %v6590
      %7545 = vmatpush1.msra.mxu0 %v6589
      %7546 = vmatprep.subr.mxu0 %v6652
      %7547 = vmatpush2.msra.mxu0 %v6651
      %7548 = vmatprep.subr.mxu0 %v6650
      %7549 = vmatpush2.msra.mxu0 %v6649
      %7550 = vmatprep.subr.mxu0 %v6648
      %7551 = vmatpush2.msra.mxu0 %v6647
      %7552 = vmatprep.subr.mxu0 %v6646
      %7553 = vmatpush2.msra.mxu0 %v6645
      %7554 = vmatprep.subr.mxu0 %v6644
      %7555 = vmatpush2.msra.mxu0 %v6643
      %7556 = vmatprep.subr.mxu0 %v6642
      %7557 = vmatpush2.msra.mxu0 %v6641
      %7558 = vmatprep.subr.mxu0 %v6640
      %7559 = vmatpush2.msra.mxu0 %v6639
      %7560 = vmatprep.subr.mxu0 %v6638
      %7561 = vmatpush2.msra.mxu0 %v6637
      %7562 = vmatprep.subr.mxu0 %v6636
      %7563 = vmatpush2.msra.mxu0 %v6635
      %7564 = vmatprep.subr.mxu0 %v6634
      %7565 = vmatpush2.msra.mxu0 %v6633
      %7566 = vmatprep.subr.mxu0 %v6632
      %7567 = vmatpush2.msra.mxu0 %v6631
      %7568 = vmatprep.subr.mxu0 %v6630
      %7569 = vmatpush2.msra.mxu0 %v6629
      %7570 = vmatprep.subr.mxu0 %v6628
      %7571 = vmatpush2.msra.mxu0 %v6627
      %7572 = vmatprep.subr.mxu0 %v6626
      %7573 = vmatpush2.msra.mxu0 %v6625
      %7574 = vmatprep.subr.mxu0 %v6624
      %7575 = vmatpush2.msra.mxu0 %v6623
      %7576 = vmatprep.subr.mxu0 %v6622
      %7577 = vmatpush2.msra.mxu0 %v6621
      %7578 = vmatprep.mubr.f32.mxu0 %v7295
      %7579 = vmatmul.mubr.f32.gmra.mxu0 %v7294
      %v7580 = vpop.f32.mrf.mxu0
      %v7581 = vadd.f32 %v6779, %v7580
      %v7582 = vpop.f32.mrf.mxu0
      %v7583 = vadd.f32 %v6783, %v7582
      %7584 = vdwg.mxu0
      %7585 = vmatprep.subr.mxu0 %v6684
      %7586 = vmatpush1.msra.mxu0 %v6683
      %7587 = vmatprep.subr.mxu0 %v6682
      %7588 = vmatpush1.msra.mxu0 %v6681
      %7589 = vmatprep.subr.mxu0 %v6680
      %7590 = vmatpush1.msra.mxu0 %v6679
      %7591 = vmatprep.subr.mxu0 %v6678
      %7592 = vmatpush1.msra.mxu0 %v6677
      %7593 = vmatprep.subr.mxu0 %v6676
      %7594 = vmatpush1.msra.mxu0 %v6675
      %7595 = vmatprep.subr.mxu0 %v6674
      %7596 = vmatpush1.msra.mxu0 %v6673
      %7597 = vmatprep.subr.mxu0 %v6672
      %7598 = vmatpush1.msra.mxu0 %v6671
      %7599 = vmatprep.subr.mxu0 %v6670
      %7600 = vmatpush1.msra.mxu0 %v6669
      %7601 = vmatprep.subr.mxu0 %v6668
      %7602 = vmatpush1.msra.mxu0 %v6667
      %7603 = vmatprep.subr.mxu0 %v6666
      %7604 = vmatpush1.msra.mxu0 %v6665
      %7605 = vmatprep.subr.mxu0 %v6664
      %7606 = vmatpush1.msra.mxu0 %v6663
      %7607 = vmatprep.subr.mxu0 %v6662
      %7608 = vmatpush1.msra.mxu0 %v6661
      %7609 = vmatprep.subr.mxu0 %v6660
      %7610 = vmatpush1.msra.mxu0 %v6659
      %7611 = vmatprep.subr.mxu0 %v6658
      %7612 = vmatpush1.msra.mxu0 %v6657
      %7613 = vmatprep.subr.mxu0 %v6656
      %7614 = vmatpush1.msra.mxu0 %v6655
      %7615 = vmatprep.subr.mxu0 %v6654
      %7616 = vmatpush1.msra.mxu0 %v6653
      %7617 = vmatprep.subr.mxu0 %v6716
      %7618 = vmatpush2.msra.mxu0 %v6715
      %7619 = vmatprep.subr.mxu0 %v6714
      %7620 = vmatpush2.msra.mxu0 %v6713
      %7621 = vmatprep.subr.mxu0 %v6712
      %7622 = vmatpush2.msra.mxu0 %v6711
      %7623 = vmatprep.subr.mxu0 %v6710
      %7624 = vmatpush2.msra.mxu0 %v6709
      %7625 = vmatprep.subr.mxu0 %v6708
      %7626 = vmatpush2.msra.mxu0 %v6707
      %7627 = vmatprep.subr.mxu0 %v6706
      %7628 = vmatpush2.msra.mxu0 %v6705
      %7629 = vmatprep.subr.mxu0 %v6704
      %7630 = vmatpush2.msra.mxu0 %v6703
      %7631 = vmatprep.subr.mxu0 %v6702
      %7632 = vmatpush2.msra.mxu0 %v6701
      %7633 = vmatprep.subr.mxu0 %v6700
      %7634 = vmatpush2.msra.mxu0 %v6699
      %7635 = vmatprep.subr.mxu0 %v6698
      %7636 = vmatpush2.msra.mxu0 %v6697
      %7637 = vmatprep.subr.mxu0 %v6696
      %7638 = vmatpush2.msra.mxu0 %v6695
      %7639 = vmatprep.subr.mxu0 %v6694
      %7640 = vmatpush2.msra.mxu0 %v6693
      %7641 = vmatprep.subr.mxu0 %v6692
      %7642 = vmatpush2.msra.mxu0 %v6691
      %7643 = vmatprep.subr.mxu0 %v6690
      %7644 = vmatpush2.msra.mxu0 %v6689
      %7645 = vmatprep.subr.mxu0 %v6688
      %7646 = vmatpush2.msra.mxu0 %v6687
      %7647 = vmatprep.subr.mxu0 %v6686
      %7648 = vmatpush2.msra.mxu0 %v6685
      %7649 = vmatprep.mubr.f32.mxu0 %v7297
      %7650 = vmatmul.mubr.f32.gmra.mxu0 %v7296
      %v7651 = vpop.f32.mrf.mxu0
      %v7652 = vadd.f32 %v7581, %v7651
      %v7653 = vpop.f32.mrf.mxu0
      %v7654 = vadd.f32 %v7583, %v7653
      %7655 = vdwg.mxu0
      %7656 = vmatprep.subr.mxu0 %v6748
      %7657 = vmatpush1.msra.mxu0 %v6747
      %7658 = vmatprep.subr.mxu0 %v6746
      %7659 = vmatpush1.msra.mxu0 %v6745
      %7660 = vmatprep.subr.mxu0 %v6744
      %7661 = vmatpush1.msra.mxu0 %v6743
      %7662 = vmatprep.subr.mxu0 %v6742
      %7663 = vmatpush1.msra.mxu0 %v6741
      %7664 = vmatprep.subr.mxu0 %v6740
      %7665 = vmatpush1.msra.mxu0 %v6739
      %7666 = vmatprep.subr.mxu0 %v6738
      %7667 = vmatpush1.msra.mxu0 %v6737
      %7668 = vmatprep.subr.mxu0 %v6736
      %7669 = vmatpush1.msra.mxu0 %v6735
      %7670 = vmatprep.subr.mxu0 %v6734
      %7671 = vmatpush1.msra.mxu0 %v6733
      %7672 = vmatprep.subr.mxu0 %v6732
      %7673 = vmatpush1.msra.mxu0 %v6731
      %7674 = vmatprep.subr.mxu0 %v6730
      %7675 = vmatpush1.msra.mxu0 %v6729
      %7676 = vmatprep.subr.mxu0 %v6728
      %7677 = vmatpush1.msra.mxu0 %v6727
      %7678 = vmatprep.subr.mxu0 %v6726
      %7679 = vmatpush1.msra.mxu0 %v6725
      %7680 = vmatprep.subr.mxu0 %v6724
      %7681 = vmatpush1.msra.mxu0 %v6723
      %7682 = vmatprep.subr.mxu0 %v6722
      %7683 = vmatpush1.msra.mxu0 %v6721
      %7684 = vmatprep.subr.mxu0 %v6720
      %7685 = vmatpush1.msra.mxu0 %v6719
      %7686 = vmatprep.subr.mxu0 %v6718
      %7687 = vmatpush1.msra.mxu0 %v6717
      %7688 = vmatprep.subr.mxu0 0.0
      %7689 = vmatpush2.msra.mxu0 0.0
      %7690 = vmatprep.subr.mxu0 0.0
      %7691 = vmatpush2.msra.mxu0 0.0
      %7692 = vmatprep.subr.mxu0 0.0
      %7693 = vmatpush2.msra.mxu0 0.0
      %7694 = vmatprep.subr.mxu0 0.0
      %7695 = vmatpush2.msra.mxu0 0.0
      %7696 = vmatprep.subr.mxu0 0.0
      %7697 = vmatpush2.msra.mxu0 0.0
      %7698 = vmatprep.subr.mxu0 0.0
      %7699 = vmatpush2.msra.mxu0 0.0
      %7700 = vmatprep.subr.mxu0 0.0
      %7701 = vmatpush2.msra.mxu0 0.0
      %7702 = vmatprep.subr.mxu0 0.0
      %7703 = vmatpush2.msra.mxu0 0.0
      %7704 = vmatprep.subr.mxu0 0.0
      %7705 = vmatpush2.msra.mxu0 0.0
      %7706 = vmatprep.subr.mxu0 0.0
      %7707 = vmatpush2.msra.mxu0 0.0
      %7708 = vmatprep.subr.mxu0 0.0
      %7709 = vmatpush2.msra.mxu0 0.0
      %7710 = vmatprep.subr.mxu0 0.0
      %7711 = vmatpush2.msra.mxu0 0.0
      %7712 = vmatprep.subr.mxu0 0.0
      %7713 = vmatpush2.msra.mxu0 0.0
      %7714 = vmatprep.subr.mxu0 0.0
      %7715 = vmatpush2.msra.mxu0 0.0
      %7716 = vmatprep.subr.mxu0 0.0
      %7717 = vmatpush2.msra.mxu0 0.0
      %7718 = vmatprep.subr.mxu0 0.0
      %7719 = vmatpush2.msra.mxu0 0.0
      %7720 = vmatprep.mubr.f32.mxu0 0.0
      %7721 = vmatmul.mubr.f32.gmra.mxu0 %v7513
      %v7722 = vpop.f32.mrf.mxu0
      %v7723 = vadd.f32 %v7652, %v7722
      %v7724 = vpop.f32.mrf.mxu0
      %v7725 = vadd.f32 %v7654, %v7724
      %7726 = vdwg.mxu0
      %v7727 = vtanh.pop %v7723
      %v7728 = vtanh.pop %v7725
      %v7729 = vadd.f32 %v7511, %v7727
      %v7730 = vadd.f32 %v7512, %v7728
      %v7732 = vsel %vm673, %v7730, 0
      %7734 = vmatprep.subr.mxu0 0.0
      %7735 = vmatpush1.msra.mxu0 %v6765
      %7736 = vmatprep.subr.mxu0 0.0
      %7737 = vmatpush1.msra.mxu0 %v6764
      %7738 = vmatprep.subr.mxu0 0.0
      %7739 = vmatpush1.msra.mxu0 %v6763
      %7740 = vmatprep.subr.mxu0 0.0
      %7741 = vmatpush1.msra.mxu0 %v6762
      %7742 = vmatprep.subr.mxu0 0.0
      %7743 = vmatpush1.msra.mxu0 %v6761
      %7744 = vmatprep.subr.mxu0 0.0
      %7745 = vmatpush1.msra.mxu0 %v6760
      %7746 = vmatprep.subr.mxu0 0.0
      %7747 = vmatpush1.msra.mxu0 %v6759
      %7748 = vmatprep.subr.mxu0 0.0
      %7749 = vmatpush1.msra.mxu0 %v6758
      %7750 = vmatprep.subr.mxu0 0.0
      %7751 = vmatpush1.msra.mxu0 %v6757
      %7752 = vmatprep.subr.mxu0 0.0
      %7753 = vmatpush1.msra.mxu0 %v6756
      %7754 = vmatprep.subr.mxu0 0.0
      %7755 = vmatpush1.msra.mxu0 %v6755
      %7756 = vmatprep.subr.mxu0 0.0
      %7757 = vmatpush1.msra.mxu0 %v6754
      %7758 = vmatprep.subr.mxu0 0.0
      %7759 = vmatpush1.msra.mxu0 %v6753
      %7760 = vmatprep.subr.mxu0 0.0
      %7761 = vmatpush1.msra.mxu0 %v6752
      %7762 = vmatprep.subr.mxu0 0.0
      %7763 = vmatpush1.msra.mxu0 %v6751
      %7764 = vmatprep.subr.mxu0 0.0
      %7765 = vmatpush1.msra.mxu0 %v6750
      %7766 = vmatprep.subr.mxu0 0.0
      %7767 = vmatpush2.msra.mxu0 0.0
      %7768 = vmatprep.subr.mxu0 0.0
      %7769 = vmatpush2.msra.mxu0 0.0
      %7770 = vmatprep.subr.mxu0 0.0
      %7771 = vmatpush2.msra.mxu0 0.0
      %7772 = vmatprep.subr.mxu0 0.0
      %7773 = vmatpush2.msra.mxu0 0.0
      %7774 = vmatprep.subr.mxu0 0.0
      %7775 = vmatpush2.msra.mxu0 0.0
      %7776 = vmatprep.subr.mxu0 0.0
      %7777 = vmatpush2.msra.mxu0 0.0
      %7778 = vmatprep.subr.mxu0 0.0
      %7779 = vmatpush2.msra.mxu0 0.0
      %7780 = vmatprep.subr.mxu0 0.0
      %7781 = vmatpush2.msra.mxu0 0.0
      %7782 = vmatprep.subr.mxu0 0.0
      %7783 = vmatpush2.msra.mxu0 0.0
      %7784 = vmatprep.subr.mxu0 0.0
      %7785 = vmatpush2.msra.mxu0 0.0
      %7786 = vmatprep.subr.mxu0 0.0
      %7787 = vmatpush2.msra.mxu0 0.0
      %7788 = vmatprep.subr.mxu0 0.0
      %7789 = vmatpush2.msra.mxu0 0.0
      %7790 = vmatprep.subr.mxu0 0.0
      %7791 = vmatpush2.msra.mxu0 %v6769
      %7792 = vmatprep.subr.mxu0 0.0
      %7793 = vmatpush2.msra.mxu0 %v6768
      %7794 = vmatprep.subr.mxu0 0.0
      %7795 = vmatpush2.msra.mxu0 %v6767
      %7796 = vmatprep.subr.mxu0 0.0
      %7797 = vmatpush2.msra.mxu0 %v6766
      %7798 = vmatprep.mubr.f32.mxu0 %v7732
      %7799 = vmatmul.mubr.f32.gmra.mxu0 %v7729
      %v7800 = vpop.f32.mrf.mxu0
      %v7801 = vadd.f32 0.0, %v7800
      %v7802 = vpop.f32.mrf.mxu0
      %7803 = vdwg.mxu0
      %s7804 = scalar_lea.vmem [#allocation3], 8
      %7805 = vst [vmem:[%s7804] sm:$0xff] %v7801
      %v7806 = vld [vmem:[%s2690] sm:$0xff]
      %v7807 = vld [vmem:[%s3123] sm:$0xff]
      %v7808 = vld [vmem:[%s3556] sm:$0xff]
      %v7809 = vld [vmem:[%s3989] sm:$0xff]
      %v7810 = vld [vmem:[%s4422] sm:$0xff]
      %7811 = vmatprep.subr.mxu0 %v6620
      %7812 = vmatpush1.msra.mxu0 %v6619
      %7813 = vmatprep.subr.mxu0 %v6618
      %7814 = vmatpush1.msra.mxu0 %v6617
      %7815 = vmatprep.subr.mxu0 %v6616
      %7816 = vmatpush1.msra.mxu0 %v6615
      %7817 = vmatprep.subr.mxu0 %v6614
      %7818 = vmatpush1.msra.mxu0 %v6613
      %7819 = vmatprep.subr.mxu0 %v6612
      %7820 = vmatpush1.msra.mxu0 %v6611
      %7821 = vmatprep.subr.mxu0 %v6610
      %7822 = vmatpush1.msra.mxu0 %v6609
      %7823 = vmatprep.subr.mxu0 %v6608
      %7824 = vmatpush1.msra.mxu0 %v6607
      %7825 = vmatprep.subr.mxu0 %v6606
      %7826 = vmatpush1.msra.mxu0 %v6605
      %7827 = vmatprep.subr.mxu0 %v6604
      %7828 = vmatpush1.msra.mxu0 %v6603
      %7829 = vmatprep.subr.mxu0 %v6602
      %7830 = vmatpush1.msra.mxu0 %v6601
      %7831 = vmatprep.subr.mxu0 %v6600
      %7832 = vmatpush1.msra.mxu0 %v6599
      %7833 = vmatprep.subr.mxu0 %v6598
      %7834 = vmatpush1.msra.mxu0 %v6597
      %7835 = vmatprep.subr.mxu0 %v6596
      %7836 = vmatpush1.msra.mxu0 %v6595
      %7837 = vmatprep.subr.mxu0 %v6594
      %7838 = vmatpush1.msra.mxu0 %v6593
      %7839 = vmatprep.subr.mxu0 %v6592
      %7840 = vmatpush1.msra.mxu0 %v6591
      %7841 = vmatprep.subr.mxu0 %v6590
      %7842 = vmatpush1.msra.mxu0 %v6589
      %7843 = vmatprep.subr.mxu0 %v6652
      %7844 = vmatpush2.msra.mxu0 %v6651
      %7845 = vmatprep.subr.mxu0 %v6650
      %7846 = vmatpush2.msra.mxu0 %v6649
      %7847 = vmatprep.subr.mxu0 %v6648
      %7848 = vmatpush2.msra.mxu0 %v6647
      %7849 = vmatprep.subr.mxu0 %v6646
      %7850 = vmatpush2.msra.mxu0 %v6645
      %7851 = vmatprep.subr.mxu0 %v6644
      %7852 = vmatpush2.msra.mxu0 %v6643
      %7853 = vmatprep.subr.mxu0 %v6642
      %7854 = vmatpush2.msra.mxu0 %v6641
      %7855 = vmatprep.subr.mxu0 %v6640
      %7856 = vmatpush2.msra.mxu0 %v6639
      %7857 = vmatprep.subr.mxu0 %v6638
      %7858 = vmatpush2.msra.mxu0 %v6637
      %7859 = vmatprep.subr.mxu0 %v6636
      %7860 = vmatpush2.msra.mxu0 %v6635
      %7861 = vmatprep.subr.mxu0 %v6634
      %7862 = vmatpush2.msra.mxu0 %v6633
      %7863 = vmatprep.subr.mxu0 %v6632
      %7864 = vmatpush2.msra.mxu0 %v6631
      %7865 = vmatprep.subr.mxu0 %v6630
      %7866 = vmatpush2.msra.mxu0 %v6629
      %7867 = vmatprep.subr.mxu0 %v6628
      %7868 = vmatpush2.msra.mxu0 %v6627
      %7869 = vmatprep.subr.mxu0 %v6626
      %7870 = vmatpush2.msra.mxu0 %v6625
      %7871 = vmatprep.subr.mxu0 %v6624
      %7872 = vmatpush2.msra.mxu0 %v6623
      %7873 = vmatprep.subr.mxu0 %v6622
      %7874 = vmatpush2.msra.mxu0 %v6621
      %7875 = vmatprep.mubr.f32.mxu0 %v7807
      %7876 = vmatmul.mubr.f32.gmra.mxu0 %v7806
      %v7877 = vpop.f32.mrf.mxu0
      %v7878 = vadd.f32 %v6779, %v7877
      %v7879 = vpop.f32.mrf.mxu0
      %v7880 = vadd.f32 %v6783, %v7879
      %7881 = vdwg.mxu0
      %7882 = vmatprep.subr.mxu0 %v6684
      %7883 = vmatpush1.msra.mxu0 %v6683
      %7884 = vmatprep.subr.mxu0 %v6682
      %7885 = vmatpush1.msra.mxu0 %v6681
      %7886 = vmatprep.subr.mxu0 %v6680
      %7887 = vmatpush1.msra.mxu0 %v6679
      %7888 = vmatprep.subr.mxu0 %v6678
      %7889 = vmatpush1.msra.mxu0 %v6677
      %7890 = vmatprep.subr.mxu0 %v6676
      %7891 = vmatpush1.msra.mxu0 %v6675
      %7892 = vmatprep.subr.mxu0 %v6674
      %7893 = vmatpush1.msra.mxu0 %v6673
      %7894 = vmatprep.subr.mxu0 %v6672
      %7895 = vmatpush1.msra.mxu0 %v6671
      %7896 = vmatprep.subr.mxu0 %v6670
      %7897 = vmatpush1.msra.mxu0 %v6669
      %7898 = vmatprep.subr.mxu0 %v6668
      %7899 = vmatpush1.msra.mxu0 %v6667
      %7900 = vmatprep.subr.mxu0 %v6666
      %7901 = vmatpush1.msra.mxu0 %v6665
      %7902 = vmatprep.subr.mxu0 %v6664
      %7903 = vmatpush1.msra.mxu0 %v6663
      %7904 = vmatprep.subr.mxu0 %v6662
      %7905 = vmatpush1.msra.mxu0 %v6661
      %7906 = vmatprep.subr.mxu0 %v6660
      %7907 = vmatpush1.msra.mxu0 %v6659
      %7908 = vmatprep.subr.mxu0 %v6658
      %7909 = vmatpush1.msra.mxu0 %v6657
      %7910 = vmatprep.subr.mxu0 %v6656
      %7911 = vmatpush1.msra.mxu0 %v6655
      %7912 = vmatprep.subr.mxu0 %v6654
      %7913 = vmatpush1.msra.mxu0 %v6653
      %7914 = vmatprep.subr.mxu0 %v6716
      %7915 = vmatpush2.msra.mxu0 %v6715
      %7916 = vmatprep.subr.mxu0 %v6714
      %7917 = vmatpush2.msra.mxu0 %v6713
      %7918 = vmatprep.subr.mxu0 %v6712
      %7919 = vmatpush2.msra.mxu0 %v6711
      %7920 = vmatprep.subr.mxu0 %v6710
      %7921 = vmatpush2.msra.mxu0 %v6709
      %7922 = vmatprep.subr.mxu0 %v6708
      %7923 = vmatpush2.msra.mxu0 %v6707
      %7924 = vmatprep.subr.mxu0 %v6706
      %7925 = vmatpush2.msra.mxu0 %v6705
      %7926 = vmatprep.subr.mxu0 %v6704
      %7927 = vmatpush2.msra.mxu0 %v6703
      %7928 = vmatprep.subr.mxu0 %v6702
      %7929 = vmatpush2.msra.mxu0 %v6701
      %7930 = vmatprep.subr.mxu0 %v6700
      %7931 = vmatpush2.msra.mxu0 %v6699
      %7932 = vmatprep.subr.mxu0 %v6698
      %7933 = vmatpush2.msra.mxu0 %v6697
      %7934 = vmatprep.subr.mxu0 %v6696
      %7935 = vmatpush2.msra.mxu0 %v6695
      %7936 = vmatprep.subr.mxu0 %v6694
      %7937 = vmatpush2.msra.mxu0 %v6693
      %7938 = vmatprep.subr.mxu0 %v6692
      %7939 = vmatpush2.msra.mxu0 %v6691
      %7940 = vmatprep.subr.mxu0 %v6690
      %7941 = vmatpush2.msra.mxu0 %v6689
      %7942 = vmatprep.subr.mxu0 %v6688
      %7943 = vmatpush2.msra.mxu0 %v6687
      %7944 = vmatprep.subr.mxu0 %v6686
      %7945 = vmatpush2.msra.mxu0 %v6685
      %7946 = vmatprep.mubr.f32.mxu0 %v7809
      %7947 = vmatmul.mubr.f32.gmra.mxu0 %v7808
      %v7948 = vpop.f32.mrf.mxu0
      %v7949 = vadd.f32 %v7878, %v7948
      %v7950 = vpop.f32.mrf.mxu0
      %v7951 = vadd.f32 %v7880, %v7950
      %7952 = vdwg.mxu0
      %7953 = vmatprep.subr.mxu0 %v6748
      %7954 = vmatpush1.msra.mxu0 %v6747
      %7955 = vmatprep.subr.mxu0 %v6746
      %7956 = vmatpush1.msra.mxu0 %v6745
      %7957 = vmatprep.subr.mxu0 %v6744
      %7958 = vmatpush1.msra.mxu0 %v6743
      %7959 = vmatprep.subr.mxu0 %v6742
      %7960 = vmatpush1.msra.mxu0 %v6741
      %7961 = vmatprep.subr.mxu0 %v6740
      %7962 = vmatpush1.msra.mxu0 %v6739
      %7963 = vmatprep.subr.mxu0 %v6738
      %7964 = vmatpush1.msra.mxu0 %v6737
      %7965 = vmatprep.subr.mxu0 %v6736
      %7966 = vmatpush1.msra.mxu0 %v6735
      %7967 = vmatprep.subr.mxu0 %v6734
      %7968 = vmatpush1.msra.mxu0 %v6733
      %7969 = vmatprep.subr.mxu0 %v6732
      %7970 = vmatpush1.msra.mxu0 %v6731
      %7971 = vmatprep.subr.mxu0 %v6730
      %7972 = vmatpush1.msra.mxu0 %v6729
      %7973 = vmatprep.subr.mxu0 %v6728
      %7974 = vmatpush1.msra.mxu0 %v6727
      %7975 = vmatprep.subr.mxu0 %v6726
      %7976 = vmatpush1.msra.mxu0 %v6725
      %7977 = vmatprep.subr.mxu0 %v6724
      %7978 = vmatpush1.msra.mxu0 %v6723
      %7979 = vmatprep.subr.mxu0 %v6722
      %7980 = vmatpush1.msra.mxu0 %v6721
      %7981 = vmatprep.subr.mxu0 %v6720
      %7982 = vmatpush1.msra.mxu0 %v6719
      %7983 = vmatprep.subr.mxu0 %v6718
      %7984 = vmatpush1.msra.mxu0 %v6717
      %7985 = vmatprep.subr.mxu0 0.0
      %7986 = vmatpush2.msra.mxu0 0.0
      %7987 = vmatprep.subr.mxu0 0.0
      %7988 = vmatpush2.msra.mxu0 0.0
      %7989 = vmatprep.subr.mxu0 0.0
      %7990 = vmatpush2.msra.mxu0 0.0
      %7991 = vmatprep.subr.mxu0 0.0
      %7992 = vmatpush2.msra.mxu0 0.0
      %7993 = vmatprep.subr.mxu0 0.0
      %7994 = vmatpush2.msra.mxu0 0.0
      %7995 = vmatprep.subr.mxu0 0.0
      %7996 = vmatpush2.msra.mxu0 0.0
      %7997 = vmatprep.subr.mxu0 0.0
      %7998 = vmatpush2.msra.mxu0 0.0
      %7999 = vmatprep.subr.mxu0 0.0
      %8000 = vmatpush2.msra.mxu0 0.0
      %8001 = vmatprep.subr.mxu0 0.0
      %8002 = vmatpush2.msra.mxu0 0.0
      %8003 = vmatprep.subr.mxu0 0.0
      %8004 = vmatpush2.msra.mxu0 0.0
      %8005 = vmatprep.subr.mxu0 0.0
      %8006 = vmatpush2.msra.mxu0 0.0
      %8007 = vmatprep.subr.mxu0 0.0
      %8008 = vmatpush2.msra.mxu0 0.0
      %8009 = vmatprep.subr.mxu0 0.0
      %8010 = vmatpush2.msra.mxu0 0.0
      %8011 = vmatprep.subr.mxu0 0.0
      %8012 = vmatpush2.msra.mxu0 0.0
      %8013 = vmatprep.subr.mxu0 0.0
      %8014 = vmatpush2.msra.mxu0 0.0
      %8015 = vmatprep.subr.mxu0 0.0
      %8016 = vmatpush2.msra.mxu0 0.0
      %8017 = vmatprep.mubr.f32.mxu0 0.0
      %8018 = vmatmul.mubr.f32.gmra.mxu0 %v7810
      %v8019 = vpop.f32.mrf.mxu0
      %v8020 = vadd.f32 %v7949, %v8019
      %v8021 = vpop.f32.mrf.mxu0
      %v8022 = vadd.f32 %v7951, %v8021
      %8023 = vdwg.mxu0
      %v8024 = vtanh.pop %v8020
      %v8025 = vtanh.pop %v8022
      %v8026 = vld [vmem:[%s4855] sm:$0xff]
      %8027 = vmatprep.subr.mxu0 %v6620
      %8028 = vmatpush1.msra.mxu0 %v6619
      %8029 = vmatprep.subr.mxu0 %v6618
      %8030 = vmatpush1.msra.mxu0 %v6617
      %8031 = vmatprep.subr.mxu0 %v6616
      %8032 = vmatpush1.msra.mxu0 %v6615
      %8033 = vmatprep.subr.mxu0 %v6614
      %8034 = vmatpush1.msra.mxu0 %v6613
      %8035 = vmatprep.subr.mxu0 %v6612
      %8036 = vmatpush1.msra.mxu0 %v6611
      %8037 = vmatprep.subr.mxu0 %v6610
      %8038 = vmatpush1.msra.mxu0 %v6609
      %8039 = vmatprep.subr.mxu0 %v6608
      %8040 = vmatpush1.msra.mxu0 %v6607
      %8041 = vmatprep.subr.mxu0 %v6606
      %8042 = vmatpush1.msra.mxu0 %v6605
      %8043 = vmatprep.subr.mxu0 %v6604
      %8044 = vmatpush1.msra.mxu0 %v6603
      %8045 = vmatprep.subr.mxu0 %v6602
      %8046 = vmatpush1.msra.mxu0 %v6601
      %8047 = vmatprep.subr.mxu0 %v6600
      %8048 = vmatpush1.msra.mxu0 %v6599
      %8049 = vmatprep.subr.mxu0 %v6598
      %8050 = vmatpush1.msra.mxu0 %v6597
      %8051 = vmatprep.subr.mxu0 %v6596
      %8052 = vmatpush1.msra.mxu0 %v6595
      %8053 = vmatprep.subr.mxu0 %v6594
      %8054 = vmatpush1.msra.mxu0 %v6593
      %8055 = vmatprep.subr.mxu0 %v6592
      %8056 = vmatpush1.msra.mxu0 %v6591
      %8057 = vmatprep.subr.mxu0 %v6590
      %8058 = vmatpush1.msra.mxu0 %v6589
      %8059 = vmatprep.subr.mxu0 %v6652
      %8060 = vmatpush2.msra.mxu0 %v6651
      %8061 = vmatprep.subr.mxu0 %v6650
      %8062 = vmatpush2.msra.mxu0 %v6649
      %8063 = vmatprep.subr.mxu0 %v6648
      %8064 = vmatpush2.msra.mxu0 %v6647
      %8065 = vmatprep.subr.mxu0 %v6646
      %8066 = vmatpush2.msra.mxu0 %v6645
      %8067 = vmatprep.subr.mxu0 %v6644
      %8068 = vmatpush2.msra.mxu0 %v6643
      %8069 = vmatprep.subr.mxu0 %v6642
      %8070 = vmatpush2.msra.mxu0 %v6641
      %8071 = vmatprep.subr.mxu0 %v6640
      %8072 = vmatpush2.msra.mxu0 %v6639
      %8073 = vmatprep.subr.mxu0 %v6638
      %8074 = vmatpush2.msra.mxu0 %v6637
      %8075 = vmatprep.subr.mxu0 %v6636
      %8076 = vmatpush2.msra.mxu0 %v6635
      %8077 = vmatprep.subr.mxu0 %v6634
      %8078 = vmatpush2.msra.mxu0 %v6633
      %8079 = vmatprep.subr.mxu0 %v6632
      %8080 = vmatpush2.msra.mxu0 %v6631
      %8081 = vmatprep.subr.mxu0 %v6630
      %8082 = vmatpush2.msra.mxu0 %v6629
      %8083 = vmatprep.subr.mxu0 %v6628
      %8084 = vmatpush2.msra.mxu0 %v6627
      %8085 = vmatprep.subr.mxu0 %v6626
      %8086 = vmatpush2.msra.mxu0 %v6625
      %8087 = vmatprep.subr.mxu0 %v6624
      %8088 = vmatpush2.msra.mxu0 %v6623
      %8089 = vmatprep.subr.mxu0 %v6622
      %8090 = vmatpush2.msra.mxu0 %v6621
      %8091 = vmatprep.mubr.f32.mxu0 %v7808
      %8092 = vmatmul.mubr.f32.gmra.mxu0 %v7807
      %v8093 = vpop.f32.mrf.mxu0
      %v8094 = vadd.f32 %v6779, %v8093
      %v8095 = vpop.f32.mrf.mxu0
      %v8096 = vadd.f32 %v6783, %v8095
      %8097 = vdwg.mxu0
      %8098 = vmatprep.subr.mxu0 %v6684
      %8099 = vmatpush1.msra.mxu0 %v6683
      %8100 = vmatprep.subr.mxu0 %v6682
      %8101 = vmatpush1.msra.mxu0 %v6681
      %8102 = vmatprep.subr.mxu0 %v6680
      %8103 = vmatpush1.msra.mxu0 %v6679
      %8104 = vmatprep.subr.mxu0 %v6678
      %8105 = vmatpush1.msra.mxu0 %v6677
      %8106 = vmatprep.subr.mxu0 %v6676
      %8107 = vmatpush1.msra.mxu0 %v6675
      %8108 = vmatprep.subr.mxu0 %v6674
      %8109 = vmatpush1.msra.mxu0 %v6673
      %8110 = vmatprep.subr.mxu0 %v6672
      %8111 = vmatpush1.msra.mxu0 %v6671
      %8112 = vmatprep.subr.mxu0 %v6670
      %8113 = vmatpush1.msra.mxu0 %v6669
      %8114 = vmatprep.subr.mxu0 %v6668
      %8115 = vmatpush1.msra.mxu0 %v6667
      %8116 = vmatprep.subr.mxu0 %v6666
      %8117 = vmatpush1.msra.mxu0 %v6665
      %8118 = vmatprep.subr.mxu0 %v6664
      %8119 = vmatpush1.msra.mxu0 %v6663
      %8120 = vmatprep.subr.mxu0 %v6662
      %8121 = vmatpush1.msra.mxu0 %v6661
      %8122 = vmatprep.subr.mxu0 %v6660
      %8123 = vmatpush1.msra.mxu0 %v6659
      %8124 = vmatprep.subr.mxu0 %v6658
      %8125 = vmatpush1.msra.mxu0 %v6657
      %8126 = vmatprep.subr.mxu0 %v6656
      %8127 = vmatpush1.msra.mxu0 %v6655
      %8128 = vmatprep.subr.mxu0 %v6654
      %8129 = vmatpush1.msra.mxu0 %v6653
      %8130 = vmatprep.subr.mxu0 %v6716
      %8131 = vmatpush2.msra.mxu0 %v6715
      %8132 = vmatprep.subr.mxu0 %v6714
      %8133 = vmatpush2.msra.mxu0 %v6713
      %8134 = vmatprep.subr.mxu0 %v6712
      %8135 = vmatpush2.msra.mxu0 %v6711
      %8136 = vmatprep.subr.mxu0 %v6710
      %8137 = vmatpush2.msra.mxu0 %v6709
      %8138 = vmatprep.subr.mxu0 %v6708
      %8139 = vmatpush2.msra.mxu0 %v6707
      %8140 = vmatprep.subr.mxu0 %v6706
      %8141 = vmatpush2.msra.mxu0 %v6705
      %8142 = vmatprep.subr.mxu0 %v6704
      %8143 = vmatpush2.msra.mxu0 %v6703
      %8144 = vmatprep.subr.mxu0 %v6702
      %8145 = vmatpush2.msra.mxu0 %v6701
      %8146 = vmatprep.subr.mxu0 %v6700
      %8147 = vmatpush2.msra.mxu0 %v6699
      %8148 = vmatprep.subr.mxu0 %v6698
      %8149 = vmatpush2.msra.mxu0 %v6697
      %8150 = vmatprep.subr.mxu0 %v6696
      %8151 = vmatpush2.msra.mxu0 %v6695
      %8152 = vmatprep.subr.mxu0 %v6694
      %8153 = vmatpush2.msra.mxu0 %v6693
      %8154 = vmatprep.subr.mxu0 %v6692
      %8155 = vmatpush2.msra.mxu0 %v6691
      %8156 = vmatprep.subr.mxu0 %v6690
      %8157 = vmatpush2.msra.mxu0 %v6689
      %8158 = vmatprep.subr.mxu0 %v6688
      %8159 = vmatpush2.msra.mxu0 %v6687
      %8160 = vmatprep.subr.mxu0 %v6686
      %8161 = vmatpush2.msra.mxu0 %v6685
      %8162 = vmatprep.mubr.f32.mxu0 %v7810
      %8163 = vmatmul.mubr.f32.gmra.mxu0 %v7809
      %v8164 = vpop.f32.mrf.mxu0
      %v8165 = vadd.f32 %v8094, %v8164
      %v8166 = vpop.f32.mrf.mxu0
      %v8167 = vadd.f32 %v8096, %v8166
      %8168 = vdwg.mxu0
      %8169 = vmatprep.subr.mxu0 %v6748
      %8170 = vmatpush1.msra.mxu0 %v6747
      %8171 = vmatprep.subr.mxu0 %v6746
      %8172 = vmatpush1.msra.mxu0 %v6745
      %8173 = vmatprep.subr.mxu0 %v6744
      %8174 = vmatpush1.msra.mxu0 %v6743
      %8175 = vmatprep.subr.mxu0 %v6742
      %8176 = vmatpush1.msra.mxu0 %v6741
      %8177 = vmatprep.subr.mxu0 %v6740
      %8178 = vmatpush1.msra.mxu0 %v6739
      %8179 = vmatprep.subr.mxu0 %v6738
      %8180 = vmatpush1.msra.mxu0 %v6737
      %8181 = vmatprep.subr.mxu0 %v6736
      %8182 = vmatpush1.msra.mxu0 %v6735
      %8183 = vmatprep.subr.mxu0 %v6734
      %8184 = vmatpush1.msra.mxu0 %v6733
      %8185 = vmatprep.subr.mxu0 %v6732
      %8186 = vmatpush1.msra.mxu0 %v6731
      %8187 = vmatprep.subr.mxu0 %v6730
      %8188 = vmatpush1.msra.mxu0 %v6729
      %8189 = vmatprep.subr.mxu0 %v6728
      %8190 = vmatpush1.msra.mxu0 %v6727
      %8191 = vmatprep.subr.mxu0 %v6726
      %8192 = vmatpush1.msra.mxu0 %v6725
      %8193 = vmatprep.subr.mxu0 %v6724
      %8194 = vmatpush1.msra.mxu0 %v6723
      %8195 = vmatprep.subr.mxu0 %v6722
      %8196 = vmatpush1.msra.mxu0 %v6721
      %8197 = vmatprep.subr.mxu0 %v6720
      %8198 = vmatpush1.msra.mxu0 %v6719
      %8199 = vmatprep.subr.mxu0 %v6718
      %8200 = vmatpush1.msra.mxu0 %v6717
      %8201 = vmatprep.subr.mxu0 0.0
      %8202 = vmatpush2.msra.mxu0 0.0
      %8203 = vmatprep.subr.mxu0 0.0
      %8204 = vmatpush2.msra.mxu0 0.0
      %8205 = vmatprep.subr.mxu0 0.0
      %8206 = vmatpush2.msra.mxu0 0.0
      %8207 = vmatprep.subr.mxu0 0.0
      %8208 = vmatpush2.msra.mxu0 0.0
      %8209 = vmatprep.subr.mxu0 0.0
      %8210 = vmatpush2.msra.mxu0 0.0
      %8211 = vmatprep.subr.mxu0 0.0
      %8212 = vmatpush2.msra.mxu0 0.0
      %8213 = vmatprep.subr.mxu0 0.0
      %8214 = vmatpush2.msra.mxu0 0.0
      %8215 = vmatprep.subr.mxu0 0.0
      %8216 = vmatpush2.msra.mxu0 0.0
      %8217 = vmatprep.subr.mxu0 0.0
      %8218 = vmatpush2.msra.mxu0 0.0
      %8219 = vmatprep.subr.mxu0 0.0
      %8220 = vmatpush2.msra.mxu0 0.0
      %8221 = vmatprep.subr.mxu0 0.0
      %8222 = vmatpush2.msra.mxu0 0.0
      %8223 = vmatprep.subr.mxu0 0.0
      %8224 = vmatpush2.msra.mxu0 0.0
      %8225 = vmatprep.subr.mxu0 0.0
      %8226 = vmatpush2.msra.mxu0 0.0
      %8227 = vmatprep.subr.mxu0 0.0
      %8228 = vmatpush2.msra.mxu0 0.0
      %8229 = vmatprep.subr.mxu0 0.0
      %8230 = vmatpush2.msra.mxu0 0.0
      %8231 = vmatprep.subr.mxu0 0.0
      %8232 = vmatpush2.msra.mxu0 0.0
      %8233 = vmatprep.mubr.f32.mxu0 0.0
      %8234 = vmatmul.mubr.f32.gmra.mxu0 %v8026
      %v8235 = vpop.f32.mrf.mxu0
      %v8236 = vadd.f32 %v8165, %v8235
      %v8237 = vpop.f32.mrf.mxu0
      %v8238 = vadd.f32 %v8167, %v8237
      %8239 = vdwg.mxu0
      %v8240 = vtanh.pop %v8236
      %v8241 = vtanh.pop %v8238
      %v8242 = vadd.f32 %v8024, %v8240
      %v8243 = vadd.f32 %v8025, %v8241
      %v8245 = vsel %vm673, %v8243, 0
      %8247 = vmatprep.subr.mxu0 0.0
      %8248 = vmatpush1.msra.mxu0 %v6765
      %8249 = vmatprep.subr.mxu0 0.0
      %8250 = vmatpush1.msra.mxu0 %v6764
      %8251 = vmatprep.subr.mxu0 0.0
      %8252 = vmatpush1.msra.mxu0 %v6763
      %8253 = vmatprep.subr.mxu0 0.0
      %8254 = vmatpush1.msra.mxu0 %v6762
      %8255 = vmatprep.subr.mxu0 0.0
      %8256 = vmatpush1.msra.mxu0 %v6761
      %8257 = vmatprep.subr.mxu0 0.0
      %8258 = vmatpush1.msra.mxu0 %v6760
      %8259 = vmatprep.subr.mxu0 0.0
      %8260 = vmatpush1.msra.mxu0 %v6759
      %8261 = vmatprep.subr.mxu0 0.0
      %8262 = vmatpush1.msra.mxu0 %v6758
      %8263 = vmatprep.subr.mxu0 0.0
      %8264 = vmatpush1.msra.mxu0 %v6757
      %8265 = vmatprep.subr.mxu0 0.0
      %8266 = vmatpush1.msra.mxu0 %v6756
      %8267 = vmatprep.subr.mxu0 0.0
      %8268 = vmatpush1.msra.mxu0 %v6755
      %8269 = vmatprep.subr.mxu0 0.0
      %8270 = vmatpush1.msra.mxu0 %v6754
      %8271 = vmatprep.subr.mxu0 0.0
      %8272 = vmatpush1.msra.mxu0 %v6753
      %8273 = vmatprep.subr.mxu0 0.0
      %8274 = vmatpush1.msra.mxu0 %v6752
      %8275 = vmatprep.subr.mxu0 0.0
      %8276 = vmatpush1.msra.mxu0 %v6751
      %8277 = vmatprep.subr.mxu0 0.0
      %8278 = vmatpush1.msra.mxu0 %v6750
      %8279 = vmatprep.subr.mxu0 0.0
      %8280 = vmatpush2.msra.mxu0 0.0
      %8281 = vmatprep.subr.mxu0 0.0
      %8282 = vmatpush2.msra.mxu0 0.0
      %8283 = vmatprep.subr.mxu0 0.0
      %8284 = vmatpush2.msra.mxu0 0.0
      %8285 = vmatprep.subr.mxu0 0.0
      %8286 = vmatpush2.msra.mxu0 0.0
      %8287 = vmatprep.subr.mxu0 0.0
      %8288 = vmatpush2.msra.mxu0 0.0
      %8289 = vmatprep.subr.mxu0 0.0
      %8290 = vmatpush2.msra.mxu0 0.0
      %8291 = vmatprep.subr.mxu0 0.0
      %8292 = vmatpush2.msra.mxu0 0.0
      %8293 = vmatprep.subr.mxu0 0.0
      %8294 = vmatpush2.msra.mxu0 0.0
      %8295 = vmatprep.subr.mxu0 0.0
      %8296 = vmatpush2.msra.mxu0 0.0
      %8297 = vmatprep.subr.mxu0 0.0
      %8298 = vmatpush2.msra.mxu0 0.0
      %8299 = vmatprep.subr.mxu0 0.0
      %8300 = vmatpush2.msra.mxu0 0.0
      %8301 = vmatprep.subr.mxu0 0.0
      %8302 = vmatpush2.msra.mxu0 0.0
      %8303 = vmatprep.subr.mxu0 0.0
      %8304 = vmatpush2.msra.mxu0 %v6769
      %8305 = vmatprep.subr.mxu0 0.0
      %8306 = vmatpush2.msra.mxu0 %v6768
      %8307 = vmatprep.subr.mxu0 0.0
      %8308 = vmatpush2.msra.mxu0 %v6767
      %8309 = vmatprep.subr.mxu0 0.0
      %8310 = vmatpush2.msra.mxu0 %v6766
      %8311 = vmatprep.mubr.f32.mxu0 %v8245
      %8312 = vmatmul.mubr.f32.gmra.mxu0 %v8242
      %v8313 = vpop.f32.mrf.mxu0
      %v8314 = vadd.f32 0.0, %v8313
      %v8315 = vpop.f32.mrf.mxu0
      %8316 = vdwg.mxu0
      %s8317 = scalar_lea.vmem [#allocation3], 16
      %8318 = vst [vmem:[%s8317] sm:$0xff] %v8314
      %v8319 = vld [vmem:[%s3556] sm:$0xff]
      %v8320 = vld [vmem:[%s3989] sm:$0xff]
      %v8321 = vld [vmem:[%s4422] sm:$0xff]
      %v8322 = vld [vmem:[%s4855] sm:$0xff]
      %v8323 = vld [vmem:[%s5288] sm:$0xff]
      %8324 = vmatprep.subr.mxu0 %v6620
      %8325 = vmatpush1.msra.mxu0 %v6619
      %8326 = vmatprep.subr.mxu0 %v6618
      %8327 = vmatpush1.msra.mxu0 %v6617
      %8328 = vmatprep.subr.mxu0 %v6616
      %8329 = vmatpush1.msra.mxu0 %v6615
      %8330 = vmatprep.subr.mxu0 %v6614
      %8331 = vmatpush1.msra.mxu0 %v6613
      %8332 = vmatprep.subr.mxu0 %v6612
      %8333 = vmatpush1.msra.mxu0 %v6611
      %8334 = vmatprep.subr.mxu0 %v6610
      %8335 = vmatpush1.msra.mxu0 %v6609
      %8336 = vmatprep.subr.mxu0 %v6608
      %8337 = vmatpush1.msra.mxu0 %v6607
      %8338 = vmatprep.subr.mxu0 %v6606
      %8339 = vmatpush1.msra.mxu0 %v6605
      %8340 = vmatprep.subr.mxu0 %v6604
      %8341 = vmatpush1.msra.mxu0 %v6603
      %8342 = vmatprep.subr.mxu0 %v6602
      %8343 = vmatpush1.msra.mxu0 %v6601
      %8344 = vmatprep.subr.mxu0 %v6600
      %8345 = vmatpush1.msra.mxu0 %v6599
      %8346 = vmatprep.subr.mxu0 %v6598
      %8347 = vmatpush1.msra.mxu0 %v6597
      %8348 = vmatprep.subr.mxu0 %v6596
      %8349 = vmatpush1.msra.mxu0 %v6595
      %8350 = vmatprep.subr.mxu0 %v6594
      %8351 = vmatpush1.msra.mxu0 %v6593
      %8352 = vmatprep.subr.mxu0 %v6592
      %8353 = vmatpush1.msra.mxu0 %v6591
      %8354 = vmatprep.subr.mxu0 %v6590
      %8355 = vmatpush1.msra.mxu0 %v6589
      %8356 = vmatprep.subr.mxu0 %v6652
      %8357 = vmatpush2.msra.mxu0 %v6651
      %8358 = vmatprep.subr.mxu0 %v6650
      %8359 = vmatpush2.msra.mxu0 %v6649
      %8360 = vmatprep.subr.mxu0 %v6648
      %8361 = vmatpush2.msra.mxu0 %v6647
      %8362 = vmatprep.subr.mxu0 %v6646
      %8363 = vmatpush2.msra.mxu0 %v6645
      %8364 = vmatprep.subr.mxu0 %v6644
      %8365 = vmatpush2.msra.mxu0 %v6643
      %8366 = vmatprep.subr.mxu0 %v6642
      %8367 = vmatpush2.msra.mxu0 %v6641
      %8368 = vmatprep.subr.mxu0 %v6640
      %8369 = vmatpush2.msra.mxu0 %v6639
      %8370 = vmatprep.subr.mxu0 %v6638
      %8371 = vmatpush2.msra.mxu0 %v6637
      %8372 = vmatprep.subr.mxu0 %v6636
      %8373 = vmatpush2.msra.mxu0 %v6635
      %8374 = vmatprep.subr.mxu0 %v6634
      %8375 = vmatpush2.msra.mxu0 %v6633
      %8376 = vmatprep.subr.mxu0 %v6632
      %8377 = vmatpush2.msra.mxu0 %v6631
      %8378 = vmatprep.subr.mxu0 %v6630
      %8379 = vmatpush2.msra.mxu0 %v6629
      %8380 = vmatprep.subr.mxu0 %v6628
      %8381 = vmatpush2.msra.mxu0 %v6627
      %8382 = vmatprep.subr.mxu0 %v6626
      %8383 = vmatpush2.msra.mxu0 %v6625
      %8384 = vmatprep.subr.mxu0 %v6624
      %8385 = vmatpush2.msra.mxu0 %v6623
      %8386 = vmatprep.subr.mxu0 %v6622
      %8387 = vmatpush2.msra.mxu0 %v6621
      %8388 = vmatprep.mubr.f32.mxu0 %v8320
      %8389 = vmatmul.mubr.f32.gmra.mxu0 %v8319
      %v8390 = vpop.f32.mrf.mxu0
      %v8391 = vadd.f32 %v6779, %v8390
      %v8392 = vpop.f32.mrf.mxu0
      %v8393 = vadd.f32 %v6783, %v8392
      %8394 = vdwg.mxu0
      %8395 = vmatprep.subr.mxu0 %v6684
      %8396 = vmatpush1.msra.mxu0 %v6683
      %8397 = vmatprep.subr.mxu0 %v6682
      %8398 = vmatpush1.msra.mxu0 %v6681
      %8399 = vmatprep.subr.mxu0 %v6680
      %8400 = vmatpush1.msra.mxu0 %v6679
      %8401 = vmatprep.subr.mxu0 %v6678
      %8402 = vmatpush1.msra.mxu0 %v6677
      %8403 = vmatprep.subr.mxu0 %v6676
      %8404 = vmatpush1.msra.mxu0 %v6675
      %8405 = vmatprep.subr.mxu0 %v6674
      %8406 = vmatpush1.msra.mxu0 %v6673
      %8407 = vmatprep.subr.mxu0 %v6672
      %8408 = vmatpush1.msra.mxu0 %v6671
      %8409 = vmatprep.subr.mxu0 %v6670
      %8410 = vmatpush1.msra.mxu0 %v6669
      %8411 = vmatprep.subr.mxu0 %v6668
      %8412 = vmatpush1.msra.mxu0 %v6667
      %8413 = vmatprep.subr.mxu0 %v6666
      %8414 = vmatpush1.msra.mxu0 %v6665
      %8415 = vmatprep.subr.mxu0 %v6664
      %8416 = vmatpush1.msra.mxu0 %v6663
      %8417 = vmatprep.subr.mxu0 %v6662
      %8418 = vmatpush1.msra.mxu0 %v6661
      %8419 = vmatprep.subr.mxu0 %v6660
      %8420 = vmatpush1.msra.mxu0 %v6659
      %8421 = vmatprep.subr.mxu0 %v6658
      %8422 = vmatpush1.msra.mxu0 %v6657
      %8423 = vmatprep.subr.mxu0 %v6656
      %8424 = vmatpush1.msra.mxu0 %v6655
      %8425 = vmatprep.subr.mxu0 %v6654
      %8426 = vmatpush1.msra.mxu0 %v6653
      %8427 = vmatprep.subr.mxu0 %v6716
      %8428 = vmatpush2.msra.mxu0 %v6715
      %8429 = vmatprep.subr.mxu0 %v6714
      %8430 = vmatpush2.msra.mxu0 %v6713
      %8431 = vmatprep.subr.mxu0 %v6712
      %8432 = vmatpush2.msra.mxu0 %v6711
      %8433 = vmatprep.subr.mxu0 %v6710
      %8434 = vmatpush2.msra.mxu0 %v6709
      %8435 = vmatprep.subr.mxu0 %v6708
      %8436 = vmatpush2.msra.mxu0 %v6707
      %8437 = vmatprep.subr.mxu0 %v6706
      %8438 = vmatpush2.msra.mxu0 %v6705
      %8439 = vmatprep.subr.mxu0 %v6704
      %8440 = vmatpush2.msra.mxu0 %v6703
      %8441 = vmatprep.subr.mxu0 %v6702
      %8442 = vmatpush2.msra.mxu0 %v6701
      %8443 = vmatprep.subr.mxu0 %v6700
      %8444 = vmatpush2.msra.mxu0 %v6699
      %8445 = vmatprep.subr.mxu0 %v6698
      %8446 = vmatpush2.msra.mxu0 %v6697
      %8447 = vmatprep.subr.mxu0 %v6696
      %8448 = vmatpush2.msra.mxu0 %v6695
      %8449 = vmatprep.subr.mxu0 %v6694
      %8450 = vmatpush2.msra.mxu0 %v6693
      %8451 = vmatprep.subr.mxu0 %v6692
      %8452 = vmatpush2.msra.mxu0 %v6691
      %8453 = vmatprep.subr.mxu0 %v6690
      %8454 = vmatpush2.msra.mxu0 %v6689
      %8455 = vmatprep.subr.mxu0 %v6688
      %8456 = vmatpush2.msra.mxu0 %v6687
      %8457 = vmatprep.subr.mxu0 %v6686
      %8458 = vmatpush2.msra.mxu0 %v6685
      %8459 = vmatprep.mubr.f32.mxu0 %v8322
      %8460 = vmatmul.mubr.f32.gmra.mxu0 %v8321
      %v8461 = vpop.f32.mrf.mxu0
      %v8462 = vadd.f32 %v8391, %v8461
      %v8463 = vpop.f32.mrf.mxu0
      %v8464 = vadd.f32 %v8393, %v8463
      %8465 = vdwg.mxu0
      %8466 = vmatprep.subr.mxu0 %v6748
      %8467 = vmatpush1.msra.mxu0 %v6747
      %8468 = vmatprep.subr.mxu0 %v6746
      %8469 = vmatpush1.msra.mxu0 %v6745
      %8470 = vmatprep.subr.mxu0 %v6744
      %8471 = vmatpush1.msra.mxu0 %v6743
      %8472 = vmatprep.subr.mxu0 %v6742
      %8473 = vmatpush1.msra.mxu0 %v6741
      %8474 = vmatprep.subr.mxu0 %v6740
      %8475 = vmatpush1.msra.mxu0 %v6739
      %8476 = vmatprep.subr.mxu0 %v6738
      %8477 = vmatpush1.msra.mxu0 %v6737
      %8478 = vmatprep.subr.mxu0 %v6736
      %8479 = vmatpush1.msra.mxu0 %v6735
      %8480 = vmatprep.subr.mxu0 %v6734
      %8481 = vmatpush1.msra.mxu0 %v6733
      %8482 = vmatprep.subr.mxu0 %v6732
      %8483 = vmatpush1.msra.mxu0 %v6731
      %8484 = vmatprep.subr.mxu0 %v6730
      %8485 = vmatpush1.msra.mxu0 %v6729
      %8486 = vmatprep.subr.mxu0 %v6728
      %8487 = vmatpush1.msra.mxu0 %v6727
      %8488 = vmatprep.subr.mxu0 %v6726
      %8489 = vmatpush1.msra.mxu0 %v6725
      %8490 = vmatprep.subr.mxu0 %v6724
      %8491 = vmatpush1.msra.mxu0 %v6723
      %8492 = vmatprep.subr.mxu0 %v6722
      %8493 = vmatpush1.msra.mxu0 %v6721
      %8494 = vmatprep.subr.mxu0 %v6720
      %8495 = vmatpush1.msra.mxu0 %v6719
      %8496 = vmatprep.subr.mxu0 %v6718
      %8497 = vmatpush1.msra.mxu0 %v6717
      %8498 = vmatprep.subr.mxu0 0.0
      %8499 = vmatpush2.msra.mxu0 0.0
      %8500 = vmatprep.subr.mxu0 0.0
      %8501 = vmatpush2.msra.mxu0 0.0
      %8502 = vmatprep.subr.mxu0 0.0
      %8503 = vmatpush2.msra.mxu0 0.0
      %8504 = vmatprep.subr.mxu0 0.0
      %8505 = vmatpush2.msra.mxu0 0.0
      %8506 = vmatprep.subr.mxu0 0.0
      %8507 = vmatpush2.msra.mxu0 0.0
      %8508 = vmatprep.subr.mxu0 0.0
      %8509 = vmatpush2.msra.mxu0 0.0
      %8510 = vmatprep.subr.mxu0 0.0
      %8511 = vmatpush2.msra.mxu0 0.0
      %8512 = vmatprep.subr.mxu0 0.0
      %8513 = vmatpush2.msra.mxu0 0.0
      %8514 = vmatprep.subr.mxu0 0.0
      %8515 = vmatpush2.msra.mxu0 0.0
      %8516 = vmatprep.subr.mxu0 0.0
      %8517 = vmatpush2.msra.mxu0 0.0
      %8518 = vmatprep.subr.mxu0 0.0
      %8519 = vmatpush2.msra.mxu0 0.0
      %8520 = vmatprep.subr.mxu0 0.0
      %8521 = vmatpush2.msra.mxu0 0.0
      %8522 = vmatprep.subr.mxu0 0.0
      %8523 = vmatpush2.msra.mxu0 0.0
      %8524 = vmatprep.subr.mxu0 0.0
      %8525 = vmatpush2.msra.mxu0 0.0
      %8526 = vmatprep.subr.mxu0 0.0
      %8527 = vmatpush2.msra.mxu0 0.0
      %8528 = vmatprep.subr.mxu0 0.0
      %8529 = vmatpush2.msra.mxu0 0.0
      %8530 = vmatprep.mubr.f32.mxu0 0.0
      %8531 = vmatmul.mubr.f32.gmra.mxu0 %v8323
      %v8532 = vpop.f32.mrf.mxu0
      %v8533 = vadd.f32 %v8462, %v8532
      %v8534 = vpop.f32.mrf.mxu0
      %v8535 = vadd.f32 %v8464, %v8534
      %8536 = vdwg.mxu0
      %v8537 = vtanh.pop %v8533
      %v8538 = vtanh.pop %v8535
      %v8539 = vld [vmem:[%s5721] sm:$0xff]
      %8540 = vmatprep.subr.mxu0 %v6620
      %8541 = vmatpush1.msra.mxu0 %v6619
      %8542 = vmatprep.subr.mxu0 %v6618
      %8543 = vmatpush1.msra.mxu0 %v6617
      %8544 = vmatprep.subr.mxu0 %v6616
      %8545 = vmatpush1.msra.mxu0 %v6615
      %8546 = vmatprep.subr.mxu0 %v6614
      %8547 = vmatpush1.msra.mxu0 %v6613
      %8548 = vmatprep.subr.mxu0 %v6612
      %8549 = vmatpush1.msra.mxu0 %v6611
      %8550 = vmatprep.subr.mxu0 %v6610
      %8551 = vmatpush1.msra.mxu0 %v6609
      %8552 = vmatprep.subr.mxu0 %v6608
      %8553 = vmatpush1.msra.mxu0 %v6607
      %8554 = vmatprep.subr.mxu0 %v6606
      %8555 = vmatpush1.msra.mxu0 %v6605
      %8556 = vmatprep.subr.mxu0 %v6604
      %8557 = vmatpush1.msra.mxu0 %v6603
      %8558 = vmatprep.subr.mxu0 %v6602
      %8559 = vmatpush1.msra.mxu0 %v6601
      %8560 = vmatprep.subr.mxu0 %v6600
      %8561 = vmatpush1.msra.mxu0 %v6599
      %8562 = vmatprep.subr.mxu0 %v6598
      %8563 = vmatpush1.msra.mxu0 %v6597
      %8564 = vmatprep.subr.mxu0 %v6596
      %8565 = vmatpush1.msra.mxu0 %v6595
      %8566 = vmatprep.subr.mxu0 %v6594
      %8567 = vmatpush1.msra.mxu0 %v6593
      %8568 = vmatprep.subr.mxu0 %v6592
      %8569 = vmatpush1.msra.mxu0 %v6591
      %8570 = vmatprep.subr.mxu0 %v6590
      %8571 = vmatpush1.msra.mxu0 %v6589
      %8572 = vmatprep.subr.mxu0 %v6652
      %8573 = vmatpush2.msra.mxu0 %v6651
      %8574 = vmatprep.subr.mxu0 %v6650
      %8575 = vmatpush2.msra.mxu0 %v6649
      %8576 = vmatprep.subr.mxu0 %v6648
      %8577 = vmatpush2.msra.mxu0 %v6647
      %8578 = vmatprep.subr.mxu0 %v6646
      %8579 = vmatpush2.msra.mxu0 %v6645
      %8580 = vmatprep.subr.mxu0 %v6644
      %8581 = vmatpush2.msra.mxu0 %v6643
      %8582 = vmatprep.subr.mxu0 %v6642
      %8583 = vmatpush2.msra.mxu0 %v6641
      %8584 = vmatprep.subr.mxu0 %v6640
      %8585 = vmatpush2.msra.mxu0 %v6639
      %8586 = vmatprep.subr.mxu0 %v6638
      %8587 = vmatpush2.msra.mxu0 %v6637
      %8588 = vmatprep.subr.mxu0 %v6636
      %8589 = vmatpush2.msra.mxu0 %v6635
      %8590 = vmatprep.subr.mxu0 %v6634
      %8591 = vmatpush2.msra.mxu0 %v6633
      %8592 = vmatprep.subr.mxu0 %v6632
      %8593 = vmatpush2.msra.mxu0 %v6631
      %8594 = vmatprep.subr.mxu0 %v6630
      %8595 = vmatpush2.msra.mxu0 %v6629
      %8596 = vmatprep.subr.mxu0 %v6628
      %8597 = vmatpush2.msra.mxu0 %v6627
      %8598 = vmatprep.subr.mxu0 %v6626
      %8599 = vmatpush2.msra.mxu0 %v6625
      %8600 = vmatprep.subr.mxu0 %v6624
      %8601 = vmatpush2.msra.mxu0 %v6623
      %8602 = vmatprep.subr.mxu0 %v6622
      %8603 = vmatpush2.msra.mxu0 %v6621
      %8604 = vmatprep.mubr.f32.mxu0 %v8321
      %8605 = vmatmul.mubr.f32.gmra.mxu0 %v8320
      %v8606 = vpop.f32.mrf.mxu0
      %v8607 = vadd.f32 %v6779, %v8606
      %v8608 = vpop.f32.mrf.mxu0
      %v8609 = vadd.f32 %v6783, %v8608
      %8610 = vdwg.mxu0
      %8611 = vmatprep.subr.mxu0 %v6684
      %8612 = vmatpush1.msra.mxu0 %v6683
      %8613 = vmatprep.subr.mxu0 %v6682
      %8614 = vmatpush1.msra.mxu0 %v6681
      %8615 = vmatprep.subr.mxu0 %v6680
      %8616 = vmatpush1.msra.mxu0 %v6679
      %8617 = vmatprep.subr.mxu0 %v6678
      %8618 = vmatpush1.msra.mxu0 %v6677
      %8619 = vmatprep.subr.mxu0 %v6676
      %8620 = vmatpush1.msra.mxu0 %v6675
      %8621 = vmatprep.subr.mxu0 %v6674
      %8622 = vmatpush1.msra.mxu0 %v6673
      %8623 = vmatprep.subr.mxu0 %v6672
      %8624 = vmatpush1.msra.mxu0 %v6671
      %8625 = vmatprep.subr.mxu0 %v6670
      %8626 = vmatpush1.msra.mxu0 %v6669
      %8627 = vmatprep.subr.mxu0 %v6668
      %8628 = vmatpush1.msra.mxu0 %v6667
      %8629 = vmatprep.subr.mxu0 %v6666
      %8630 = vmatpush1.msra.mxu0 %v6665
      %8631 = vmatprep.subr.mxu0 %v6664
      %8632 = vmatpush1.msra.mxu0 %v6663
      %8633 = vmatprep.subr.mxu0 %v6662
      %8634 = vmatpush1.msra.mxu0 %v6661
      %8635 = vmatprep.subr.mxu0 %v6660
      %8636 = vmatpush1.msra.mxu0 %v6659
      %8637 = vmatprep.subr.mxu0 %v6658
      %8638 = vmatpush1.msra.mxu0 %v6657
      %8639 = vmatprep.subr.mxu0 %v6656
      %8640 = vmatpush1.msra.mxu0 %v6655
      %8641 = vmatprep.subr.mxu0 %v6654
      %8642 = vmatpush1.msra.mxu0 %v6653
      %8643 = vmatprep.subr.mxu0 %v6716
      %8644 = vmatpush2.msra.mxu0 %v6715
      %8645 = vmatprep.subr.mxu0 %v6714
      %8646 = vmatpush2.msra.mxu0 %v6713
      %8647 = vmatprep.subr.mxu0 %v6712
      %8648 = vmatpush2.msra.mxu0 %v6711
      %8649 = vmatprep.subr.mxu0 %v6710
      %8650 = vmatpush2.msra.mxu0 %v6709
      %8651 = vmatprep.subr.mxu0 %v6708
      %8652 = vmatpush2.msra.mxu0 %v6707
      %8653 = vmatprep.subr.mxu0 %v6706
      %8654 = vmatpush2.msra.mxu0 %v6705
      %8655 = vmatprep.subr.mxu0 %v6704
      %8656 = vmatpush2.msra.mxu0 %v6703
      %8657 = vmatprep.subr.mxu0 %v6702
      %8658 = vmatpush2.msra.mxu0 %v6701
      %8659 = vmatprep.subr.mxu0 %v6700
      %8660 = vmatpush2.msra.mxu0 %v6699
      %8661 = vmatprep.subr.mxu0 %v6698
      %8662 = vmatpush2.msra.mxu0 %v6697
      %8663 = vmatprep.subr.mxu0 %v6696
      %8664 = vmatpush2.msra.mxu0 %v6695
      %8665 = vmatprep.subr.mxu0 %v6694
      %8666 = vmatpush2.msra.mxu0 %v6693
      %8667 = vmatprep.subr.mxu0 %v6692
      %8668 = vmatpush2.msra.mxu0 %v6691
      %8669 = vmatprep.subr.mxu0 %v6690
      %8670 = vmatpush2.msra.mxu0 %v6689
      %8671 = vmatprep.subr.mxu0 %v6688
      %8672 = vmatpush2.msra.mxu0 %v6687
      %8673 = vmatprep.subr.mxu0 %v6686
      %8674 = vmatpush2.msra.mxu0 %v6685
      %8675 = vmatprep.mubr.f32.mxu0 %v8323
      %8676 = vmatmul.mubr.f32.gmra.mxu0 %v8322
      %v8677 = vpop.f32.mrf.mxu0
      %v8678 = vadd.f32 %v8607, %v8677
      %v8679 = vpop.f32.mrf.mxu0
      %v8680 = vadd.f32 %v8609, %v8679
      %8681 = vdwg.mxu0
      %8682 = vmatprep.subr.mxu0 %v6748
      %8683 = vmatpush1.msra.mxu0 %v6747
      %8684 = vmatprep.subr.mxu0 %v6746
      %8685 = vmatpush1.msra.mxu0 %v6745
      %8686 = vmatprep.subr.mxu0 %v6744
      %8687 = vmatpush1.msra.mxu0 %v6743
      %8688 = vmatprep.subr.mxu0 %v6742
      %8689 = vmatpush1.msra.mxu0 %v6741
      %8690 = vmatprep.subr.mxu0 %v6740
      %8691 = vmatpush1.msra.mxu0 %v6739
      %8692 = vmatprep.subr.mxu0 %v6738
      %8693 = vmatpush1.msra.mxu0 %v6737
      %8694 = vmatprep.subr.mxu0 %v6736
      %8695 = vmatpush1.msra.mxu0 %v6735
      %8696 = vmatprep.subr.mxu0 %v6734
      %8697 = vmatpush1.msra.mxu0 %v6733
      %8698 = vmatprep.subr.mxu0 %v6732
      %8699 = vmatpush1.msra.mxu0 %v6731
      %8700 = vmatprep.subr.mxu0 %v6730
      %8701 = vmatpush1.msra.mxu0 %v6729
      %8702 = vmatprep.subr.mxu0 %v6728
      %8703 = vmatpush1.msra.mxu0 %v6727
      %8704 = vmatprep.subr.mxu0 %v6726
      %8705 = vmatpush1.msra.mxu0 %v6725
      %8706 = vmatprep.subr.mxu0 %v6724
      %8707 = vmatpush1.msra.mxu0 %v6723
      %8708 = vmatprep.subr.mxu0 %v6722
      %8709 = vmatpush1.msra.mxu0 %v6721
      %8710 = vmatprep.subr.mxu0 %v6720
      %8711 = vmatpush1.msra.mxu0 %v6719
      %8712 = vmatprep.subr.mxu0 %v6718
      %8713 = vmatpush1.msra.mxu0 %v6717
      %8714 = vmatprep.subr.mxu0 0.0
      %8715 = vmatpush2.msra.mxu0 0.0
      %8716 = vmatprep.subr.mxu0 0.0
      %8717 = vmatpush2.msra.mxu0 0.0
      %8718 = vmatprep.subr.mxu0 0.0
      %8719 = vmatpush2.msra.mxu0 0.0
      %8720 = vmatprep.subr.mxu0 0.0
      %8721 = vmatpush2.msra.mxu0 0.0
      %8722 = vmatprep.subr.mxu0 0.0
      %8723 = vmatpush2.msra.mxu0 0.0
      %8724 = vmatprep.subr.mxu0 0.0
      %8725 = vmatpush2.msra.mxu0 0.0
      %8726 = vmatprep.subr.mxu0 0.0
      %8727 = vmatpush2.msra.mxu0 0.0
      %8728 = vmatprep.subr.mxu0 0.0
      %8729 = vmatpush2.msra.mxu0 0.0
      %8730 = vmatprep.subr.mxu0 0.0
      %8731 = vmatpush2.msra.mxu0 0.0
      %8732 = vmatprep.subr.mxu0 0.0
      %8733 = vmatpush2.msra.mxu0 0.0
      %8734 = vmatprep.subr.mxu0 0.0
      %8735 = vmatpush2.msra.mxu0 0.0
      %8736 = vmatprep.subr.mxu0 0.0
      %8737 = vmatpush2.msra.mxu0 0.0
      %8738 = vmatprep.subr.mxu0 0.0
      %8739 = vmatpush2.msra.mxu0 0.0
      %8740 = vmatprep.subr.mxu0 0.0
      %8741 = vmatpush2.msra.mxu0 0.0
      %8742 = vmatprep.subr.mxu0 0.0
      %8743 = vmatpush2.msra.mxu0 0.0
      %8744 = vmatprep.subr.mxu0 0.0
      %8745 = vmatpush2.msra.mxu0 0.0
      %8746 = vmatprep.mubr.f32.mxu0 0.0
      %8747 = vmatmul.mubr.f32.gmra.mxu0 %v8539
      %v8748 = vpop.f32.mrf.mxu0
      %v8749 = vadd.f32 %v8678, %v8748
      %v8750 = vpop.f32.mrf.mxu0
      %v8751 = vadd.f32 %v8680, %v8750
      %8752 = vdwg.mxu0
      %v8753 = vtanh.pop %v8749
      %v8754 = vtanh.pop %v8751
      %v8755 = vadd.f32 %v8537, %v8753
      %v8756 = vadd.f32 %v8538, %v8754
      %v8758 = vsel %vm673, %v8756, 0
      %8760 = vmatprep.subr.mxu0 0.0
      %8761 = vmatpush1.msra.mxu0 %v6765
      %8762 = vmatprep.subr.mxu0 0.0
      %8763 = vmatpush1.msra.mxu0 %v6764
      %8764 = vmatprep.subr.mxu0 0.0
      %8765 = vmatpush1.msra.mxu0 %v6763
      %8766 = vmatprep.subr.mxu0 0.0
      %8767 = vmatpush1.msra.mxu0 %v6762
      %8768 = vmatprep.subr.mxu0 0.0
      %8769 = vmatpush1.msra.mxu0 %v6761
      %8770 = vmatprep.subr.mxu0 0.0
      %8771 = vmatpush1.msra.mxu0 %v6760
      %8772 = vmatprep.subr.mxu0 0.0
      %8773 = vmatpush1.msra.mxu0 %v6759
      %8774 = vmatprep.subr.mxu0 0.0
      %8775 = vmatpush1.msra.mxu0 %v6758
      %8776 = vmatprep.subr.mxu0 0.0
      %8777 = vmatpush1.msra.mxu0 %v6757
      %8778 = vmatprep.subr.mxu0 0.0
      %8779 = vmatpush1.msra.mxu0 %v6756
      %8780 = vmatprep.subr.mxu0 0.0
      %8781 = vmatpush1.msra.mxu0 %v6755
      %8782 = vmatprep.subr.mxu0 0.0
      %8783 = vmatpush1.msra.mxu0 %v6754
      %8784 = vmatprep.subr.mxu0 0.0
      %8785 = vmatpush1.msra.mxu0 %v6753
      %8786 = vmatprep.subr.mxu0 0.0
      %8787 = vmatpush1.msra.mxu0 %v6752
      %8788 = vmatprep.subr.mxu0 0.0
      %8789 = vmatpush1.msra.mxu0 %v6751
      %8790 = vmatprep.subr.mxu0 0.0
      %8791 = vmatpush1.msra.mxu0 %v6750
      %8792 = vmatprep.subr.mxu0 0.0
      %8793 = vmatpush2.msra.mxu0 0.0
      %8794 = vmatprep.subr.mxu0 0.0
      %8795 = vmatpush2.msra.mxu0 0.0
      %8796 = vmatprep.subr.mxu0 0.0
      %8797 = vmatpush2.msra.mxu0 0.0
      %8798 = vmatprep.subr.mxu0 0.0
      %8799 = vmatpush2.msra.mxu0 0.0
      %8800 = vmatprep.subr.mxu0 0.0
      %8801 = vmatpush2.msra.mxu0 0.0
      %8802 = vmatprep.subr.mxu0 0.0
      %8803 = vmatpush2.msra.mxu0 0.0
      %8804 = vmatprep.subr.mxu0 0.0
      %8805 = vmatpush2.msra.mxu0 0.0
      %8806 = vmatprep.subr.mxu0 0.0
      %8807 = vmatpush2.msra.mxu0 0.0
      %8808 = vmatprep.subr.mxu0 0.0
      %8809 = vmatpush2.msra.mxu0 0.0
      %8810 = vmatprep.subr.mxu0 0.0
      %8811 = vmatpush2.msra.mxu0 0.0
      %8812 = vmatprep.subr.mxu0 0.0
      %8813 = vmatpush2.msra.mxu0 0.0
      %8814 = vmatprep.subr.mxu0 0.0
      %8815 = vmatpush2.msra.mxu0 0.0
      %8816 = vmatprep.subr.mxu0 0.0
      %8817 = vmatpush2.msra.mxu0 %v6769
      %8818 = vmatprep.subr.mxu0 0.0
      %8819 = vmatpush2.msra.mxu0 %v6768
      %8820 = vmatprep.subr.mxu0 0.0
      %8821 = vmatpush2.msra.mxu0 %v6767
      %8822 = vmatprep.subr.mxu0 0.0
      %8823 = vmatpush2.msra.mxu0 %v6766
      %8824 = vmatprep.mubr.f32.mxu0 %v8758
      %8825 = vmatmul.mubr.f32.gmra.mxu0 %v8755
      %v8826 = vpop.f32.mrf.mxu0
      %v8827 = vadd.f32 0.0, %v8826
      %v8828 = vpop.f32.mrf.mxu0
      %8829 = vdwg.mxu0
      %s8830 = scalar_lea.vmem [#allocation3], 24
      %8831 = vst [vmem:[%s8830] sm:$0xff] %v8827
      %v8832 = vld [vmem:[%s4422] sm:$0xff]
      %v8833 = vld [vmem:[%s4855] sm:$0xff]
      %v8834 = vld [vmem:[%s5288] sm:$0xff]
      %v8835 = vld [vmem:[%s5721] sm:$0xff]
      %v8836 = vld [vmem:[%s6154] sm:$0xff]
      %8837 = vmatprep.subr.mxu0 %v6620
      %8838 = vmatpush1.msra.mxu0 %v6619
      %8839 = vmatprep.subr.mxu0 %v6618
      %8840 = vmatpush1.msra.mxu0 %v6617
      %8841 = vmatprep.subr.mxu0 %v6616
      %8842 = vmatpush1.msra.mxu0 %v6615
      %8843 = vmatprep.subr.mxu0 %v6614
      %8844 = vmatpush1.msra.mxu0 %v6613
      %8845 = vmatprep.subr.mxu0 %v6612
      %8846 = vmatpush1.msra.mxu0 %v6611
      %8847 = vmatprep.subr.mxu0 %v6610
      %8848 = vmatpush1.msra.mxu0 %v6609
      %8849 = vmatprep.subr.mxu0 %v6608
      %8850 = vmatpush1.msra.mxu0 %v6607
      %8851 = vmatprep.subr.mxu0 %v6606
      %8852 = vmatpush1.msra.mxu0 %v6605
      %8853 = vmatprep.subr.mxu0 %v6604
      %8854 = vmatpush1.msra.mxu0 %v6603
      %8855 = vmatprep.subr.mxu0 %v6602
      %8856 = vmatpush1.msra.mxu0 %v6601
      %8857 = vmatprep.subr.mxu0 %v6600
      %8858 = vmatpush1.msra.mxu0 %v6599
      %8859 = vmatprep.subr.mxu0 %v6598
      %8860 = vmatpush1.msra.mxu0 %v6597
      %8861 = vmatprep.subr.mxu0 %v6596
      %8862 = vmatpush1.msra.mxu0 %v6595
      %8863 = vmatprep.subr.mxu0 %v6594
      %8864 = vmatpush1.msra.mxu0 %v6593
      %8865 = vmatprep.subr.mxu0 %v6592
      %8866 = vmatpush1.msra.mxu0 %v6591
      %8867 = vmatprep.subr.mxu0 %v6590
      %8868 = vmatpush1.msra.mxu0 %v6589
      %8869 = vmatprep.subr.mxu0 %v6652
      %8870 = vmatpush2.msra.mxu0 %v6651
      %8871 = vmatprep.subr.mxu0 %v6650
      %8872 = vmatpush2.msra.mxu0 %v6649
      %8873 = vmatprep.subr.mxu0 %v6648
      %8874 = vmatpush2.msra.mxu0 %v6647
      %8875 = vmatprep.subr.mxu0 %v6646
      %8876 = vmatpush2.msra.mxu0 %v6645
      %8877 = vmatprep.subr.mxu0 %v6644
      %8878 = vmatpush2.msra.mxu0 %v6643
      %8879 = vmatprep.subr.mxu0 %v6642
      %8880 = vmatpush2.msra.mxu0 %v6641
      %8881 = vmatprep.subr.mxu0 %v6640
      %8882 = vmatpush2.msra.mxu0 %v6639
      %8883 = vmatprep.subr.mxu0 %v6638
      %8884 = vmatpush2.msra.mxu0 %v6637
      %8885 = vmatprep.subr.mxu0 %v6636
      %8886 = vmatpush2.msra.mxu0 %v6635
      %8887 = vmatprep.subr.mxu0 %v6634
      %8888 = vmatpush2.msra.mxu0 %v6633
      %8889 = vmatprep.subr.mxu0 %v6632
      %8890 = vmatpush2.msra.mxu0 %v6631
      %8891 = vmatprep.subr.mxu0 %v6630
      %8892 = vmatpush2.msra.mxu0 %v6629
      %8893 = vmatprep.subr.mxu0 %v6628
      %8894 = vmatpush2.msra.mxu0 %v6627
      %8895 = vmatprep.subr.mxu0 %v6626
      %8896 = vmatpush2.msra.mxu0 %v6625
      %8897 = vmatprep.subr.mxu0 %v6624
      %8898 = vmatpush2.msra.mxu0 %v6623
      %8899 = vmatprep.subr.mxu0 %v6622
      %8900 = vmatpush2.msra.mxu0 %v6621
      %8901 = vmatprep.mubr.f32.mxu0 %v8833
      %8902 = vmatmul.mubr.f32.gmra.mxu0 %v8832
      %v8903 = vpop.f32.mrf.mxu0
      %v8904 = vadd.f32 %v6779, %v8903
      %v8905 = vpop.f32.mrf.mxu0
      %v8906 = vadd.f32 %v6783, %v8905
      %8907 = vdwg.mxu0
      %8908 = vmatprep.subr.mxu0 %v6684
      %8909 = vmatpush1.msra.mxu0 %v6683
      %8910 = vmatprep.subr.mxu0 %v6682
      %8911 = vmatpush1.msra.mxu0 %v6681
      %8912 = vmatprep.subr.mxu0 %v6680
      %8913 = vmatpush1.msra.mxu0 %v6679
      %8914 = vmatprep.subr.mxu0 %v6678
      %8915 = vmatpush1.msra.mxu0 %v6677
      %8916 = vmatprep.subr.mxu0 %v6676
      %8917 = vmatpush1.msra.mxu0 %v6675
      %8918 = vmatprep.subr.mxu0 %v6674
      %8919 = vmatpush1.msra.mxu0 %v6673
      %8920 = vmatprep.subr.mxu0 %v6672
      %8921 = vmatpush1.msra.mxu0 %v6671
      %8922 = vmatprep.subr.mxu0 %v6670
      %8923 = vmatpush1.msra.mxu0 %v6669
      %8924 = vmatprep.subr.mxu0 %v6668
      %8925 = vmatpush1.msra.mxu0 %v6667
      %8926 = vmatprep.subr.mxu0 %v6666
      %8927 = vmatpush1.msra.mxu0 %v6665
      %8928 = vmatprep.subr.mxu0 %v6664
      %8929 = vmatpush1.msra.mxu0 %v6663
      %8930 = vmatprep.subr.mxu0 %v6662
      %8931 = vmatpush1.msra.mxu0 %v6661
      %8932 = vmatprep.subr.mxu0 %v6660
      %8933 = vmatpush1.msra.mxu0 %v6659
      %8934 = vmatprep.subr.mxu0 %v6658
      %8935 = vmatpush1.msra.mxu0 %v6657
      %8936 = vmatprep.subr.mxu0 %v6656
      %8937 = vmatpush1.msra.mxu0 %v6655
      %8938 = vmatprep.subr.mxu0 %v6654
      %8939 = vmatpush1.msra.mxu0 %v6653
      %8940 = vmatprep.subr.mxu0 %v6716
      %8941 = vmatpush2.msra.mxu0 %v6715
      %8942 = vmatprep.subr.mxu0 %v6714
      %8943 = vmatpush2.msra.mxu0 %v6713
      %8944 = vmatprep.subr.mxu0 %v6712
      %8945 = vmatpush2.msra.mxu0 %v6711
      %8946 = vmatprep.subr.mxu0 %v6710
      %8947 = vmatpush2.msra.mxu0 %v6709
      %8948 = vmatprep.subr.mxu0 %v6708
      %8949 = vmatpush2.msra.mxu0 %v6707
      %8950 = vmatprep.subr.mxu0 %v6706
      %8951 = vmatpush2.msra.mxu0 %v6705
      %8952 = vmatprep.subr.mxu0 %v6704
      %8953 = vmatpush2.msra.mxu0 %v6703
      %8954 = vmatprep.subr.mxu0 %v6702
      %8955 = vmatpush2.msra.mxu0 %v6701
      %8956 = vmatprep.subr.mxu0 %v6700
      %8957 = vmatpush2.msra.mxu0 %v6699
      %8958 = vmatprep.subr.mxu0 %v6698
      %8959 = vmatpush2.msra.mxu0 %v6697
      %8960 = vmatprep.subr.mxu0 %v6696
      %8961 = vmatpush2.msra.mxu0 %v6695
      %8962 = vmatprep.subr.mxu0 %v6694
      %8963 = vmatpush2.msra.mxu0 %v6693
      %8964 = vmatprep.subr.mxu0 %v6692
      %8965 = vmatpush2.msra.mxu0 %v6691
      %8966 = vmatprep.subr.mxu0 %v6690
      %8967 = vmatpush2.msra.mxu0 %v6689
      %8968 = vmatprep.subr.mxu0 %v6688
      %8969 = vmatpush2.msra.mxu0 %v6687
      %8970 = vmatprep.subr.mxu0 %v6686
      %8971 = vmatpush2.msra.mxu0 %v6685
      %8972 = vmatprep.mubr.f32.mxu0 %v8835
      %8973 = vmatmul.mubr.f32.gmra.mxu0 %v8834
      %v8974 = vpop.f32.mrf.mxu0
      %v8975 = vadd.f32 %v8904, %v8974
      %v8976 = vpop.f32.mrf.mxu0
      %v8977 = vadd.f32 %v8906, %v8976
      %8978 = vdwg.mxu0
      %8979 = vmatprep.subr.mxu0 %v6748
      %8980 = vmatpush1.msra.mxu0 %v6747
      %8981 = vmatprep.subr.mxu0 %v6746
      %8982 = vmatpush1.msra.mxu0 %v6745
      %8983 = vmatprep.subr.mxu0 %v6744
      %8984 = vmatpush1.msra.mxu0 %v6743
      %8985 = vmatprep.subr.mxu0 %v6742
      %8986 = vmatpush1.msra.mxu0 %v6741
      %8987 = vmatprep.subr.mxu0 %v6740
      %8988 = vmatpush1.msra.mxu0 %v6739
      %8989 = vmatprep.subr.mxu0 %v6738
      %8990 = vmatpush1.msra.mxu0 %v6737
      %8991 = vmatprep.subr.mxu0 %v6736
      %8992 = vmatpush1.msra.mxu0 %v6735
      %8993 = vmatprep.subr.mxu0 %v6734
      %8994 = vmatpush1.msra.mxu0 %v6733
      %8995 = vmatprep.subr.mxu0 %v6732
      %8996 = vmatpush1.msra.mxu0 %v6731
      %8997 = vmatprep.subr.mxu0 %v6730
      %8998 = vmatpush1.msra.mxu0 %v6729
      %8999 = vmatprep.subr.mxu0 %v6728
      %9000 = vmatpush1.msra.mxu0 %v6727
      %9001 = vmatprep.subr.mxu0 %v6726
      %9002 = vmatpush1.msra.mxu0 %v6725
      %9003 = vmatprep.subr.mxu0 %v6724
      %9004 = vmatpush1.msra.mxu0 %v6723
      %9005 = vmatprep.subr.mxu0 %v6722
      %9006 = vmatpush1.msra.mxu0 %v6721
      %9007 = vmatprep.subr.mxu0 %v6720
      %9008 = vmatpush1.msra.mxu0 %v6719
      %9009 = vmatprep.subr.mxu0 %v6718
      %9010 = vmatpush1.msra.mxu0 %v6717
      %9011 = vmatprep.subr.mxu0 0.0
      %9012 = vmatpush2.msra.mxu0 0.0
      %9013 = vmatprep.subr.mxu0 0.0
      %9014 = vmatpush2.msra.mxu0 0.0
      %9015 = vmatprep.subr.mxu0 0.0
      %9016 = vmatpush2.msra.mxu0 0.0
      %9017 = vmatprep.subr.mxu0 0.0
      %9018 = vmatpush2.msra.mxu0 0.0
      %9019 = vmatprep.subr.mxu0 0.0
      %9020 = vmatpush2.msra.mxu0 0.0
      %9021 = vmatprep.subr.mxu0 0.0
      %9022 = vmatpush2.msra.mxu0 0.0
      %9023 = vmatprep.subr.mxu0 0.0
      %9024 = vmatpush2.msra.mxu0 0.0
      %9025 = vmatprep.subr.mxu0 0.0
      %9026 = vmatpush2.msra.mxu0 0.0
      %9027 = vmatprep.subr.mxu0 0.0
      %9028 = vmatpush2.msra.mxu0 0.0
      %9029 = vmatprep.subr.mxu0 0.0
      %9030 = vmatpush2.msra.mxu0 0.0
      %9031 = vmatprep.subr.mxu0 0.0
      %9032 = vmatpush2.msra.mxu0 0.0
      %9033 = vmatprep.subr.mxu0 0.0
      %9034 = vmatpush2.msra.mxu0 0.0
      %9035 = vmatprep.subr.mxu0 0.0
      %9036 = vmatpush2.msra.mxu0 0.0
      %9037 = vmatprep.subr.mxu0 0.0
      %9038 = vmatpush2.msra.mxu0 0.0
      %9039 = vmatprep.subr.mxu0 0.0
      %9040 = vmatpush2.msra.mxu0 0.0
      %9041 = vmatprep.subr.mxu0 0.0
      %9042 = vmatpush2.msra.mxu0 0.0
      %9043 = vmatprep.mubr.f32.mxu0 0.0
      %9044 = vmatmul.mubr.f32.gmra.mxu0 %v8836
      %v9045 = vpop.f32.mrf.mxu0
      %v9046 = vadd.f32 %v8975, %v9045
      %v9047 = vpop.f32.mrf.mxu0
      %v9048 = vadd.f32 %v8977, %v9047
      %9049 = vdwg.mxu0
      %v9050 = vtanh.pop %v9046
      %v9051 = vtanh.pop %v9048
      %v9052 = vld [vmem:[%s6587] sm:$0xff]
      %9053 = vmatprep.subr.mxu0 %v6620
      %9054 = vmatpush1.msra.mxu0 %v6619
      %9055 = vmatprep.subr.mxu0 %v6618
      %9056 = vmatpush1.msra.mxu0 %v6617
      %9057 = vmatprep.subr.mxu0 %v6616
      %9058 = vmatpush1.msra.mxu0 %v6615
      %9059 = vmatprep.subr.mxu0 %v6614
      %9060 = vmatpush1.msra.mxu0 %v6613
      %9061 = vmatprep.subr.mxu0 %v6612
      %9062 = vmatpush1.msra.mxu0 %v6611
      %9063 = vmatprep.subr.mxu0 %v6610
      %9064 = vmatpush1.msra.mxu0 %v6609
      %9065 = vmatprep.subr.mxu0 %v6608
      %9066 = vmatpush1.msra.mxu0 %v6607
      %9067 = vmatprep.subr.mxu0 %v6606
      %9068 = vmatpush1.msra.mxu0 %v6605
      %9069 = vmatprep.subr.mxu0 %v6604
      %9070 = vmatpush1.msra.mxu0 %v6603
      %9071 = vmatprep.subr.mxu0 %v6602
      %9072 = vmatpush1.msra.mxu0 %v6601
      %9073 = vmatprep.subr.mxu0 %v6600
      %9074 = vmatpush1.msra.mxu0 %v6599
      %9075 = vmatprep.subr.mxu0 %v6598
      %9076 = vmatpush1.msra.mxu0 %v6597
      %9077 = vmatprep.subr.mxu0 %v6596
      %9078 = vmatpush1.msra.mxu0 %v6595
      %9079 = vmatprep.subr.mxu0 %v6594
      %9080 = vmatpush1.msra.mxu0 %v6593
      %9081 = vmatprep.subr.mxu0 %v6592
      %9082 = vmatpush1.msra.mxu0 %v6591
      %9083 = vmatprep.subr.mxu0 %v6590
      %9084 = vmatpush1.msra.mxu0 %v6589
      %9085 = vmatprep.subr.mxu0 %v6652
      %9086 = vmatpush2.msra.mxu0 %v6651
      %9087 = vmatprep.subr.mxu0 %v6650
      %9088 = vmatpush2.msra.mxu0 %v6649
      %9089 = vmatprep.subr.mxu0 %v6648
      %9090 = vmatpush2.msra.mxu0 %v6647
      %9091 = vmatprep.subr.mxu0 %v6646
      %9092 = vmatpush2.msra.mxu0 %v6645
      %9093 = vmatprep.subr.mxu0 %v6644
      %9094 = vmatpush2.msra.mxu0 %v6643
      %9095 = vmatprep.subr.mxu0 %v6642
      %9096 = vmatpush2.msra.mxu0 %v6641
      %9097 = vmatprep.subr.mxu0 %v6640
      %9098 = vmatpush2.msra.mxu0 %v6639
      %9099 = vmatprep.subr.mxu0 %v6638
      %9100 = vmatpush2.msra.mxu0 %v6637
      %9101 = vmatprep.subr.mxu0 %v6636
      %9102 = vmatpush2.msra.mxu0 %v6635
      %9103 = vmatprep.subr.mxu0 %v6634
      %9104 = vmatpush2.msra.mxu0 %v6633
      %9105 = vmatprep.subr.mxu0 %v6632
      %9106 = vmatpush2.msra.mxu0 %v6631
      %9107 = vmatprep.subr.mxu0 %v6630
      %9108 = vmatpush2.msra.mxu0 %v6629
      %9109 = vmatprep.subr.mxu0 %v6628
      %9110 = vmatpush2.msra.mxu0 %v6627
      %9111 = vmatprep.subr.mxu0 %v6626
      %9112 = vmatpush2.msra.mxu0 %v6625
      %9113 = vmatprep.subr.mxu0 %v6624
      %9114 = vmatpush2.msra.mxu0 %v6623
      %9115 = vmatprep.subr.mxu0 %v6622
      %9116 = vmatpush2.msra.mxu0 %v6621
      %9117 = vmatprep.mubr.f32.mxu0 %v8834
      %9118 = vmatmul.mubr.f32.gmra.mxu0 %v8833
      %v9119 = vpop.f32.mrf.mxu0
      %v9120 = vadd.f32 %v6779, %v9119
      %v9121 = vpop.f32.mrf.mxu0
      %v9122 = vadd.f32 %v6783, %v9121
      %9123 = vdwg.mxu0
      %9124 = vmatprep.subr.mxu0 %v6684
      %9125 = vmatpush1.msra.mxu0 %v6683
      %9126 = vmatprep.subr.mxu0 %v6682
      %9127 = vmatpush1.msra.mxu0 %v6681
      %9128 = vmatprep.subr.mxu0 %v6680
      %9129 = vmatpush1.msra.mxu0 %v6679
      %9130 = vmatprep.subr.mxu0 %v6678
      %9131 = vmatpush1.msra.mxu0 %v6677
      %9132 = vmatprep.subr.mxu0 %v6676
      %9133 = vmatpush1.msra.mxu0 %v6675
      %9134 = vmatprep.subr.mxu0 %v6674
      %9135 = vmatpush1.msra.mxu0 %v6673
      %9136 = vmatprep.subr.mxu0 %v6672
      %9137 = vmatpush1.msra.mxu0 %v6671
      %9138 = vmatprep.subr.mxu0 %v6670
      %9139 = vmatpush1.msra.mxu0 %v6669
      %9140 = vmatprep.subr.mxu0 %v6668
      %9141 = vmatpush1.msra.mxu0 %v6667
      %9142 = vmatprep.subr.mxu0 %v6666
      %9143 = vmatpush1.msra.mxu0 %v6665
      %9144 = vmatprep.subr.mxu0 %v6664
      %9145 = vmatpush1.msra.mxu0 %v6663
      %9146 = vmatprep.subr.mxu0 %v6662
      %9147 = vmatpush1.msra.mxu0 %v6661
      %9148 = vmatprep.subr.mxu0 %v6660
      %9149 = vmatpush1.msra.mxu0 %v6659
      %9150 = vmatprep.subr.mxu0 %v6658
      %9151 = vmatpush1.msra.mxu0 %v6657
      %9152 = vmatprep.subr.mxu0 %v6656
      %9153 = vmatpush1.msra.mxu0 %v6655
      %9154 = vmatprep.subr.mxu0 %v6654
      %9155 = vmatpush1.msra.mxu0 %v6653
      %9156 = vmatprep.subr.mxu0 %v6716
      %9157 = vmatpush2.msra.mxu0 %v6715
      %9158 = vmatprep.subr.mxu0 %v6714
      %9159 = vmatpush2.msra.mxu0 %v6713
      %9160 = vmatprep.subr.mxu0 %v6712
      %9161 = vmatpush2.msra.mxu0 %v6711
      %9162 = vmatprep.subr.mxu0 %v6710
      %9163 = vmatpush2.msra.mxu0 %v6709
      %9164 = vmatprep.subr.mxu0 %v6708
      %9165 = vmatpush2.msra.mxu0 %v6707
      %9166 = vmatprep.subr.mxu0 %v6706
      %9167 = vmatpush2.msra.mxu0 %v6705
      %9168 = vmatprep.subr.mxu0 %v6704
      %9169 = vmatpush2.msra.mxu0 %v6703
      %9170 = vmatprep.subr.mxu0 %v6702
      %9171 = vmatpush2.msra.mxu0 %v6701
      %9172 = vmatprep.subr.mxu0 %v6700
      %9173 = vmatpush2.msra.mxu0 %v6699
      %9174 = vmatprep.subr.mxu0 %v6698
      %9175 = vmatpush2.msra.mxu0 %v6697
      %9176 = vmatprep.subr.mxu0 %v6696
      %9177 = vmatpush2.msra.mxu0 %v6695
      %9178 = vmatprep.subr.mxu0 %v6694
      %9179 = vmatpush2.msra.mxu0 %v6693
      %9180 = vmatprep.subr.mxu0 %v6692
      %9181 = vmatpush2.msra.mxu0 %v6691
      %9182 = vmatprep.subr.mxu0 %v6690
      %9183 = vmatpush2.msra.mxu0 %v6689
      %9184 = vmatprep.subr.mxu0 %v6688
      %9185 = vmatpush2.msra.mxu0 %v6687
      %9186 = vmatprep.subr.mxu0 %v6686
      %9187 = vmatpush2.msra.mxu0 %v6685
      %9188 = vmatprep.mubr.f32.mxu0 %v8836
      %9189 = vmatmul.mubr.f32.gmra.mxu0 %v8835
      %v9190 = vpop.f32.mrf.mxu0
      %v9191 = vadd.f32 %v9120, %v9190
      %v9192 = vpop.f32.mrf.mxu0
      %v9193 = vadd.f32 %v9122, %v9192
      %9194 = vdwg.mxu0
      %9195 = vmatprep.subr.mxu0 %v6748
      %9196 = vmatpush1.msra.mxu0 %v6747
      %9197 = vmatprep.subr.mxu0 %v6746
      %9198 = vmatpush1.msra.mxu0 %v6745
      %9199 = vmatprep.subr.mxu0 %v6744
      %9200 = vmatpush1.msra.mxu0 %v6743
      %9201 = vmatprep.subr.mxu0 %v6742
      %9202 = vmatpush1.msra.mxu0 %v6741
      %9203 = vmatprep.subr.mxu0 %v6740
      %9204 = vmatpush1.msra.mxu0 %v6739
      %9205 = vmatprep.subr.mxu0 %v6738
      %9206 = vmatpush1.msra.mxu0 %v6737
      %9207 = vmatprep.subr.mxu0 %v6736
      %9208 = vmatpush1.msra.mxu0 %v6735
      %9209 = vmatprep.subr.mxu0 %v6734
      %9210 = vmatpush1.msra.mxu0 %v6733
      %9211 = vmatprep.subr.mxu0 %v6732
      %9212 = vmatpush1.msra.mxu0 %v6731
      %9213 = vmatprep.subr.mxu0 %v6730
      %9214 = vmatpush1.msra.mxu0 %v6729
      %9215 = vmatprep.subr.mxu0 %v6728
      %9216 = vmatpush1.msra.mxu0 %v6727
      %9217 = vmatprep.subr.mxu0 %v6726
      %9218 = vmatpush1.msra.mxu0 %v6725
      %9219 = vmatprep.subr.mxu0 %v6724
      %9220 = vmatpush1.msra.mxu0 %v6723
      %9221 = vmatprep.subr.mxu0 %v6722
      %9222 = vmatpush1.msra.mxu0 %v6721
      %9223 = vmatprep.subr.mxu0 %v6720
      %9224 = vmatpush1.msra.mxu0 %v6719
      %9225 = vmatprep.subr.mxu0 %v6718
      %9226 = vmatpush1.msra.mxu0 %v6717
      %9227 = vmatprep.subr.mxu0 0.0
      %9228 = vmatpush2.msra.mxu0 0.0
      %9229 = vmatprep.subr.mxu0 0.0
      %9230 = vmatpush2.msra.mxu0 0.0
      %9231 = vmatprep.subr.mxu0 0.0
      %9232 = vmatpush2.msra.mxu0 0.0
      %9233 = vmatprep.subr.mxu0 0.0
      %9234 = vmatpush2.msra.mxu0 0.0
      %9235 = vmatprep.subr.mxu0 0.0
      %9236 = vmatpush2.msra.mxu0 0.0
      %9237 = vmatprep.subr.mxu0 0.0
      %9238 = vmatpush2.msra.mxu0 0.0
      %9239 = vmatprep.subr.mxu0 0.0
      %9240 = vmatpush2.msra.mxu0 0.0
      %9241 = vmatprep.subr.mxu0 0.0
      %9242 = vmatpush2.msra.mxu0 0.0
      %9243 = vmatprep.subr.mxu0 0.0
      %9244 = vmatpush2.msra.mxu0 0.0
      %9245 = vmatprep.subr.mxu0 0.0
      %9246 = vmatpush2.msra.mxu0 0.0
      %9247 = vmatprep.subr.mxu0 0.0
      %9248 = vmatpush2.msra.mxu0 0.0
      %9249 = vmatprep.subr.mxu0 0.0
      %9250 = vmatpush2.msra.mxu0 0.0
      %9251 = vmatprep.subr.mxu0 0.0
      %9252 = vmatpush2.msra.mxu0 0.0
      %9253 = vmatprep.subr.mxu0 0.0
      %9254 = vmatpush2.msra.mxu0 0.0
      %9255 = vmatprep.subr.mxu0 0.0
      %9256 = vmatpush2.msra.mxu0 0.0
      %9257 = vmatprep.subr.mxu0 0.0
      %9258 = vmatpush2.msra.mxu0 0.0
      %9259 = vmatprep.mubr.f32.mxu0 0.0
      %9260 = vmatmul.mubr.f32.gmra.mxu0 %v9052
      %v9261 = vpop.f32.mrf.mxu0
      %v9262 = vadd.f32 %v9191, %v9261
      %v9263 = vpop.f32.mrf.mxu0
      %v9264 = vadd.f32 %v9193, %v9263
      %9265 = vdwg.mxu0
      %v9266 = vtanh.pop %v9262
      %v9267 = vtanh.pop %v9264
      %v9268 = vadd.f32 %v9050, %v9266
      %v9269 = vadd.f32 %v9051, %v9267
      %v9271 = vsel %vm673, %v9269, 0
      %9273 = vmatprep.subr.mxu0 0.0
      %9274 = vmatpush1.msra.mxu0 %v6765
      %9275 = vmatprep.subr.mxu0 0.0
      %9276 = vmatpush1.msra.mxu0 %v6764
      %9277 = vmatprep.subr.mxu0 0.0
      %9278 = vmatpush1.msra.mxu0 %v6763
      %9279 = vmatprep.subr.mxu0 0.0
      %9280 = vmatpush1.msra.mxu0 %v6762
      %9281 = vmatprep.subr.mxu0 0.0
      %9282 = vmatpush1.msra.mxu0 %v6761
      %9283 = vmatprep.subr.mxu0 0.0
      %9284 = vmatpush1.msra.mxu0 %v6760
      %9285 = vmatprep.subr.mxu0 0.0
      %9286 = vmatpush1.msra.mxu0 %v6759
      %9287 = vmatprep.subr.mxu0 0.0
      %9288 = vmatpush1.msra.mxu0 %v6758
      %9289 = vmatprep.subr.mxu0 0.0
      %9290 = vmatpush1.msra.mxu0 %v6757
      %9291 = vmatprep.subr.mxu0 0.0
      %9292 = vmatpush1.msra.mxu0 %v6756
      %9293 = vmatprep.subr.mxu0 0.0
      %9294 = vmatpush1.msra.mxu0 %v6755
      %9295 = vmatprep.subr.mxu0 0.0
      %9296 = vmatpush1.msra.mxu0 %v6754
      %9297 = vmatprep.subr.mxu0 0.0
      %9298 = vmatpush1.msra.mxu0 %v6753
      %9299 = vmatprep.subr.mxu0 0.0
      %9300 = vmatpush1.msra.mxu0 %v6752
      %9301 = vmatprep.subr.mxu0 0.0
      %9302 = vmatpush1.msra.mxu0 %v6751
      %9303 = vmatprep.subr.mxu0 0.0
      %9304 = vmatpush1.msra.mxu0 %v6750
      %9305 = vmatprep.subr.mxu0 0.0
      %9306 = vmatpush2.msra.mxu0 0.0
      %9307 = vmatprep.subr.mxu0 0.0
      %9308 = vmatpush2.msra.mxu0 0.0
      %9309 = vmatprep.subr.mxu0 0.0
      %9310 = vmatpush2.msra.mxu0 0.0
      %9311 = vmatprep.subr.mxu0 0.0
      %9312 = vmatpush2.msra.mxu0 0.0
      %9313 = vmatprep.subr.mxu0 0.0
      %9314 = vmatpush2.msra.mxu0 0.0
      %9315 = vmatprep.subr.mxu0 0.0
      %9316 = vmatpush2.msra.mxu0 0.0
      %9317 = vmatprep.subr.mxu0 0.0
      %9318 = vmatpush2.msra.mxu0 0.0
      %9319 = vmatprep.subr.mxu0 0.0
      %9320 = vmatpush2.msra.mxu0 0.0
      %9321 = vmatprep.subr.mxu0 0.0
      %9322 = vmatpush2.msra.mxu0 0.0
      %9323 = vmatprep.subr.mxu0 0.0
      %9324 = vmatpush2.msra.mxu0 0.0
      %9325 = vmatprep.subr.mxu0 0.0
      %9326 = vmatpush2.msra.mxu0 0.0
      %9327 = vmatprep.subr.mxu0 0.0
      %9328 = vmatpush2.msra.mxu0 0.0
      %9329 = vmatprep.subr.mxu0 0.0
      %9330 = vmatpush2.msra.mxu0 %v6769
      %9331 = vmatprep.subr.mxu0 0.0
      %9332 = vmatpush2.msra.mxu0 %v6768
      %9333 = vmatprep.subr.mxu0 0.0
      %9334 = vmatpush2.msra.mxu0 %v6767
      %9335 = vmatprep.subr.mxu0 0.0
      %9336 = vmatpush2.msra.mxu0 %v6766
      %9337 = vmatprep.mubr.f32.mxu0 %v9271
      %9338 = vmatmul.mubr.f32.gmra.mxu0 %v9268
      %v9339 = vpop.f32.mrf.mxu0
      %v9340 = vadd.f32 0.0, %v9339
      %v9341 = vpop.f32.mrf.mxu0
      %9342 = vdwg.mxu0
      %s9343 = scalar_lea.vmem [#allocation3], 32
      %9344 = vst [vmem:[%s9343] sm:$0xff] %v9340
      %v9345 = vld [vmem:[#allocation3] sm:$0xff]
      %v9346 = vld [vmem:[%s7804] sm:$0xff]
      %v9347 = vld [vmem:[%s8317] sm:$0xff]
      %v9348 = vld [vmem:[%s8830] sm:$0xff]
      %v9349 = vld [vmem:[%s9343] sm:$0xff]
      %v9350 = vld [vmem:[%s7] sm:$0xff]
      %v9351 = vld [vmem:[%s7 + $0x8] sm:$0xff]
      %v9352 = vld [vmem:[%s7 + $0x10] sm:$0xff]
      %v9353 = vld [vmem:[%s7 + $0x18] sm:$0xff]
      %v9354 = vld [vmem:[%s7 + $0x20] sm:$0xff]
      %v9355 = vld [vmem:[%s7 + $0x28] sm:$0xff]
      %v9356 = vld [vmem:[%s7 + $0x30] sm:$0xff]
      %v9357 = vld [vmem:[%s7 + $0x38] sm:$0xff]
      %v9358 = vld [vmem:[%s7 + $0x40] sm:$0xff]
      %v9359 = vld [vmem:[%s7 + $0x48] sm:$0xff]
      %v9360 = vld [vmem:[%s7 + $0x50] sm:$0xff]
      %v9361 = vld [vmem:[%s7 + $0x58] sm:$0xff]
      %v9362 = vld [vmem:[%s7 + $0x60] sm:$0xff]
      %v9363 = vld [vmem:[%s7 + $0x68] sm:$0xff]
      %v9364 = vld [vmem:[%s7 + $0x70] sm:$0xff]
      %v9365 = vld [vmem:[%s7 + $0x78] sm:$0xff]
      %v9366 = vld [vmem:[%s7 + $0x80] sm:$0xff]
      %v9367 = vld [vmem:[%s7 + $0x88] sm:$0xff]
      %v9368 = vld [vmem:[%s7 + $0x90] sm:$0xff]
      %v9369 = vld [vmem:[%s7 + $0x98] sm:$0xff]
      %v9370 = vld [vmem:[%s7 + $0xa0] sm:$0xff]
      %v9371 = vld [vmem:[%s7 + $0xa8] sm:$0xff]
      %v9372 = vld [vmem:[%s7 + $0xb0] sm:$0xff]
      %v9373 = vld [vmem:[%s7 + $0xb8] sm:$0xff]
      %v9374 = vld [vmem:[%s7 + $0xc0] sm:$0xff]
      %v9375 = vld [vmem:[%s7 + $0xc8] sm:$0xff]
      %v9376 = vld [vmem:[%s7 + $0xd0] sm:$0xff]
      %v9377 = vld [vmem:[%s7 + $0xd8] sm:$0xff]
      %v9378 = vld [vmem:[%s7 + $0xe0] sm:$0xff]
      %v9379 = vld [vmem:[%s7 + $0xe8] sm:$0xff]
      %v9380 = vld [vmem:[%s7 + $0xf0] sm:$0xff]
      %v9381 = vld [vmem:[%s7 + $0xf8] sm:$0xff]
      %v9382 = vld [vmem:[%s7 + $0x100] sm:$0xff]
      %v9383 = vld [vmem:[%s7 + $0x108] sm:$0xff]
      %v9384 = vld [vmem:[%s7 + $0x110] sm:$0xff]
      %v9385 = vld [vmem:[%s7 + $0x118] sm:$0xff]
      %v9386 = vld [vmem:[%s7 + $0x120] sm:$0xff]
      %v9387 = vld [vmem:[%s7 + $0x128] sm:$0xff]
      %v9388 = vld [vmem:[%s7 + $0x130] sm:$0xff]
      %v9389 = vld [vmem:[%s7 + $0x138] sm:$0xff]
      %v9390 = vld [vmem:[%s7 + $0x140] sm:$0xff]
      %v9391 = vld [vmem:[%s7 + $0x148] sm:$0xff]
      %v9392 = vld [vmem:[%s7 + $0x150] sm:$0xff]
      %v9393 = vld [vmem:[%s7 + $0x158] sm:$0xff]
      %v9394 = vld [vmem:[%s7 + $0x160] sm:$0xff]
      %v9395 = vld [vmem:[%s7 + $0x168] sm:$0xff]
      %v9396 = vld [vmem:[%s7 + $0x170] sm:$0xff]
      %v9397 = vld [vmem:[%s7 + $0x178] sm:$0xff]
      %v9398 = vld [vmem:[%s7 + $0x180] sm:$0xff]
      %v9399 = vld [vmem:[%s7 + $0x188] sm:$0xff]
      %v9400 = vld [vmem:[%s7 + $0x190] sm:$0xff]
      %v9401 = vld [vmem:[%s7 + $0x198] sm:$0xff]
      %v9402 = vld [vmem:[%s7 + $0x1a0] sm:$0xff]
      %v9403 = vld [vmem:[%s7 + $0x1a8] sm:$0xff]
      %v9404 = vld [vmem:[%s7 + $0x1b0] sm:$0xff]
      %v9405 = vld [vmem:[%s7 + $0x1b8] sm:$0xff]
      %v9406 = vld [vmem:[%s7 + $0x1c0] sm:$0xff]
      %v9407 = vld [vmem:[%s7 + $0x1c8] sm:$0xff]
      %v9408 = vld [vmem:[%s7 + $0x1d0] sm:$0xff]
      %v9409 = vld [vmem:[%s7 + $0x1d8] sm:$0xff]
      %v9410 = vld [vmem:[%s7 + $0x1e0] sm:$0xff]
      %v9411 = vld [vmem:[%s7 + $0x1e8] sm:$0xff]
      %v9412 = vld [vmem:[%s7 + $0x1f0] sm:$0xff]
      %v9413 = vld [vmem:[%s7 + $0x1f8] sm:$0xff]
      %v9414 = vld [vmem:[%s7 + $0x200] sm:$0xff]
      %v9415 = vld [vmem:[%s7 + $0x208] sm:$0xff]
      %v9416 = vld [vmem:[%s7 + $0x210] sm:$0xff]
      %v9417 = vld [vmem:[%s7 + $0x218] sm:$0xff]
      %v9418 = vld [vmem:[%s7 + $0x220] sm:$0xff]
      %v9419 = vld [vmem:[%s7 + $0x228] sm:$0xff]
      %v9420 = vld [vmem:[%s7 + $0x230] sm:$0xff]
      %v9421 = vld [vmem:[%s7 + $0x238] sm:$0xff]
      %v9422 = vld [vmem:[%s7 + $0x240] sm:$0xff]
      %v9423 = vld [vmem:[%s7 + $0x248] sm:$0xff]
      %v9424 = vld [vmem:[%s7 + $0x250] sm:$0xff]
      %v9425 = vld [vmem:[%s7 + $0x258] sm:$0xff]
      %v9426 = vld [vmem:[%s7 + $0x260] sm:$0xff]
      %v9427 = vld [vmem:[%s7 + $0x268] sm:$0xff]
      %v9428 = vld [vmem:[%s7 + $0x270] sm:$0xff]
      %v9429 = vld [vmem:[%s7 + $0x278] sm:$0xff]
      %v9430 = vld [vmem:[%s8] sm:$0x1]
      %v9432 = vlaneseq
      %v9433 = vshrl.u32 %v9432, 7
      %v9434 = vsub.s32 0, %v9433
      %v9435 = vrot.slane %v9430, %v9434
      %9437 = vmatprep.subr.mxu0 0.0
      %9438 = vmatpush1.msra.mxu0 %v9365
      %9439 = vmatprep.subr.mxu0 0.0
      %9440 = vmatpush1.msra.mxu0 %v9364
      %9441 = vmatprep.subr.mxu0 0.0
      %9442 = vmatpush1.msra.mxu0 %v9363
      %9443 = vmatprep.subr.mxu0 0.0
      %9444 = vmatpush1.msra.mxu0 %v9362
      %9445 = vmatprep.subr.mxu0 0.0
      %9446 = vmatpush1.msra.mxu0 %v9361
      %9447 = vmatprep.subr.mxu0 0.0
      %9448 = vmatpush1.msra.mxu0 %v9360
      %9449 = vmatprep.subr.mxu0 0.0
      %9450 = vmatpush1.msra.mxu0 %v9359
      %9451 = vmatprep.subr.mxu0 0.0
      %9452 = vmatpush1.msra.mxu0 %v9358
      %9453 = vmatprep.subr.mxu0 0.0
      %9454 = vmatpush1.msra.mxu0 %v9357
      %9455 = vmatprep.subr.mxu0 0.0
      %9456 = vmatpush1.msra.mxu0 %v9356
      %9457 = vmatprep.subr.mxu0 0.0
      %9458 = vmatpush1.msra.mxu0 %v9355
      %9459 = vmatprep.subr.mxu0 0.0
      %9460 = vmatpush1.msra.mxu0 %v9354
      %9461 = vmatprep.subr.mxu0 0.0
      %9462 = vmatpush1.msra.mxu0 %v9353
      %9463 = vmatprep.subr.mxu0 0.0
      %9464 = vmatpush1.msra.mxu0 %v9352
      %9465 = vmatprep.subr.mxu0 0.0
      %9466 = vmatpush1.msra.mxu0 %v9351
      %9467 = vmatprep.subr.mxu0 0.0
      %9468 = vmatpush1.msra.mxu0 %v9350
      %9469 = vmatprep.subr.mxu0 0.0
      %9470 = vmatpush2.msra.mxu0 %v9381
      %9471 = vmatprep.subr.mxu0 0.0
      %9472 = vmatpush2.msra.mxu0 %v9380
      %9473 = vmatprep.subr.mxu0 0.0
      %9474 = vmatpush2.msra.mxu0 %v9379
      %9475 = vmatprep.subr.mxu0 0.0
      %9476 = vmatpush2.msra.mxu0 %v9378
      %9477 = vmatprep.subr.mxu0 0.0
      %9478 = vmatpush2.msra.mxu0 %v9377
      %9479 = vmatprep.subr.mxu0 0.0
      %9480 = vmatpush2.msra.mxu0 %v9376
      %9481 = vmatprep.subr.mxu0 0.0
      %9482 = vmatpush2.msra.mxu0 %v9375
      %9483 = vmatprep.subr.mxu0 0.0
      %9484 = vmatpush2.msra.mxu0 %v9374
      %9485 = vmatprep.subr.mxu0 0.0
      %9486 = vmatpush2.msra.mxu0 %v9373
      %9487 = vmatprep.subr.mxu0 0.0
      %9488 = vmatpush2.msra.mxu0 %v9372
      %9489 = vmatprep.subr.mxu0 0.0
      %9490 = vmatpush2.msra.mxu0 %v9371
      %9491 = vmatprep.subr.mxu0 0.0
      %9492 = vmatpush2.msra.mxu0 %v9370
      %9493 = vmatprep.subr.mxu0 0.0
      %9494 = vmatpush2.msra.mxu0 %v9369
      %9495 = vmatprep.subr.mxu0 0.0
      %9496 = vmatpush2.msra.mxu0 %v9368
      %9497 = vmatprep.subr.mxu0 0.0
      %9498 = vmatpush2.msra.mxu0 %v9367
      %9499 = vmatprep.subr.mxu0 0.0
      %9500 = vmatpush2.msra.mxu0 %v9366
      %9501 = vmatprep.mubr.f32.mxu0 %v9346
      %9502 = vmatmul.mubr.f32.gmra.mxu0 %v9345
      %v9503 = vpop.f32.mrf.mxu0
      %v9504 = vadd.f32 %v9435, %v9503
      %v9505 = vpop.f32.mrf.mxu0
      %9506 = vdwg.mxu0
      %9507 = vmatprep.subr.mxu0 0.0
      %9508 = vmatpush1.msra.mxu0 %v9397
      %9509 = vmatprep.subr.mxu0 0.0
      %9510 = vmatpush1.msra.mxu0 %v9396
      %9511 = vmatprep.subr.mxu0 0.0
      %9512 = vmatpush1.msra.mxu0 %v9395
      %9513 = vmatprep.subr.mxu0 0.0
      %9514 = vmatpush1.msra.mxu0 %v9394
      %9515 = vmatprep.subr.mxu0 0.0
      %9516 = vmatpush1.msra.mxu0 %v9393
      %9517 = vmatprep.subr.mxu0 0.0
      %9518 = vmatpush1.msra.mxu0 %v9392
      %9519 = vmatprep.subr.mxu0 0.0
      %9520 = vmatpush1.msra.mxu0 %v9391
      %9521 = vmatprep.subr.mxu0 0.0
      %9522 = vmatpush1.msra.mxu0 %v9390
      %9523 = vmatprep.subr.mxu0 0.0
      %9524 = vmatpush1.msra.mxu0 %v9389
      %9525 = vmatprep.subr.mxu0 0.0
      %9526 = vmatpush1.msra.mxu0 %v9388
      %9527 = vmatprep.subr.mxu0 0.0
      %9528 = vmatpush1.msra.mxu0 %v9387
      %9529 = vmatprep.subr.mxu0 0.0
      %9530 = vmatpush1.msra.mxu0 %v9386
      %9531 = vmatprep.subr.mxu0 0.0
      %9532 = vmatpush1.msra.mxu0 %v9385
      %9533 = vmatprep.subr.mxu0 0.0
      %9534 = vmatpush1.msra.mxu0 %v9384
      %9535 = vmatprep.subr.mxu0 0.0
      %9536 = vmatpush1.msra.mxu0 %v9383
      %9537 = vmatprep.subr.mxu0 0.0
      %9538 = vmatpush1.msra.mxu0 %v9382
      %9539 = vmatprep.subr.mxu0 0.0
      %9540 = vmatpush2.msra.mxu0 %v9413
      %9541 = vmatprep.subr.mxu0 0.0
      %9542 = vmatpush2.msra.mxu0 %v9412
      %9543 = vmatprep.subr.mxu0 0.0
      %9544 = vmatpush2.msra.mxu0 %v9411
      %9545 = vmatprep.subr.mxu0 0.0
      %9546 = vmatpush2.msra.mxu0 %v9410
      %9547 = vmatprep.subr.mxu0 0.0
      %9548 = vmatpush2.msra.mxu0 %v9409
      %9549 = vmatprep.subr.mxu0 0.0
      %9550 = vmatpush2.msra.mxu0 %v9408
      %9551 = vmatprep.subr.mxu0 0.0
      %9552 = vmatpush2.msra.mxu0 %v9407
      %9553 = vmatprep.subr.mxu0 0.0
      %9554 = vmatpush2.msra.mxu0 %v9406
      %9555 = vmatprep.subr.mxu0 0.0
      %9556 = vmatpush2.msra.mxu0 %v9405
      %9557 = vmatprep.subr.mxu0 0.0
      %9558 = vmatpush2.msra.mxu0 %v9404
      %9559 = vmatprep.subr.mxu0 0.0
      %9560 = vmatpush2.msra.mxu0 %v9403
      %9561 = vmatprep.subr.mxu0 0.0
      %9562 = vmatpush2.msra.mxu0 %v9402
      %9563 = vmatprep.subr.mxu0 0.0
      %9564 = vmatpush2.msra.mxu0 %v9401
      %9565 = vmatprep.subr.mxu0 0.0
      %9566 = vmatpush2.msra.mxu0 %v9400
      %9567 = vmatprep.subr.mxu0 0.0
      %9568 = vmatpush2.msra.mxu0 %v9399
      %9569 = vmatprep.subr.mxu0 0.0
      %9570 = vmatpush2.msra.mxu0 %v9398
      %9571 = vmatprep.mubr.f32.mxu0 %v9348
      %9572 = vmatmul.mubr.f32.gmra.mxu0 %v9347
      %v9573 = vpop.f32.mrf.mxu0
      %v9574 = vadd.f32 %v9504, %v9573
      %v9575 = vpop.f32.mrf.mxu0
      %9576 = vdwg.mxu0
      %9577 = vmatprep.subr.mxu0 0.0
      %9578 = vmatpush1.msra.mxu0 %v9429
      %9579 = vmatprep.subr.mxu0 0.0
      %9580 = vmatpush1.msra.mxu0 %v9428
      %9581 = vmatprep.subr.mxu0 0.0
      %9582 = vmatpush1.msra.mxu0 %v9427
      %9583 = vmatprep.subr.mxu0 0.0
      %9584 = vmatpush1.msra.mxu0 %v9426
      %9585 = vmatprep.subr.mxu0 0.0
      %9586 = vmatpush1.msra.mxu0 %v9425
      %9587 = vmatprep.subr.mxu0 0.0
      %9588 = vmatpush1.msra.mxu0 %v9424
      %9589 = vmatprep.subr.mxu0 0.0
      %9590 = vmatpush1.msra.mxu0 %v9423
      %9591 = vmatprep.subr.mxu0 0.0
      %9592 = vmatpush1.msra.mxu0 %v9422
      %9593 = vmatprep.subr.mxu0 0.0
      %9594 = vmatpush1.msra.mxu0 %v9421
      %9595 = vmatprep.subr.mxu0 0.0
      %9596 = vmatpush1.msra.mxu0 %v9420
      %9597 = vmatprep.subr.mxu0 0.0
      %9598 = vmatpush1.msra.mxu0 %v9419
      %9599 = vmatprep.subr.mxu0 0.0
      %9600 = vmatpush1.msra.mxu0 %v9418
      %9601 = vmatprep.subr.mxu0 0.0
      %9602 = vmatpush1.msra.mxu0 %v9417
      %9603 = vmatprep.subr.mxu0 0.0
      %9604 = vmatpush1.msra.mxu0 %v9416
      %9605 = vmatprep.subr.mxu0 0.0
      %9606 = vmatpush1.msra.mxu0 %v9415
      %9607 = vmatprep.subr.mxu0 0.0
      %9608 = vmatpush1.msra.mxu0 %v9414
      %9609 = vmatprep.subr.mxu0 0.0
      %9610 = vmatpush2.msra.mxu0 0.0
      %9611 = vmatprep.subr.mxu0 0.0
      %9612 = vmatpush2.msra.mxu0 0.0
      %9613 = vmatprep.subr.mxu0 0.0
      %9614 = vmatpush2.msra.mxu0 0.0
      %9615 = vmatprep.subr.mxu0 0.0
      %9616 = vmatpush2.msra.mxu0 0.0
      %9617 = vmatprep.subr.mxu0 0.0
      %9618 = vmatpush2.msra.mxu0 0.0
      %9619 = vmatprep.subr.mxu0 0.0
      %9620 = vmatpush2.msra.mxu0 0.0
      %9621 = vmatprep.subr.mxu0 0.0
      %9622 = vmatpush2.msra.mxu0 0.0
      %9623 = vmatprep.subr.mxu0 0.0
      %9624 = vmatpush2.msra.mxu0 0.0
      %9625 = vmatprep.subr.mxu0 0.0
      %9626 = vmatpush2.msra.mxu0 0.0
      %9627 = vmatprep.subr.mxu0 0.0
      %9628 = vmatpush2.msra.mxu0 0.0
      %9629 = vmatprep.subr.mxu0 0.0
      %9630 = vmatpush2.msra.mxu0 0.0
      %9631 = vmatprep.subr.mxu0 0.0
      %9632 = vmatpush2.msra.mxu0 0.0
      %9633 = vmatprep.subr.mxu0 0.0
      %9634 = vmatpush2.msra.mxu0 0.0
      %9635 = vmatprep.subr.mxu0 0.0
      %9636 = vmatpush2.msra.mxu0 0.0
      %9637 = vmatprep.subr.mxu0 0.0
      %9638 = vmatpush2.msra.mxu0 0.0
      %9639 = vmatprep.subr.mxu0 0.0
      %9640 = vmatpush2.msra.mxu0 0.0
      %9641 = vmatprep.mubr.f32.mxu0 0.0
      %9642 = vmatmul.mubr.f32.gmra.mxu0 %v9349
      %v9643 = vpop.f32.mrf.mxu0
      %v9644 = vadd.f32 %v9574, %v9643
      %v9645 = vpop.f32.mrf.mxu0
      %9646 = vdwg.mxu0
      %v9647 = vtanh.pop %v9644
      %v9648 = vld [vmem:[%s9] sm:$0xff]
      %v9649 = vld [vmem:[%s9 + $0x8] sm:$0xff]
      %v9650 = vld [vmem:[%s9 + $0x10] sm:$0xff]
      %v9651 = vld [vmem:[%s9 + $0x18] sm:$0xff]
      %v9652 = vld [vmem:[%s9 + $0x20] sm:$0xff]
      %v9653 = vld [vmem:[%s9 + $0x28] sm:$0xff]
      %v9654 = vld [vmem:[%s9 + $0x30] sm:$0xff]
      %v9655 = vld [vmem:[%s9 + $0x38] sm:$0xff]
      %v9656 = vld [vmem:[%s9 + $0x40] sm:$0xff]
      %v9657 = vld [vmem:[%s9 + $0x48] sm:$0xff]
      %v9658 = vld [vmem:[%s9 + $0x50] sm:$0xff]
      %v9659 = vld [vmem:[%s9 + $0x58] sm:$0xff]
      %v9660 = vld [vmem:[%s9 + $0x60] sm:$0xff]
      %v9661 = vld [vmem:[%s9 + $0x68] sm:$0xff]
      %v9662 = vld [vmem:[%s9 + $0x70] sm:$0xff]
      %v9663 = vld [vmem:[%s9 + $0x78] sm:$0xff]
      %v9664 = vld [vmem:[%s10] sm:$0x1]
      %v9666 = vlaneseq
      %v9667 = vshrl.u32 %v9666, 7
      %v9668 = vsub.s32 0, %v9667
      %v9669 = vrot.slane %v9664, %v9668
      %9671 = vmatprep.subr.mxu0 0.0
      %9672 = vmatpush1.msra.mxu0 %v9663
      %9673 = vmatprep.subr.mxu0 0.0
      %9674 = vmatpush1.msra.mxu0 %v9662
      %9675 = vmatprep.subr.mxu0 0.0
      %9676 = vmatpush1.msra.mxu0 %v9661
      %9677 = vmatprep.subr.mxu0 0.0
      %9678 = vmatpush1.msra.mxu0 %v9660
      %9679 = vmatprep.subr.mxu0 0.0
      %9680 = vmatpush1.msra.mxu0 %v9659
      %9681 = vmatprep.subr.mxu0 0.0
      %9682 = vmatpush1.msra.mxu0 %v9658
      %9683 = vmatprep.subr.mxu0 0.0
      %9684 = vmatpush1.msra.mxu0 %v9657
      %9685 = vmatprep.subr.mxu0 0.0
      %9686 = vmatpush1.msra.mxu0 %v9656
      %9687 = vmatprep.subr.mxu0 0.0
      %9688 = vmatpush1.msra.mxu0 %v9655
      %9689 = vmatprep.subr.mxu0 0.0
      %9690 = vmatpush1.msra.mxu0 %v9654
      %9691 = vmatprep.subr.mxu0 0.0
      %9692 = vmatpush1.msra.mxu0 %v9653
      %9693 = vmatprep.subr.mxu0 0.0
      %9694 = vmatpush1.msra.mxu0 %v9652
      %9695 = vmatprep.subr.mxu0 0.0
      %9696 = vmatpush1.msra.mxu0 %v9651
      %9697 = vmatprep.subr.mxu0 0.0
      %9698 = vmatpush1.msra.mxu0 %v9650
      %9699 = vmatprep.subr.mxu0 0.0
      %9700 = vmatpush1.msra.mxu0 %v9649
      %9701 = vmatprep.subr.mxu0 0.0
      %9702 = vmatpush1.msra.mxu0 %v9648
      %9703 = vmatprep.subr.mxu0 0.0
      %9704 = vmatpush2.msra.mxu0 0.0
      %9705 = vmatprep.subr.mxu0 0.0
      %9706 = vmatpush2.msra.mxu0 0.0
      %9707 = vmatprep.subr.mxu0 0.0
      %9708 = vmatpush2.msra.mxu0 0.0
      %9709 = vmatprep.subr.mxu0 0.0
      %9710 = vmatpush2.msra.mxu0 0.0
      %9711 = vmatprep.subr.mxu0 0.0
      %9712 = vmatpush2.msra.mxu0 0.0
      %9713 = vmatprep.subr.mxu0 0.0
      %9714 = vmatpush2.msra.mxu0 0.0
      %9715 = vmatprep.subr.mxu0 0.0
      %9716 = vmatpush2.msra.mxu0 0.0
      %9717 = vmatprep.subr.mxu0 0.0
      %9718 = vmatpush2.msra.mxu0 0.0
      %9719 = vmatprep.subr.mxu0 0.0
      %9720 = vmatpush2.msra.mxu0 0.0
      %9721 = vmatprep.subr.mxu0 0.0
      %9722 = vmatpush2.msra.mxu0 0.0
      %9723 = vmatprep.subr.mxu0 0.0
      %9724 = vmatpush2.msra.mxu0 0.0
      %9725 = vmatprep.subr.mxu0 0.0
      %9726 = vmatpush2.msra.mxu0 0.0
      %9727 = vmatprep.subr.mxu0 0.0
      %9728 = vmatpush2.msra.mxu0 0.0
      %9729 = vmatprep.subr.mxu0 0.0
      %9730 = vmatpush2.msra.mxu0 0.0
      %9731 = vmatprep.subr.mxu0 0.0
      %9732 = vmatpush2.msra.mxu0 0.0
      %9733 = vmatprep.subr.mxu0 0.0
      %9734 = vmatpush2.msra.mxu0 0.0
      %9735 = vmatprep.mubr.f32.mxu0 0.0
      %9736 = vmatmul.mubr.f32.gmra.mxu0 %v9647
      %v9737 = vpop.f32.mrf.mxu0
      %v9738 = vadd.f32 %v9669, %v9737
      %v9739 = vpop.f32.mrf.mxu0
      %9740 = vdwg.mxu0
      %v9741 = vtanh.pop %v9738
      %v9742 = vld [vmem:[%s11] sm:$0xff]
      %v9743 = vld [vmem:[%s11 + $0x8] sm:$0xff]
      %v9744 = vld [vmem:[%s11 + $0x10] sm:$0xff]
      %v9745 = vld [vmem:[%s11 + $0x18] sm:$0xff]
      %v9746 = vld [vmem:[%s11 + $0x20] sm:$0xff]
      %v9747 = vld [vmem:[%s11 + $0x28] sm:$0xff]
      %v9748 = vld [vmem:[%s11 + $0x30] sm:$0xff]
      %v9749 = vld [vmem:[%s11 + $0x38] sm:$0xff]
      %v9750 = vld [vmem:[%s11 + $0x40] sm:$0xff]
      %v9751 = vld [vmem:[%s11 + $0x48] sm:$0xff]
      %v9752 = vld [vmem:[%s11 + $0x50] sm:$0xff]
      %v9753 = vld [vmem:[%s11 + $0x58] sm:$0xff]
      %v9754 = vld [vmem:[%s11 + $0x60] sm:$0xff]
      %v9755 = vld [vmem:[%s11 + $0x68] sm:$0xff]
      %v9756 = vld [vmem:[%s11 + $0x70] sm:$0xff]
      %v9757 = vld [vmem:[%s11 + $0x78] sm:$0xff]
      %v9758 = vld [vmem:[%s12] sm:$0x1]
      %v9760 = vlaneseq
      %v9761 = vshrl.u32 %v9760, 7
      %v9762 = vsub.s32 0, %v9761
      %v9763 = vrot.slane %v9758, %v9762
      %9765 = vmatprep.subr.mxu0 0.0
      %9766 = vmatpush1.msra.mxu0 %v9757
      %9767 = vmatprep.subr.mxu0 0.0
      %9768 = vmatpush1.msra.mxu0 %v9756
      %9769 = vmatprep.subr.mxu0 0.0
      %9770 = vmatpush1.msra.mxu0 %v9755
      %9771 = vmatprep.subr.mxu0 0.0
      %9772 = vmatpush1.msra.mxu0 %v9754
      %9773 = vmatprep.subr.mxu0 0.0
      %9774 = vmatpush1.msra.mxu0 %v9753
      %9775 = vmatprep.subr.mxu0 0.0
      %9776 = vmatpush1.msra.mxu0 %v9752
      %9777 = vmatprep.subr.mxu0 0.0
      %9778 = vmatpush1.msra.mxu0 %v9751
      %9779 = vmatprep.subr.mxu0 0.0
      %9780 = vmatpush1.msra.mxu0 %v9750
      %9781 = vmatprep.subr.mxu0 0.0
      %9782 = vmatpush1.msra.mxu0 %v9749
      %9783 = vmatprep.subr.mxu0 0.0
      %9784 = vmatpush1.msra.mxu0 %v9748
      %9785 = vmatprep.subr.mxu0 0.0
      %9786 = vmatpush1.msra.mxu0 %v9747
      %9787 = vmatprep.subr.mxu0 0.0
      %9788 = vmatpush1.msra.mxu0 %v9746
      %9789 = vmatprep.subr.mxu0 0.0
      %9790 = vmatpush1.msra.mxu0 %v9745
      %9791 = vmatprep.subr.mxu0 0.0
      %9792 = vmatpush1.msra.mxu0 %v9744
      %9793 = vmatprep.subr.mxu0 0.0
      %9794 = vmatpush1.msra.mxu0 %v9743
      %9795 = vmatprep.subr.mxu0 0.0
      %9796 = vmatpush1.msra.mxu0 %v9742
      %9797 = vmatprep.subr.mxu0 0.0
      %9798 = vmatpush2.msra.mxu0 0.0
      %9799 = vmatprep.subr.mxu0 0.0
      %9800 = vmatpush2.msra.mxu0 0.0
      %9801 = vmatprep.subr.mxu0 0.0
      %9802 = vmatpush2.msra.mxu0 0.0
      %9803 = vmatprep.subr.mxu0 0.0
      %9804 = vmatpush2.msra.mxu0 0.0
      %9805 = vmatprep.subr.mxu0 0.0
      %9806 = vmatpush2.msra.mxu0 0.0
      %9807 = vmatprep.subr.mxu0 0.0
      %9808 = vmatpush2.msra.mxu0 0.0
      %9809 = vmatprep.subr.mxu0 0.0
      %9810 = vmatpush2.msra.mxu0 0.0
      %9811 = vmatprep.subr.mxu0 0.0
      %9812 = vmatpush2.msra.mxu0 0.0
      %9813 = vmatprep.subr.mxu0 0.0
      %9814 = vmatpush2.msra.mxu0 0.0
      %9815 = vmatprep.subr.mxu0 0.0
      %9816 = vmatpush2.msra.mxu0 0.0
      %9817 = vmatprep.subr.mxu0 0.0
      %9818 = vmatpush2.msra.mxu0 0.0
      %9819 = vmatprep.subr.mxu0 0.0
      %9820 = vmatpush2.msra.mxu0 0.0
      %9821 = vmatprep.subr.mxu0 0.0
      %9822 = vmatpush2.msra.mxu0 0.0
      %9823 = vmatprep.subr.mxu0 0.0
      %9824 = vmatpush2.msra.mxu0 0.0
      %9825 = vmatprep.subr.mxu0 0.0
      %9826 = vmatpush2.msra.mxu0 0.0
      %9827 = vmatprep.subr.mxu0 0.0
      %9828 = vmatpush2.msra.mxu0 0.0
      %9829 = vmatprep.mubr.f32.mxu0 0.0
      %9830 = vmatmul.mubr.f32.gmra.mxu0 %v9741
      %v9831 = vpop.f32.mrf.mxu0
      %v9832 = vadd.f32 %v9763, %v9831
      %v9833 = vpop.f32.mrf.mxu0
      %9834 = vdwg.mxu0
      %9835 = vst [vmem:[%s443] sm:$0xff] %v9832
      %p9836 = scmp.lt.s32.totalorder %s24, 1
      %s9837 = scalar_select %p9836, %s24, 1
      %s9838 = smul.addr %s9837, 8
      %s9839 = scalar_lea.vmem %s13, %s9838
      // Predicated region
      $region73: #{lenet5_forward.1} parent=71 // pred_check
        %p9840 = pneg %p320
      $region74: #{lenet5_forward.1} parent=71 // pred_check_branch
        %9842 = sbr.rel (%p9840) target = $region76
      $region75: #{lenet5_forward.1} parent=71 // pred_region
        _
      $region76: #{lenet5_forward.1} parent=71 // pred_fallthru
        _
    $region72: #{lenet5_forward.1} parent=5 // pred_fallthru
      _
    %p9843 = scmp.le.s32.totalorder 2, %s19
    // Predicated region
    $region77: #{lenet5_forward.1} parent=5 // pred_check
      %p9844 = pneg %p9843
    $region78: #{lenet5_forward.1} parent=5 // pred_check_branch
      %9846 = sbr.rel (%p9844) target = $region80
    $region79: #{lenet5_forward.1} parent=5 // pred_region
      %s9847 = ssub.s32 %s19, 2
      // Predicated region
      $region81: #{lenet5_forward.1} parent=79 // pred_check
        %p9848 = pneg %p326
      $region82: #{lenet5_forward.1} parent=79 // pred_check_branch
        %9850 = sbr.rel (%p9848) target = $region84
      $region83: #{lenet5_forward.1} parent=79 // pred_region
        %p9851 = scmp.lt.s32.totalorder %s25, 1
        %s9852 = scalar_select %p9851, %s25, 1
        %s9853 = smul.addr %s9852, 8
        %s9854 = scalar_lea.vmem %s13, %s9853
      $region84: #{lenet5_forward.1} parent=79 // pred_fallthru
        _
    $region80: #{lenet5_forward.1} parent=5 // pred_fallthru
      _
  $region6: #{lenet5_forward.1} parent=0 // loop_footer
    %s23 = sadd.s32 1, %s19
  $region7: #{lenet5_forward.1} parent=0 // loop_footer_branch
    %18 = sbr.rel target = $region3
  $region8: #{lenet5_forward.1} parent=0 // loop_exit
    _

</llo_original>
